<compile_context>
chip_gen: v7x
topology: tpu7x:2x2x1
jax: 0.10.0
libtpu: 0.0.40
codegen_flags: <defaults>
</compile_context>

<pallas_src>
import functools

import jax
import jax.numpy as jnp
from jax import lax
from jax.experimental import pallas as pl
from jax.experimental.pallas import tpu as pltpu


def local_sa_kernel(x_ref, w_ref, avg_ref, gamma_ref, beta_ref, emb_ref, mask_ref,
                    o_ref, taps_ref, *, heads, kk, vv, W, m):
    N = x_ref.shape[-1]                       # H*W (static)
    cq = heads * kk
    r = m // 2

    x = x_ref[0]                              # (Cin, N) bf16

    # ---- fused 1x1 convolutions (q|k|v) as ONE MXU matmul (bf16 operands, f32 acc) ----
    y = jnp.dot(w_ref[...], x, preferred_element_type=jnp.float32)          # (C, N) f32

    # ---- fused GroupNorm over all q/k/v channels (block-diag averaging matrix input) ----
    ch_sum = jnp.sum(y, axis=1, keepdims=True)                              # (C, 1)
    ch_sq = jnp.sum(y * y, axis=1, keepdims=True)                           # (C, 1)
    stats = jnp.concatenate([ch_sum, ch_sq], axis=1)                        # (C, 2)
    g = jnp.dot(avg_ref[...], stats, preferred_element_type=jnp.float32)    # (C, 2): [mean, E[x^2]]
    mean = g[:, 0:1]
    var = jnp.maximum(g[:, 1:2] - mean * mean, 0.0)
    y = (y - mean) * lax.rsqrt(var + 1e-5) * gamma_ref[...] + beta_ref[...]

    q = y[:cq, :]                              # (heads*kk, N)
    kg = y[cq:cq + kk, :]                      # (kk, N)
    v = y[cq + kk:, :]                         # (vv, N)

    # ---- softmax over the spatial (lane) axis; divide goes to the EUP ----
    e = jnp.exp(kg - jnp.max(kg, axis=1, keepdims=True))
    s = e * pl.reciprocal(jnp.sum(e, axis=1, keepdims=True), approx=True)   # (kk, N)

    # ---- content term: content_vk[v, k] = sum_n v[v, n] * s[k, n]  -> (vv, kk) ----
    content_vk = lax.dot_general(v.astype(jnp.bfloat16), s.astype(jnp.bfloat16),
                                 (((1,), (1,)), ((), ())),
                                 preferred_element_type=jnp.float32)

    # ---- build shifted-value stack taps[(t, v), n] = valid[t, n] * v[v, n + off_t] ----
    # Rolls on the XLU; explicit row+col validity mask (constant input) -> no wrap leakage.
    for t in range(m * m):
        dy, dx = t // m, t % m
        off = (dy - r) * W + (dx - r)
        rolled = pltpu.roll(v, (-off) % N, axis=1)                          # rolled[:, n] = v[:, (n+off) % N]
        taps_ref[t * vv:(t + 1) * vv, :] = (rolled * mask_ref[t:t + 1, :]).astype(jnp.bfloat16)

    # ---- 7x7 context on the MXU: kron(emb, I_vv) (kk*vv, m*m*vv) @ taps (m*m*vv, N) ----
    vctx = jnp.dot(emb_ref[...], taps_ref[...],
                   preferred_element_type=jnp.float32)                      # (kk*vv, N)

    # ---- final per-k contraction (16 broadcast-FMAs), folding in the content term ----
    q4 = q.reshape(heads, kk, N)
    out = jnp.zeros((heads, vv, N), jnp.float32)
    for ki in range(kk):
        comb = vctx[ki * vv:(ki + 1) * vv, :] + content_vk[:, ki:ki + 1]    # (vv, N)
        out = out + q4[:, ki:ki + 1, :] * comb[None]                        # (heads, vv, N)

    o_ref[0] = out.astype(o_ref.dtype)                                      # lane-dense store


def local_sa_block(x, params, heads=4, k=16, m=7):
    """LocalSABlock forward.  x: (B, Cin, H, W) f32 -> (B, out_channels, H, W) f32."""
    B, Cin, H, W = x.shape
    N = H * W
    kk = k
    cq = params["wq"].shape[0]            # heads * k
    ck = params["wk"].shape[0]            # k * u
    vv = params["wv"].shape[0]            # out_channels // heads  (u == 1)
    C = cq + ck + vv
    r = m // 2
    # TODO(synk): u (uu) is assumed to be 1 (the module default); u > 1 would add one extra
    # small contraction over u in the keys/values terms.

    xf = x.reshape(B, Cin, N).astype(jnp.bfloat16)
    w_all = jnp.concatenate([params["wq"], params["wk"], params["wv"]],
                            axis=0).astype(jnp.bfloat16)                    # (C, Cin)
    gamma = jnp.concatenate([params["gq_g"], params["gk_g"], params["gv_g"]]
                            ).reshape(C, 1).astype(jnp.float32)
    beta = jnp.concatenate([params["gq_b"], params["gk_b"], params["gv_b"]]
                           ).reshape(C, 1).astype(jnp.float32)

    # Block-diagonal group-averaging matrix (PyTorch GroupNorm: contiguous channel groups).
    def gids(c, groups, base):
        return base + jnp.arange(c) // (c // groups)
    gid = jnp.concatenate([gids(cq, cq // 4, 0),
                           gids(ck, ck // 4, cq // 4),
                           gids(vv, vv // 4, cq // 4 + ck // 4)])
    same = (gid[:, None] == gid[None, :]).astype(jnp.float32)
    avg = same / (jnp.sum(same, axis=1, keepdims=True) * N)                 # (C, C)

    # Context weight: E[(k*vv+v), (t*vv+v')] = emb2[k, t] * delta(v, v').
    emb2 = params["emb"].reshape(kk, m * m).astype(jnp.float32)
    emb_big = jnp.kron(emb2, jnp.eye(vv, dtype=jnp.float32)).astype(jnp.bfloat16)  # (kk*vv, m*m*vv)

    # Per-tap in-image validity mask (covers BOTH vertical and horizontal out-of-range).
    yy = jnp.arange(N, dtype=jnp.int32) // W
    xx = jnp.arange(N, dtype=jnp.int32) % W
    dys = jnp.arange(m * m, dtype=jnp.int32) // m - r
    dxs = jnp.arange(m * m, dtype=jnp.int32) % m - r
    ry = yy[None, :] + dys[:, None]
    cx = xx[None, :] + dxs[:, None]
    valid = ((ry >= 0) & (ry < H) & (cx >= 0) & (cx < W)).astype(jnp.float32)       # (m*m, N)

    kernel = functools.partial(local_sa_kernel, heads=heads, kk=kk, vv=vv, W=W, m=m)
    const2d = lambda shape: pl.BlockSpec(shape, lambda b: (0, 0))

    out = pl.pallas_call(
        kernel,
        out_shape=jax.ShapeDtypeStruct((B, heads, vv, N), jnp.float32),
        grid=(B,),
        in_specs=[
            pl.BlockSpec((1, Cin, N), lambda b: (b, 0, 0)),
            const2d((C, Cin)),
            const2d((C, C)),
            const2d((C, 1)),
            const2d((C, 1)),
            const2d((kk * vv, m * m * vv)),
            const2d((m * m, N)),
        ],
        out_specs=pl.BlockSpec((1, heads, vv, N), lambda b: (b, 0, 0, 0)),
        scratch_shapes=[pltpu.VMEM((m * m * vv, N), jnp.bfloat16)],
        compiler_params=pltpu.CompilerParams(dimension_semantics=("parallel",)),
    )(xf, w_all, avg, gamma, beta, emb_big, valid)
    # TODO(synk): for B == 1 on v7x add a second parallel grid axis (split heads or rows with a
    # halo) so both TensorCores get work; with B >= 2 each core takes a batch element.
    return out.reshape(B, heads * vv, H, W)


def reference_local_sa(x, params, heads=4, k=16, m=7):
    """Pure-JAX reference mirroring the PyTorch module (same bf16 rounding of conv operands)."""
    B, Cin, H, W = x.shape
    N = H * W
    kk = k
    vv = params["wv"].shape[0]
    hp = lax.Precision.HIGHEST
    xb = x.reshape(B, Cin, N).astype(jnp.bfloat16).astype(jnp.float32)

    def conv_gn(w, g, b, groups):
        wb = w.astype(jnp.bfloat16).astype(jnp.float32)
        y = jnp.einsum("oi,bin->bon", wb, xb, precision=hp)
        C = w.shape[0]
        yg = y.reshape(B, groups, (C // groups) * N)
        mean = jnp.mean(yg, axis=-1, keepdims=True)
        var = jnp.var(yg, axis=-1, keepdims=True)
        yn = ((yg - mean) * lax.rsqrt(var + 1e-5)).reshape(B, C, N)
        return yn * g[None, :, None] + b[None, :, None]

    q = conv_gn(params["wq"], params["gq_g"], params["gq_b"], (heads * kk) // 4)
    q = q.reshape(B, heads, kk, N)
    s = jax.nn.softmax(conv_gn(params["wk"], params["gk_g"], params["gk_b"], kk // 4), axis=-1)
    v = conv_gn(params["wv"], params["gv_g"], params["gv_b"], vv // 4)

    content = jnp.einsum("bkn,bvn->bkv", s, v, precision=hp)
    content = jnp.einsum("bhkn,bkv->bhvn", q, content, precision=hp)

    r = m // 2
    vimg = v.reshape(B, vv, H, W)
    vp = jnp.pad(vimg, ((0, 0), (0, 0), (r, r), (r, r)))
    taps = jnp.stack([vp[:, :, dy:dy + H, dx:dx + W]
                      for dy in range(m) for dx in range(m)], axis=2)    # (B, vv, m*m, H, W)
    emb2 = params["emb"].reshape(kk, m * m)
    ctx = jnp.einsum("kt,bvtyx->bkvyx", emb2, taps, precision=hp).reshape(B, kk, vv, N)
    ctx = jnp.einsum("bhkn,bkvn->bhvn", q, ctx, precision=hp)
    return (content + ctx).reshape(B, heads * vv, H, W)


if __name__ == "__main__":
    key = jax.random.PRNGKey(0)
    B, Cin, H, W = 2, 64, 16, 16
    heads, k, u, m = 4, 16, 1, 7
    out_channels = 64
    vv = out_channels // heads

    ks = jax.random.split(key, 8)
    x = jax.random.normal(ks[0], (B, Cin, H, W), jnp.float32)

    def gn_params(kx, c):
        k1, k2 = jax.random.split(kx)
        return (1.0 + 0.05 * jax.random.normal(k1, (c,), jnp.float32),
                0.05 * jax.random.normal(k2, (c,), jnp.float32))

    sc = 1.0 / (Cin ** 0.5)
    params = {
        "wq": jax.random.normal(ks[1], (k * heads, Cin), jnp.float32) * sc,
        "wk": jax.random.normal(ks[2], (k * u, Cin), jnp.float32) * sc,
        "wv": jax.random.normal(ks[3], (vv * u, Cin), jnp.float32) * sc,
        "emb": jax.random.normal(ks[4], (k, u, 1, m, m), jnp.float32),
    }
    params["gq_g"], params["gq_b"] = gn_params(ks[5], k * heads)
    params["gk_g"], params["gk_b"] = gn_params(ks[6], k * u)
    params["gv_g"], params["gv_b"] = gn_params(ks[7], vv * u)

    fwd = jax.jit(functools.partial(local_sa_block, heads=heads, k=k, m=m))
    out = fwd(x, params)
    jax.block_until_ready(out)

    ref = reference_local_sa(x, params, heads=heads, k=k, m=m)
    err = float(jnp.max(jnp.abs(out - ref)))
    scale = float(jnp.max(jnp.abs(ref)))

    assert out.shape == (B, out_channels, H, W)
    assert bool(jnp.isfinite(out).all())
    assert err <= 2e-2 * (1.0 + scale), f"kernel/reference mismatch: err={err}, scale={scale}"
    print("KERNEL_OK")
</pallas_src>

<mosaic_0001>
module attributes {stable_mosaic.version = 11 : i64} {
  func.func @local_sa_kernel(%arg0: i32, %arg1: memref<1x64x256xbf16, #tpu.memory_space<vmem>>, %arg2: memref<96x64xbf16, #tpu.memory_space<vmem>>, %arg3: memref<96x96xf32, #tpu.memory_space<vmem>>, %arg4: memref<96x1xf32, #tpu.memory_space<vmem>>, %arg5: memref<96x1xf32, #tpu.memory_space<vmem>>, %arg6: memref<256x784xbf16, #tpu.memory_space<vmem>>, %arg7: memref<49x256xf32, #tpu.memory_space<vmem>>, %arg8: memref<1x4x16x256xf32, #tpu.memory_space<vmem>>, %arg9: memref<784x256xbf16, #tpu.memory_space<vmem>>) attributes {dimension_semantics = [#tpu.dimension_semantics<parallel>], iteration_bounds = array<i64: 2>, scalar_prefetch = 0 : i64, scratch_operands = 1 : i64, tpu.core_type = #tpu.core_type<tc>, window_params = [{transform_indices = @transform_0, window_bounds = array<i64: 1, 64, 256>}, {pipeline_mode = #tpu.pipeline_mode<synchronous>, transform_indices = @transform_1, window_bounds = array<i64: 96, 64>}, {pipeline_mode = #tpu.pipeline_mode<synchronous>, transform_indices = @transform_2, window_bounds = array<i64: 96, 96>}, {pipeline_mode = #tpu.pipeline_mode<synchronous>, transform_indices = @transform_3, window_bounds = array<i64: 96, 1>}, {pipeline_mode = #tpu.pipeline_mode<synchronous>, transform_indices = @transform_4, window_bounds = array<i64: 96, 1>}, {pipeline_mode = #tpu.pipeline_mode<synchronous>, transform_indices = @transform_5, window_bounds = array<i64: 256, 784>}, {pipeline_mode = #tpu.pipeline_mode<synchronous>, transform_indices = @transform_6, window_bounds = array<i64: 49, 256>}, {transform_indices = @transform_7, window_bounds = array<i64: 1, 4, 16, 256>}]} {
    %c0 = arith.constant 0 : index
    %c0_0 = arith.constant 0 : index
    %c0_1 = arith.constant 0 : index
    %0 = vector.load %arg1[%c0, %c0_0, %c0_1] : memref<1x64x256xbf16, #tpu.memory_space<vmem>>, vector<1x64x256xbf16>
    %1 = vector.shape_cast %0 : vector<1x64x256xbf16> to vector<64x256xbf16>
    %c0_2 = arith.constant 0 : index
    %c0_3 = arith.constant 0 : index
    %2 = vector.load %arg2[%c0_2, %c0_3] : memref<96x64xbf16, #tpu.memory_space<vmem>>, vector<96x64xbf16>
    %cst = arith.constant dense<0.000000e+00> : vector<96x256xf32>
    %3 = tpu.matmul %2, %1, %cst {dimension_numbers = #tpu.dot_dimension_numbers<[1], [0], [0], [1], [0, 0, 1, 1], [], []>} : vector<96x64xbf16>, vector<64x256xbf16>, vector<96x256xf32> -> vector<96x256xf32>
    %cst_4 = arith.constant dense<0.000000e+00> : vector<96xf32>
    %4 = vector.multi_reduction <add>, %3, %cst_4 [1] : vector<96x256xf32> to vector<96xf32>
    %5 = vector.shape_cast %4 : vector<96xf32> to vector<96x1xf32>
    %6 = arith.mulf %3, %3 : vector<96x256xf32>
    %cst_5 = arith.constant dense<0.000000e+00> : vector<96xf32>
    %7 = vector.multi_reduction <add>, %6, %cst_5 [1] : vector<96x256xf32> to vector<96xf32>
    %8 = vector.shape_cast %7 : vector<96xf32> to vector<96x1xf32>
    %9 = tpu.concatenate %5, %8 in 1 : vector<96x1xf32>, vector<96x1xf32> -> vector<96x2xf32>
    %c0_6 = arith.constant 0 : index
    %c0_7 = arith.constant 0 : index
    %10 = vector.load %arg3[%c0_6, %c0_7] : memref<96x96xf32, #tpu.memory_space<vmem>>, vector<96x96xf32>
    %cst_8 = arith.constant dense<0.000000e+00> : vector<96x2xf32>
    %11 = tpu.matmul %10, %9, %cst_8 {dimension_numbers = #tpu.dot_dimension_numbers<[1], [0], [0], [1], [0, 0, 1, 1], [], []>} : vector<96x96xf32>, vector<96x2xf32>, vector<96x2xf32> -> vector<96x2xf32>
    %12 = vector.extract_strided_slice %11 {offsets = [0, 0], sizes = [96, 1], strides = [1, 1]} : vector<96x2xf32> to vector<96x1xf32>
    %13 = vector.extract_strided_slice %11 {offsets = [0, 1], sizes = [96, 1], strides = [1, 1]} : vector<96x2xf32> to vector<96x1xf32>
    %14 = arith.mulf %12, %12 : vector<96x1xf32>
    %15 = arith.subf %13, %14 : vector<96x1xf32>
    %cst_9 = arith.constant 0.000000e+00 : f32
    %16 = vector.broadcast %cst_9 : f32 to vector<96x1xf32>
    %17 = arith.maximumf %15, %16 : vector<96x1xf32>
    %18 = vector.broadcast %12 : vector<96x1xf32> to vector<96x256xf32>
    %19 = arith.subf %3, %18 : vector<96x256xf32>
    %cst_10 = arith.constant 9.99999974E-6 : f32
    %20 = vector.broadcast %cst_10 : f32 to vector<96x1xf32>
    %21 = arith.addf %17, %20 : vector<96x1xf32>
    %22 = math.rsqrt %21 : vector<96x1xf32>
    %23 = vector.broadcast %22 : vector<96x1xf32> to vector<96x256xf32>
    %24 = arith.mulf %19, %23 : vector<96x256xf32>
    %c0_11 = arith.constant 0 : index
    %c0_12 = arith.constant 0 : index
    %25 = vector.load %arg4[%c0_11, %c0_12] : memref<96x1xf32, #tpu.memory_space<vmem>>, vector<96x1xf32>
    %26 = vector.broadcast %25 : vector<96x1xf32> to vector<96x256xf32>
    %27 = arith.mulf %24, %26 : vector<96x256xf32>
    %c0_13 = arith.constant 0 : index
    %c0_14 = arith.constant 0 : index
    %28 = vector.load %arg5[%c0_13, %c0_14] : memref<96x1xf32, #tpu.memory_space<vmem>>, vector<96x1xf32>
    %29 = vector.broadcast %28 : vector<96x1xf32> to vector<96x256xf32>
    %30 = arith.addf %27, %29 : vector<96x256xf32>
    %31 = vector.extract_strided_slice %30 {offsets = [0, 0], sizes = [64, 256], strides = [1, 1]} : vector<96x256xf32> to vector<64x256xf32>
    %32 = vector.extract_strided_slice %30 {offsets = [64, 0], sizes = [16, 256], strides = [1, 1]} : vector<96x256xf32> to vector<16x256xf32>
    %33 = vector.extract_strided_slice %30 {offsets = [80, 0], sizes = [16, 256], strides = [1, 1]} : vector<96x256xf32> to vector<16x256xf32>
    %cst_15 = arith.constant dense<0xFF800000> : vector<16xf32>
    %34 = vector.multi_reduction <maximumf>, %32, %cst_15 [1] : vector<16x256xf32> to vector<16xf32>
    %35 = vector.shape_cast %34 : vector<16xf32> to vector<16x1xf32>
    %36 = vector.broadcast %35 : vector<16x1xf32> to vector<16x256xf32>
    %37 = arith.subf %32, %36 : vector<16x256xf32>
    %38 = math.exp %37 : vector<16x256xf32>
    %cst_16 = arith.constant dense<0.000000e+00> : vector<16xf32>
    %39 = vector.multi_reduction <add>, %38, %cst_16 [1] : vector<16x256xf32> to vector<16xf32>
    %40 = vector.shape_cast %39 : vector<16xf32> to vector<16x1xf32>
    %41 = tpu.reciprocal %40 {approx = true} : vector<16x1xf32> -> vector<16x1xf32>
    %42 = vector.broadcast %41 : vector<16x1xf32> to vector<16x256xf32>
    %43 = arith.mulf %38, %42 : vector<16x256xf32>
    %44 = arith.truncf %33 : vector<16x256xf32> to vector<16x256xbf16>
    %45 = arith.truncf %43 : vector<16x256xf32> to vector<16x256xbf16>
    %cst_17 = arith.constant dense<0.000000e+00> : vector<16x16xf32>
    %46 = tpu.matmul %44, %45, %cst_17 {dimension_numbers = #tpu.dot_dimension_numbers<[1], [1], [0], [0], [0, 0, 1, 0], [], []>} : vector<16x256xbf16>, vector<16x256xbf16>, vector<16x16xf32> -> vector<16x16xf32>
    %c51_i32 = arith.constant 51 : i32
    %47 = tpu.dynamic_rotate %33 by %c51_i32 dim 1 : vector<16x256xf32>, i32 -> vector<16x256xf32>
    %c0_18 = arith.constant 0 : index
    %c0_19 = arith.constant 0 : index
    %48 = vector.load %arg7[%c0_18, %c0_19] : memref<49x256xf32, #tpu.memory_space<vmem>>, vector<1x256xf32>
    %49 = vector.broadcast %48 : vector<1x256xf32> to vector<16x256xf32>
    %50 = arith.mulf %47, %49 : vector<16x256xf32>
    %51 = arith.truncf %50 : vector<16x256xf32> to vector<16x256xbf16>
    %c0_20 = arith.constant 0 : index
    %c0_21 = arith.constant 0 : index
    %52 = vector.load %arg9[%c0_20, %c0_21] : memref<784x256xbf16, #tpu.memory_space<vmem>>, vector<16x256xbf16>
    tpu.vector_store %arg9[%c0_20, %c0_21], %51 {strides = array<i32>} : memref<784x256xbf16, #tpu.memory_space<vmem>>, vector<16x256xbf16>,
    %c50_i32 = arith.constant 50 : i32
    %53 = tpu.dynamic_rotate %33 by %c50_i32 dim 1 : vector<16x256xf32>, i32 -> vector<16x256xf32>
    %c1 = arith.constant 1 : index
    %c0_22 = arith.constant 0 : index
    %54 = vector.load %arg7[%c1, %c0_22] : memref<49x256xf32, #tpu.memory_space<vmem>>, vector<1x256xf32>
    %55 = vector.broadcast %54 : vector<1x256xf32> to vector<16x256xf32>
    %56 = arith.mulf %53, %55 : vector<16x256xf32>
    %57 = arith.truncf %56 : vector<16x256xf32> to vector<16x256xbf16>
    %c16 = arith.constant 16 : index
    %c0_23 = arith.constant 0 : index
    %58 = vector.load %arg9[%c16, %c0_23] : memref<784x256xbf16, #tpu.memory_space<vmem>>, vector<16x256xbf16>
    tpu.vector_store %arg9[%c16, %c0_23], %57 {strides = array<i32>} : memref<784x256xbf16, #tpu.memory_space<vmem>>, vector<16x256xbf16>,
    %c49_i32 = arith.constant 49 : i32
    %59 = tpu.dynamic_rotate %33 by %c49_i32 dim 1 : vector<16x256xf32>, i32 -> vector<16x256xf32>
    %c2 = arith.constant 2 : index
    %c0_24 = arith.constant 0 : index
    %60 = vector.load %arg7[%c2, %c0_24] : memref<49x256xf32, #tpu.memory_space<vmem>>, vector<1x256xf32>
    %61 = vector.broadcast %60 : vector<1x256xf32> to vector<16x256xf32>
    %62 = arith.mulf %59, %61 : vector<16x256xf32>
    %63 = arith.truncf %62 : vector<16x256xf32> to vector<16x256xbf16>
    %c32 = arith.constant 32 : index
    %c0_25 = arith.constant 0 : index
    %64 = vector.load %arg9[%c32, %c0_25] : memref<784x256xbf16, #tpu.memory_space<vmem>>, vector<16x256xbf16>
    tpu.vector_store %arg9[%c32, %c0_25], %63 {strides = array<i32>} : memref<784x256xbf16, #tpu.memory_space<vmem>>, vector<16x256xbf16>,
    %c48_i32 = arith.constant 48 : i32
    %65 = tpu.dynamic_rotate %33 by %c48_i32 dim 1 : vector<16x256xf32>, i32 -> vector<16x256xf32>
    %c3 = arith.constant 3 : index
    %c0_26 = arith.constant 0 : index
    %66 = vector.load %arg7[%c3, %c0_26] : memref<49x256xf32, #tpu.memory_space<vmem>>, vector<1x256xf32>
    %67 = vector.broadcast %66 : vector<1x256xf32> to vector<16x256xf32>
    %68 = arith.mulf %65, %67 : vector<16x256xf32>
    %69 = arith.truncf %68 : vector<16x256xf32> to vector<16x256xbf16>
    %c48 = arith.constant 48 : index
    %c0_27 = arith.constant 0 : index
    %70 = vector.load %arg9[%c48, %c0_27] : memref<784x256xbf16, #tpu.memory_space<vmem>>, vector<16x256xbf16>
    tpu.vector_store %arg9[%c48, %c0_27], %69 {strides = array<i32>} : memref<784x256xbf16, #tpu.memory_space<vmem>>, vector<16x256xbf16>,
    %c47_i32 = arith.constant 47 : i32
    %71 = tpu.dynamic_rotate %33 by %c47_i32 dim 1 : vector<16x256xf32>, i32 -> vector<16x256xf32>
    %c4 = arith.constant 4 : index
    %c0_28 = arith.constant 0 : index
    %72 = vector.load %arg7[%c4, %c0_28] : memref<49x256xf32, #tpu.memory_space<vmem>>, vector<1x256xf32>
    %73 = vector.broadcast %72 : vector<1x256xf32> to vector<16x256xf32>
    %74 = arith.mulf %71, %73 : vector<16x256xf32>
    %75 = arith.truncf %74 : vector<16x256xf32> to vector<16x256xbf16>
    %c64 = arith.constant 64 : index
    %c0_29 = arith.constant 0 : index
    %76 = vector.load %arg9[%c64, %c0_29] : memref<784x256xbf16, #tpu.memory_space<vmem>>, vector<16x256xbf16>
    tpu.vector_store %arg9[%c64, %c0_29], %75 {strides = array<i32>} : memref<784x256xbf16, #tpu.memory_space<vmem>>, vector<16x256xbf16>,
    %c46_i32 = arith.constant 46 : i32
    %77 = tpu.dynamic_rotate %33 by %c46_i32 dim 1 : vector<16x256xf32>, i32 -> vector<16x256xf32>
    %c5 = arith.constant 5 : index
    %c0_30 = arith.constant 0 : index
    %78 = vector.load %arg7[%c5, %c0_30] : memref<49x256xf32, #tpu.memory_space<vmem>>, vector<1x256xf32>
    %79 = vector.broadcast %78 : vector<1x256xf32> to vector<16x256xf32>
    %80 = arith.mulf %77, %79 : vector<16x256xf32>
    %81 = arith.truncf %80 : vector<16x256xf32> to vector<16x256xbf16>
    %c80 = arith.constant 80 : index
    %c0_31 = arith.constant 0 : index
    %82 = vector.load %arg9[%c80, %c0_31] : memref<784x256xbf16, #tpu.memory_space<vmem>>, vector<16x256xbf16>
    tpu.vector_store %arg9[%c80, %c0_31], %81 {strides = array<i32>} : memref<784x256xbf16, #tpu.memory_space<vmem>>, vector<16x256xbf16>,
    %c45_i32 = arith.constant 45 : i32
    %83 = tpu.dynamic_rotate %33 by %c45_i32 dim 1 : vector<16x256xf32>, i32 -> vector<16x256xf32>
    %c6 = arith.constant 6 : index
    %c0_32 = arith.constant 0 : index
    %84 = vector.load %arg7[%c6, %c0_32] : memref<49x256xf32, #tpu.memory_space<vmem>>, vector<1x256xf32>
    %85 = vector.broadcast %84 : vector<1x256xf32> to vector<16x256xf32>
    %86 = arith.mulf %83, %85 : vector<16x256xf32>
    %87 = arith.truncf %86 : vector<16x256xf32> to vector<16x256xbf16>
    %c96 = arith.constant 96 : index
    %c0_33 = arith.constant 0 : index
    %88 = vector.load %arg9[%c96, %c0_33] : memref<784x256xbf16, #tpu.memory_space<vmem>>, vector<16x256xbf16>
    tpu.vector_store %arg9[%c96, %c0_33], %87 {strides = array<i32>} : memref<784x256xbf16, #tpu.memory_space<vmem>>, vector<16x256xbf16>,
    %c35_i32 = arith.constant 35 : i32
    %89 = tpu.dynamic_rotate %33 by %c35_i32 dim 1 : vector<16x256xf32>, i32 -> vector<16x256xf32>
    %c7 = arith.constant 7 : index
    %c0_34 = arith.constant 0 : index
    %90 = vector.load %arg7[%c7, %c0_34] : memref<49x256xf32, #tpu.memory_space<vmem>>, vector<1x256xf32>
    %91 = vector.broadcast %90 : vector<1x256xf32> to vector<16x256xf32>
    %92 = arith.mulf %89, %91 : vector<16x256xf32>
    %93 = arith.truncf %92 : vector<16x256xf32> to vector<16x256xbf16>
    %c112 = arith.constant 112 : index
    %c0_35 = arith.constant 0 : index
    %94 = vector.load %arg9[%c112, %c0_35] : memref<784x256xbf16, #tpu.memory_space<vmem>>, vector<16x256xbf16>
    tpu.vector_store %arg9[%c112, %c0_35], %93 {strides = array<i32>} : memref<784x256xbf16, #tpu.memory_space<vmem>>, vector<16x256xbf16>,
    %c34_i32 = arith.constant 34 : i32
    %95 = tpu.dynamic_rotate %33 by %c34_i32 dim 1 : vector<16x256xf32>, i32 -> vector<16x256xf32>
    %c8 = arith.constant 8 : index
    %c0_36 = arith.constant 0 : index
    %96 = vector.load %arg7[%c8, %c0_36] : memref<49x256xf32, #tpu.memory_space<vmem>>, vector<1x256xf32>
    %97 = vector.broadcast %96 : vector<1x256xf32> to vector<16x256xf32>
    %98 = arith.mulf %95, %97 : vector<16x256xf32>
    %99 = arith.truncf %98 : vector<16x256xf32> to vector<16x256xbf16>
    %c128 = arith.constant 128 : index
    %c0_37 = arith.constant 0 : index
    %100 = vector.load %arg9[%c128, %c0_37] : memref<784x256xbf16, #tpu.memory_space<vmem>>, vector<16x256xbf16>
    tpu.vector_store %arg9[%c128, %c0_37], %99 {strides = array<i32>} : memref<784x256xbf16, #tpu.memory_space<vmem>>, vector<16x256xbf16>,
    %c33_i32 = arith.constant 33 : i32
    %101 = tpu.dynamic_rotate %33 by %c33_i32 dim 1 : vector<16x256xf32>, i32 -> vector<16x256xf32>
    %c9 = arith.constant 9 : index
    %c0_38 = arith.constant 0 : index
    %102 = vector.load %arg7[%c9, %c0_38] : memref<49x256xf32, #tpu.memory_space<vmem>>, vector<1x256xf32>
    %103 = vector.broadcast %102 : vector<1x256xf32> to vector<16x256xf32>
    %104 = arith.mulf %101, %103 : vector<16x256xf32>
    %105 = arith.truncf %104 : vector<16x256xf32> to vector<16x256xbf16>
    %c144 = arith.constant 144 : index
    %c0_39 = arith.constant 0 : index
    %106 = vector.load %arg9[%c144, %c0_39] : memref<784x256xbf16, #tpu.memory_space<vmem>>, vector<16x256xbf16>
    tpu.vector_store %arg9[%c144, %c0_39], %105 {strides = array<i32>} : memref<784x256xbf16, #tpu.memory_space<vmem>>, vector<16x256xbf16>,
    %c32_i32 = arith.constant 32 : i32
    %107 = tpu.dynamic_rotate %33 by %c32_i32 dim 1 : vector<16x256xf32>, i32 -> vector<16x256xf32>
    %c10 = arith.constant 10 : index
    %c0_40 = arith.constant 0 : index
    %108 = vector.load %arg7[%c10, %c0_40] : memref<49x256xf32, #tpu.memory_space<vmem>>, vector<1x256xf32>
    %109 = vector.broadcast %108 : vector<1x256xf32> to vector<16x256xf32>
    %110 = arith.mulf %107, %109 : vector<16x256xf32>
    %111 = arith.truncf %110 : vector<16x256xf32> to vector<16x256xbf16>
    %c160 = arith.constant 160 : index
    %c0_41 = arith.constant 0 : index
    %112 = vector.load %arg9[%c160, %c0_41] : memref<784x256xbf16, #tpu.memory_space<vmem>>, vector<16x256xbf16>
    tpu.vector_store %arg9[%c160, %c0_41], %111 {strides = array<i32>} : memref<784x256xbf16, #tpu.memory_space<vmem>>, vector<16x256xbf16>,
    %c31_i32 = arith.constant 31 : i32
    %113 = tpu.dynamic_rotate %33 by %c31_i32 dim 1 : vector<16x256xf32>, i32 -> vector<16x256xf32>
    %c11 = arith.constant 11 : index
    %c0_42 = arith.constant 0 : index
    %114 = vector.load %arg7[%c11, %c0_42] : memref<49x256xf32, #tpu.memory_space<vmem>>, vector<1x256xf32>
    %115 = vector.broadcast %114 : vector<1x256xf32> to vector<16x256xf32>
    %116 = arith.mulf %113, %115 : vector<16x256xf32>
    %117 = arith.truncf %116 : vector<16x256xf32> to vector<16x256xbf16>
    %c176 = arith.constant 176 : index
    %c0_43 = arith.constant 0 : index
    %118 = vector.load %arg9[%c176, %c0_43] : memref<784x256xbf16, #tpu.memory_space<vmem>>, vector<16x256xbf16>
    tpu.vector_store %arg9[%c176, %c0_43], %117 {strides = array<i32>} : memref<784x256xbf16, #tpu.memory_space<vmem>>, vector<16x256xbf16>,
    %c30_i32 = arith.constant 30 : i32
    %119 = tpu.dynamic_rotate %33 by %c30_i32 dim 1 : vector<16x256xf32>, i32 -> vector<16x256xf32>
    %c12 = arith.constant 12 : index
    %c0_44 = arith.constant 0 : index
    %120 = vector.load %arg7[%c12, %c0_44] : memref<49x256xf32, #tpu.memory_space<vmem>>, vector<1x256xf32>
    %121 = vector.broadcast %120 : vector<1x256xf32> to vector<16x256xf32>
    %122 = arith.mulf %119, %121 : vector<16x256xf32>
    %123 = arith.truncf %122 : vector<16x256xf32> to vector<16x256xbf16>
    %c192 = arith.constant 192 : index
    %c0_45 = arith.constant 0 : index
    %124 = vector.load %arg9[%c192, %c0_45] : memref<784x256xbf16, #tpu.memory_space<vmem>>, vector<16x256xbf16>
    tpu.vector_store %arg9[%c192, %c0_45], %123 {strides = array<i32>} : memref<784x256xbf16, #tpu.memory_space<vmem>>, vector<16x256xbf16>,
    %c29_i32 = arith.constant 29 : i32
    %125 = tpu.dynamic_rotate %33 by %c29_i32 dim 1 : vector<16x256xf32>, i32 -> vector<16x256xf32>
    %c13 = arith.constant 13 : index
    %c0_46 = arith.constant 0 : index
    %126 = vector.load %arg7[%c13, %c0_46] : memref<49x256xf32, #tpu.memory_space<vmem>>, vector<1x256xf32>
    %127 = vector.broadcast %126 : vector<1x256xf32> to vector<16x256xf32>
    %128 = arith.mulf %125, %127 : vector<16x256xf32>
    %129 = arith.truncf %128 : vector<16x256xf32> to vector<16x256xbf16>
    %c208 = arith.constant 208 : index
    %c0_47 = arith.constant 0 : index
    %130 = vector.load %arg9[%c208, %c0_47] : memref<784x256xbf16, #tpu.memory_space<vmem>>, vector<16x256xbf16>
    tpu.vector_store %arg9[%c208, %c0_47], %129 {strides = array<i32>} : memref<784x256xbf16, #tpu.memory_space<vmem>>, vector<16x256xbf16>,
    %c19_i32 = arith.constant 19 : i32
    %131 = tpu.dynamic_rotate %33 by %c19_i32 dim 1 : vector<16x256xf32>, i32 -> vector<16x256xf32>
    %c14 = arith.constant 14 : index
    %c0_48 = arith.constant 0 : index
    %132 = vector.load %arg7[%c14, %c0_48] : memref<49x256xf32, #tpu.memory_space<vmem>>, vector<1x256xf32>
    %133 = vector.broadcast %132 : vector<1x256xf32> to vector<16x256xf32>
    %134 = arith.mulf %131, %133 : vector<16x256xf32>
    %135 = arith.truncf %134 : vector<16x256xf32> to vector<16x256xbf16>
    %c224 = arith.constant 224 : index
    %c0_49 = arith.constant 0 : index
    %136 = vector.load %arg9[%c224, %c0_49] : memref<784x256xbf16, #tpu.memory_space<vmem>>, vector<16x256xbf16>
    tpu.vector_store %arg9[%c224, %c0_49], %135 {strides = array<i32>} : memref<784x256xbf16, #tpu.memory_space<vmem>>, vector<16x256xbf16>,
    %c18_i32 = arith.constant 18 : i32
    %137 = tpu.dynamic_rotate %33 by %c18_i32 dim 1 : vector<16x256xf32>, i32 -> vector<16x256xf32>
    %c15 = arith.constant 15 : index
    %c0_50 = arith.constant 0 : index
    %138 = vector.load %arg7[%c15, %c0_50] : memref<49x256xf32, #tpu.memory_space<vmem>>, vector<1x256xf32>
    %139 = vector.broadcast %138 : vector<1x256xf32> to vector<16x256xf32>
    %140 = arith.mulf %137, %139 : vector<16x256xf32>
    %141 = arith.truncf %140 : vector<16x256xf32> to vector<16x256xbf16>
    %c240 = arith.constant 240 : index
    %c0_51 = arith.constant 0 : index
    %142 = vector.load %arg9[%c240, %c0_51] : memref<784x256xbf16, #tpu.memory_space<vmem>>, vector<16x256xbf16>
    tpu.vector_store %arg9[%c240, %c0_51], %141 {strides = array<i32>} : memref<784x256xbf16, #tpu.memory_space<vmem>>, vector<16x256xbf16>,
    %c17_i32 = arith.constant 17 : i32
    %143 = tpu.dynamic_rotate %33 by %c17_i32 dim 1 : vector<16x256xf32>, i32 -> vector<16x256xf32>
    %c16_52 = arith.constant 16 : index
    %c0_53 = arith.constant 0 : index
    %144 = vector.load %arg7[%c16_52, %c0_53] : memref<49x256xf32, #tpu.memory_space<vmem>>, vector<1x256xf32>
    %145 = vector.broadcast %144 : vector<1x256xf32> to vector<16x256xf32>
    %146 = arith.mulf %143, %145 : vector<16x256xf32>
    %147 = arith.truncf %146 : vector<16x256xf32> to vector<16x256xbf16>
    %c256 = arith.constant 256 : index
    %c0_54 = arith.constant 0 : index
    %148 = vector.load %arg9[%c256, %c0_54] : memref<784x256xbf16, #tpu.memory_space<vmem>>, vector<16x256xbf16>
    tpu.vector_store %arg9[%c256, %c0_54], %147 {strides = array<i32>} : memref<784x256xbf16, #tpu.memory_space<vmem>>, vector<16x256xbf16>,
    %c16_i32 = arith.constant 16 : i32
    %149 = tpu.dynamic_rotate %33 by %c16_i32 dim 1 : vector<16x256xf32>, i32 -> vector<16x256xf32>
    %c17 = arith.constant 17 : index
    %c0_55 = arith.constant 0 : index
    %150 = vector.load %arg7[%c17, %c0_55] : memref<49x256xf32, #tpu.memory_space<vmem>>, vector<1x256xf32>
    %151 = vector.broadcast %150 : vector<1x256xf32> to vector<16x256xf32>
    %152 = arith.mulf %149, %151 : vector<16x256xf32>
    %153 = arith.truncf %152 : vector<16x256xf32> to vector<16x256xbf16>
    %c272 = arith.constant 272 : index
    %c0_56 = arith.constant 0 : index
    %154 = vector.load %arg9[%c272, %c0_56] : memref<784x256xbf16, #tpu.memory_space<vmem>>, vector<16x256xbf16>
    tpu.vector_store %arg9[%c272, %c0_56], %153 {strides = array<i32>} : memref<784x256xbf16, #tpu.memory_space<vmem>>, vector<16x256xbf16>,
    %c15_i32 = arith.constant 15 : i32
    %155 = tpu.dynamic_rotate %33 by %c15_i32 dim 1 : vector<16x256xf32>, i32 -> vector<16x256xf32>
    %c18 = arith.constant 18 : index
    %c0_57 = arith.constant 0 : index
    %156 = vector.load %arg7[%c18, %c0_57] : memref<49x256xf32, #tpu.memory_space<vmem>>, vector<1x256xf32>
    %157 = vector.broadcast %156 : vector<1x256xf32> to vector<16x256xf32>
    %158 = arith.mulf %155, %157 : vector<16x256xf32>
    %159 = arith.truncf %158 : vector<16x256xf32> to vector<16x256xbf16>
    %c288 = arith.constant 288 : index
    %c0_58 = arith.constant 0 : index
    %160 = vector.load %arg9[%c288, %c0_58] : memref<784x256xbf16, #tpu.memory_space<vmem>>, vector<16x256xbf16>
    tpu.vector_store %arg9[%c288, %c0_58], %159 {strides = array<i32>} : memref<784x256xbf16, #tpu.memory_space<vmem>>, vector<16x256xbf16>,
    %c14_i32 = arith.constant 14 : i32
    %161 = tpu.dynamic_rotate %33 by %c14_i32 dim 1 : vector<16x256xf32>, i32 -> vector<16x256xf32>
    %c19 = arith.constant 19 : index
    %c0_59 = arith.constant 0 : index
    %162 = vector.load %arg7[%c19, %c0_59] : memref<49x256xf32, #tpu.memory_space<vmem>>, vector<1x256xf32>
    %163 = vector.broadcast %162 : vector<1x256xf32> to vector<16x256xf32>
    %164 = arith.mulf %161, %163 : vector<16x256xf32>
    %165 = arith.truncf %164 : vector<16x256xf32> to vector<16x256xbf16>
    %c304 = arith.constant 304 : index
    %c0_60 = arith.constant 0 : index
    %166 = vector.load %arg9[%c304, %c0_60] : memref<784x256xbf16, #tpu.memory_space<vmem>>, vector<16x256xbf16>
    tpu.vector_store %arg9[%c304, %c0_60], %165 {strides = array<i32>} : memref<784x256xbf16, #tpu.memory_space<vmem>>, vector<16x256xbf16>,
    %c13_i32 = arith.constant 13 : i32
    %167 = tpu.dynamic_rotate %33 by %c13_i32 dim 1 : vector<16x256xf32>, i32 -> vector<16x256xf32>
    %c20 = arith.constant 20 : index
    %c0_61 = arith.constant 0 : index
    %168 = vector.load %arg7[%c20, %c0_61] : memref<49x256xf32, #tpu.memory_space<vmem>>, vector<1x256xf32>
    %169 = vector.broadcast %168 : vector<1x256xf32> to vector<16x256xf32>
    %170 = arith.mulf %167, %169 : vector<16x256xf32>
    %171 = arith.truncf %170 : vector<16x256xf32> to vector<16x256xbf16>
    %c320 = arith.constant 320 : index
    %c0_62 = arith.constant 0 : index
    %172 = vector.load %arg9[%c320, %c0_62] : memref<784x256xbf16, #tpu.memory_space<vmem>>, vector<16x256xbf16>
    tpu.vector_store %arg9[%c320, %c0_62], %171 {strides = array<i32>} : memref<784x256xbf16, #tpu.memory_space<vmem>>, vector<16x256xbf16>,
    %c3_i32 = arith.constant 3 : i32
    %173 = tpu.dynamic_rotate %33 by %c3_i32 dim 1 : vector<16x256xf32>, i32 -> vector<16x256xf32>
    %c21 = arith.constant 21 : index
    %c0_63 = arith.constant 0 : index
    %174 = vector.load %arg7[%c21, %c0_63] : memref<49x256xf32, #tpu.memory_space<vmem>>, vector<1x256xf32>
    %175 = vector.broadcast %174 : vector<1x256xf32> to vector<16x256xf32>
    %176 = arith.mulf %173, %175 : vector<16x256xf32>
    %177 = arith.truncf %176 : vector<16x256xf32> to vector<16x256xbf16>
    %c336 = arith.constant 336 : index
    %c0_64 = arith.constant 0 : index
    %178 = vector.load %arg9[%c336, %c0_64] : memref<784x256xbf16, #tpu.memory_space<vmem>>, vector<16x256xbf16>
    tpu.vector_store %arg9[%c336, %c0_64], %177 {strides = array<i32>} : memref<784x256xbf16, #tpu.memory_space<vmem>>, vector<16x256xbf16>,
    %c2_i32 = arith.constant 2 : i32
    %179 = tpu.dynamic_rotate %33 by %c2_i32 dim 1 : vector<16x256xf32>, i32 -> vector<16x256xf32>
    %c22 = arith.constant 22 : index
    %c0_65 = arith.constant 0 : index
    %180 = vector.load %arg7[%c22, %c0_65] : memref<49x256xf32, #tpu.memory_space<vmem>>, vector<1x256xf32>
    %181 = vector.broadcast %180 : vector<1x256xf32> to vector<16x256xf32>
    %182 = arith.mulf %179, %181 : vector<16x256xf32>
    %183 = arith.truncf %182 : vector<16x256xf32> to vector<16x256xbf16>
    %c352 = arith.constant 352 : index
    %c0_66 = arith.constant 0 : index
    %184 = vector.load %arg9[%c352, %c0_66] : memref<784x256xbf16, #tpu.memory_space<vmem>>, vector<16x256xbf16>
    tpu.vector_store %arg9[%c352, %c0_66], %183 {strides = array<i32>} : memref<784x256xbf16, #tpu.memory_space<vmem>>, vector<16x256xbf16>,
    %c1_i32 = arith.constant 1 : i32
    %185 = tpu.dynamic_rotate %33 by %c1_i32 dim 1 : vector<16x256xf32>, i32 -> vector<16x256xf32>
    %c23 = arith.constant 23 : index
    %c0_67 = arith.constant 0 : index
    %186 = vector.load %arg7[%c23, %c0_67] : memref<49x256xf32, #tpu.memory_space<vmem>>, vector<1x256xf32>
    %187 = vector.broadcast %186 : vector<1x256xf32> to vector<16x256xf32>
    %188 = arith.mulf %185, %187 : vector<16x256xf32>
    %189 = arith.truncf %188 : vector<16x256xf32> to vector<16x256xbf16>
    %c368 = arith.constant 368 : index
    %c0_68 = arith.constant 0 : index
    %190 = vector.load %arg9[%c368, %c0_68] : memref<784x256xbf16, #tpu.memory_space<vmem>>, vector<16x256xbf16>
    tpu.vector_store %arg9[%c368, %c0_68], %189 {strides = array<i32>} : memref<784x256xbf16, #tpu.memory_space<vmem>>, vector<16x256xbf16>,
    %c0_i32 = arith.constant 0 : i32
    %191 = tpu.dynamic_rotate %33 by %c0_i32 dim 1 : vector<16x256xf32>, i32 -> vector<16x256xf32>
    %c24 = arith.constant 24 : index
    %c0_69 = arith.constant 0 : index
    %192 = vector.load %arg7[%c24, %c0_69] : memref<49x256xf32, #tpu.memory_space<vmem>>, vector<1x256xf32>
    %193 = vector.broadcast %192 : vector<1x256xf32> to vector<16x256xf32>
    %194 = arith.mulf %191, %193 : vector<16x256xf32>
    %195 = arith.truncf %194 : vector<16x256xf32> to vector<16x256xbf16>
    %c384 = arith.constant 384 : index
    %c0_70 = arith.constant 0 : index
    %196 = vector.load %arg9[%c384, %c0_70] : memref<784x256xbf16, #tpu.memory_space<vmem>>, vector<16x256xbf16>
    tpu.vector_store %arg9[%c384, %c0_70], %195 {strides = array<i32>} : memref<784x256xbf16, #tpu.memory_space<vmem>>, vector<16x256xbf16>,
    %c255_i32 = arith.constant 255 : i32
    %197 = tpu.dynamic_rotate %33 by %c255_i32 dim 1 : vector<16x256xf32>, i32 -> vector<16x256xf32>
    %c25 = arith.constant 25 : index
    %c0_71 = arith.constant 0 : index
    %198 = vector.load %arg7[%c25, %c0_71] : memref<49x256xf32, #tpu.memory_space<vmem>>, vector<1x256xf32>
    %199 = vector.broadcast %198 : vector<1x256xf32> to vector<16x256xf32>
    %200 = arith.mulf %197, %199 : vector<16x256xf32>
    %201 = arith.truncf %200 : vector<16x256xf32> to vector<16x256xbf16>
    %c400 = arith.constant 400 : index
    %c0_72 = arith.constant 0 : index
    %202 = vector.load %arg9[%c400, %c0_72] : memref<784x256xbf16, #tpu.memory_space<vmem>>, vector<16x256xbf16>
    tpu.vector_store %arg9[%c400, %c0_72], %201 {strides = array<i32>} : memref<784x256xbf16, #tpu.memory_space<vmem>>, vector<16x256xbf16>,
    %c254_i32 = arith.constant 254 : i32
    %203 = tpu.dynamic_rotate %33 by %c254_i32 dim 1 : vector<16x256xf32>, i32 -> vector<16x256xf32>
    %c26 = arith.constant 26 : index
    %c0_73 = arith.constant 0 : index
    %204 = vector.load %arg7[%c26, %c0_73] : memref<49x256xf32, #tpu.memory_space<vmem>>, vector<1x256xf32>
    %205 = vector.broadcast %204 : vector<1x256xf32> to vector<16x256xf32>
    %206 = arith.mulf %203, %205 : vector<16x256xf32>
    %207 = arith.truncf %206 : vector<16x256xf32> to vector<16x256xbf16>
    %c416 = arith.constant 416 : index
    %c0_74 = arith.constant 0 : index
    %208 = vector.load %arg9[%c416, %c0_74] : memref<784x256xbf16, #tpu.memory_space<vmem>>, vector<16x256xbf16>
    tpu.vector_store %arg9[%c416, %c0_74], %207 {strides = array<i32>} : memref<784x256xbf16, #tpu.memory_space<vmem>>, vector<16x256xbf16>,
    %c253_i32 = arith.constant 253 : i32
    %209 = tpu.dynamic_rotate %33 by %c253_i32 dim 1 : vector<16x256xf32>, i32 -> vector<16x256xf32>
    %c27 = arith.constant 27 : index
    %c0_75 = arith.constant 0 : index
    %210 = vector.load %arg7[%c27, %c0_75] : memref<49x256xf32, #tpu.memory_space<vmem>>, vector<1x256xf32>
    %211 = vector.broadcast %210 : vector<1x256xf32> to vector<16x256xf32>
    %212 = arith.mulf %209, %211 : vector<16x256xf32>
    %213 = arith.truncf %212 : vector<16x256xf32> to vector<16x256xbf16>
    %c432 = arith.constant 432 : index
    %c0_76 = arith.constant 0 : index
    %214 = vector.load %arg9[%c432, %c0_76] : memref<784x256xbf16, #tpu.memory_space<vmem>>, vector<16x256xbf16>
    tpu.vector_store %arg9[%c432, %c0_76], %213 {strides = array<i32>} : memref<784x256xbf16, #tpu.memory_space<vmem>>, vector<16x256xbf16>,
    %c243_i32 = arith.constant 243 : i32
    %215 = tpu.dynamic_rotate %33 by %c243_i32 dim 1 : vector<16x256xf32>, i32 -> vector<16x256xf32>
    %c28 = arith.constant 28 : index
    %c0_77 = arith.constant 0 : index
    %216 = vector.load %arg7[%c28, %c0_77] : memref<49x256xf32, #tpu.memory_space<vmem>>, vector<1x256xf32>
    %217 = vector.broadcast %216 : vector<1x256xf32> to vector<16x256xf32>
    %218 = arith.mulf %215, %217 : vector<16x256xf32>
    %219 = arith.truncf %218 : vector<16x256xf32> to vector<16x256xbf16>
    %c448 = arith.constant 448 : index
    %c0_78 = arith.constant 0 : index
    %220 = vector.load %arg9[%c448, %c0_78] : memref<784x256xbf16, #tpu.memory_space<vmem>>, vector<16x256xbf16>
    tpu.vector_store %arg9[%c448, %c0_78], %219 {strides = array<i32>} : memref<784x256xbf16, #tpu.memory_space<vmem>>, vector<16x256xbf16>,
    %c242_i32 = arith.constant 242 : i32
    %221 = tpu.dynamic_rotate %33 by %c242_i32 dim 1 : vector<16x256xf32>, i32 -> vector<16x256xf32>
    %c29 = arith.constant 29 : index
    %c0_79 = arith.constant 0 : index
    %222 = vector.load %arg7[%c29, %c0_79] : memref<49x256xf32, #tpu.memory_space<vmem>>, vector<1x256xf32>
    %223 = vector.broadcast %222 : vector<1x256xf32> to vector<16x256xf32>
    %224 = arith.mulf %221, %223 : vector<16x256xf32>
    %225 = arith.truncf %224 : vector<16x256xf32> to vector<16x256xbf16>
    %c464 = arith.constant 464 : index
    %c0_80 = arith.constant 0 : index
    %226 = vector.load %arg9[%c464, %c0_80] : memref<784x256xbf16, #tpu.memory_space<vmem>>, vector<16x256xbf16>
    tpu.vector_store %arg9[%c464, %c0_80], %225 {strides = array<i32>} : memref<784x256xbf16, #tpu.memory_space<vmem>>, vector<16x256xbf16>,
    %c241_i32 = arith.constant 241 : i32
    %227 = tpu.dynamic_rotate %33 by %c241_i32 dim 1 : vector<16x256xf32>, i32 -> vector<16x256xf32>
    %c30 = arith.constant 30 : index
    %c0_81 = arith.constant 0 : index
    %228 = vector.load %arg7[%c30, %c0_81] : memref<49x256xf32, #tpu.memory_space<vmem>>, vector<1x256xf32>
    %229 = vector.broadcast %228 : vector<1x256xf32> to vector<16x256xf32>
    %230 = arith.mulf %227, %229 : vector<16x256xf32>
    %231 = arith.truncf %230 : vector<16x256xf32> to vector<16x256xbf16>
    %c480 = arith.constant 480 : index
    %c0_82 = arith.constant 0 : index
    %232 = vector.load %arg9[%c480, %c0_82] : memref<784x256xbf16, #tpu.memory_space<vmem>>, vector<16x256xbf16>
    tpu.vector_store %arg9[%c480, %c0_82], %231 {strides = array<i32>} : memref<784x256xbf16, #tpu.memory_space<vmem>>, vector<16x256xbf16>,
    %c240_i32 = arith.constant 240 : i32
    %233 = tpu.dynamic_rotate %33 by %c240_i32 dim 1 : vector<16x256xf32>, i32 -> vector<16x256xf32>
    %c31 = arith.constant 31 : index
    %c0_83 = arith.constant 0 : index
    %234 = vector.load %arg7[%c31, %c0_83] : memref<49x256xf32, #tpu.memory_space<vmem>>, vector<1x256xf32>
    %235 = vector.broadcast %234 : vector<1x256xf32> to vector<16x256xf32>
    %236 = arith.mulf %233, %235 : vector<16x256xf32>
    %237 = arith.truncf %236 : vector<16x256xf32> to vector<16x256xbf16>
    %c496 = arith.constant 496 : index
    %c0_84 = arith.constant 0 : index
    %238 = vector.load %arg9[%c496, %c0_84] : memref<784x256xbf16, #tpu.memory_space<vmem>>, vector<16x256xbf16>
    tpu.vector_store %arg9[%c496, %c0_84], %237 {strides = array<i32>} : memref<784x256xbf16, #tpu.memory_space<vmem>>, vector<16x256xbf16>,
    %c239_i32 = arith.constant 239 : i32
    %239 = tpu.dynamic_rotate %33 by %c239_i32 dim 1 : vector<16x256xf32>, i32 -> vector<16x256xf32>
    %c32_85 = arith.constant 32 : index
    %c0_86 = arith.constant 0 : index
    %240 = vector.load %arg7[%c32_85, %c0_86] : memref<49x256xf32, #tpu.memory_space<vmem>>, vector<1x256xf32>
    %241 = vector.broadcast %240 : vector<1x256xf32> to vector<16x256xf32>
    %242 = arith.mulf %239, %241 : vector<16x256xf32>
    %243 = arith.truncf %242 : vector<16x256xf32> to vector<16x256xbf16>
    %c512 = arith.constant 512 : index
    %c0_87 = arith.constant 0 : index
    %244 = vector.load %arg9[%c512, %c0_87] : memref<784x256xbf16, #tpu.memory_space<vmem>>, vector<16x256xbf16>
    tpu.vector_store %arg9[%c512, %c0_87], %243 {strides = array<i32>} : memref<784x256xbf16, #tpu.memory_space<vmem>>, vector<16x256xbf16>,
    %c238_i32 = arith.constant 238 : i32
    %245 = tpu.dynamic_rotate %33 by %c238_i32 dim 1 : vector<16x256xf32>, i32 -> vector<16x256xf32>
    %c33 = arith.constant 33 : index
    %c0_88 = arith.constant 0 : index
    %246 = vector.load %arg7[%c33, %c0_88] : memref<49x256xf32, #tpu.memory_space<vmem>>, vector<1x256xf32>
    %247 = vector.broadcast %246 : vector<1x256xf32> to vector<16x256xf32>
    %248 = arith.mulf %245, %247 : vector<16x256xf32>
    %249 = arith.truncf %248 : vector<16x256xf32> to vector<16x256xbf16>
    %c528 = arith.constant 528 : index
    %c0_89 = arith.constant 0 : index
    %250 = vector.load %arg9[%c528, %c0_89] : memref<784x256xbf16, #tpu.memory_space<vmem>>, vector<16x256xbf16>
    tpu.vector_store %arg9[%c528, %c0_89], %249 {strides = array<i32>} : memref<784x256xbf16, #tpu.memory_space<vmem>>, vector<16x256xbf16>,
    %c237_i32 = arith.constant 237 : i32
    %251 = tpu.dynamic_rotate %33 by %c237_i32 dim 1 : vector<16x256xf32>, i32 -> vector<16x256xf32>
    %c34 = arith.constant 34 : index
    %c0_90 = arith.constant 0 : index
    %252 = vector.load %arg7[%c34, %c0_90] : memref<49x256xf32, #tpu.memory_space<vmem>>, vector<1x256xf32>
    %253 = vector.broadcast %252 : vector<1x256xf32> to vector<16x256xf32>
    %254 = arith.mulf %251, %253 : vector<16x256xf32>
    %255 = arith.truncf %254 : vector<16x256xf32> to vector<16x256xbf16>
    %c544 = arith.constant 544 : index
    %c0_91 = arith.constant 0 : index
    %256 = vector.load %arg9[%c544, %c0_91] : memref<784x256xbf16, #tpu.memory_space<vmem>>, vector<16x256xbf16>
    tpu.vector_store %arg9[%c544, %c0_91], %255 {strides = array<i32>} : memref<784x256xbf16, #tpu.memory_space<vmem>>, vector<16x256xbf16>,
    %c227_i32 = arith.constant 227 : i32
    %257 = tpu.dynamic_rotate %33 by %c227_i32 dim 1 : vector<16x256xf32>, i32 -> vector<16x256xf32>
    %c35 = arith.constant 35 : index
    %c0_92 = arith.constant 0 : index
    %258 = vector.load %arg7[%c35, %c0_92] : memref<49x256xf32, #tpu.memory_space<vmem>>, vector<1x256xf32>
    %259 = vector.broadcast %258 : vector<1x256xf32> to vector<16x256xf32>
    %260 = arith.mulf %257, %259 : vector<16x256xf32>
    %261 = arith.truncf %260 : vector<16x256xf32> to vector<16x256xbf16>
    %c560 = arith.constant 560 : index
    %c0_93 = arith.constant 0 : index
    %262 = vector.load %arg9[%c560, %c0_93] : memref<784x256xbf16, #tpu.memory_space<vmem>>, vector<16x256xbf16>
    tpu.vector_store %arg9[%c560, %c0_93], %261 {strides = array<i32>} : memref<784x256xbf16, #tpu.memory_space<vmem>>, vector<16x256xbf16>,
    %c226_i32 = arith.constant 226 : i32
    %263 = tpu.dynamic_rotate %33 by %c226_i32 dim 1 : vector<16x256xf32>, i32 -> vector<16x256xf32>
    %c36 = arith.constant 36 : index
    %c0_94 = arith.constant 0 : index
    %264 = vector.load %arg7[%c36, %c0_94] : memref<49x256xf32, #tpu.memory_space<vmem>>, vector<1x256xf32>
    %265 = vector.broadcast %264 : vector<1x256xf32> to vector<16x256xf32>
    %266 = arith.mulf %263, %265 : vector<16x256xf32>
    %267 = arith.truncf %266 : vector<16x256xf32> to vector<16x256xbf16>
    %c576 = arith.constant 576 : index
    %c0_95 = arith.constant 0 : index
    %268 = vector.load %arg9[%c576, %c0_95] : memref<784x256xbf16, #tpu.memory_space<vmem>>, vector<16x256xbf16>
    tpu.vector_store %arg9[%c576, %c0_95], %267 {strides = array<i32>} : memref<784x256xbf16, #tpu.memory_space<vmem>>, vector<16x256xbf16>,
    %c225_i32 = arith.constant 225 : i32
    %269 = tpu.dynamic_rotate %33 by %c225_i32 dim 1 : vector<16x256xf32>, i32 -> vector<16x256xf32>
    %c37 = arith.constant 37 : index
    %c0_96 = arith.constant 0 : index
    %270 = vector.load %arg7[%c37, %c0_96] : memref<49x256xf32, #tpu.memory_space<vmem>>, vector<1x256xf32>
    %271 = vector.broadcast %270 : vector<1x256xf32> to vector<16x256xf32>
    %272 = arith.mulf %269, %271 : vector<16x256xf32>
    %273 = arith.truncf %272 : vector<16x256xf32> to vector<16x256xbf16>
    %c592 = arith.constant 592 : index
    %c0_97 = arith.constant 0 : index
    %274 = vector.load %arg9[%c592, %c0_97] : memref<784x256xbf16, #tpu.memory_space<vmem>>, vector<16x256xbf16>
    tpu.vector_store %arg9[%c592, %c0_97], %273 {strides = array<i32>} : memref<784x256xbf16, #tpu.memory_space<vmem>>, vector<16x256xbf16>,
    %c224_i32 = arith.constant 224 : i32
    %275 = tpu.dynamic_rotate %33 by %c224_i32 dim 1 : vector<16x256xf32>, i32 -> vector<16x256xf32>
    %c38 = arith.constant 38 : index
    %c0_98 = arith.constant 0 : index
    %276 = vector.load %arg7[%c38, %c0_98] : memref<49x256xf32, #tpu.memory_space<vmem>>, vector<1x256xf32>
    %277 = vector.broadcast %276 : vector<1x256xf32> to vector<16x256xf32>
    %278 = arith.mulf %275, %277 : vector<16x256xf32>
    %279 = arith.truncf %278 : vector<16x256xf32> to vector<16x256xbf16>
    %c608 = arith.constant 608 : index
    %c0_99 = arith.constant 0 : index
    %280 = vector.load %arg9[%c608, %c0_99] : memref<784x256xbf16, #tpu.memory_space<vmem>>, vector<16x256xbf16>
    tpu.vector_store %arg9[%c608, %c0_99], %279 {strides = array<i32>} : memref<784x256xbf16, #tpu.memory_space<vmem>>, vector<16x256xbf16>,
    %c223_i32 = arith.constant 223 : i32
    %281 = tpu.dynamic_rotate %33 by %c223_i32 dim 1 : vector<16x256xf32>, i32 -> vector<16x256xf32>
    %c39 = arith.constant 39 : index
    %c0_100 = arith.constant 0 : index
    %282 = vector.load %arg7[%c39, %c0_100] : memref<49x256xf32, #tpu.memory_space<vmem>>, vector<1x256xf32>
    %283 = vector.broadcast %282 : vector<1x256xf32> to vector<16x256xf32>
    %284 = arith.mulf %281, %283 : vector<16x256xf32>
    %285 = arith.truncf %284 : vector<16x256xf32> to vector<16x256xbf16>
    %c624 = arith.constant 624 : index
    %c0_101 = arith.constant 0 : index
    %286 = vector.load %arg9[%c624, %c0_101] : memref<784x256xbf16, #tpu.memory_space<vmem>>, vector<16x256xbf16>
    tpu.vector_store %arg9[%c624, %c0_101], %285 {strides = array<i32>} : memref<784x256xbf16, #tpu.memory_space<vmem>>, vector<16x256xbf16>,
    %c222_i32 = arith.constant 222 : i32
    %287 = tpu.dynamic_rotate %33 by %c222_i32 dim 1 : vector<16x256xf32>, i32 -> vector<16x256xf32>
    %c40 = arith.constant 40 : index
    %c0_102 = arith.constant 0 : index
    %288 = vector.load %arg7[%c40, %c0_102] : memref<49x256xf32, #tpu.memory_space<vmem>>, vector<1x256xf32>
    %289 = vector.broadcast %288 : vector<1x256xf32> to vector<16x256xf32>
    %290 = arith.mulf %287, %289 : vector<16x256xf32>
    %291 = arith.truncf %290 : vector<16x256xf32> to vector<16x256xbf16>
    %c640 = arith.constant 640 : index
    %c0_103 = arith.constant 0 : index
    %292 = vector.load %arg9[%c640, %c0_103] : memref<784x256xbf16, #tpu.memory_space<vmem>>, vector<16x256xbf16>
    tpu.vector_store %arg9[%c640, %c0_103], %291 {strides = array<i32>} : memref<784x256xbf16, #tpu.memory_space<vmem>>, vector<16x256xbf16>,
    %c221_i32 = arith.constant 221 : i32
    %293 = tpu.dynamic_rotate %33 by %c221_i32 dim 1 : vector<16x256xf32>, i32 -> vector<16x256xf32>
    %c41 = arith.constant 41 : index
    %c0_104 = arith.constant 0 : index
    %294 = vector.load %arg7[%c41, %c0_104] : memref<49x256xf32, #tpu.memory_space<vmem>>, vector<1x256xf32>
    %295 = vector.broadcast %294 : vector<1x256xf32> to vector<16x256xf32>
    %296 = arith.mulf %293, %295 : vector<16x256xf32>
    %297 = arith.truncf %296 : vector<16x256xf32> to vector<16x256xbf16>
    %c656 = arith.constant 656 : index
    %c0_105 = arith.constant 0 : index
    %298 = vector.load %arg9[%c656, %c0_105] : memref<784x256xbf16, #tpu.memory_space<vmem>>, vector<16x256xbf16>
    tpu.vector_store %arg9[%c656, %c0_105], %297 {strides = array<i32>} : memref<784x256xbf16, #tpu.memory_space<vmem>>, vector<16x256xbf16>,
    %c211_i32 = arith.constant 211 : i32
    %299 = tpu.dynamic_rotate %33 by %c211_i32 dim 1 : vector<16x256xf32>, i32 -> vector<16x256xf32>
    %c42 = arith.constant 42 : index
    %c0_106 = arith.constant 0 : index
    %300 = vector.load %arg7[%c42, %c0_106] : memref<49x256xf32, #tpu.memory_space<vmem>>, vector<1x256xf32>
    %301 = vector.broadcast %300 : vector<1x256xf32> to vector<16x256xf32>
    %302 = arith.mulf %299, %301 : vector<16x256xf32>
    %303 = arith.truncf %302 : vector<16x256xf32> to vector<16x256xbf16>
    %c672 = arith.constant 672 : index
    %c0_107 = arith.constant 0 : index
    %304 = vector.load %arg9[%c672, %c0_107] : memref<784x256xbf16, #tpu.memory_space<vmem>>, vector<16x256xbf16>
    tpu.vector_store %arg9[%c672, %c0_107], %303 {strides = array<i32>} : memref<784x256xbf16, #tpu.memory_space<vmem>>, vector<16x256xbf16>,
    %c210_i32 = arith.constant 210 : i32
    %305 = tpu.dynamic_rotate %33 by %c210_i32 dim 1 : vector<16x256xf32>, i32 -> vector<16x256xf32>
    %c43 = arith.constant 43 : index
    %c0_108 = arith.constant 0 : index
    %306 = vector.load %arg7[%c43, %c0_108] : memref<49x256xf32, #tpu.memory_space<vmem>>, vector<1x256xf32>
    %307 = vector.broadcast %306 : vector<1x256xf32> to vector<16x256xf32>
    %308 = arith.mulf %305, %307 : vector<16x256xf32>
    %309 = arith.truncf %308 : vector<16x256xf32> to vector<16x256xbf16>
    %c688 = arith.constant 688 : index
    %c0_109 = arith.constant 0 : index
    %310 = vector.load %arg9[%c688, %c0_109] : memref<784x256xbf16, #tpu.memory_space<vmem>>, vector<16x256xbf16>
    tpu.vector_store %arg9[%c688, %c0_109], %309 {strides = array<i32>} : memref<784x256xbf16, #tpu.memory_space<vmem>>, vector<16x256xbf16>,
    %c209_i32 = arith.constant 209 : i32
    %311 = tpu.dynamic_rotate %33 by %c209_i32 dim 1 : vector<16x256xf32>, i32 -> vector<16x256xf32>
    %c44 = arith.constant 44 : index
    %c0_110 = arith.constant 0 : index
    %312 = vector.load %arg7[%c44, %c0_110] : memref<49x256xf32, #tpu.memory_space<vmem>>, vector<1x256xf32>
    %313 = vector.broadcast %312 : vector<1x256xf32> to vector<16x256xf32>
    %314 = arith.mulf %311, %313 : vector<16x256xf32>
    %315 = arith.truncf %314 : vector<16x256xf32> to vector<16x256xbf16>
    %c704 = arith.constant 704 : index
    %c0_111 = arith.constant 0 : index
    %316 = vector.load %arg9[%c704, %c0_111] : memref<784x256xbf16, #tpu.memory_space<vmem>>, vector<16x256xbf16>
    tpu.vector_store %arg9[%c704, %c0_111], %315 {strides = array<i32>} : memref<784x256xbf16, #tpu.memory_space<vmem>>, vector<16x256xbf16>,
    %c208_i32 = arith.constant 208 : i32
    %317 = tpu.dynamic_rotate %33 by %c208_i32 dim 1 : vector<16x256xf32>, i32 -> vector<16x256xf32>
    %c45 = arith.constant 45 : index
    %c0_112 = arith.constant 0 : index
    %318 = vector.load %arg7[%c45, %c0_112] : memref<49x256xf32, #tpu.memory_space<vmem>>, vector<1x256xf32>
    %319 = vector.broadcast %318 : vector<1x256xf32> to vector<16x256xf32>
    %320 = arith.mulf %317, %319 : vector<16x256xf32>
    %321 = arith.truncf %320 : vector<16x256xf32> to vector<16x256xbf16>
    %c720 = arith.constant 720 : index
    %c0_113 = arith.constant 0 : index
    %322 = vector.load %arg9[%c720, %c0_113] : memref<784x256xbf16, #tpu.memory_space<vmem>>, vector<16x256xbf16>
    tpu.vector_store %arg9[%c720, %c0_113], %321 {strides = array<i32>} : memref<784x256xbf16, #tpu.memory_space<vmem>>, vector<16x256xbf16>,
    %c207_i32 = arith.constant 207 : i32
    %323 = tpu.dynamic_rotate %33 by %c207_i32 dim 1 : vector<16x256xf32>, i32 -> vector<16x256xf32>
    %c46 = arith.constant 46 : index
    %c0_114 = arith.constant 0 : index
    %324 = vector.load %arg7[%c46, %c0_114] : memref<49x256xf32, #tpu.memory_space<vmem>>, vector<1x256xf32>
    %325 = vector.broadcast %324 : vector<1x256xf32> to vector<16x256xf32>
    %326 = arith.mulf %323, %325 : vector<16x256xf32>
    %327 = arith.truncf %326 : vector<16x256xf32> to vector<16x256xbf16>
    %c736 = arith.constant 736 : index
    %c0_115 = arith.constant 0 : index
    %328 = vector.load %arg9[%c736, %c0_115] : memref<784x256xbf16, #tpu.memory_space<vmem>>, vector<16x256xbf16>
    tpu.vector_store %arg9[%c736, %c0_115], %327 {strides = array<i32>} : memref<784x256xbf16, #tpu.memory_space<vmem>>, vector<16x256xbf16>,
    %c206_i32 = arith.constant 206 : i32
    %329 = tpu.dynamic_rotate %33 by %c206_i32 dim 1 : vector<16x256xf32>, i32 -> vector<16x256xf32>
    %c47 = arith.constant 47 : index
    %c0_116 = arith.constant 0 : index
    %330 = vector.load %arg7[%c47, %c0_116] : memref<49x256xf32, #tpu.memory_space<vmem>>, vector<1x256xf32>
    %331 = vector.broadcast %330 : vector<1x256xf32> to vector<16x256xf32>
    %332 = arith.mulf %329, %331 : vector<16x256xf32>
    %333 = arith.truncf %332 : vector<16x256xf32> to vector<16x256xbf16>
    %c752 = arith.constant 752 : index
    %c0_117 = arith.constant 0 : index
    %334 = vector.load %arg9[%c752, %c0_117] : memref<784x256xbf16, #tpu.memory_space<vmem>>, vector<16x256xbf16>
    tpu.vector_store %arg9[%c752, %c0_117], %333 {strides = array<i32>} : memref<784x256xbf16, #tpu.memory_space<vmem>>, vector<16x256xbf16>,
    %c205_i32 = arith.constant 205 : i32
    %335 = tpu.dynamic_rotate %33 by %c205_i32 dim 1 : vector<16x256xf32>, i32 -> vector<16x256xf32>
    %c48_118 = arith.constant 48 : index
    %c0_119 = arith.constant 0 : index
    %336 = vector.load %arg7[%c48_118, %c0_119] : memref<49x256xf32, #tpu.memory_space<vmem>>, vector<1x256xf32>
    %337 = vector.broadcast %336 : vector<1x256xf32> to vector<16x256xf32>
    %338 = arith.mulf %335, %337 : vector<16x256xf32>
    %339 = arith.truncf %338 : vector<16x256xf32> to vector<16x256xbf16>
    %c768 = arith.constant 768 : index
    %c0_120 = arith.constant 0 : index
    %340 = vector.load %arg9[%c768, %c0_120] : memref<784x256xbf16, #tpu.memory_space<vmem>>, vector<16x256xbf16>
    tpu.vector_store %arg9[%c768, %c0_120], %339 {strides = array<i32>} : memref<784x256xbf16, #tpu.memory_space<vmem>>, vector<16x256xbf16>,
    %c0_121 = arith.constant 0 : index
    %c0_122 = arith.constant 0 : index
    %341 = vector.load %arg6[%c0_121, %c0_122] : memref<256x784xbf16, #tpu.memory_space<vmem>>, vector<256x784xbf16>
    %c0_123 = arith.constant 0 : index
    %c0_124 = arith.constant 0 : index
    %342 = vector.load %arg9[%c0_123, %c0_124] : memref<784x256xbf16, #tpu.memory_space<vmem>>, vector<784x256xbf16>
    %cst_125 = arith.constant dense<0.000000e+00> : vector<256x256xf32>
    %343 = tpu.matmul %341, %342, %cst_125 {dimension_numbers = #tpu.dot_dimension_numbers<[1], [0], [0], [1], [0, 0, 1, 1], [], []>} : vector<256x784xbf16>, vector<784x256xbf16>, vector<256x256xf32> -> vector<256x256xf32>
    %344 = vector.shape_cast %31 : vector<64x256xf32> to vector<4x16x256xf32>
    %cst_126 = arith.constant 0.000000e+00 : f32
    %345 = vector.broadcast %cst_126 : f32 to vector<4x16x256xf32>
    %346 = vector.extract_strided_slice %343 {offsets = [0, 0], sizes = [16, 256], strides = [1, 1]} : vector<256x256xf32> to vector<16x256xf32>
    %347 = vector.extract_strided_slice %46 {offsets = [0, 0], sizes = [16, 1], strides = [1, 1]} : vector<16x16xf32> to vector<16x1xf32>
    %348 = vector.broadcast %347 : vector<16x1xf32> to vector<16x256xf32>
    %349 = arith.addf %346, %348 : vector<16x256xf32>
    %350 = vector.extract_strided_slice %344 {offsets = [0, 0, 0], sizes = [4, 1, 256], strides = [1, 1, 1]} : vector<4x16x256xf32> to vector<4x1x256xf32>
    %351 = vector.shape_cast %349 : vector<16x256xf32> to vector<1x16x256xf32>
    %352 = vector.broadcast %350 : vector<4x1x256xf32> to vector<4x16x256xf32>
    %353 = vector.broadcast %351 : vector<1x16x256xf32> to vector<4x16x256xf32>
    %354 = arith.mulf %352, %353 : vector<4x16x256xf32>
    %355 = arith.addf %345, %354 : vector<4x16x256xf32>
    %356 = vector.extract_strided_slice %343 {offsets = [16, 0], sizes = [16, 256], strides = [1, 1]} : vector<256x256xf32> to vector<16x256xf32>
    %357 = vector.extract_strided_slice %46 {offsets = [0, 1], sizes = [16, 1], strides = [1, 1]} : vector<16x16xf32> to vector<16x1xf32>
    %358 = vector.broadcast %357 : vector<16x1xf32> to vector<16x256xf32>
    %359 = arith.addf %356, %358 : vector<16x256xf32>
    %360 = vector.extract_strided_slice %344 {offsets = [0, 1, 0], sizes = [4, 1, 256], strides = [1, 1, 1]} : vector<4x16x256xf32> to vector<4x1x256xf32>
    %361 = vector.shape_cast %359 : vector<16x256xf32> to vector<1x16x256xf32>
    %362 = vector.broadcast %360 : vector<4x1x256xf32> to vector<4x16x256xf32>
    %363 = vector.broadcast %361 : vector<1x16x256xf32> to vector<4x16x256xf32>
    %364 = arith.mulf %362, %363 : vector<4x16x256xf32>
    %365 = arith.addf %355, %364 : vector<4x16x256xf32>
    %366 = vector.extract_strided_slice %343 {offsets = [32, 0], sizes = [16, 256], strides = [1, 1]} : vector<256x256xf32> to vector<16x256xf32>
    %367 = vector.extract_strided_slice %46 {offsets = [0, 2], sizes = [16, 1], strides = [1, 1]} : vector<16x16xf32> to vector<16x1xf32>
    %368 = vector.broadcast %367 : vector<16x1xf32> to vector<16x256xf32>
    %369 = arith.addf %366, %368 : vector<16x256xf32>
    %370 = vector.extract_strided_slice %344 {offsets = [0, 2, 0], sizes = [4, 1, 256], strides = [1, 1, 1]} : vector<4x16x256xf32> to vector<4x1x256xf32>
    %371 = vector.shape_cast %369 : vector<16x256xf32> to vector<1x16x256xf32>
    %372 = vector.broadcast %370 : vector<4x1x256xf32> to vector<4x16x256xf32>
    %373 = vector.broadcast %371 : vector<1x16x256xf32> to vector<4x16x256xf32>
    %374 = arith.mulf %372, %373 : vector<4x16x256xf32>
    %375 = arith.addf %365, %374 : vector<4x16x256xf32>
    %376 = vector.extract_strided_slice %343 {offsets = [48, 0], sizes = [16, 256], strides = [1, 1]} : vector<256x256xf32> to vector<16x256xf32>
    %377 = vector.extract_strided_slice %46 {offsets = [0, 3], sizes = [16, 1], strides = [1, 1]} : vector<16x16xf32> to vector<16x1xf32>
    %378 = vector.broadcast %377 : vector<16x1xf32> to vector<16x256xf32>
    %379 = arith.addf %376, %378 : vector<16x256xf32>
    %380 = vector.extract_strided_slice %344 {offsets = [0, 3, 0], sizes = [4, 1, 256], strides = [1, 1, 1]} : vector<4x16x256xf32> to vector<4x1x256xf32>
    %381 = vector.shape_cast %379 : vector<16x256xf32> to vector<1x16x256xf32>
    %382 = vector.broadcast %380 : vector<4x1x256xf32> to vector<4x16x256xf32>
    %383 = vector.broadcast %381 : vector<1x16x256xf32> to vector<4x16x256xf32>
    %384 = arith.mulf %382, %383 : vector<4x16x256xf32>
    %385 = arith.addf %375, %384 : vector<4x16x256xf32>
    %386 = vector.extract_strided_slice %343 {offsets = [64, 0], sizes = [16, 256], strides = [1, 1]} : vector<256x256xf32> to vector<16x256xf32>
    %387 = vector.extract_strided_slice %46 {offsets = [0, 4], sizes = [16, 1], strides = [1, 1]} : vector<16x16xf32> to vector<16x1xf32>
    %388 = vector.broadcast %387 : vector<16x1xf32> to vector<16x256xf32>
    %389 = arith.addf %386, %388 : vector<16x256xf32>
    %390 = vector.extract_strided_slice %344 {offsets = [0, 4, 0], sizes = [4, 1, 256], strides = [1, 1, 1]} : vector<4x16x256xf32> to vector<4x1x256xf32>
    %391 = vector.shape_cast %389 : vector<16x256xf32> to vector<1x16x256xf32>
    %392 = vector.broadcast %390 : vector<4x1x256xf32> to vector<4x16x256xf32>
    %393 = vector.broadcast %391 : vector<1x16x256xf32> to vector<4x16x256xf32>
    %394 = arith.mulf %392, %393 : vector<4x16x256xf32>
    %395 = arith.addf %385, %394 : vector<4x16x256xf32>
    %396 = vector.extract_strided_slice %343 {offsets = [80, 0], sizes = [16, 256], strides = [1, 1]} : vector<256x256xf32> to vector<16x256xf32>
    %397 = vector.extract_strided_slice %46 {offsets = [0, 5], sizes = [16, 1], strides = [1, 1]} : vector<16x16xf32> to vector<16x1xf32>
    %398 = vector.broadcast %397 : vector<16x1xf32> to vector<16x256xf32>
    %399 = arith.addf %396, %398 : vector<16x256xf32>
    %400 = vector.extract_strided_slice %344 {offsets = [0, 5, 0], sizes = [4, 1, 256], strides = [1, 1, 1]} : vector<4x16x256xf32> to vector<4x1x256xf32>
    %401 = vector.shape_cast %399 : vector<16x256xf32> to vector<1x16x256xf32>
    %402 = vector.broadcast %400 : vector<4x1x256xf32> to vector<4x16x256xf32>
    %403 = vector.broadcast %401 : vector<1x16x256xf32> to vector<4x16x256xf32>
    %404 = arith.mulf %402, %403 : vector<4x16x256xf32>
    %405 = arith.addf %395, %404 : vector<4x16x256xf32>
    %406 = vector.extract_strided_slice %343 {offsets = [96, 0], sizes = [16, 256], strides = [1, 1]} : vector<256x256xf32> to vector<16x256xf32>
    %407 = vector.extract_strided_slice %46 {offsets = [0, 6], sizes = [16, 1], strides = [1, 1]} : vector<16x16xf32> to vector<16x1xf32>
    %408 = vector.broadcast %407 : vector<16x1xf32> to vector<16x256xf32>
    %409 = arith.addf %406, %408 : vector<16x256xf32>
    %410 = vector.extract_strided_slice %344 {offsets = [0, 6, 0], sizes = [4, 1, 256], strides = [1, 1, 1]} : vector<4x16x256xf32> to vector<4x1x256xf32>
    %411 = vector.shape_cast %409 : vector<16x256xf32> to vector<1x16x256xf32>
    %412 = vector.broadcast %410 : vector<4x1x256xf32> to vector<4x16x256xf32>
    %413 = vector.broadcast %411 : vector<1x16x256xf32> to vector<4x16x256xf32>
    %414 = arith.mulf %412, %413 : vector<4x16x256xf32>
    %415 = arith.addf %405, %414 : vector<4x16x256xf32>
    %416 = vector.extract_strided_slice %343 {offsets = [112, 0], sizes = [16, 256], strides = [1, 1]} : vector<256x256xf32> to vector<16x256xf32>
    %417 = vector.extract_strided_slice %46 {offsets = [0, 7], sizes = [16, 1], strides = [1, 1]} : vector<16x16xf32> to vector<16x1xf32>
    %418 = vector.broadcast %417 : vector<16x1xf32> to vector<16x256xf32>
    %419 = arith.addf %416, %418 : vector<16x256xf32>
    %420 = vector.extract_strided_slice %344 {offsets = [0, 7, 0], sizes = [4, 1, 256], strides = [1, 1, 1]} : vector<4x16x256xf32> to vector<4x1x256xf32>
    %421 = vector.shape_cast %419 : vector<16x256xf32> to vector<1x16x256xf32>
    %422 = vector.broadcast %420 : vector<4x1x256xf32> to vector<4x16x256xf32>
    %423 = vector.broadcast %421 : vector<1x16x256xf32> to vector<4x16x256xf32>
    %424 = arith.mulf %422, %423 : vector<4x16x256xf32>
    %425 = arith.addf %415, %424 : vector<4x16x256xf32>
    %426 = vector.extract_strided_slice %343 {offsets = [128, 0], sizes = [16, 256], strides = [1, 1]} : vector<256x256xf32> to vector<16x256xf32>
    %427 = vector.extract_strided_slice %46 {offsets = [0, 8], sizes = [16, 1], strides = [1, 1]} : vector<16x16xf32> to vector<16x1xf32>
    %428 = vector.broadcast %427 : vector<16x1xf32> to vector<16x256xf32>
    %429 = arith.addf %426, %428 : vector<16x256xf32>
    %430 = vector.extract_strided_slice %344 {offsets = [0, 8, 0], sizes = [4, 1, 256], strides = [1, 1, 1]} : vector<4x16x256xf32> to vector<4x1x256xf32>
    %431 = vector.shape_cast %429 : vector<16x256xf32> to vector<1x16x256xf32>
    %432 = vector.broadcast %430 : vector<4x1x256xf32> to vector<4x16x256xf32>
    %433 = vector.broadcast %431 : vector<1x16x256xf32> to vector<4x16x256xf32>
    %434 = arith.mulf %432, %433 : vector<4x16x256xf32>
    %435 = arith.addf %425, %434 : vector<4x16x256xf32>
    %436 = vector.extract_strided_slice %343 {offsets = [144, 0], sizes = [16, 256], strides = [1, 1]} : vector<256x256xf32> to vector<16x256xf32>
    %437 = vector.extract_strided_slice %46 {offsets = [0, 9], sizes = [16, 1], strides = [1, 1]} : vector<16x16xf32> to vector<16x1xf32>
    %438 = vector.broadcast %437 : vector<16x1xf32> to vector<16x256xf32>
    %439 = arith.addf %436, %438 : vector<16x256xf32>
    %440 = vector.extract_strided_slice %344 {offsets = [0, 9, 0], sizes = [4, 1, 256], strides = [1, 1, 1]} : vector<4x16x256xf32> to vector<4x1x256xf32>
    %441 = vector.shape_cast %439 : vector<16x256xf32> to vector<1x16x256xf32>
    %442 = vector.broadcast %440 : vector<4x1x256xf32> to vector<4x16x256xf32>
    %443 = vector.broadcast %441 : vector<1x16x256xf32> to vector<4x16x256xf32>
    %444 = arith.mulf %442, %443 : vector<4x16x256xf32>
    %445 = arith.addf %435, %444 : vector<4x16x256xf32>
    %446 = vector.extract_strided_slice %343 {offsets = [160, 0], sizes = [16, 256], strides = [1, 1]} : vector<256x256xf32> to vector<16x256xf32>
    %447 = vector.extract_strided_slice %46 {offsets = [0, 10], sizes = [16, 1], strides = [1, 1]} : vector<16x16xf32> to vector<16x1xf32>
    %448 = vector.broadcast %447 : vector<16x1xf32> to vector<16x256xf32>
    %449 = arith.addf %446, %448 : vector<16x256xf32>
    %450 = vector.extract_strided_slice %344 {offsets = [0, 10, 0], sizes = [4, 1, 256], strides = [1, 1, 1]} : vector<4x16x256xf32> to vector<4x1x256xf32>
    %451 = vector.shape_cast %449 : vector<16x256xf32> to vector<1x16x256xf32>
    %452 = vector.broadcast %450 : vector<4x1x256xf32> to vector<4x16x256xf32>
    %453 = vector.broadcast %451 : vector<1x16x256xf32> to vector<4x16x256xf32>
    %454 = arith.mulf %452, %453 : vector<4x16x256xf32>
    %455 = arith.addf %445, %454 : vector<4x16x256xf32>
    %456 = vector.extract_strided_slice %343 {offsets = [176, 0], sizes = [16, 256], strides = [1, 1]} : vector<256x256xf32> to vector<16x256xf32>
    %457 = vector.extract_strided_slice %46 {offsets = [0, 11], sizes = [16, 1], strides = [1, 1]} : vector<16x16xf32> to vector<16x1xf32>
    %458 = vector.broadcast %457 : vector<16x1xf32> to vector<16x256xf32>
    %459 = arith.addf %456, %458 : vector<16x256xf32>
    %460 = vector.extract_strided_slice %344 {offsets = [0, 11, 0], sizes = [4, 1, 256], strides = [1, 1, 1]} : vector<4x16x256xf32> to vector<4x1x256xf32>
    %461 = vector.shape_cast %459 : vector<16x256xf32> to vector<1x16x256xf32>
    %462 = vector.broadcast %460 : vector<4x1x256xf32> to vector<4x16x256xf32>
    %463 = vector.broadcast %461 : vector<1x16x256xf32> to vector<4x16x256xf32>
    %464 = arith.mulf %462, %463 : vector<4x16x256xf32>
    %465 = arith.addf %455, %464 : vector<4x16x256xf32>
    %466 = vector.extract_strided_slice %343 {offsets = [192, 0], sizes = [16, 256], strides = [1, 1]} : vector<256x256xf32> to vector<16x256xf32>
    %467 = vector.extract_strided_slice %46 {offsets = [0, 12], sizes = [16, 1], strides = [1, 1]} : vector<16x16xf32> to vector<16x1xf32>
    %468 = vector.broadcast %467 : vector<16x1xf32> to vector<16x256xf32>
    %469 = arith.addf %466, %468 : vector<16x256xf32>
    %470 = vector.extract_strided_slice %344 {offsets = [0, 12, 0], sizes = [4, 1, 256], strides = [1, 1, 1]} : vector<4x16x256xf32> to vector<4x1x256xf32>
    %471 = vector.shape_cast %469 : vector<16x256xf32> to vector<1x16x256xf32>
    %472 = vector.broadcast %470 : vector<4x1x256xf32> to vector<4x16x256xf32>
    %473 = vector.broadcast %471 : vector<1x16x256xf32> to vector<4x16x256xf32>
    %474 = arith.mulf %472, %473 : vector<4x16x256xf32>
    %475 = arith.addf %465, %474 : vector<4x16x256xf32>
    %476 = vector.extract_strided_slice %343 {offsets = [208, 0], sizes = [16, 256], strides = [1, 1]} : vector<256x256xf32> to vector<16x256xf32>
    %477 = vector.extract_strided_slice %46 {offsets = [0, 13], sizes = [16, 1], strides = [1, 1]} : vector<16x16xf32> to vector<16x1xf32>
    %478 = vector.broadcast %477 : vector<16x1xf32> to vector<16x256xf32>
    %479 = arith.addf %476, %478 : vector<16x256xf32>
    %480 = vector.extract_strided_slice %344 {offsets = [0, 13, 0], sizes = [4, 1, 256], strides = [1, 1, 1]} : vector<4x16x256xf32> to vector<4x1x256xf32>
    %481 = vector.shape_cast %479 : vector<16x256xf32> to vector<1x16x256xf32>
    %482 = vector.broadcast %480 : vector<4x1x256xf32> to vector<4x16x256xf32>
    %483 = vector.broadcast %481 : vector<1x16x256xf32> to vector<4x16x256xf32>
    %484 = arith.mulf %482, %483 : vector<4x16x256xf32>
    %485 = arith.addf %475, %484 : vector<4x16x256xf32>
    %486 = vector.extract_strided_slice %343 {offsets = [224, 0], sizes = [16, 256], strides = [1, 1]} : vector<256x256xf32> to vector<16x256xf32>
    %487 = vector.extract_strided_slice %46 {offsets = [0, 14], sizes = [16, 1], strides = [1, 1]} : vector<16x16xf32> to vector<16x1xf32>
    %488 = vector.broadcast %487 : vector<16x1xf32> to vector<16x256xf32>
    %489 = arith.addf %486, %488 : vector<16x256xf32>
    %490 = vector.extract_strided_slice %344 {offsets = [0, 14, 0], sizes = [4, 1, 256], strides = [1, 1, 1]} : vector<4x16x256xf32> to vector<4x1x256xf32>
    %491 = vector.shape_cast %489 : vector<16x256xf32> to vector<1x16x256xf32>
    %492 = vector.broadcast %490 : vector<4x1x256xf32> to vector<4x16x256xf32>
    %493 = vector.broadcast %491 : vector<1x16x256xf32> to vector<4x16x256xf32>
    %494 = arith.mulf %492, %493 : vector<4x16x256xf32>
    %495 = arith.addf %485, %494 : vector<4x16x256xf32>
    %496 = vector.extract_strided_slice %343 {offsets = [240, 0], sizes = [16, 256], strides = [1, 1]} : vector<256x256xf32> to vector<16x256xf32>
    %497 = vector.extract_strided_slice %46 {offsets = [0, 15], sizes = [16, 1], strides = [1, 1]} : vector<16x16xf32> to vector<16x1xf32>
    %498 = vector.broadcast %497 : vector<16x1xf32> to vector<16x256xf32>
    %499 = arith.addf %496, %498 : vector<16x256xf32>
    %500 = vector.extract_strided_slice %344 {offsets = [0, 15, 0], sizes = [4, 1, 256], strides = [1, 1, 1]} : vector<4x16x256xf32> to vector<4x1x256xf32>
    %501 = vector.shape_cast %499 : vector<16x256xf32> to vector<1x16x256xf32>
    %502 = vector.broadcast %500 : vector<4x1x256xf32> to vector<4x16x256xf32>
    %503 = vector.broadcast %501 : vector<1x16x256xf32> to vector<4x16x256xf32>
    %504 = arith.mulf %502, %503 : vector<4x16x256xf32>
    %505 = arith.addf %495, %504 : vector<4x16x256xf32>
    %c0_127 = arith.constant 0 : index
    %c0_128 = arith.constant 0 : index
    %c0_129 = arith.constant 0 : index
    %c0_130 = arith.constant 0 : index
    %506 = vector.load %arg8[%c0_127, %c0_128, %c0_129, %c0_130] : memref<1x4x16x256xf32, #tpu.memory_space<vmem>>, vector<1x4x16x256xf32>
    %507 = vector.shape_cast %506 : vector<1x4x16x256xf32> to vector<4x16x256xf32>
    %508 = vector.shape_cast %505 : vector<4x16x256xf32> to vector<1x4x16x256xf32>
    tpu.vector_store %arg8[%c0_127, %c0_128, %c0_129, %c0_130], %508 {strides = array<i32>} : memref<1x4x16x256xf32, #tpu.memory_space<vmem>>, vector<1x4x16x256xf32>,
    return
  }
  func.func @transform_0(%arg0: i32) -> (i32, i32, i32) {
    %c0_i32 = arith.constant 0 : i32
    %c0_i32_0 = arith.constant 0 : i32
    %c0_i32_1 = arith.constant 0 : i32
    return %arg0, %c0_i32, %c0_i32_0 : i32, i32, i32
  }
  func.func @transform_1(%arg0: i32) -> (i32, i32) {
    %c0_i32 = arith.constant 0 : i32
    %c0_i32_0 = arith.constant 0 : i32
    %c0_i32_1 = arith.constant 0 : i32
    return %c0_i32, %c0_i32_0 : i32, i32
  }
  func.func @transform_2(%arg0: i32) -> (i32, i32) {
    %c0_i32 = arith.constant 0 : i32
    %c0_i32_0 = arith.constant 0 : i32
    %c0_i32_1 = arith.constant 0 : i32
    return %c0_i32, %c0_i32_0 : i32, i32
  }
  func.func @transform_3(%arg0: i32) -> (i32, i32) {
    %c0_i32 = arith.constant 0 : i32
    %c0_i32_0 = arith.constant 0 : i32
    %c0_i32_1 = arith.constant 0 : i32
    return %c0_i32, %c0_i32_0 : i32, i32
  }
  func.func @transform_4(%arg0: i32) -> (i32, i32) {
    %c0_i32 = arith.constant 0 : i32
    %c0_i32_0 = arith.constant 0 : i32
    %c0_i32_1 = arith.constant 0 : i32
    return %c0_i32, %c0_i32_0 : i32, i32
  }
  func.func @transform_5(%arg0: i32) -> (i32, i32) {
    %c0_i32 = arith.constant 0 : i32
    %c0_i32_0 = arith.constant 0 : i32
    %c0_i32_1 = arith.constant 0 : i32
    return %c0_i32, %c0_i32_0 : i32, i32
  }
  func.func @transform_6(%arg0: i32) -> (i32, i32) {
    %c0_i32 = arith.constant 0 : i32
    %c0_i32_0 = arith.constant 0 : i32
    %c0_i32_1 = arith.constant 0 : i32
    return %c0_i32, %c0_i32_0 : i32, i32
  }
  func.func @transform_7(%arg0: i32) -> (i32, i32, i32, i32) {
    %c0_i32 = arith.constant 0 : i32
    %c0_i32_0 = arith.constant 0 : i32
    %c0_i32_1 = arith.constant 0 : i32
    %c0_i32_2 = arith.constant 0 : i32
    return %arg0, %c0_i32, %c0_i32_0, %c0_i32_1 : i32, i32, i32, i32
  }
}

</mosaic_0001>

<llo_original>
// kernel: mul.1
$region0: #{mul.1}
  %s0 = inlined_call_operand.vmem [shape: f32[16,7,7], index: 0, kind: input, shape index: {}]
  %s1 = inlined_call_operand.vmem [shape: f32[16,49], index: 1, kind: output, shape index: {}]
  %v2 = vld [vmem:[%s0] sm:$0x7f]
  %vm3 = vcmask 130048
  %4 = vst.msk [vmem:[%s1] sm:$0x7f] %vm3, %v2
  %s5 = scalar_lea.vmem %s0, 8
  %v6 = vld [vmem:[%s5] sm:$0x7f]
  %vm7 = vcmask 130048
  %s8 = scalar_lea.vmem %s1, 7
  %9 = vst.msk [vmem:[%s8] sm:$0x7f] %vm7, %v6
  %s10 = scalar_lea.vmem %s0, 16
  %v11 = vld [vmem:[%s10] sm:$0x7f]
  %vm12 = vcmask 130048
  %s13 = scalar_lea.vmem %s1, 14
  %14 = vst.msk [vmem:[%s13] sm:$0x7f] %vm12, %v11
  %s15 = scalar_lea.vmem %s0, 24
  %v16 = vld [vmem:[%s15] sm:$0x7f]
  %vm17 = vcmask 130048
  %s18 = scalar_lea.vmem %s1, 21
  %19 = vst.msk [vmem:[%s18] sm:$0x7f] %vm17, %v16
  %s20 = scalar_lea.vmem %s0, 32
  %v21 = vld [vmem:[%s20] sm:$0x7f]
  %vm22 = vcmask 130048
  %s23 = scalar_lea.vmem %s1, 28
  %24 = vst.msk [vmem:[%s23] sm:$0x7f] %vm22, %v21
  %s25 = scalar_lea.vmem %s0, 40
  %v26 = vld [vmem:[%s25] sm:$0x7f]
  %vm27 = vcmask 130048
  %s28 = scalar_lea.vmem %s1, 35
  %29 = vst.msk [vmem:[%s28] sm:$0x7f] %vm27, %v26
  %s30 = scalar_lea.vmem %s0, 48
  %v31 = vld [vmem:[%s30] sm:$0x7f]
  %vm32 = vcmask 130048
  %s33 = scalar_lea.vmem %s1, 42
  %34 = vst.msk [vmem:[%s33] sm:$0x7f] %vm32, %v31

// kernel: local_sa_block.1
$region0: #{local_sa_block.1}
  #allocation0 [shape = 'u32[]', space=smem, size = 0x4, offset = 0x4, fixed_abs, tag = 'smem constant byte address 0x4 - core index']
  #allocation1 [shape = 'u32[144,128]{1,0:T(1,128)}', space=vmem, size = 0x12000, scoped, tag = 'internal scratch']
  #allocation2 [shape = 'bf16[784,256]{1,0:T(16,128)(2,1)}', space=vmem, size = 0x62000, scoped, tag = 'scratch operand']
  %s0 = inlined_call_operand.vmem [shape: bf16[2,64,256], index: 0, kind: input, shape index: {}]
  %s1 = inlined_call_operand.vmem [shape: bf16[96,64], index: 1, kind: input, shape index: {}]
  %s2 = inlined_call_operand.vmem [shape: f32[96,96], index: 2, kind: input, shape index: {}]
  %s3 = inlined_call_operand.vmem [shape: f32[96,1], index: 3, kind: input, shape index: {}]
  %s4 = inlined_call_operand.vmem [shape: f32[96,1], index: 4, kind: input, shape index: {}]
  %s5 = inlined_call_operand.vmem [shape: bf16[256,784], index: 5, kind: input, shape index: {}]
  %s6 = inlined_call_operand.vmem [shape: f32[49,256], index: 6, kind: input, shape index: {}]
  %s7 = inlined_call_operand.vmem [shape: f32[2,4,16,256], index: 7, kind: output, shape index: {}]
  %s8 = sld [smem:[#allocation0]]
  $region61: #{local_sa_block.1} parent=0
    _
  %s10 = ssub.s32 1, %s8
  %s11 = scalar_select 0, %s10, %s8
  loop: start=0, step=1, limit=4
  $region2: #{local_sa_block.1} parent=0 // loop_pre_header
    _
  $region3: #{local_sa_block.1} parent=0 // loop_header
    %s13 = sphi 0, %s17
    %p14 = scmp.ge.s32.totalorder %s13, 4
    %s23 = sphi 0, %s25
    %s26 = sphi 0, %s23
    %s27 = sphi 0, %s26
    %s43 = sphi 0, %s27
    %s47 = sphi 0, %s47
    %s49 = sphi 0, %s47
    %s50 = sphi 0, %s49
    %s64 = sphi 0, %s50
    %s68 = sphi 0, %s68
    %s70 = sphi 0, %s68
    %s71 = sphi 0, %s70
    %s85 = sphi 0, %s71
    %s89 = sphi 0, %s89
    %s91 = sphi 0, %s89
    %s92 = sphi 0, %s91
    %s106 = sphi 0, %s92
    %s110 = sphi 0, %s110
    %s112 = sphi 0, %s110
    %s113 = sphi 0, %s112
    %s127 = sphi 0, %s113
    %s131 = sphi 0, %s131
    %s133 = sphi 0, %s131
    %s134 = sphi 0, %s133
    %s148 = sphi 0, %s134
    %s152 = sphi 0, %s152
    %s154 = sphi 0, %s152
    %s155 = sphi 0, %s154
    %s169 = sphi 0, %s155
    %s175 = sphi 0, %s177
    %s178 = sphi 0, %s175
    %s179 = sphi 0, %s178
    %s195 = sphi 0, %s179
  $region4: #{local_sa_block.1} parent=0 // loop_header_branch
    %16 = sbr.rel (%p14) target = $region8
  $region5: #{local_sa_block.1} parent=0 // loop_body
    %s18 = ssub.s32 %s13, 1
    %s19 = ssub.s32 %s13, 2
    %s20 = sadd.s32 %s13, 1
    %s21 = ssub.s32 %s13, %s20
    %p22 = scmp.eq.s32.totalorder %s21, 0
    %s24 = sadd.s32 %s23, 1
    %s25 = scalar_select %p22, %s23, %s24
    %p28 = pneg %p22
    %p29 = scmp.eq.s32.totalorder %s13, 1
    %p30 = por %p28, %p29
    %p31 = scmp.ne.s32.totalorder %s23, %s26
    %p32 = scmp.eq.s32.totalorder %s13, 0
    %p33 = por %p31, %p32
    %p34 = scmp.ne.s32.totalorder %s23, %s26
    %p35 = scmp.eq.s32.totalorder %s18, 1
    %p36 = por %p34, %p35
    %p37 = scmp.ne.s32.totalorder %s26, %s27
    %p38 = scmp.eq.s32.totalorder %s18, 0
    %p39 = por %p37, %p38
    %p40 = scmp.ne.s32.totalorder %s26, %s27
    %p41 = scmp.eq.s32.totalorder %s19, 1
    %p42 = por %p40, %p41
    %p44 = scmp.ne.s32.totalorder %s27, %s43
    %p45 = scmp.eq.s32.totalorder %s19, 0
    %p46 = por %p44, %p45
    %s48 = sadd.s32 %s47, 1
    %p51 = scmp.eq.s32.totalorder %s13, 1
    %p52 = scmp.ne.s32.totalorder %s47, %s49
    %p53 = scmp.eq.s32.totalorder %s13, 0
    %p54 = por %p52, %p53
    %p55 = scmp.ne.s32.totalorder %s47, %s49
    %p56 = scmp.eq.s32.totalorder %s18, 1
    %p57 = por %p55, %p56
    %p58 = scmp.ne.s32.totalorder %s49, %s50
    %p59 = scmp.eq.s32.totalorder %s18, 0
    %p60 = por %p58, %p59
    %p61 = scmp.ne.s32.totalorder %s49, %s50
    %p62 = scmp.eq.s32.totalorder %s19, 1
    %p63 = por %p61, %p62
    %p65 = scmp.ne.s32.totalorder %s50, %s64
    %p66 = scmp.eq.s32.totalorder %s19, 0
    %p67 = por %p65, %p66
    %s69 = sadd.s32 %s68, 1
    %p72 = scmp.eq.s32.totalorder %s13, 1
    %p73 = scmp.ne.s32.totalorder %s68, %s70
    %p74 = scmp.eq.s32.totalorder %s13, 0
    %p75 = por %p73, %p74
    %p76 = scmp.ne.s32.totalorder %s68, %s70
    %p77 = scmp.eq.s32.totalorder %s18, 1
    %p78 = por %p76, %p77
    %p79 = scmp.ne.s32.totalorder %s70, %s71
    %p80 = scmp.eq.s32.totalorder %s18, 0
    %p81 = por %p79, %p80
    %p82 = scmp.ne.s32.totalorder %s70, %s71
    %p83 = scmp.eq.s32.totalorder %s19, 1
    %p84 = por %p82, %p83
    %p86 = scmp.ne.s32.totalorder %s71, %s85
    %p87 = scmp.eq.s32.totalorder %s19, 0
    %p88 = por %p86, %p87
    %s90 = sadd.s32 %s89, 1
    %p93 = scmp.eq.s32.totalorder %s13, 1
    %p94 = scmp.ne.s32.totalorder %s89, %s91
    %p95 = scmp.eq.s32.totalorder %s13, 0
    %p96 = por %p94, %p95
    %p97 = scmp.ne.s32.totalorder %s89, %s91
    %p98 = scmp.eq.s32.totalorder %s18, 1
    %p99 = por %p97, %p98
    %p100 = scmp.ne.s32.totalorder %s91, %s92
    %p101 = scmp.eq.s32.totalorder %s18, 0
    %p102 = por %p100, %p101
    %p103 = scmp.ne.s32.totalorder %s91, %s92
    %p104 = scmp.eq.s32.totalorder %s19, 1
    %p105 = por %p103, %p104
    %p107 = scmp.ne.s32.totalorder %s92, %s106
    %p108 = scmp.eq.s32.totalorder %s19, 0
    %p109 = por %p107, %p108
    %s111 = sadd.s32 %s110, 1
    %p114 = scmp.eq.s32.totalorder %s13, 1
    %p115 = scmp.ne.s32.totalorder %s110, %s112
    %p116 = scmp.eq.s32.totalorder %s13, 0
    %p117 = por %p115, %p116
    %p118 = scmp.ne.s32.totalorder %s110, %s112
    %p119 = scmp.eq.s32.totalorder %s18, 1
    %p120 = por %p118, %p119
    %p121 = scmp.ne.s32.totalorder %s112, %s113
    %p122 = scmp.eq.s32.totalorder %s18, 0
    %p123 = por %p121, %p122
    %p124 = scmp.ne.s32.totalorder %s112, %s113
    %p125 = scmp.eq.s32.totalorder %s19, 1
    %p126 = por %p124, %p125
    %p128 = scmp.ne.s32.totalorder %s113, %s127
    %p129 = scmp.eq.s32.totalorder %s19, 0
    %p130 = por %p128, %p129
    %s132 = sadd.s32 %s131, 1
    %p135 = scmp.eq.s32.totalorder %s13, 1
    %p136 = scmp.ne.s32.totalorder %s131, %s133
    %p137 = scmp.eq.s32.totalorder %s13, 0
    %p138 = por %p136, %p137
    %p139 = scmp.ne.s32.totalorder %s131, %s133
    %p140 = scmp.eq.s32.totalorder %s18, 1
    %p141 = por %p139, %p140
    %p142 = scmp.ne.s32.totalorder %s133, %s134
    %p143 = scmp.eq.s32.totalorder %s18, 0
    %p144 = por %p142, %p143
    %p145 = scmp.ne.s32.totalorder %s133, %s134
    %p146 = scmp.eq.s32.totalorder %s19, 1
    %p147 = por %p145, %p146
    %p149 = scmp.ne.s32.totalorder %s134, %s148
    %p150 = scmp.eq.s32.totalorder %s19, 0
    %p151 = por %p149, %p150
    %s153 = sadd.s32 %s152, 1
    %p156 = scmp.eq.s32.totalorder %s13, 1
    %p157 = scmp.ne.s32.totalorder %s152, %s154
    %p158 = scmp.eq.s32.totalorder %s13, 0
    %p159 = por %p157, %p158
    %p160 = scmp.ne.s32.totalorder %s152, %s154
    %p161 = scmp.eq.s32.totalorder %s18, 1
    %p162 = por %p160, %p161
    %p163 = scmp.ne.s32.totalorder %s154, %s155
    %p164 = scmp.eq.s32.totalorder %s18, 0
    %p165 = por %p163, %p164
    %p166 = scmp.ne.s32.totalorder %s154, %s155
    %p167 = scmp.eq.s32.totalorder %s19, 1
    %p168 = por %p166, %p167
    %p170 = scmp.ne.s32.totalorder %s155, %s169
    %p171 = scmp.eq.s32.totalorder %s19, 0
    %p172 = por %p170, %p171
    %s173 = ssub.s32 %s13, %s20
    %p174 = scmp.eq.s32.totalorder %s173, 0
    %s176 = sadd.s32 %s175, 1
    %s177 = scalar_select %p174, %s175, %s176
    %p180 = pneg %p174
    %p181 = scmp.eq.s32.totalorder %s13, 1
    %p182 = por %p180, %p181
    %p183 = scmp.ne.s32.totalorder %s175, %s178
    %p184 = scmp.eq.s32.totalorder %s13, 0
    %p185 = por %p183, %p184
    %p186 = scmp.ne.s32.totalorder %s175, %s178
    %p187 = scmp.eq.s32.totalorder %s18, 1
    %p188 = por %p186, %p187
    %p189 = scmp.ne.s32.totalorder %s178, %s179
    %p190 = scmp.eq.s32.totalorder %s18, 0
    %p191 = por %p189, %p190
    %p192 = scmp.ne.s32.totalorder %s178, %s179
    %p193 = scmp.eq.s32.totalorder %s19, 1
    %p194 = por %p192, %p193
    %p196 = scmp.ne.s32.totalorder %s179, %s195
    %p197 = scmp.eq.s32.totalorder %s19, 0
    %p198 = por %p196, %p197
    %p199 = scmp.le.s32.totalorder 1, %s13
    %p200 = scmp.lt.s32.totalorder %s13, 3
    %p201 = pnand %p199, %p200
    %p202 = pneg %p201
    // Predicated region
    $region9: #{local_sa_block.1} parent=5 // pred_check
      _
    $region10: #{local_sa_block.1} parent=5 // pred_check_branch
      %204 = sbr.rel (%p201) target = $region12
    $region11: #{local_sa_block.1} parent=5 // pred_region
      %s205 = ssub.s32 %s13, 1
      // Predicated region
      $region13: #{local_sa_block.1} parent=11 // pred_check
        %p206 = pneg %p60
      $region14: #{local_sa_block.1} parent=11 // pred_check_branch
        %208 = sbr.rel (%p206) target = $region16
      $region15: #{local_sa_block.1} parent=11 // pred_region
        _
      $region16: #{local_sa_block.1} parent=11 // pred_fallthru
        _
      // Predicated region
      $region17: #{local_sa_block.1} parent=11 // pred_check
        %p209 = pneg %p81
      $region18: #{local_sa_block.1} parent=11 // pred_check_branch
        %211 = sbr.rel (%p209) target = $region20
      $region19: #{local_sa_block.1} parent=11 // pred_region
        _
      $region20: #{local_sa_block.1} parent=11 // pred_fallthru
        _
      // Predicated region
      $region21: #{local_sa_block.1} parent=11 // pred_check
        %p212 = pneg %p102
      $region22: #{local_sa_block.1} parent=11 // pred_check_branch
        %214 = sbr.rel (%p212) target = $region24
      $region23: #{local_sa_block.1} parent=11 // pred_region
        _
      $region24: #{local_sa_block.1} parent=11 // pred_fallthru
        _
      // Predicated region
      $region25: #{local_sa_block.1} parent=11 // pred_check
        %p215 = pneg %p123
      $region26: #{local_sa_block.1} parent=11 // pred_check_branch
        %217 = sbr.rel (%p215) target = $region28
      $region27: #{local_sa_block.1} parent=11 // pred_region
        _
      $region28: #{local_sa_block.1} parent=11 // pred_fallthru
        _
      // Predicated region
      $region29: #{local_sa_block.1} parent=11 // pred_check
        %p218 = pneg %p144
      $region30: #{local_sa_block.1} parent=11 // pred_check_branch
        %220 = sbr.rel (%p218) target = $region32
      $region31: #{local_sa_block.1} parent=11 // pred_region
        _
      $region32: #{local_sa_block.1} parent=11 // pred_fallthru
        _
      // Predicated region
      $region33: #{local_sa_block.1} parent=11 // pred_check
        %p221 = pneg %p165
      $region34: #{local_sa_block.1} parent=11 // pred_check_branch
        %223 = sbr.rel (%p221) target = $region36
      $region35: #{local_sa_block.1} parent=11 // pred_region
        _
      $region36: #{local_sa_block.1} parent=11 // pred_fallthru
        _
    $region12: #{local_sa_block.1} parent=5 // pred_fallthru
      _
    %p224 = scmp.lt.s32.totalorder %s13, 2
    // Predicated region
    $region37: #{local_sa_block.1} parent=5 // pred_check
      %p225 = pneg %p224
    $region38: #{local_sa_block.1} parent=5 // pred_check_branch
      %227 = sbr.rel (%p225) target = $region40
    $region39: #{local_sa_block.1} parent=5 // pred_region
      // Predicated region
      $region41: #{local_sa_block.1} parent=39 // pred_check
        %p228 = pneg %p33
      $region42: #{local_sa_block.1} parent=39 // pred_check_branch
        %230 = sbr.rel (%p228) target = $region44
      $region43: #{local_sa_block.1} parent=39 // pred_region
        %p231 = scmp.lt.s32.totalorder %s13, 1
        %s232 = scalar_select %p231, %s13, 1
        %s233 = smul.addr %s232, 16
        %s234 = smul.addr %s233, 4
        %s235 = scalar_lea.vmem %s0, %s234
      $region44: #{local_sa_block.1} parent=39 // pred_fallthru
        _
    $region40: #{local_sa_block.1} parent=5 // pred_fallthru
      _
    %p236 = scmp.le.s32.totalorder 1, %s13
    %p237 = scmp.lt.s32.totalorder %s13, 3
    %p238 = pnand %p236, %p237
    %p239 = pneg %p238
    // Predicated region
    $region45: #{local_sa_block.1} parent=5 // pred_check
      _
    $region46: #{local_sa_block.1} parent=5 // pred_check_branch
      %241 = sbr.rel (%p238) target = $region48
    $region47: #{local_sa_block.1} parent=5 // pred_region
      %s242 = ssub.s32 %s13, 1
      %p243 = scmp.lt.s32.totalorder %s18, 1
      %s244 = scalar_select %p243, %s18, 1
      %s245 = smul.addr %s244, 16
      %s246 = smul.addr %s245, 4
      %s247 = scalar_lea.vmem %s0, %s246
      %p248 = pneg %p39
      %p249 = pneg %p36
      %p250 = pneg %p60
      %p251 = pneg %p57
      %p252 = pneg %p81
      %p253 = pneg %p78
      %p254 = pneg %p102
      %p255 = pneg %p99
      %p256 = pneg %p123
      %p257 = pneg %p120
      %p258 = pneg %p144
      %p259 = pneg %p141
      %p260 = pneg %p165
      %p261 = pneg %p162
      %p262 = pneg %p191
      %p263 = pneg %p188
      %p264 = scmp.lt.s32.totalorder %s18, 1
      %s265 = scalar_select %p264, %s18, 1
      %s266 = smul.addr %s265, 16
      %s267 = smul.addr %s266, 8
      %s268 = scalar_lea.vmem %s7, %s267
      %p269 = scmp.lt.s32.totalorder %s18, 1
      %s270 = scalar_select %p269, %s18, 1
      %s271 = smul.addr %s270, 16
      %s272 = smul.addr %s271, 4
      %s273 = scalar_lea.vmem %s0, %s272
      %p274 = scmp.lt.s32.totalorder %s18, 1
      %s275 = scalar_select %p274, %s18, 1
      %s276 = smul.addr %s275, 16
      %s277 = smul.addr %s276, 8
      %s278 = scalar_lea.vmem %s7, %s277
      %v280 = vld [vmem:[%s273] sm:$0xff]
      %v281 = vld [vmem:[%s273 + $0x8] sm:$0xff]
      %v282 = vld [vmem:[%s273 + $0x10] sm:$0xff]
      %v283 = vld [vmem:[%s273 + $0x18] sm:$0xff]
      %v284 = vld [vmem:[%s273 + $0x20] sm:$0xff]
      %v285 = vld [vmem:[%s273 + $0x28] sm:$0xff]
      %v286 = vld [vmem:[%s273 + $0x30] sm:$0xff]
      %v287 = vld [vmem:[%s273 + $0x38] sm:$0xff]
      %v288 = vld [vmem:[%s1] sm:$0xf]
      %v289 = vld [vmem:[%s1 + $0x4] sm:$0xf]
      %v290 = vld [vmem:[%s1 + $0x8] sm:$0xf]
      %v291 = vld [vmem:[%s1 + $0xc] sm:$0xf]
      %v292 = vld [vmem:[%s1 + $0x10] sm:$0xf]
      %v293 = vld [vmem:[%s1 + $0x14] sm:$0xf]
      %v294 = vld [vmem:[%s1 + $0x18] sm:$0xf]
      %v295 = vld [vmem:[%s1 + $0x1c] sm:$0xf]
      %v296 = vld [vmem:[%s1 + $0x20] sm:$0xf]
      %v297 = vld [vmem:[%s1 + $0x24] sm:$0xf]
      %v298 = vld [vmem:[%s1 + $0x28] sm:$0xf]
      %v299 = vld [vmem:[%s1 + $0x2c] sm:$0xf]
      %v312 = vunpack.c.l.b16 %v288
      %v313 = vunpack.c.l.b16 %v289
      %v314 = vunpack.c.l.b16 %v290
      %v315 = vunpack.c.l.b16 %v291
      %v316 = vunpack.c.l.b16 %v292
      %v317 = vunpack.c.l.b16 %v293
      %v318 = vunpack.c.l.b16 %v294
      %v319 = vunpack.c.l.b16 %v295
      %v320 = vunpack.c.l.b16 %v296
      %v321 = vunpack.c.l.b16 %v297
      %v322 = vunpack.c.l.b16 %v298
      %v323 = vunpack.c.l.b16 %v299
      %v324 = vpack.c.b16 %v313, %v312
      %v325 = vpack.c.b16 %v315, %v314
      %v326 = vpack.c.b16 %v317, %v316
      %v327 = vpack.c.b16 %v319, %v318
      %v328 = vpack.c.b16 %v321, %v320
      %v329 = vpack.c.b16 %v323, %v322
      %v338 = vunpack.c.l.b16 %v280
      %v339 = vunpack.c.h.b16 %v280
      %v340 = vunpack.c.l.b16 %v281
      %v341 = vunpack.c.h.b16 %v281
      %v342 = vunpack.c.l.b16 %v282
      %v343 = vunpack.c.h.b16 %v282
      %v344 = vunpack.c.l.b16 %v283
      %v345 = vunpack.c.h.b16 %v283
      %v346 = vunpack.c.l.b16 %v284
      %v347 = vunpack.c.h.b16 %v284
      %v348 = vunpack.c.l.b16 %v285
      %v349 = vunpack.c.h.b16 %v285
      %v350 = vunpack.c.l.b16 %v286
      %v351 = vunpack.c.h.b16 %v286
      %v352 = vunpack.c.l.b16 %v287
      %v353 = vunpack.c.h.b16 %v287
      %v354 = vpack.c.b16 %v340, %v338
      %v355 = vpack.c.b16 %v341, %v339
      %v356 = vpack.c.b16 %v344, %v342
      %v357 = vpack.c.b16 %v345, %v343
      %v358 = vpack.c.b16 %v348, %v346
      %v359 = vpack.c.b16 %v349, %v347
      %v360 = vpack.c.b16 %v352, %v350
      %v361 = vpack.c.b16 %v353, %v351
      %vm370 = vcmask 523264
      %v372 = vsel %vm370, %v324, 0
      %v375 = vsel %vm370, %v325, 0
      %v378 = vsel %vm370, %v326, 0
      %v381 = vsel %vm370, %v327, 0
      %v384 = vsel %vm370, %v328, 0
      %v387 = vsel %vm370, %v329, 0
      %389 = vmatprep.subr.bf16.mxu0 %v355
      %390 = vmatpush1.bf16.msra.mxu0 %v354
      %391 = vmatprep.subr.bf16.mxu0 %v357
      %392 = vmatpush1.bf16.msra.mxu0 %v356
      %393 = vmatprep.subr.bf16.mxu0 %v359
      %394 = vmatpush1.bf16.msra.mxu0 %v358
      %395 = vmatprep.subr.bf16.mxu0 %v361
      %396 = vmatpush1.bf16.msra.mxu0 %v360
      %397 = vmatprep.subr.bf16.mxu0 0
      %398 = vmatpush1.bf16.msra.mxu0 0
      %399 = vmatprep.subr.bf16.mxu0 0
      %400 = vmatpush1.bf16.msra.mxu0 0
      %401 = vmatprep.subr.bf16.mxu0 0
      %402 = vmatpush1.bf16.msra.mxu0 0
      %403 = vmatprep.subr.bf16.mxu0 0
      %404 = vmatpush1.bf16.msra.mxu0 0
      %405 = vmatprep.subr.bf16.mxu0 0
      %406 = vmatpush1.bf16.msra.mxu0 0
      %407 = vmatprep.subr.bf16.mxu0 0
      %408 = vmatpush1.bf16.msra.mxu0 0
      %409 = vmatprep.subr.bf16.mxu0 0
      %410 = vmatpush1.bf16.msra.mxu0 0
      %411 = vmatprep.subr.bf16.mxu0 0
      %412 = vmatpush1.bf16.msra.mxu0 0
      %413 = vmatprep.subr.bf16.mxu0 0
      %414 = vmatpush1.bf16.msra.mxu0 0
      %415 = vmatprep.subr.bf16.mxu0 0
      %416 = vmatpush1.bf16.msra.mxu0 0
      %417 = vmatprep.subr.bf16.mxu0 0
      %418 = vmatpush1.bf16.msra.mxu0 0
      %419 = vmatprep.subr.bf16.mxu0 0
      %420 = vmatpush1.bf16.msra.mxu0 0
      %421 = vmatprep.mubr.bf16.mxu0 0
      %422 = vmatmul.mubr.bf16.gmra.mrb[0].mxu0 %v372
      %v423 = vpop.f32.mrb[0].mxu0
      %v424 = vadd.f32 0.0, %v423
      %v425 = vpop.f32.mrb[0].mxu0
      %v426 = vadd.f32 0.0, %v425
      %v427 = vpop.f32.mrb[0].mxu0
      %v428 = vadd.f32 0.0, %v427
      %v429 = vpop.f32.mrb[0].mxu0
      %v430 = vadd.f32 0.0, %v429
      %431 = vmatprep.mubr.bf16.mxu0 0
      %432 = vmatmul.mubr.bf16.gmra.mrb[0].mxu0 %v375
      %v433 = vpop.f32.mrb[0].mxu0
      %v434 = vadd.f32 0.0, %v433
      %v435 = vpop.f32.mrb[0].mxu0
      %v436 = vadd.f32 0.0, %v435
      %v437 = vpop.f32.mrb[0].mxu0
      %v438 = vadd.f32 0.0, %v437
      %v439 = vpop.f32.mrb[0].mxu0
      %v440 = vadd.f32 0.0, %v439
      %441 = vmatprep.mubr.bf16.mxu0 0
      %442 = vmatmul.mubr.bf16.gmra.mrb[0].mxu0 %v378
      %v443 = vpop.f32.mrb[0].mxu0
      %v444 = vadd.f32 0.0, %v443
      %v445 = vpop.f32.mrb[0].mxu0
      %v446 = vadd.f32 0.0, %v445
      %v447 = vpop.f32.mrb[0].mxu0
      %v448 = vadd.f32 0.0, %v447
      %v449 = vpop.f32.mrb[0].mxu0
      %v450 = vadd.f32 0.0, %v449
      %451 = vmatprep.mubr.bf16.mxu0 0
      %452 = vmatmul.mubr.bf16.gmra.mrb[0].mxu0 %v381
      %v453 = vpop.f32.mrb[0].mxu0
      %v454 = vadd.f32 0.0, %v453
      %v455 = vpop.f32.mrb[0].mxu0
      %v456 = vadd.f32 0.0, %v455
      %v457 = vpop.f32.mrb[0].mxu0
      %v458 = vadd.f32 0.0, %v457
      %v459 = vpop.f32.mrb[0].mxu0
      %v460 = vadd.f32 0.0, %v459
      %461 = vmatprep.mubr.bf16.mxu0 0
      %462 = vmatmul.mubr.bf16.gmra.mrb[0].mxu0 %v384
      %v463 = vpop.f32.mrb[0].mxu0
      %v464 = vadd.f32 0.0, %v463
      %v465 = vpop.f32.mrb[0].mxu0
      %v466 = vadd.f32 0.0, %v465
      %v467 = vpop.f32.mrb[0].mxu0
      %v468 = vadd.f32 0.0, %v467
      %v469 = vpop.f32.mrb[0].mxu0
      %v470 = vadd.f32 0.0, %v469
      %471 = vmatprep.mubr.bf16.mxu0 0
      %472 = vmatmul.mubr.bf16.gmra.mrb[0].mxu0 %v387
      %v473 = vpop.f32.mrb[0].mxu0
      %v474 = vadd.f32 0.0, %v473
      %v475 = vpop.f32.mrb[0].mxu0
      %v476 = vadd.f32 0.0, %v475
      %v477 = vpop.f32.mrb[0].mxu0
      %v478 = vadd.f32 0.0, %v477
      %v479 = vpop.f32.mrb[0].mxu0
      %v480 = vadd.f32 0.0, %v479
      %481 = vdwg.mxu0
      %v482 = vadd.f32 %v424, %v426
      %483 = vadd.xlane.f32.xlu0 %v482
      %v484 = vpop.xlane.xlu0 %483
      %v485 = vadd.f32 %v428, %v430
      %486 = vadd.xlane.f32.xlu0 %v485
      %v487 = vpop.xlane.xlu0 %486
      %v488 = vadd.f32 %v434, %v436
      %489 = vadd.xlane.f32.xlu0 %v488
      %v490 = vpop.xlane.xlu0 %489
      %v491 = vadd.f32 %v438, %v440
      %492 = vadd.xlane.f32.xlu0 %v491
      %v493 = vpop.xlane.xlu0 %492
      %v494 = vadd.f32 %v444, %v446
      %495 = vadd.xlane.f32.xlu0 %v494
      %v496 = vpop.xlane.xlu0 %495
      %v497 = vadd.f32 %v448, %v450
      %498 = vadd.xlane.f32.xlu0 %v497
      %v499 = vpop.xlane.xlu0 %498
      %v500 = vadd.f32 %v454, %v456
      %501 = vadd.xlane.f32.xlu0 %v500
      %v502 = vpop.xlane.xlu0 %501
      %v503 = vadd.f32 %v458, %v460
      %504 = vadd.xlane.f32.xlu0 %v503
      %v505 = vpop.xlane.xlu0 %504
      %v506 = vadd.f32 %v464, %v466
      %507 = vadd.xlane.f32.xlu0 %v506
      %v508 = vpop.xlane.xlu0 %507
      %v509 = vadd.f32 %v468, %v470
      %510 = vadd.xlane.f32.xlu0 %v509
      %v511 = vpop.xlane.xlu0 %510
      %v512 = vadd.f32 %v474, %v476
      %513 = vadd.xlane.f32.xlu0 %v512
      %v514 = vpop.xlane.xlu0 %513
      %v515 = vadd.f32 %v478, %v480
      %516 = vadd.xlane.f32.xlu0 %v515
      %v517 = vpop.xlane.xlu0 %516
      %v518 = vmul.f32 %v424, %v424
      %v519 = vmul.f32 %v426, %v426
      %v520 = vmul.f32 %v428, %v428
      %v521 = vmul.f32 %v430, %v430
      %v522 = vmul.f32 %v434, %v434
      %v523 = vmul.f32 %v436, %v436
      %v524 = vmul.f32 %v438, %v438
      %v525 = vmul.f32 %v440, %v440
      %v526 = vmul.f32 %v444, %v444
      %v527 = vmul.f32 %v446, %v446
      %v528 = vmul.f32 %v448, %v448
      %v529 = vmul.f32 %v450, %v450
      %v530 = vmul.f32 %v454, %v454
      %v531 = vmul.f32 %v456, %v456
      %v532 = vmul.f32 %v458, %v458
      %v533 = vmul.f32 %v460, %v460
      %v534 = vmul.f32 %v464, %v464
      %v535 = vmul.f32 %v466, %v466
      %v536 = vmul.f32 %v468, %v468
      %v537 = vmul.f32 %v470, %v470
      %v538 = vmul.f32 %v474, %v474
      %v539 = vmul.f32 %v476, %v476
      %v540 = vmul.f32 %v478, %v478
      %v541 = vmul.f32 %v480, %v480
      %v542 = vadd.f32 %v518, %v519
      %543 = vadd.xlane.f32.xlu0 %v542
      %v544 = vpop.xlane.xlu0 %543
      %v545 = vadd.f32 %v520, %v521
      %546 = vadd.xlane.f32.xlu0 %v545
      %v547 = vpop.xlane.xlu0 %546
      %v548 = vadd.f32 %v522, %v523
      %549 = vadd.xlane.f32.xlu0 %v548
      %v550 = vpop.xlane.xlu0 %549
      %v551 = vadd.f32 %v524, %v525
      %552 = vadd.xlane.f32.xlu0 %v551
      %v553 = vpop.xlane.xlu0 %552
      %v554 = vadd.f32 %v526, %v527
      %555 = vadd.xlane.f32.xlu0 %v554
      %v556 = vpop.xlane.xlu0 %555
      %v557 = vadd.f32 %v528, %v529
      %558 = vadd.xlane.f32.xlu0 %v557
      %v559 = vpop.xlane.xlu0 %558
      %v560 = vadd.f32 %v530, %v531
      %561 = vadd.xlane.f32.xlu0 %v560
      %v562 = vpop.xlane.xlu0 %561
      %v563 = vadd.f32 %v532, %v533
      %564 = vadd.xlane.f32.xlu0 %v563
      %v565 = vpop.xlane.xlu0 %564
      %v566 = vadd.f32 %v534, %v535
      %567 = vadd.xlane.f32.xlu0 %v566
      %v568 = vpop.xlane.xlu0 %567
      %v569 = vadd.f32 %v536, %v537
      %570 = vadd.xlane.f32.xlu0 %v569
      %v571 = vpop.xlane.xlu0 %570
      %v572 = vadd.f32 %v538, %v539
      %573 = vadd.xlane.f32.xlu0 %v572
      %v574 = vpop.xlane.xlu0 %573
      %v575 = vadd.f32 %v540, %v541
      %576 = vadd.xlane.f32.xlu0 %v575
      %v577 = vpop.xlane.xlu0 %576
      %vm578 = vcmask 7168
      %v579 = vsel %vm578, %v484, %v544
      %v580 = vsel %vm578, %v487, %v547
      %v581 = vsel %vm578, %v490, %v550
      %v582 = vsel %vm578, %v493, %v553
      %v583 = vsel %vm578, %v496, %v556
      %v584 = vsel %vm578, %v499, %v559
      %v585 = vsel %vm578, %v502, %v562
      %v586 = vsel %vm578, %v505, %v565
      %v587 = vsel %vm578, %v508, %v568
      %v588 = vsel %vm578, %v511, %v571
      %v589 = vsel %vm578, %v514, %v574
      %v590 = vsel %vm578, %v517, %v577
      %v591 = vld [vmem:[%s2] sm:$0xff]
      %v592 = vld [vmem:[%s2 + $0x8] sm:$0xff]
      %v593 = vld [vmem:[%s2 + $0x10] sm:$0xff]
      %v594 = vld [vmem:[%s2 + $0x18] sm:$0xff]
      %v595 = vld [vmem:[%s2 + $0x20] sm:$0xff]
      %v596 = vld [vmem:[%s2 + $0x28] sm:$0xff]
      %v597 = vld [vmem:[%s2 + $0x30] sm:$0xff]
      %v598 = vld [vmem:[%s2 + $0x38] sm:$0xff]
      %v599 = vld [vmem:[%s2 + $0x40] sm:$0xff]
      %v600 = vld [vmem:[%s2 + $0x48] sm:$0xff]
      %v601 = vld [vmem:[%s2 + $0x50] sm:$0xff]
      %v602 = vld [vmem:[%s2 + $0x58] sm:$0xff]
      %vm603 = vcmask 785408
      %v605 = vsel %vm603, %v591, 0
      %v608 = vsel %vm603, %v592, 0
      %v611 = vsel %vm603, %v593, 0
      %v614 = vsel %vm603, %v594, 0
      %v617 = vsel %vm603, %v595, 0
      %v620 = vsel %vm603, %v596, 0
      %v623 = vsel %vm603, %v597, 0
      %v626 = vsel %vm603, %v598, 0
      %v629 = vsel %vm603, %v599, 0
      %v632 = vsel %vm603, %v600, 0
      %v635 = vsel %vm603, %v601, 0
      %v638 = vsel %vm603, %v602, 0
      %640 = vmatprep.subr.mxu0 0.0
      %641 = vmatpush1.msra.mxu0 %v579
      %642 = vmatprep.subr.mxu0 0.0
      %643 = vmatpush1.msra.mxu0 %v580
      %644 = vmatprep.subr.mxu0 0.0
      %645 = vmatpush1.msra.mxu0 %v581
      %646 = vmatprep.subr.mxu0 0.0
      %647 = vmatpush1.msra.mxu0 %v582
      %648 = vmatprep.subr.mxu0 0.0
      %649 = vmatpush1.msra.mxu0 %v583
      %650 = vmatprep.subr.mxu0 0.0
      %651 = vmatpush1.msra.mxu0 %v584
      %652 = vmatprep.subr.mxu0 0.0
      %653 = vmatpush1.msra.mxu0 %v585
      %654 = vmatprep.subr.mxu0 0.0
      %655 = vmatpush1.msra.mxu0 %v586
      %656 = vmatprep.subr.mxu0 0.0
      %657 = vmatpush1.msra.mxu0 %v587
      %658 = vmatprep.subr.mxu0 0.0
      %659 = vmatpush1.msra.mxu0 %v588
      %660 = vmatprep.subr.mxu0 0.0
      %661 = vmatpush1.msra.mxu0 %v589
      %662 = vmatprep.subr.mxu0 0.0
      %663 = vmatpush1.msra.mxu0 %v590
      %664 = vmatprep.subr.mxu0 0.0
      %665 = vmatpush1.msra.mxu0 0.0
      %666 = vmatprep.subr.mxu0 0.0
      %667 = vmatpush1.msra.mxu0 0.0
      %668 = vmatprep.subr.mxu0 0.0
      %669 = vmatpush1.msra.mxu0 0.0
      %670 = vmatprep.subr.mxu0 0.0
      %671 = vmatpush1.msra.mxu0 0.0
      %672 = vmatprep.subr.mxu0 0.0
      %673 = vmatpush1.msra.mxu0 0.0
      %674 = vmatprep.subr.mxu0 0.0
      %675 = vmatpush1.msra.mxu0 0.0
      %676 = vmatprep.subr.mxu0 0.0
      %677 = vmatpush1.msra.mxu0 0.0
      %678 = vmatprep.subr.mxu0 0.0
      %679 = vmatpush1.msra.mxu0 0.0
      %680 = vmatprep.subr.mxu0 0.0
      %681 = vmatpush1.msra.mxu0 0.0
      %682 = vmatprep.subr.mxu0 0.0
      %683 = vmatpush1.msra.mxu0 0.0
      %684 = vmatprep.subr.mxu0 0.0
      %685 = vmatpush1.msra.mxu0 0.0
      %686 = vmatprep.subr.mxu0 0.0
      %687 = vmatpush1.msra.mxu0 0.0
      %688 = vmatprep.subr.mxu0 0.0
      %689 = vmatpush1.msra.mxu0 0.0
      %690 = vmatprep.subr.mxu0 0.0
      %691 = vmatpush1.msra.mxu0 0.0
      %692 = vmatprep.subr.mxu0 0.0
      %693 = vmatpush1.msra.mxu0 0.0
      %694 = vmatprep.subr.mxu0 0.0
      %695 = vmatpush1.msra.mxu0 0.0
      %696 = vmatprep.subr.mxu0 0.0
      %697 = vmatpush1.msra.mxu0 0.0
      %698 = vmatprep.subr.mxu0 0.0
      %699 = vmatpush1.msra.mxu0 0.0
      %700 = vmatprep.subr.mxu0 0.0
      %701 = vmatpush1.msra.mxu0 0.0
      %702 = vmatprep.subr.mxu0 0.0
      %703 = vmatpush1.msra.mxu0 0.0
      %704 = vmatprep.mubr.f32.mxu0 0.0
      %705 = vmatmul.mubr.f32.gmra.mrb[0].mxu0 %v605
      %v706 = vpop.f32.mrb[0].mxu0
      %v707 = vadd.f32 0.0, %v706
      %v708 = vpop.f32.mrb[0].mxu0
      %709 = vmatprep.mubr.f32.mxu0 0.0
      %710 = vmatmul.mubr.f32.gmra.mrb[0].mxu0 %v608
      %v711 = vpop.f32.mrb[0].mxu0
      %v712 = vadd.f32 0.0, %v711
      %v713 = vpop.f32.mrb[0].mxu0
      %714 = vmatprep.mubr.f32.mxu0 0.0
      %715 = vmatmul.mubr.f32.gmra.mrb[0].mxu0 %v611
      %v716 = vpop.f32.mrb[0].mxu0
      %v717 = vadd.f32 0.0, %v716
      %v718 = vpop.f32.mrb[0].mxu0
      %719 = vmatprep.mubr.f32.mxu0 0.0
      %720 = vmatmul.mubr.f32.gmra.mrb[0].mxu0 %v614
      %v721 = vpop.f32.mrb[0].mxu0
      %v722 = vadd.f32 0.0, %v721
      %v723 = vpop.f32.mrb[0].mxu0
      %724 = vmatprep.mubr.f32.mxu0 0.0
      %725 = vmatmul.mubr.f32.gmra.mrb[0].mxu0 %v617
      %v726 = vpop.f32.mrb[0].mxu0
      %v727 = vadd.f32 0.0, %v726
      %v728 = vpop.f32.mrb[0].mxu0
      %729 = vmatprep.mubr.f32.mxu0 0.0
      %730 = vmatmul.mubr.f32.gmra.mrb[0].mxu0 %v620
      %v731 = vpop.f32.mrb[0].mxu0
      %v732 = vadd.f32 0.0, %v731
      %v733 = vpop.f32.mrb[0].mxu0
      %734 = vmatprep.mubr.f32.mxu0 0.0
      %735 = vmatmul.mubr.f32.gmra.mrb[0].mxu0 %v623
      %v736 = vpop.f32.mrb[0].mxu0
      %v737 = vadd.f32 0.0, %v736
      %v738 = vpop.f32.mrb[0].mxu0
      %739 = vmatprep.mubr.f32.mxu0 0.0
      %740 = vmatmul.mubr.f32.gmra.mrb[0].mxu0 %v626
      %v741 = vpop.f32.mrb[0].mxu0
      %v742 = vadd.f32 0.0, %v741
      %v743 = vpop.f32.mrb[0].mxu0
      %744 = vmatprep.mubr.f32.mxu0 0.0
      %745 = vmatmul.mubr.f32.gmra.mrb[0].mxu0 %v629
      %v746 = vpop.f32.mrb[0].mxu0
      %v747 = vadd.f32 0.0, %v746
      %v748 = vpop.f32.mrb[0].mxu0
      %749 = vmatprep.mubr.f32.mxu0 0.0
      %750 = vmatmul.mubr.f32.gmra.mrb[0].mxu0 %v632
      %v751 = vpop.f32.mrb[0].mxu0
      %v752 = vadd.f32 0.0, %v751
      %v753 = vpop.f32.mrb[0].mxu0
      %754 = vmatprep.mubr.f32.mxu0 0.0
      %755 = vmatmul.mubr.f32.gmra.mrb[0].mxu0 %v635
      %v756 = vpop.f32.mrb[0].mxu0
      %v757 = vadd.f32 0.0, %v756
      %v758 = vpop.f32.mrb[0].mxu0
      %759 = vmatprep.mubr.f32.mxu0 0.0
      %760 = vmatmul.mubr.f32.gmra.mrb[0].mxu0 %v638
      %v761 = vpop.f32.mrb[0].mxu0
      %v762 = vadd.f32 0.0, %v761
      %v763 = vpop.f32.mrb[0].mxu0
      %764 = vdwg.mxu0
      %v765 = vmul.f32 %v707, %v707
      %v766 = vmul.f32 %v712, %v712
      %v767 = vmul.f32 %v717, %v717
      %v768 = vmul.f32 %v722, %v722
      %v769 = vmul.f32 %v727, %v727
      %v770 = vmul.f32 %v732, %v732
      %v771 = vmul.f32 %v737, %v737
      %v772 = vmul.f32 %v742, %v742
      %v773 = vmul.f32 %v747, %v747
      %v774 = vmul.f32 %v752, %v752
      %v775 = vmul.f32 %v757, %v757
      %v776 = vmul.f32 %v762, %v762
      %789 = vrot.lane.b32.xlu0 %v765, 1
      %v790 = vpop.permute.xlu0 %789
      %791 = vrot.lane.b32.xlu0 %v766, 1
      %v792 = vpop.permute.xlu0 %791
      %793 = vrot.lane.b32.xlu0 %v767, 1
      %v794 = vpop.permute.xlu0 %793
      %795 = vrot.lane.b32.xlu0 %v768, 1
      %v796 = vpop.permute.xlu0 %795
      %797 = vrot.lane.b32.xlu0 %v769, 1
      %v798 = vpop.permute.xlu0 %797
      %799 = vrot.lane.b32.xlu0 %v770, 1
      %v800 = vpop.permute.xlu0 %799
      %801 = vrot.lane.b32.xlu0 %v771, 1
      %v802 = vpop.permute.xlu0 %801
      %803 = vrot.lane.b32.xlu0 %v772, 1
      %v804 = vpop.permute.xlu0 %803
      %805 = vrot.lane.b32.xlu0 %v773, 1
      %v806 = vpop.permute.xlu0 %805
      %807 = vrot.lane.b32.xlu0 %v774, 1
      %v808 = vpop.permute.xlu0 %807
      %809 = vrot.lane.b32.xlu0 %v775, 1
      %v810 = vpop.permute.xlu0 %809
      %811 = vrot.lane.b32.xlu0 %v776, 1
      %v812 = vpop.permute.xlu0 %811
      %v825 = vsub.f32 %v707, %v790
      %v826 = vsub.f32 %v712, %v792
      %v827 = vsub.f32 %v717, %v794
      %v828 = vsub.f32 %v722, %v796
      %v829 = vsub.f32 %v727, %v798
      %v830 = vsub.f32 %v732, %v800
      %v831 = vsub.f32 %v737, %v802
      %v832 = vsub.f32 %v742, %v804
      %v833 = vsub.f32 %v747, %v806
      %v834 = vsub.f32 %v752, %v808
      %v835 = vsub.f32 %v757, %v810
      %v836 = vsub.f32 %v762, %v812
      %v837 = vmax.f32 %v825, 0.0
      %v838 = vmax.f32 %v826, 0.0
      %v839 = vmax.f32 %v827, 0.0
      %v840 = vmax.f32 %v828, 0.0
      %v841 = vmax.f32 %v829, 0.0
      %v842 = vmax.f32 %v830, 0.0
      %v843 = vmax.f32 %v831, 0.0
      %v844 = vmax.f32 %v832, 0.0
      %v845 = vmax.f32 %v833, 0.0
      %v846 = vmax.f32 %v834, 0.0
      %v847 = vmax.f32 %v835, 0.0
      %v848 = vmax.f32 %v836, 0.0
      %850 = vset.pattern.permute.xlu0 0
      %851 = vperm.xlu0 %850, %v707
      %v852 = vpop.permute.xlu0 %851
      %855 = vset.pattern.permute.xlu0 0
      %856 = vperm.xlu0 %855, %v712
      %v857 = vpop.permute.xlu0 %856
      %860 = vset.pattern.permute.xlu0 0
      %861 = vperm.xlu0 %860, %v717
      %v862 = vpop.permute.xlu0 %861
      %865 = vset.pattern.permute.xlu0 0
      %866 = vperm.xlu0 %865, %v722
      %v867 = vpop.permute.xlu0 %866
      %870 = vset.pattern.permute.xlu0 0
      %871 = vperm.xlu0 %870, %v727
      %v872 = vpop.permute.xlu0 %871
      %875 = vset.pattern.permute.xlu0 0
      %876 = vperm.xlu0 %875, %v732
      %v877 = vpop.permute.xlu0 %876
      %880 = vset.pattern.permute.xlu0 0
      %881 = vperm.xlu0 %880, %v737
      %v882 = vpop.permute.xlu0 %881
      %885 = vset.pattern.permute.xlu0 0
      %886 = vperm.xlu0 %885, %v742
      %v887 = vpop.permute.xlu0 %886
      %890 = vset.pattern.permute.xlu0 0
      %891 = vperm.xlu0 %890, %v747
      %v892 = vpop.permute.xlu0 %891
      %895 = vset.pattern.permute.xlu0 0
      %896 = vperm.xlu0 %895, %v752
      %v897 = vpop.permute.xlu0 %896
      %900 = vset.pattern.permute.xlu0 0
      %901 = vperm.xlu0 %900, %v757
      %v902 = vpop.permute.xlu0 %901
      %905 = vset.pattern.permute.xlu0 0
      %906 = vperm.xlu0 %905, %v762
      %v907 = vpop.permute.xlu0 %906
      %v909 = vsub.f32 %v424, %v852
      %v910 = vsub.f32 %v426, %v852
      %v911 = vsub.f32 %v428, %v857
      %v912 = vsub.f32 %v430, %v857
      %v913 = vsub.f32 %v434, %v862
      %v914 = vsub.f32 %v436, %v862
      %v915 = vsub.f32 %v438, %v867
      %v916 = vsub.f32 %v440, %v867
      %v917 = vsub.f32 %v444, %v872
      %v918 = vsub.f32 %v446, %v872
      %v919 = vsub.f32 %v448, %v877
      %v920 = vsub.f32 %v450, %v877
      %v921 = vsub.f32 %v454, %v882
      %v922 = vsub.f32 %v456, %v882
      %v923 = vsub.f32 %v458, %v887
      %v924 = vsub.f32 %v460, %v887
      %v925 = vsub.f32 %v464, %v892
      %v926 = vsub.f32 %v466, %v892
      %v927 = vsub.f32 %v468, %v897
      %v928 = vsub.f32 %v470, %v897
      %v929 = vsub.f32 %v474, %v902
      %v930 = vsub.f32 %v476, %v902
      %v931 = vsub.f32 %v478, %v907
      %v932 = vsub.f32 %v480, %v907
      %v933 = vadd.f32 %v837, 1e-05
      %v934 = vadd.f32 %v838, 1e-05
      %v935 = vadd.f32 %v839, 1e-05
      %v936 = vadd.f32 %v840, 1e-05
      %v937 = vadd.f32 %v841, 1e-05
      %v938 = vadd.f32 %v842, 1e-05
      %v939 = vadd.f32 %v843, 1e-05
      %v940 = vadd.f32 %v844, 1e-05
      %v941 = vadd.f32 %v845, 1e-05
      %v942 = vadd.f32 %v846, 1e-05
      %v943 = vadd.f32 %v847, 1e-05
      %v944 = vadd.f32 %v848, 1e-05
      %v945 = vrsqrt.pop %v933
      %v946 = vrsqrt.pop %v934
      %v947 = vrsqrt.pop %v935
      %v948 = vrsqrt.pop %v936
      %v949 = vrsqrt.pop %v937
      %v950 = vrsqrt.pop %v938
      %v951 = vrsqrt.pop %v939
      %v952 = vrsqrt.pop %v940
      %v953 = vrsqrt.pop %v941
      %v954 = vrsqrt.pop %v942
      %v955 = vrsqrt.pop %v943
      %v956 = vrsqrt.pop %v944
      %958 = vset.pattern.permute.xlu0 1
      %959 = vperm.xlu0 %958, %v945
      %v960 = vpop.permute.xlu0 %959
      %963 = vset.pattern.permute.xlu0 1
      %964 = vperm.xlu0 %963, %v946
      %v965 = vpop.permute.xlu0 %964
      %968 = vset.pattern.permute.xlu0 1
      %969 = vperm.xlu0 %968, %v947
      %v970 = vpop.permute.xlu0 %969
      %973 = vset.pattern.permute.xlu0 1
      %974 = vperm.xlu0 %973, %v948
      %v975 = vpop.permute.xlu0 %974
      %978 = vset.pattern.permute.xlu0 1
      %979 = vperm.xlu0 %978, %v949
      %v980 = vpop.permute.xlu0 %979
      %983 = vset.pattern.permute.xlu0 1
      %984 = vperm.xlu0 %983, %v950
      %v985 = vpop.permute.xlu0 %984
      %988 = vset.pattern.permute.xlu0 1
      %989 = vperm.xlu0 %988, %v951
      %v990 = vpop.permute.xlu0 %989
      %993 = vset.pattern.permute.xlu0 1
      %994 = vperm.xlu0 %993, %v952
      %v995 = vpop.permute.xlu0 %994
      %998 = vset.pattern.permute.xlu0 1
      %999 = vperm.xlu0 %998, %v953
      %v1000 = vpop.permute.xlu0 %999
      %1003 = vset.pattern.permute.xlu0 1
      %1004 = vperm.xlu0 %1003, %v954
      %v1005 = vpop.permute.xlu0 %1004
      %1008 = vset.pattern.permute.xlu0 1
      %1009 = vperm.xlu0 %1008, %v955
      %v1010 = vpop.permute.xlu0 %1009
      %1013 = vset.pattern.permute.xlu0 1
      %1014 = vperm.xlu0 %1013, %v956
      %v1015 = vpop.permute.xlu0 %1014
      %v1017 = vmul.f32 %v909, %v960
      %v1018 = vmul.f32 %v910, %v960
      %v1019 = vmul.f32 %v911, %v965
      %v1020 = vmul.f32 %v912, %v965
      %v1021 = vmul.f32 %v913, %v970
      %v1022 = vmul.f32 %v914, %v970
      %v1023 = vmul.f32 %v915, %v975
      %v1024 = vmul.f32 %v916, %v975
      %v1025 = vmul.f32 %v917, %v980
      %v1026 = vmul.f32 %v918, %v980
      %v1027 = vmul.f32 %v919, %v985
      %v1028 = vmul.f32 %v920, %v985
      %v1029 = vmul.f32 %v921, %v990
      %v1030 = vmul.f32 %v922, %v990
      %v1031 = vmul.f32 %v923, %v995
      %v1032 = vmul.f32 %v924, %v995
      %v1033 = vmul.f32 %v925, %v1000
      %v1034 = vmul.f32 %v926, %v1000
      %v1035 = vmul.f32 %v927, %v1005
      %v1036 = vmul.f32 %v928, %v1005
      %v1037 = vmul.f32 %v929, %v1010
      %v1038 = vmul.f32 %v930, %v1010
      %v1039 = vmul.f32 %v931, %v1015
      %v1040 = vmul.f32 %v932, %v1015
      %v1041 = vld [vmem:[%s3] sm:$0xff]
      %v1042 = vld [vmem:[%s3 + $0x8] sm:$0xff]
      %v1043 = vld [vmem:[%s3 + $0x10] sm:$0xff]
      %v1044 = vld [vmem:[%s3 + $0x18] sm:$0xff]
      %v1045 = vld [vmem:[%s3 + $0x20] sm:$0xff]
      %v1046 = vld [vmem:[%s3 + $0x28] sm:$0xff]
      %v1047 = vld [vmem:[%s3 + $0x30] sm:$0xff]
      %v1048 = vld [vmem:[%s3 + $0x38] sm:$0xff]
      %v1049 = vld [vmem:[%s3 + $0x40] sm:$0xff]
      %v1050 = vld [vmem:[%s3 + $0x48] sm:$0xff]
      %v1051 = vld [vmem:[%s3 + $0x50] sm:$0xff]
      %v1052 = vld [vmem:[%s3 + $0x58] sm:$0xff]
      %1054 = vset.pattern.permute.xlu0 0
      %1055 = vperm.xlu0 %1054, %v1041
      %v1056 = vpop.permute.xlu0 %1055
      %1059 = vset.pattern.permute.xlu0 0
      %1060 = vperm.xlu0 %1059, %v1042
      %v1061 = vpop.permute.xlu0 %1060
      %1064 = vset.pattern.permute.xlu0 0
      %1065 = vperm.xlu0 %1064, %v1043
      %v1066 = vpop.permute.xlu0 %1065
      %1069 = vset.pattern.permute.xlu0 0
      %1070 = vperm.xlu0 %1069, %v1044
      %v1071 = vpop.permute.xlu0 %1070
      %1074 = vset.pattern.permute.xlu0 0
      %1075 = vperm.xlu0 %1074, %v1045
      %v1076 = vpop.permute.xlu0 %1075
      %1079 = vset.pattern.permute.xlu0 0
      %1080 = vperm.xlu0 %1079, %v1046
      %v1081 = vpop.permute.xlu0 %1080
      %1084 = vset.pattern.permute.xlu0 0
      %1085 = vperm.xlu0 %1084, %v1047
      %v1086 = vpop.permute.xlu0 %1085
      %1089 = vset.pattern.permute.xlu0 0
      %1090 = vperm.xlu0 %1089, %v1048
      %v1091 = vpop.permute.xlu0 %1090
      %1094 = vset.pattern.permute.xlu0 0
      %1095 = vperm.xlu0 %1094, %v1049
      %v1096 = vpop.permute.xlu0 %1095
      %1099 = vset.pattern.permute.xlu0 0
      %1100 = vperm.xlu0 %1099, %v1050
      %v1101 = vpop.permute.xlu0 %1100
      %1104 = vset.pattern.permute.xlu0 0
      %1105 = vperm.xlu0 %1104, %v1051
      %v1106 = vpop.permute.xlu0 %1105
      %1109 = vset.pattern.permute.xlu0 0
      %1110 = vperm.xlu0 %1109, %v1052
      %v1111 = vpop.permute.xlu0 %1110
      %v1113 = vmul.f32 %v1017, %v1056
      %v1114 = vmul.f32 %v1018, %v1056
      %v1115 = vmul.f32 %v1019, %v1061
      %v1116 = vmul.f32 %v1020, %v1061
      %v1117 = vmul.f32 %v1021, %v1066
      %v1118 = vmul.f32 %v1022, %v1066
      %v1119 = vmul.f32 %v1023, %v1071
      %v1120 = vmul.f32 %v1024, %v1071
      %v1121 = vmul.f32 %v1025, %v1076
      %v1122 = vmul.f32 %v1026, %v1076
      %v1123 = vmul.f32 %v1027, %v1081
      %v1124 = vmul.f32 %v1028, %v1081
      %v1125 = vmul.f32 %v1029, %v1086
      %v1126 = vmul.f32 %v1030, %v1086
      %v1127 = vmul.f32 %v1031, %v1091
      %v1128 = vmul.f32 %v1032, %v1091
      %v1129 = vmul.f32 %v1033, %v1096
      %v1130 = vmul.f32 %v1034, %v1096
      %v1131 = vmul.f32 %v1035, %v1101
      %v1132 = vmul.f32 %v1036, %v1101
      %v1133 = vmul.f32 %v1037, %v1106
      %v1134 = vmul.f32 %v1038, %v1106
      %v1135 = vmul.f32 %v1039, %v1111
      %v1136 = vmul.f32 %v1040, %v1111
      %v1137 = vld [vmem:[%s4] sm:$0xff]
      %v1138 = vld [vmem:[%s4 + $0x8] sm:$0xff]
      %v1139 = vld [vmem:[%s4 + $0x10] sm:$0xff]
      %v1140 = vld [vmem:[%s4 + $0x18] sm:$0xff]
      %v1141 = vld [vmem:[%s4 + $0x20] sm:$0xff]
      %v1142 = vld [vmem:[%s4 + $0x28] sm:$0xff]
      %v1143 = vld [vmem:[%s4 + $0x30] sm:$0xff]
      %v1144 = vld [vmem:[%s4 + $0x38] sm:$0xff]
      %v1145 = vld [vmem:[%s4 + $0x40] sm:$0xff]
      %v1146 = vld [vmem:[%s4 + $0x48] sm:$0xff]
      %v1147 = vld [vmem:[%s4 + $0x50] sm:$0xff]
      %v1148 = vld [vmem:[%s4 + $0x58] sm:$0xff]
      %1150 = vset.pattern.permute.xlu0 0
      %1151 = vperm.xlu0 %1150, %v1137
      %v1152 = vpop.permute.xlu0 %1151
      %1155 = vset.pattern.permute.xlu0 0
      %1156 = vperm.xlu0 %1155, %v1138
      %v1157 = vpop.permute.xlu0 %1156
      %1160 = vset.pattern.permute.xlu0 0
      %1161 = vperm.xlu0 %1160, %v1139
      %v1162 = vpop.permute.xlu0 %1161
      %1165 = vset.pattern.permute.xlu0 0
      %1166 = vperm.xlu0 %1165, %v1140
      %v1167 = vpop.permute.xlu0 %1166
      %1170 = vset.pattern.permute.xlu0 0
      %1171 = vperm.xlu0 %1170, %v1141
      %v1172 = vpop.permute.xlu0 %1171
      %1175 = vset.pattern.permute.xlu0 0
      %1176 = vperm.xlu0 %1175, %v1142
      %v1177 = vpop.permute.xlu0 %1176
      %1180 = vset.pattern.permute.xlu0 0
      %1181 = vperm.xlu0 %1180, %v1143
      %v1182 = vpop.permute.xlu0 %1181
      %1185 = vset.pattern.permute.xlu0 0
      %1186 = vperm.xlu0 %1185, %v1144
      %v1187 = vpop.permute.xlu0 %1186
      %1190 = vset.pattern.permute.xlu0 0
      %1191 = vperm.xlu0 %1190, %v1145
      %v1192 = vpop.permute.xlu0 %1191
      %1195 = vset.pattern.permute.xlu0 0
      %1196 = vperm.xlu0 %1195, %v1146
      %v1197 = vpop.permute.xlu0 %1196
      %1200 = vset.pattern.permute.xlu0 0
      %1201 = vperm.xlu0 %1200, %v1147
      %v1202 = vpop.permute.xlu0 %1201
      %1205 = vset.pattern.permute.xlu0 0
      %1206 = vperm.xlu0 %1205, %v1148
      %v1207 = vpop.permute.xlu0 %1206
      %v1209 = vadd.f32 %v1113, %v1152
      %v1210 = vadd.f32 %v1114, %v1152
      %v1211 = vadd.f32 %v1115, %v1157
      %v1212 = vadd.f32 %v1116, %v1157
      %v1213 = vadd.f32 %v1117, %v1162
      %v1214 = vadd.f32 %v1118, %v1162
      %v1215 = vadd.f32 %v1119, %v1167
      %v1216 = vadd.f32 %v1120, %v1167
      %v1217 = vadd.f32 %v1121, %v1172
      %v1218 = vadd.f32 %v1122, %v1172
      %v1219 = vadd.f32 %v1123, %v1177
      %v1220 = vadd.f32 %v1124, %v1177
      %v1221 = vadd.f32 %v1125, %v1182
      %v1222 = vadd.f32 %v1126, %v1182
      %v1223 = vadd.f32 %v1127, %v1187
      %v1224 = vadd.f32 %v1128, %v1187
      %v1225 = vadd.f32 %v1129, %v1192
      %v1226 = vadd.f32 %v1130, %v1192
      %v1227 = vadd.f32 %v1131, %v1197
      %v1228 = vadd.f32 %v1132, %v1197
      %v1229 = vadd.f32 %v1133, %v1202
      %v1230 = vadd.f32 %v1134, %v1202
      %v1231 = vadd.f32 %v1135, %v1207
      %v1232 = vadd.f32 %v1136, %v1207
      %v1233 = vmax.f32 %v1225, %v1226
      %1234 = vmax.xlane.f32.xlu0 %v1233
      %v1235 = vpop.xlane.xlu0 %1234
      %v1236 = vmax.f32 %v1227, %v1228
      %1237 = vmax.xlane.f32.xlu0 %v1236
      %v1238 = vpop.xlane.xlu0 %1237
      %v1239 = vsub.f32 %v1225, %v1235
      %v1240 = vsub.f32 %v1226, %v1235
      %v1241 = vsub.f32 %v1227, %v1238
      %v1242 = vsub.f32 %v1228, %v1238
      %v1243 = vmul.f32 %v1239, 1.442695
      %v1244 = vpow.pop %v1243
      %v1245 = vmul.f32 %v1240, 1.442695
      %v1246 = vpow.pop %v1245
      %v1247 = vmul.f32 %v1241, 1.442695
      %v1248 = vpow.pop %v1247
      %v1249 = vmul.f32 %v1242, 1.442695
      %v1250 = vpow.pop %v1249
      %v1251 = vadd.f32 %v1244, %v1246
      %1252 = vadd.xlane.f32.xlu0 %v1251
      %v1253 = vpop.xlane.xlu0 %1252
      %v1254 = vadd.f32 %v1248, %v1250
      %1255 = vadd.xlane.f32.xlu0 %v1254
      %v1256 = vpop.xlane.xlu0 %1255
      %v1257 = vrcp.pop %v1253
      %v1258 = vrcp.pop %v1256
      %v1259 = vmul.f32 %v1244, %v1257
      %v1260 = vmul.f32 %v1246, %v1257
      %v1261 = vmul.f32 %v1248, %v1258
      %v1262 = vmul.f32 %v1250, %v1258
      %v1263 = vpack.c.bf16 %v1231, %v1229
      %v1264 = vpack.c.bf16 %v1232, %v1230
      %v1265 = vpack.c.bf16 %v1261, %v1259
      %v1266 = vpack.c.bf16 %v1262, %v1260
      %1267 = vmatprep.subr.bf16.mxu0 %v1266
      %1268 = vmatpush1.bf16.xpose.msra.mxu0 %v1265
      %1269 = vmatprep.subr.bf16.mxu0 0
      %1270 = vmatpush1.bf16.xpose.msra.mxu0 0
      %1271 = vmatprep.subr.bf16.mxu0 0
      %1272 = vmatpush1.bf16.xpose.msra.mxu0 0
      %1273 = vmatprep.subr.bf16.mxu0 0
      %1274 = vmatpush1.bf16.xpose.msra.mxu0 0
      %1275 = vmatprep.subr.bf16.mxu0 0
      %1276 = vmatpush1.bf16.xpose.msra.mxu0 0
      %1277 = vmatprep.subr.bf16.mxu0 0
      %1278 = vmatpush1.bf16.xpose.msra.mxu0 0
      %1279 = vmatprep.subr.bf16.mxu0 0
      %1280 = vmatpush1.bf16.xpose.msra.mxu0 0
      %1281 = vmatprep.subr.bf16.mxu0 0
      %1282 = vmatpush1.bf16.xpose.msra.mxu0 0
      %1283 = vmatprep.subr.bf16.mxu0 0
      %1284 = vmatpush1.bf16.xpose.msra.mxu0 0
      %1285 = vmatprep.subr.bf16.mxu0 0
      %1286 = vmatpush1.bf16.xpose.msra.mxu0 0
      %1287 = vmatprep.subr.bf16.mxu0 0
      %1288 = vmatpush1.bf16.xpose.msra.mxu0 0
      %1289 = vmatprep.subr.bf16.mxu0 0
      %1290 = vmatpush1.bf16.xpose.msra.mxu0 0
      %1291 = vmatprep.subr.bf16.mxu0 0
      %1292 = vmatpush1.bf16.xpose.msra.mxu0 0
      %1293 = vmatprep.subr.bf16.mxu0 0
      %1294 = vmatpush1.bf16.xpose.msra.mxu0 0
      %1295 = vmatprep.subr.bf16.mxu0 0
      %1296 = vmatpush1.bf16.xpose.msra.mxu0 0
      %1297 = vmatprep.subr.bf16.mxu0 0
      %1298 = vmatpush1.bf16.xpose.msra.mxu0 0
      %1299 = vmatprep.mubr.bf16.mxu0 %v1264
      %1300 = vmatmul.mubr.bf16.gmra.mrb[0].mxu0 %v1263
      %v1301 = vpop.f32.mrb[0].mxu0
      %v1302 = vadd.f32 0.0, %v1301
      %v1303 = vpop.f32.mrb[0].mxu0
      %v1304 = vpop.f32.mrb[0].mxu0
      %v1305 = vadd.f32 0.0, %v1304
      %v1306 = vpop.f32.mrb[0].mxu0
      %1307 = vdwg.mxu0
      %1308 = vrot.lane.b32.xlu0 %v1229, 51
      %v1309 = vpop.permute.xlu0 %1308
      %1310 = vrot.lane.b32.xlu0 %v1231, 51
      %v1311 = vpop.permute.xlu0 %1310
      %1312 = vrot.lane.b32.xlu0 %v1230, 51
      %v1313 = vpop.permute.xlu0 %1312
      %1314 = vrot.lane.b32.xlu0 %v1232, 51
      %v1315 = vpop.permute.xlu0 %1314
      %v1316 = vlaneseq
      %v1317 = vand.u32 %v1316, 127
      %vm1318 = vcmp.lt.s32.totalorder %v1317, 51
      %v1319 = vsel %vm1318, %v1309, %v1313
      %v1320 = vsel %vm1318, %v1311, %v1315
      %v1321 = vsel %vm1318, %v1313, %v1309
      %v1322 = vsel %vm1318, %v1315, %v1311
      %v1323 = vld [vmem:[%s6] ss:$8 sm:$0x3]
      %v1325 = vlaneseq
      %v1326 = vshrl.u32 %v1325, 7
      %v1327 = vsub.s32 0, %v1326
      %v1328 = vrot.slane %v1323, %v1327
      %v1329 = vlaneseq
      %v1330 = vshrl.u32 %v1329, 7
      %v1331 = vsub.s32 1, %v1330
      %v1332 = vrot.slane %v1323, %v1331
      %v1335 = vmul.f32 %v1321, %v1328
      %v1336 = vmul.f32 %v1319, %v1332
      %v1337 = vmul.f32 %v1322, %v1328
      %v1338 = vmul.f32 %v1320, %v1332
      %v1339 = vpack.c.bf16 %v1337, %v1335
      %v1340 = vpack.c.bf16 %v1338, %v1336
      %1341 = vst [vmem:[#allocation2] sm:$0xff] %v1339
      %1342 = vst [vmem:[#allocation2 + $0x8] sm:$0xff] %v1340
      %1343 = vrot.lane.b32.xlu0 %v1229, 50
      %v1344 = vpop.permute.xlu0 %1343
      %1345 = vrot.lane.b32.xlu0 %v1231, 50
      %v1346 = vpop.permute.xlu0 %1345
      %1347 = vrot.lane.b32.xlu0 %v1230, 50
      %v1348 = vpop.permute.xlu0 %1347
      %1349 = vrot.lane.b32.xlu0 %v1232, 50
      %v1350 = vpop.permute.xlu0 %1349
      %vm1351 = vcmp.lt.s32.totalorder %v1317, 50
      %v1352 = vsel %vm1351, %v1344, %v1348
      %v1353 = vsel %vm1351, %v1346, %v1350
      %v1354 = vsel %vm1351, %v1348, %v1344
      %v1355 = vsel %vm1351, %v1350, %v1346
      %s1356 = scalar_lea.vmem %s6, 1
      %v1357 = vld [vmem:[%s1356] ss:$8 sm:$0x3]
      %v1359 = vlaneseq
      %v1360 = vshrl.u32 %v1359, 7
      %v1361 = vsub.s32 0, %v1360
      %v1362 = vrot.slane %v1357, %v1361
      %v1363 = vlaneseq
      %v1364 = vshrl.u32 %v1363, 7
      %v1365 = vsub.s32 1, %v1364
      %v1366 = vrot.slane %v1357, %v1365
      %v1369 = vmul.f32 %v1354, %v1362
      %v1370 = vmul.f32 %v1352, %v1366
      %v1371 = vmul.f32 %v1355, %v1362
      %v1372 = vmul.f32 %v1353, %v1366
      %v1373 = vpack.c.bf16 %v1371, %v1369
      %v1374 = vpack.c.bf16 %v1372, %v1370
      %1375 = vst [vmem:[#allocation2 + $0x10] sm:$0xff] %v1373
      %1376 = vst [vmem:[#allocation2 + $0x18] sm:$0xff] %v1374
      %1377 = vrot.lane.b32.xlu0 %v1229, 49
      %v1378 = vpop.permute.xlu0 %1377
      %1379 = vrot.lane.b32.xlu0 %v1231, 49
      %v1380 = vpop.permute.xlu0 %1379
      %1381 = vrot.lane.b32.xlu0 %v1230, 49
      %v1382 = vpop.permute.xlu0 %1381
      %1383 = vrot.lane.b32.xlu0 %v1232, 49
      %v1384 = vpop.permute.xlu0 %1383
      %vm1385 = vcmp.lt.s32.totalorder %v1317, 49
      %v1386 = vsel %vm1385, %v1378, %v1382
      %v1387 = vsel %vm1385, %v1380, %v1384
      %v1388 = vsel %vm1385, %v1382, %v1378
      %v1389 = vsel %vm1385, %v1384, %v1380
      %s1390 = scalar_lea.vmem %s6, 2
      %v1391 = vld [vmem:[%s1390] ss:$8 sm:$0x3]
      %v1393 = vlaneseq
      %v1394 = vshrl.u32 %v1393, 7
      %v1395 = vsub.s32 0, %v1394
      %v1396 = vrot.slane %v1391, %v1395
      %v1397 = vlaneseq
      %v1398 = vshrl.u32 %v1397, 7
      %v1399 = vsub.s32 1, %v1398
      %v1400 = vrot.slane %v1391, %v1399
      %v1403 = vmul.f32 %v1388, %v1396
      %v1404 = vmul.f32 %v1386, %v1400
      %v1405 = vmul.f32 %v1389, %v1396
      %v1406 = vmul.f32 %v1387, %v1400
      %v1407 = vpack.c.bf16 %v1405, %v1403
      %v1408 = vpack.c.bf16 %v1406, %v1404
      %1409 = vst [vmem:[#allocation2 + $0x20] sm:$0xff] %v1407
      %1410 = vst [vmem:[#allocation2 + $0x28] sm:$0xff] %v1408
      %1411 = vrot.lane.b32.xlu0 %v1229, 48
      %v1412 = vpop.permute.xlu0 %1411
      %1413 = vrot.lane.b32.xlu0 %v1231, 48
      %v1414 = vpop.permute.xlu0 %1413
      %1415 = vrot.lane.b32.xlu0 %v1230, 48
      %v1416 = vpop.permute.xlu0 %1415
      %1417 = vrot.lane.b32.xlu0 %v1232, 48
      %v1418 = vpop.permute.xlu0 %1417
      %vm1419 = vcmp.lt.s32.totalorder %v1317, 48
      %v1420 = vsel %vm1419, %v1412, %v1416
      %v1421 = vsel %vm1419, %v1414, %v1418
      %v1422 = vsel %vm1419, %v1416, %v1412
      %v1423 = vsel %vm1419, %v1418, %v1414
      %s1424 = scalar_lea.vmem %s6, 3
      %v1425 = vld [vmem:[%s1424] ss:$8 sm:$0x3]
      %v1427 = vlaneseq
      %v1428 = vshrl.u32 %v1427, 7
      %v1429 = vsub.s32 0, %v1428
      %v1430 = vrot.slane %v1425, %v1429
      %v1431 = vlaneseq
      %v1432 = vshrl.u32 %v1431, 7
      %v1433 = vsub.s32 1, %v1432
      %v1434 = vrot.slane %v1425, %v1433
      %v1437 = vmul.f32 %v1422, %v1430
      %v1438 = vmul.f32 %v1420, %v1434
      %v1439 = vmul.f32 %v1423, %v1430
      %v1440 = vmul.f32 %v1421, %v1434
      %v1441 = vpack.c.bf16 %v1439, %v1437
      %v1442 = vpack.c.bf16 %v1440, %v1438
      %1443 = vst [vmem:[#allocation2 + $0x30] sm:$0xff] %v1441
      %1444 = vst [vmem:[#allocation2 + $0x38] sm:$0xff] %v1442
      %1445 = vrot.lane.b32.xlu0 %v1229, 47
      %v1446 = vpop.permute.xlu0 %1445
      %1447 = vrot.lane.b32.xlu0 %v1231, 47
      %v1448 = vpop.permute.xlu0 %1447
      %1449 = vrot.lane.b32.xlu0 %v1230, 47
      %v1450 = vpop.permute.xlu0 %1449
      %1451 = vrot.lane.b32.xlu0 %v1232, 47
      %v1452 = vpop.permute.xlu0 %1451
      %vm1453 = vcmp.lt.s32.totalorder %v1317, 47
      %v1454 = vsel %vm1453, %v1446, %v1450
      %v1455 = vsel %vm1453, %v1448, %v1452
      %v1456 = vsel %vm1453, %v1450, %v1446
      %v1457 = vsel %vm1453, %v1452, %v1448
      %s1458 = scalar_lea.vmem %s6, 4
      %v1459 = vld [vmem:[%s1458] ss:$8 sm:$0x3]
      %v1461 = vlaneseq
      %v1462 = vshrl.u32 %v1461, 7
      %v1463 = vsub.s32 0, %v1462
      %v1464 = vrot.slane %v1459, %v1463
      %v1465 = vlaneseq
      %v1466 = vshrl.u32 %v1465, 7
      %v1467 = vsub.s32 1, %v1466
      %v1468 = vrot.slane %v1459, %v1467
      %v1471 = vmul.f32 %v1456, %v1464
      %v1472 = vmul.f32 %v1454, %v1468
      %v1473 = vmul.f32 %v1457, %v1464
      %v1474 = vmul.f32 %v1455, %v1468
      %v1475 = vpack.c.bf16 %v1473, %v1471
      %v1476 = vpack.c.bf16 %v1474, %v1472
      %1477 = vst [vmem:[#allocation2 + $0x40] sm:$0xff] %v1475
      %1478 = vst [vmem:[#allocation2 + $0x48] sm:$0xff] %v1476
      %1479 = vrot.lane.b32.xlu0 %v1229, 46
      %v1480 = vpop.permute.xlu0 %1479
      %1481 = vrot.lane.b32.xlu0 %v1231, 46
      %v1482 = vpop.permute.xlu0 %1481
      %1483 = vrot.lane.b32.xlu0 %v1230, 46
      %v1484 = vpop.permute.xlu0 %1483
      %1485 = vrot.lane.b32.xlu0 %v1232, 46
      %v1486 = vpop.permute.xlu0 %1485
      %vm1487 = vcmp.lt.s32.totalorder %v1317, 46
      %v1488 = vsel %vm1487, %v1480, %v1484
      %v1489 = vsel %vm1487, %v1482, %v1486
      %v1490 = vsel %vm1487, %v1484, %v1480
      %v1491 = vsel %vm1487, %v1486, %v1482
      %s1492 = scalar_lea.vmem %s6, 5
      %v1493 = vld [vmem:[%s1492] ss:$8 sm:$0x3]
      %v1495 = vlaneseq
      %v1496 = vshrl.u32 %v1495, 7
      %v1497 = vsub.s32 0, %v1496
      %v1498 = vrot.slane %v1493, %v1497
      %v1499 = vlaneseq
      %v1500 = vshrl.u32 %v1499, 7
      %v1501 = vsub.s32 1, %v1500
      %v1502 = vrot.slane %v1493, %v1501
      %v1505 = vmul.f32 %v1490, %v1498
      %v1506 = vmul.f32 %v1488, %v1502
      %v1507 = vmul.f32 %v1491, %v1498
      %v1508 = vmul.f32 %v1489, %v1502
      %v1509 = vpack.c.bf16 %v1507, %v1505
      %v1510 = vpack.c.bf16 %v1508, %v1506
      %1511 = vst [vmem:[#allocation2 + $0x50] sm:$0xff] %v1509
      %1512 = vst [vmem:[#allocation2 + $0x58] sm:$0xff] %v1510
      %1513 = vrot.lane.b32.xlu0 %v1229, 45
      %v1514 = vpop.permute.xlu0 %1513
      %1515 = vrot.lane.b32.xlu0 %v1231, 45
      %v1516 = vpop.permute.xlu0 %1515
      %1517 = vrot.lane.b32.xlu0 %v1230, 45
      %v1518 = vpop.permute.xlu0 %1517
      %1519 = vrot.lane.b32.xlu0 %v1232, 45
      %v1520 = vpop.permute.xlu0 %1519
      %vm1521 = vcmp.lt.s32.totalorder %v1317, 45
      %v1522 = vsel %vm1521, %v1514, %v1518
      %v1523 = vsel %vm1521, %v1516, %v1520
      %v1524 = vsel %vm1521, %v1518, %v1514
      %v1525 = vsel %vm1521, %v1520, %v1516
      %s1526 = scalar_lea.vmem %s6, 6
      %v1527 = vld [vmem:[%s1526] ss:$8 sm:$0x3]
      %v1529 = vlaneseq
      %v1530 = vshrl.u32 %v1529, 7
      %v1531 = vsub.s32 0, %v1530
      %v1532 = vrot.slane %v1527, %v1531
      %v1533 = vlaneseq
      %v1534 = vshrl.u32 %v1533, 7
      %v1535 = vsub.s32 1, %v1534
      %v1536 = vrot.slane %v1527, %v1535
      %v1539 = vmul.f32 %v1524, %v1532
      %v1540 = vmul.f32 %v1522, %v1536
      %v1541 = vmul.f32 %v1525, %v1532
      %v1542 = vmul.f32 %v1523, %v1536
      %v1543 = vpack.c.bf16 %v1541, %v1539
      %v1544 = vpack.c.bf16 %v1542, %v1540
      %1545 = vst [vmem:[#allocation2 + $0x60] sm:$0xff] %v1543
      %1546 = vst [vmem:[#allocation2 + $0x68] sm:$0xff] %v1544
      %1547 = vrot.lane.b32.xlu0 %v1229, 35
      %v1548 = vpop.permute.xlu0 %1547
      %1549 = vrot.lane.b32.xlu0 %v1231, 35
      %v1550 = vpop.permute.xlu0 %1549
      %1551 = vrot.lane.b32.xlu0 %v1230, 35
      %v1552 = vpop.permute.xlu0 %1551
      %1553 = vrot.lane.b32.xlu0 %v1232, 35
      %v1554 = vpop.permute.xlu0 %1553
      %vm1555 = vcmp.lt.s32.totalorder %v1317, 35
      %v1556 = vsel %vm1555, %v1548, %v1552
      %v1557 = vsel %vm1555, %v1550, %v1554
      %v1558 = vsel %vm1555, %v1552, %v1548
      %v1559 = vsel %vm1555, %v1554, %v1550
      %s1560 = scalar_lea.vmem %s6, 7
      %v1561 = vld [vmem:[%s1560] ss:$8 sm:$0x3]
      %v1563 = vlaneseq
      %v1564 = vshrl.u32 %v1563, 7
      %v1565 = vsub.s32 0, %v1564
      %v1566 = vrot.slane %v1561, %v1565
      %v1567 = vlaneseq
      %v1568 = vshrl.u32 %v1567, 7
      %v1569 = vsub.s32 1, %v1568
      %v1570 = vrot.slane %v1561, %v1569
      %v1573 = vmul.f32 %v1558, %v1566
      %v1574 = vmul.f32 %v1556, %v1570
      %v1575 = vmul.f32 %v1559, %v1566
      %v1576 = vmul.f32 %v1557, %v1570
      %v1577 = vpack.c.bf16 %v1575, %v1573
      %v1578 = vpack.c.bf16 %v1576, %v1574
      %1579 = vst [vmem:[#allocation2 + $0x70] sm:$0xff] %v1577
      %1580 = vst [vmem:[#allocation2 + $0x78] sm:$0xff] %v1578
      %1581 = vrot.lane.b32.xlu0 %v1229, 34
      %v1582 = vpop.permute.xlu0 %1581
      %1583 = vrot.lane.b32.xlu0 %v1231, 34
      %v1584 = vpop.permute.xlu0 %1583
      %1585 = vrot.lane.b32.xlu0 %v1230, 34
      %v1586 = vpop.permute.xlu0 %1585
      %1587 = vrot.lane.b32.xlu0 %v1232, 34
      %v1588 = vpop.permute.xlu0 %1587
      %vm1589 = vcmp.lt.s32.totalorder %v1317, 34
      %v1590 = vsel %vm1589, %v1582, %v1586
      %v1591 = vsel %vm1589, %v1584, %v1588
      %v1592 = vsel %vm1589, %v1586, %v1582
      %v1593 = vsel %vm1589, %v1588, %v1584
      %s1594 = scalar_lea.vmem %s6, 16
      %v1595 = vld [vmem:[%s1594] ss:$8 sm:$0x3]
      %v1597 = vlaneseq
      %v1598 = vshrl.u32 %v1597, 7
      %v1599 = vsub.s32 0, %v1598
      %v1600 = vrot.slane %v1595, %v1599
      %v1601 = vlaneseq
      %v1602 = vshrl.u32 %v1601, 7
      %v1603 = vsub.s32 1, %v1602
      %v1604 = vrot.slane %v1595, %v1603
      %v1607 = vmul.f32 %v1592, %v1600
      %v1608 = vmul.f32 %v1590, %v1604
      %v1609 = vmul.f32 %v1593, %v1600
      %v1610 = vmul.f32 %v1591, %v1604
      %v1611 = vpack.c.bf16 %v1609, %v1607
      %v1612 = vpack.c.bf16 %v1610, %v1608
      %1613 = vst [vmem:[#allocation2 + $0x80] sm:$0xff] %v1611
      %1614 = vst [vmem:[#allocation2 + $0x88] sm:$0xff] %v1612
      %1615 = vrot.lane.b32.xlu0 %v1229, 33
      %v1616 = vpop.permute.xlu0 %1615
      %1617 = vrot.lane.b32.xlu0 %v1231, 33
      %v1618 = vpop.permute.xlu0 %1617
      %1619 = vrot.lane.b32.xlu0 %v1230, 33
      %v1620 = vpop.permute.xlu0 %1619
      %1621 = vrot.lane.b32.xlu0 %v1232, 33
      %v1622 = vpop.permute.xlu0 %1621
      %vm1623 = vcmp.lt.s32.totalorder %v1317, 33
      %v1624 = vsel %vm1623, %v1616, %v1620
      %v1625 = vsel %vm1623, %v1618, %v1622
      %v1626 = vsel %vm1623, %v1620, %v1616
      %v1627 = vsel %vm1623, %v1622, %v1618
      %s1628 = scalar_lea.vmem %s6, 17
      %v1629 = vld [vmem:[%s1628] ss:$8 sm:$0x3]
      %v1631 = vlaneseq
      %v1632 = vshrl.u32 %v1631, 7
      %v1633 = vsub.s32 0, %v1632
      %v1634 = vrot.slane %v1629, %v1633
      %v1635 = vlaneseq
      %v1636 = vshrl.u32 %v1635, 7
      %v1637 = vsub.s32 1, %v1636
      %v1638 = vrot.slane %v1629, %v1637
      %v1641 = vmul.f32 %v1626, %v1634
      %v1642 = vmul.f32 %v1624, %v1638
      %v1643 = vmul.f32 %v1627, %v1634
      %v1644 = vmul.f32 %v1625, %v1638
      %v1645 = vpack.c.bf16 %v1643, %v1641
      %v1646 = vpack.c.bf16 %v1644, %v1642
      %1647 = vst [vmem:[#allocation2 + $0x90] sm:$0xff] %v1645
      %1648 = vst [vmem:[#allocation2 + $0x98] sm:$0xff] %v1646
      %1649 = vrot.lane.b32.xlu0 %v1229, 32
      %v1650 = vpop.permute.xlu0 %1649
      %1651 = vrot.lane.b32.xlu0 %v1231, 32
      %v1652 = vpop.permute.xlu0 %1651
      %1653 = vrot.lane.b32.xlu0 %v1230, 32
      %v1654 = vpop.permute.xlu0 %1653
      %1655 = vrot.lane.b32.xlu0 %v1232, 32
      %v1656 = vpop.permute.xlu0 %1655
      %vm1657 = vcmp.lt.s32.totalorder %v1317, 32
      %v1658 = vsel %vm1657, %v1650, %v1654
      %v1659 = vsel %vm1657, %v1652, %v1656
      %v1660 = vsel %vm1657, %v1654, %v1650
      %v1661 = vsel %vm1657, %v1656, %v1652
      %s1662 = scalar_lea.vmem %s6, 18
      %v1663 = vld [vmem:[%s1662] ss:$8 sm:$0x3]
      %v1665 = vlaneseq
      %v1666 = vshrl.u32 %v1665, 7
      %v1667 = vsub.s32 0, %v1666
      %v1668 = vrot.slane %v1663, %v1667
      %v1669 = vlaneseq
      %v1670 = vshrl.u32 %v1669, 7
      %v1671 = vsub.s32 1, %v1670
      %v1672 = vrot.slane %v1663, %v1671
      %v1675 = vmul.f32 %v1660, %v1668
      %v1676 = vmul.f32 %v1658, %v1672
      %v1677 = vmul.f32 %v1661, %v1668
      %v1678 = vmul.f32 %v1659, %v1672
      %v1679 = vpack.c.bf16 %v1677, %v1675
      %v1680 = vpack.c.bf16 %v1678, %v1676
      %1681 = vst [vmem:[#allocation2 + $0xa0] sm:$0xff] %v1679
      %1682 = vst [vmem:[#allocation2 + $0xa8] sm:$0xff] %v1680
      %1683 = vrot.lane.b32.xlu0 %v1229, 31
      %v1684 = vpop.permute.xlu0 %1683
      %1685 = vrot.lane.b32.xlu0 %v1231, 31
      %v1686 = vpop.permute.xlu0 %1685
      %1687 = vrot.lane.b32.xlu0 %v1230, 31
      %v1688 = vpop.permute.xlu0 %1687
      %1689 = vrot.lane.b32.xlu0 %v1232, 31
      %v1690 = vpop.permute.xlu0 %1689
      %vm1691 = vcmp.lt.s32.totalorder %v1317, 31
      %v1692 = vsel %vm1691, %v1684, %v1688
      %v1693 = vsel %vm1691, %v1686, %v1690
      %v1694 = vsel %vm1691, %v1688, %v1684
      %v1695 = vsel %vm1691, %v1690, %v1686
      %s1696 = scalar_lea.vmem %s6, 19
      %v1697 = vld [vmem:[%s1696] ss:$8 sm:$0x3]
      %v1699 = vlaneseq
      %v1700 = vshrl.u32 %v1699, 7
      %v1701 = vsub.s32 0, %v1700
      %v1702 = vrot.slane %v1697, %v1701
      %v1703 = vlaneseq
      %v1704 = vshrl.u32 %v1703, 7
      %v1705 = vsub.s32 1, %v1704
      %v1706 = vrot.slane %v1697, %v1705
      %v1709 = vmul.f32 %v1694, %v1702
      %v1710 = vmul.f32 %v1692, %v1706
      %v1711 = vmul.f32 %v1695, %v1702
      %v1712 = vmul.f32 %v1693, %v1706
      %v1713 = vpack.c.bf16 %v1711, %v1709
      %v1714 = vpack.c.bf16 %v1712, %v1710
      %1715 = vst [vmem:[#allocation2 + $0xb0] sm:$0xff] %v1713
      %1716 = vst [vmem:[#allocation2 + $0xb8] sm:$0xff] %v1714
      %1717 = vrot.lane.b32.xlu0 %v1229, 30
      %v1718 = vpop.permute.xlu0 %1717
      %1719 = vrot.lane.b32.xlu0 %v1231, 30
      %v1720 = vpop.permute.xlu0 %1719
      %1721 = vrot.lane.b32.xlu0 %v1230, 30
      %v1722 = vpop.permute.xlu0 %1721
      %1723 = vrot.lane.b32.xlu0 %v1232, 30
      %v1724 = vpop.permute.xlu0 %1723
      %vm1725 = vcmp.lt.s32.totalorder %v1317, 30
      %v1726 = vsel %vm1725, %v1718, %v1722
      %v1727 = vsel %vm1725, %v1720, %v1724
      %v1728 = vsel %vm1725, %v1722, %v1718
      %v1729 = vsel %vm1725, %v1724, %v1720
      %s1730 = scalar_lea.vmem %s6, 20
      %v1731 = vld [vmem:[%s1730] ss:$8 sm:$0x3]
      %v1733 = vlaneseq
      %v1734 = vshrl.u32 %v1733, 7
      %v1735 = vsub.s32 0, %v1734
      %v1736 = vrot.slane %v1731, %v1735
      %v1737 = vlaneseq
      %v1738 = vshrl.u32 %v1737, 7
      %v1739 = vsub.s32 1, %v1738
      %v1740 = vrot.slane %v1731, %v1739
      %v1743 = vmul.f32 %v1728, %v1736
      %v1744 = vmul.f32 %v1726, %v1740
      %v1745 = vmul.f32 %v1729, %v1736
      %v1746 = vmul.f32 %v1727, %v1740
      %v1747 = vpack.c.bf16 %v1745, %v1743
      %v1748 = vpack.c.bf16 %v1746, %v1744
      %1749 = vst [vmem:[#allocation2 + $0xc0] sm:$0xff] %v1747
      %1750 = vst [vmem:[#allocation2 + $0xc8] sm:$0xff] %v1748
      %1751 = vrot.lane.b32.xlu0 %v1229, 29
      %v1752 = vpop.permute.xlu0 %1751
      %1753 = vrot.lane.b32.xlu0 %v1231, 29
      %v1754 = vpop.permute.xlu0 %1753
      %1755 = vrot.lane.b32.xlu0 %v1230, 29
      %v1756 = vpop.permute.xlu0 %1755
      %1757 = vrot.lane.b32.xlu0 %v1232, 29
      %v1758 = vpop.permute.xlu0 %1757
      %vm1759 = vcmp.lt.s32.totalorder %v1317, 29
      %v1760 = vsel %vm1759, %v1752, %v1756
      %v1761 = vsel %vm1759, %v1754, %v1758
      %v1762 = vsel %vm1759, %v1756, %v1752
      %v1763 = vsel %vm1759, %v1758, %v1754
      %s1764 = scalar_lea.vmem %s6, 21
      %v1765 = vld [vmem:[%s1764] ss:$8 sm:$0x3]
      %v1767 = vlaneseq
      %v1768 = vshrl.u32 %v1767, 7
      %v1769 = vsub.s32 0, %v1768
      %v1770 = vrot.slane %v1765, %v1769
      %v1771 = vlaneseq
      %v1772 = vshrl.u32 %v1771, 7
      %v1773 = vsub.s32 1, %v1772
      %v1774 = vrot.slane %v1765, %v1773
      %v1777 = vmul.f32 %v1762, %v1770
      %v1778 = vmul.f32 %v1760, %v1774
      %v1779 = vmul.f32 %v1763, %v1770
      %v1780 = vmul.f32 %v1761, %v1774
      %v1781 = vpack.c.bf16 %v1779, %v1777
      %v1782 = vpack.c.bf16 %v1780, %v1778
      %1783 = vst [vmem:[#allocation2 + $0xd0] sm:$0xff] %v1781
      %1784 = vst [vmem:[#allocation2 + $0xd8] sm:$0xff] %v1782
      %1785 = vrot.lane.b32.xlu0 %v1229, 19
      %v1786 = vpop.permute.xlu0 %1785
      %1787 = vrot.lane.b32.xlu0 %v1231, 19
      %v1788 = vpop.permute.xlu0 %1787
      %1789 = vrot.lane.b32.xlu0 %v1230, 19
      %v1790 = vpop.permute.xlu0 %1789
      %1791 = vrot.lane.b32.xlu0 %v1232, 19
      %v1792 = vpop.permute.xlu0 %1791
      %vm1793 = vcmp.lt.s32.totalorder %v1317, 19
      %v1794 = vsel %vm1793, %v1786, %v1790
      %v1795 = vsel %vm1793, %v1788, %v1792
      %v1796 = vsel %vm1793, %v1790, %v1786
      %v1797 = vsel %vm1793, %v1792, %v1788
      %s1798 = scalar_lea.vmem %s6, 22
      %v1799 = vld [vmem:[%s1798] ss:$8 sm:$0x3]
      %v1801 = vlaneseq
      %v1802 = vshrl.u32 %v1801, 7
      %v1803 = vsub.s32 0, %v1802
      %v1804 = vrot.slane %v1799, %v1803
      %v1805 = vlaneseq
      %v1806 = vshrl.u32 %v1805, 7
      %v1807 = vsub.s32 1, %v1806
      %v1808 = vrot.slane %v1799, %v1807
      %v1811 = vmul.f32 %v1796, %v1804
      %v1812 = vmul.f32 %v1794, %v1808
      %v1813 = vmul.f32 %v1797, %v1804
      %v1814 = vmul.f32 %v1795, %v1808
      %v1815 = vpack.c.bf16 %v1813, %v1811
      %v1816 = vpack.c.bf16 %v1814, %v1812
      %1817 = vst [vmem:[#allocation2 + $0xe0] sm:$0xff] %v1815
      %1818 = vst [vmem:[#allocation2 + $0xe8] sm:$0xff] %v1816
      %1819 = vrot.lane.b32.xlu0 %v1229, 18
      %v1820 = vpop.permute.xlu0 %1819
      %1821 = vrot.lane.b32.xlu0 %v1231, 18
      %v1822 = vpop.permute.xlu0 %1821
      %1823 = vrot.lane.b32.xlu0 %v1230, 18
      %v1824 = vpop.permute.xlu0 %1823
      %1825 = vrot.lane.b32.xlu0 %v1232, 18
      %v1826 = vpop.permute.xlu0 %1825
      %vm1827 = vcmp.lt.s32.totalorder %v1317, 18
      %v1828 = vsel %vm1827, %v1820, %v1824
      %v1829 = vsel %vm1827, %v1822, %v1826
      %v1830 = vsel %vm1827, %v1824, %v1820
      %v1831 = vsel %vm1827, %v1826, %v1822
      %s1832 = scalar_lea.vmem %s6, 23
      %v1833 = vld [vmem:[%s1832] ss:$8 sm:$0x3]
      %v1835 = vlaneseq
      %v1836 = vshrl.u32 %v1835, 7
      %v1837 = vsub.s32 0, %v1836
      %v1838 = vrot.slane %v1833, %v1837
      %v1839 = vlaneseq
      %v1840 = vshrl.u32 %v1839, 7
      %v1841 = vsub.s32 1, %v1840
      %v1842 = vrot.slane %v1833, %v1841
      %v1845 = vmul.f32 %v1830, %v1838
      %v1846 = vmul.f32 %v1828, %v1842
      %v1847 = vmul.f32 %v1831, %v1838
      %v1848 = vmul.f32 %v1829, %v1842
      %v1849 = vpack.c.bf16 %v1847, %v1845
      %v1850 = vpack.c.bf16 %v1848, %v1846
      %1851 = vst [vmem:[#allocation2 + $0xf0] sm:$0xff] %v1849
      %1852 = vst [vmem:[#allocation2 + $0xf8] sm:$0xff] %v1850
      %1853 = vrot.lane.b32.xlu0 %v1229, 17
      %v1854 = vpop.permute.xlu0 %1853
      %1855 = vrot.lane.b32.xlu0 %v1231, 17
      %v1856 = vpop.permute.xlu0 %1855
      %1857 = vrot.lane.b32.xlu0 %v1230, 17
      %v1858 = vpop.permute.xlu0 %1857
      %1859 = vrot.lane.b32.xlu0 %v1232, 17
      %v1860 = vpop.permute.xlu0 %1859
      %vm1861 = vcmp.lt.s32.totalorder %v1317, 17
      %v1862 = vsel %vm1861, %v1854, %v1858
      %v1863 = vsel %vm1861, %v1856, %v1860
      %v1864 = vsel %vm1861, %v1858, %v1854
      %v1865 = vsel %vm1861, %v1860, %v1856
      %s1866 = scalar_lea.vmem %s6, 32
      %v1867 = vld [vmem:[%s1866] ss:$8 sm:$0x3]
      %v1869 = vlaneseq
      %v1870 = vshrl.u32 %v1869, 7
      %v1871 = vsub.s32 0, %v1870
      %v1872 = vrot.slane %v1867, %v1871
      %v1873 = vlaneseq
      %v1874 = vshrl.u32 %v1873, 7
      %v1875 = vsub.s32 1, %v1874
      %v1876 = vrot.slane %v1867, %v1875
      %v1879 = vmul.f32 %v1864, %v1872
      %v1880 = vmul.f32 %v1862, %v1876
      %v1881 = vmul.f32 %v1865, %v1872
      %v1882 = vmul.f32 %v1863, %v1876
      %v1883 = vpack.c.bf16 %v1881, %v1879
      %v1884 = vpack.c.bf16 %v1882, %v1880
      %1885 = vst [vmem:[#allocation2 + $0x100] sm:$0xff] %v1883
      %1886 = vst [vmem:[#allocation2 + $0x108] sm:$0xff] %v1884
      %1887 = vrot.lane.b32.xlu0 %v1229, 16
      %v1888 = vpop.permute.xlu0 %1887
      %1889 = vrot.lane.b32.xlu0 %v1231, 16
      %v1890 = vpop.permute.xlu0 %1889
      %1891 = vrot.lane.b32.xlu0 %v1230, 16
      %v1892 = vpop.permute.xlu0 %1891
      %1893 = vrot.lane.b32.xlu0 %v1232, 16
      %v1894 = vpop.permute.xlu0 %1893
      %vm1895 = vcmp.lt.s32.totalorder %v1317, 16
      %v1896 = vsel %vm1895, %v1888, %v1892
      %v1897 = vsel %vm1895, %v1890, %v1894
      %v1898 = vsel %vm1895, %v1892, %v1888
      %v1899 = vsel %vm1895, %v1894, %v1890
      %s1900 = scalar_lea.vmem %s6, 33
      %v1901 = vld [vmem:[%s1900] ss:$8 sm:$0x3]
      %v1903 = vlaneseq
      %v1904 = vshrl.u32 %v1903, 7
      %v1905 = vsub.s32 0, %v1904
      %v1906 = vrot.slane %v1901, %v1905
      %v1907 = vlaneseq
      %v1908 = vshrl.u32 %v1907, 7
      %v1909 = vsub.s32 1, %v1908
      %v1910 = vrot.slane %v1901, %v1909
      %v1913 = vmul.f32 %v1898, %v1906
      %v1914 = vmul.f32 %v1896, %v1910
      %v1915 = vmul.f32 %v1899, %v1906
      %v1916 = vmul.f32 %v1897, %v1910
      %v1917 = vpack.c.bf16 %v1915, %v1913
      %v1918 = vpack.c.bf16 %v1916, %v1914
      %1919 = vst [vmem:[#allocation2 + $0x110] sm:$0xff] %v1917
      %1920 = vst [vmem:[#allocation2 + $0x118] sm:$0xff] %v1918
      %1921 = vrot.lane.b32.xlu0 %v1229, 15
      %v1922 = vpop.permute.xlu0 %1921
      %1923 = vrot.lane.b32.xlu0 %v1231, 15
      %v1924 = vpop.permute.xlu0 %1923
      %1925 = vrot.lane.b32.xlu0 %v1230, 15
      %v1926 = vpop.permute.xlu0 %1925
      %1927 = vrot.lane.b32.xlu0 %v1232, 15
      %v1928 = vpop.permute.xlu0 %1927
      %vm1929 = vcmp.lt.s32.totalorder %v1317, 15
      %v1930 = vsel %vm1929, %v1922, %v1926
      %v1931 = vsel %vm1929, %v1924, %v1928
      %v1932 = vsel %vm1929, %v1926, %v1922
      %v1933 = vsel %vm1929, %v1928, %v1924
      %s1934 = scalar_lea.vmem %s6, 34
      %v1935 = vld [vmem:[%s1934] ss:$8 sm:$0x3]
      %v1937 = vlaneseq
      %v1938 = vshrl.u32 %v1937, 7
      %v1939 = vsub.s32 0, %v1938
      %v1940 = vrot.slane %v1935, %v1939
      %v1941 = vlaneseq
      %v1942 = vshrl.u32 %v1941, 7
      %v1943 = vsub.s32 1, %v1942
      %v1944 = vrot.slane %v1935, %v1943
      %v1947 = vmul.f32 %v1932, %v1940
      %v1948 = vmul.f32 %v1930, %v1944
      %v1949 = vmul.f32 %v1933, %v1940
      %v1950 = vmul.f32 %v1931, %v1944
      %v1951 = vpack.c.bf16 %v1949, %v1947
      %v1952 = vpack.c.bf16 %v1950, %v1948
      %1953 = vst [vmem:[#allocation2 + $0x120] sm:$0xff] %v1951
      %1954 = vst [vmem:[#allocation2 + $0x128] sm:$0xff] %v1952
      %1955 = vrot.lane.b32.xlu0 %v1229, 14
      %v1956 = vpop.permute.xlu0 %1955
      %1957 = vrot.lane.b32.xlu0 %v1231, 14
      %v1958 = vpop.permute.xlu0 %1957
      %1959 = vrot.lane.b32.xlu0 %v1230, 14
      %v1960 = vpop.permute.xlu0 %1959
      %1961 = vrot.lane.b32.xlu0 %v1232, 14
      %v1962 = vpop.permute.xlu0 %1961
      %vm1963 = vcmp.lt.s32.totalorder %v1317, 14
      %v1964 = vsel %vm1963, %v1956, %v1960
      %v1965 = vsel %vm1963, %v1958, %v1962
      %v1966 = vsel %vm1963, %v1960, %v1956
      %v1967 = vsel %vm1963, %v1962, %v1958
      %s1968 = scalar_lea.vmem %s6, 35
      %v1969 = vld [vmem:[%s1968] ss:$8 sm:$0x3]
      %v1971 = vlaneseq
      %v1972 = vshrl.u32 %v1971, 7
      %v1973 = vsub.s32 0, %v1972
      %v1974 = vrot.slane %v1969, %v1973
      %v1975 = vlaneseq
      %v1976 = vshrl.u32 %v1975, 7
      %v1977 = vsub.s32 1, %v1976
      %v1978 = vrot.slane %v1969, %v1977
      %v1981 = vmul.f32 %v1966, %v1974
      %v1982 = vmul.f32 %v1964, %v1978
      %v1983 = vmul.f32 %v1967, %v1974
      %v1984 = vmul.f32 %v1965, %v1978
      %v1985 = vpack.c.bf16 %v1983, %v1981
      %v1986 = vpack.c.bf16 %v1984, %v1982
      %1987 = vst [vmem:[#allocation2 + $0x130] sm:$0xff] %v1985
      %1988 = vst [vmem:[#allocation2 + $0x138] sm:$0xff] %v1986
      %1989 = vrot.lane.b32.xlu0 %v1229, 13
      %v1990 = vpop.permute.xlu0 %1989
      %1991 = vrot.lane.b32.xlu0 %v1231, 13
      %v1992 = vpop.permute.xlu0 %1991
      %1993 = vrot.lane.b32.xlu0 %v1230, 13
      %v1994 = vpop.permute.xlu0 %1993
      %1995 = vrot.lane.b32.xlu0 %v1232, 13
      %v1996 = vpop.permute.xlu0 %1995
      %vm1997 = vcmp.lt.s32.totalorder %v1317, 13
      %v1998 = vsel %vm1997, %v1990, %v1994
      %v1999 = vsel %vm1997, %v1992, %v1996
      %v2000 = vsel %vm1997, %v1994, %v1990
      %v2001 = vsel %vm1997, %v1996, %v1992
      %s2002 = scalar_lea.vmem %s6, 36
      %v2003 = vld [vmem:[%s2002] ss:$8 sm:$0x3]
      %v2005 = vlaneseq
      %v2006 = vshrl.u32 %v2005, 7
      %v2007 = vsub.s32 0, %v2006
      %v2008 = vrot.slane %v2003, %v2007
      %v2009 = vlaneseq
      %v2010 = vshrl.u32 %v2009, 7
      %v2011 = vsub.s32 1, %v2010
      %v2012 = vrot.slane %v2003, %v2011
      %v2015 = vmul.f32 %v2000, %v2008
      %v2016 = vmul.f32 %v1998, %v2012
      %v2017 = vmul.f32 %v2001, %v2008
      %v2018 = vmul.f32 %v1999, %v2012
      %v2019 = vpack.c.bf16 %v2017, %v2015
      %v2020 = vpack.c.bf16 %v2018, %v2016
      %2021 = vst [vmem:[#allocation2 + $0x140] sm:$0xff] %v2019
      %2022 = vst [vmem:[#allocation2 + $0x148] sm:$0xff] %v2020
      %2023 = vrot.lane.b32.xlu0 %v1229, 3
      %v2024 = vpop.permute.xlu0 %2023
      %2025 = vrot.lane.b32.xlu0 %v1231, 3
      %v2026 = vpop.permute.xlu0 %2025
      %2027 = vrot.lane.b32.xlu0 %v1230, 3
      %v2028 = vpop.permute.xlu0 %2027
      %2029 = vrot.lane.b32.xlu0 %v1232, 3
      %v2030 = vpop.permute.xlu0 %2029
      %vm2031 = vcmp.lt.s32.totalorder %v1317, 3
      %v2032 = vsel %vm2031, %v2024, %v2028
      %v2033 = vsel %vm2031, %v2026, %v2030
      %v2034 = vsel %vm2031, %v2028, %v2024
      %v2035 = vsel %vm2031, %v2030, %v2026
      %s2036 = scalar_lea.vmem %s6, 37
      %v2037 = vld [vmem:[%s2036] ss:$8 sm:$0x3]
      %v2039 = vlaneseq
      %v2040 = vshrl.u32 %v2039, 7
      %v2041 = vsub.s32 0, %v2040
      %v2042 = vrot.slane %v2037, %v2041
      %v2043 = vlaneseq
      %v2044 = vshrl.u32 %v2043, 7
      %v2045 = vsub.s32 1, %v2044
      %v2046 = vrot.slane %v2037, %v2045
      %v2049 = vmul.f32 %v2034, %v2042
      %v2050 = vmul.f32 %v2032, %v2046
      %v2051 = vmul.f32 %v2035, %v2042
      %v2052 = vmul.f32 %v2033, %v2046
      %v2053 = vpack.c.bf16 %v2051, %v2049
      %v2054 = vpack.c.bf16 %v2052, %v2050
      %2055 = vst [vmem:[#allocation2 + $0x150] sm:$0xff] %v2053
      %2056 = vst [vmem:[#allocation2 + $0x158] sm:$0xff] %v2054
      %2057 = vrot.lane.b32.xlu0 %v1229, 2
      %v2058 = vpop.permute.xlu0 %2057
      %2059 = vrot.lane.b32.xlu0 %v1231, 2
      %v2060 = vpop.permute.xlu0 %2059
      %2061 = vrot.lane.b32.xlu0 %v1230, 2
      %v2062 = vpop.permute.xlu0 %2061
      %2063 = vrot.lane.b32.xlu0 %v1232, 2
      %v2064 = vpop.permute.xlu0 %2063
      %vm2065 = vcmp.lt.s32.totalorder %v1317, 2
      %v2066 = vsel %vm2065, %v2058, %v2062
      %v2067 = vsel %vm2065, %v2060, %v2064
      %v2068 = vsel %vm2065, %v2062, %v2058
      %v2069 = vsel %vm2065, %v2064, %v2060
      %s2070 = scalar_lea.vmem %s6, 38
      %v2071 = vld [vmem:[%s2070] ss:$8 sm:$0x3]
      %v2073 = vlaneseq
      %v2074 = vshrl.u32 %v2073, 7
      %v2075 = vsub.s32 0, %v2074
      %v2076 = vrot.slane %v2071, %v2075
      %v2077 = vlaneseq
      %v2078 = vshrl.u32 %v2077, 7
      %v2079 = vsub.s32 1, %v2078
      %v2080 = vrot.slane %v2071, %v2079
      %v2083 = vmul.f32 %v2068, %v2076
      %v2084 = vmul.f32 %v2066, %v2080
      %v2085 = vmul.f32 %v2069, %v2076
      %v2086 = vmul.f32 %v2067, %v2080
      %v2087 = vpack.c.bf16 %v2085, %v2083
      %v2088 = vpack.c.bf16 %v2086, %v2084
      %2089 = vst [vmem:[#allocation2 + $0x160] sm:$0xff] %v2087
      %2090 = vst [vmem:[#allocation2 + $0x168] sm:$0xff] %v2088
      %2091 = vrot.lane.b32.xlu0 %v1229, 1
      %v2092 = vpop.permute.xlu0 %2091
      %2093 = vrot.lane.b32.xlu0 %v1231, 1
      %v2094 = vpop.permute.xlu0 %2093
      %2095 = vrot.lane.b32.xlu0 %v1230, 1
      %v2096 = vpop.permute.xlu0 %2095
      %2097 = vrot.lane.b32.xlu0 %v1232, 1
      %v2098 = vpop.permute.xlu0 %2097
      %vm2099 = vcmp.lt.s32.totalorder %v1317, 1
      %v2100 = vsel %vm2099, %v2092, %v2096
      %v2101 = vsel %vm2099, %v2094, %v2098
      %v2102 = vsel %vm2099, %v2096, %v2092
      %v2103 = vsel %vm2099, %v2098, %v2094
      %s2104 = scalar_lea.vmem %s6, 39
      %v2105 = vld [vmem:[%s2104] ss:$8 sm:$0x3]
      %v2107 = vlaneseq
      %v2108 = vshrl.u32 %v2107, 7
      %v2109 = vsub.s32 0, %v2108
      %v2110 = vrot.slane %v2105, %v2109
      %v2111 = vlaneseq
      %v2112 = vshrl.u32 %v2111, 7
      %v2113 = vsub.s32 1, %v2112
      %v2114 = vrot.slane %v2105, %v2113
      %v2117 = vmul.f32 %v2102, %v2110
      %v2118 = vmul.f32 %v2100, %v2114
      %v2119 = vmul.f32 %v2103, %v2110
      %v2120 = vmul.f32 %v2101, %v2114
      %v2121 = vpack.c.bf16 %v2119, %v2117
      %v2122 = vpack.c.bf16 %v2120, %v2118
      %2123 = vst [vmem:[#allocation2 + $0x170] sm:$0xff] %v2121
      %2124 = vst [vmem:[#allocation2 + $0x178] sm:$0xff] %v2122
      %s2125 = scalar_lea.vmem %s6, 48
      %v2126 = vld [vmem:[%s2125] ss:$8 sm:$0x3]
      %v2128 = vlaneseq
      %v2129 = vshrl.u32 %v2128, 7
      %v2130 = vsub.s32 0, %v2129
      %v2131 = vrot.slane %v2126, %v2130
      %v2132 = vlaneseq
      %v2133 = vshrl.u32 %v2132, 7
      %v2134 = vsub.s32 1, %v2133
      %v2135 = vrot.slane %v2126, %v2134
      %v2138 = vmul.f32 %v1229, %v2131
      %v2139 = vmul.f32 %v1230, %v2135
      %v2140 = vmul.f32 %v1231, %v2131
      %v2141 = vmul.f32 %v1232, %v2135
      %v2142 = vpack.c.bf16 %v2140, %v2138
      %v2143 = vpack.c.bf16 %v2141, %v2139
      %2144 = vst [vmem:[#allocation2 + $0x180] sm:$0xff] %v2142
      %2145 = vst [vmem:[#allocation2 + $0x188] sm:$0xff] %v2143
      %2146 = vrot.lane.b32.xlu0 %v1229, 127
      %v2147 = vpop.permute.xlu0 %2146
      %2148 = vrot.lane.b32.xlu0 %v1231, 127
      %v2149 = vpop.permute.xlu0 %2148
      %2150 = vrot.lane.b32.xlu0 %v1230, 127
      %v2151 = vpop.permute.xlu0 %2150
      %2152 = vrot.lane.b32.xlu0 %v1232, 127
      %v2153 = vpop.permute.xlu0 %2152
      %vm2154 = vcmp.lt.s32.totalorder %v1317, 127
      %v2155 = vsel %vm2154, %v2147, %v2151
      %v2156 = vsel %vm2154, %v2149, %v2153
      %v2157 = vsel %vm2154, %v2151, %v2147
      %v2158 = vsel %vm2154, %v2153, %v2149
      %s2159 = scalar_lea.vmem %s6, 49
      %v2160 = vld [vmem:[%s2159] ss:$8 sm:$0x3]
      %v2162 = vlaneseq
      %v2163 = vshrl.u32 %v2162, 7
      %v2164 = vsub.s32 0, %v2163
      %v2165 = vrot.slane %v2160, %v2164
      %v2166 = vlaneseq
      %v2167 = vshrl.u32 %v2166, 7
      %v2168 = vsub.s32 1, %v2167
      %v2169 = vrot.slane %v2160, %v2168
      %v2172 = vmul.f32 %v2155, %v2165
      %v2173 = vmul.f32 %v2157, %v2169
      %v2174 = vmul.f32 %v2156, %v2165
      %v2175 = vmul.f32 %v2158, %v2169
      %v2176 = vpack.c.bf16 %v2174, %v2172
      %v2177 = vpack.c.bf16 %v2175, %v2173
      %2178 = vst [vmem:[#allocation2 + $0x190] sm:$0xff] %v2176
      %2179 = vst [vmem:[#allocation2 + $0x198] sm:$0xff] %v2177
      %2180 = vrot.lane.b32.xlu0 %v1229, 126
      %v2181 = vpop.permute.xlu0 %2180
      %2182 = vrot.lane.b32.xlu0 %v1231, 126
      %v2183 = vpop.permute.xlu0 %2182
      %2184 = vrot.lane.b32.xlu0 %v1230, 126
      %v2185 = vpop.permute.xlu0 %2184
      %2186 = vrot.lane.b32.xlu0 %v1232, 126
      %v2187 = vpop.permute.xlu0 %2186
      %vm2188 = vcmp.lt.s32.totalorder %v1317, 126
      %v2189 = vsel %vm2188, %v2181, %v2185
      %v2190 = vsel %vm2188, %v2183, %v2187
      %v2191 = vsel %vm2188, %v2185, %v2181
      %v2192 = vsel %vm2188, %v2187, %v2183
      %s2193 = scalar_lea.vmem %s6, 50
      %v2194 = vld [vmem:[%s2193] ss:$8 sm:$0x3]
      %v2196 = vlaneseq
      %v2197 = vshrl.u32 %v2196, 7
      %v2198 = vsub.s32 0, %v2197
      %v2199 = vrot.slane %v2194, %v2198
      %v2200 = vlaneseq
      %v2201 = vshrl.u32 %v2200, 7
      %v2202 = vsub.s32 1, %v2201
      %v2203 = vrot.slane %v2194, %v2202
      %v2206 = vmul.f32 %v2189, %v2199
      %v2207 = vmul.f32 %v2191, %v2203
      %v2208 = vmul.f32 %v2190, %v2199
      %v2209 = vmul.f32 %v2192, %v2203
      %v2210 = vpack.c.bf16 %v2208, %v2206
      %v2211 = vpack.c.bf16 %v2209, %v2207
      %2212 = vst [vmem:[#allocation2 + $0x1a0] sm:$0xff] %v2210
      %2213 = vst [vmem:[#allocation2 + $0x1a8] sm:$0xff] %v2211
      %2214 = vrot.lane.b32.xlu0 %v1229, 125
      %v2215 = vpop.permute.xlu0 %2214
      %2216 = vrot.lane.b32.xlu0 %v1231, 125
      %v2217 = vpop.permute.xlu0 %2216
      %2218 = vrot.lane.b32.xlu0 %v1230, 125
      %v2219 = vpop.permute.xlu0 %2218
      %2220 = vrot.lane.b32.xlu0 %v1232, 125
      %v2221 = vpop.permute.xlu0 %2220
      %vm2222 = vcmp.lt.s32.totalorder %v1317, 125
      %v2223 = vsel %vm2222, %v2215, %v2219
      %v2224 = vsel %vm2222, %v2217, %v2221
      %v2225 = vsel %vm2222, %v2219, %v2215
      %v2226 = vsel %vm2222, %v2221, %v2217
      %s2227 = scalar_lea.vmem %s6, 51
      %v2228 = vld [vmem:[%s2227] ss:$8 sm:$0x3]
      %v2230 = vlaneseq
      %v2231 = vshrl.u32 %v2230, 7
      %v2232 = vsub.s32 0, %v2231
      %v2233 = vrot.slane %v2228, %v2232
      %v2234 = vlaneseq
      %v2235 = vshrl.u32 %v2234, 7
      %v2236 = vsub.s32 1, %v2235
      %v2237 = vrot.slane %v2228, %v2236
      %v2240 = vmul.f32 %v2223, %v2233
      %v2241 = vmul.f32 %v2225, %v2237
      %v2242 = vmul.f32 %v2224, %v2233
      %v2243 = vmul.f32 %v2226, %v2237
      %v2244 = vpack.c.bf16 %v2242, %v2240
      %v2245 = vpack.c.bf16 %v2243, %v2241
      %2246 = vst [vmem:[#allocation2 + $0x1b0] sm:$0xff] %v2244
      %2247 = vst [vmem:[#allocation2 + $0x1b8] sm:$0xff] %v2245
      %2248 = vrot.lane.b32.xlu0 %v1229, 115
      %v2249 = vpop.permute.xlu0 %2248
      %2250 = vrot.lane.b32.xlu0 %v1231, 115
      %v2251 = vpop.permute.xlu0 %2250
      %2252 = vrot.lane.b32.xlu0 %v1230, 115
      %v2253 = vpop.permute.xlu0 %2252
      %2254 = vrot.lane.b32.xlu0 %v1232, 115
      %v2255 = vpop.permute.xlu0 %2254
      %vm2256 = vcmp.lt.s32.totalorder %v1317, 115
      %v2257 = vsel %vm2256, %v2249, %v2253
      %v2258 = vsel %vm2256, %v2251, %v2255
      %v2259 = vsel %vm2256, %v2253, %v2249
      %v2260 = vsel %vm2256, %v2255, %v2251
      %s2261 = scalar_lea.vmem %s6, 52
      %v2262 = vld [vmem:[%s2261] ss:$8 sm:$0x3]
      %v2264 = vlaneseq
      %v2265 = vshrl.u32 %v2264, 7
      %v2266 = vsub.s32 0, %v2265
      %v2267 = vrot.slane %v2262, %v2266
      %v2268 = vlaneseq
      %v2269 = vshrl.u32 %v2268, 7
      %v2270 = vsub.s32 1, %v2269
      %v2271 = vrot.slane %v2262, %v2270
      %v2274 = vmul.f32 %v2257, %v2267
      %v2275 = vmul.f32 %v2259, %v2271
      %v2276 = vmul.f32 %v2258, %v2267
      %v2277 = vmul.f32 %v2260, %v2271
      %v2278 = vpack.c.bf16 %v2276, %v2274
      %v2279 = vpack.c.bf16 %v2277, %v2275
      %2280 = vst [vmem:[#allocation2 + $0x1c0] sm:$0xff] %v2278
      %2281 = vst [vmem:[#allocation2 + $0x1c8] sm:$0xff] %v2279
      %2282 = vrot.lane.b32.xlu0 %v1229, 114
      %v2283 = vpop.permute.xlu0 %2282
      %2284 = vrot.lane.b32.xlu0 %v1231, 114
      %v2285 = vpop.permute.xlu0 %2284
      %2286 = vrot.lane.b32.xlu0 %v1230, 114
      %v2287 = vpop.permute.xlu0 %2286
      %2288 = vrot.lane.b32.xlu0 %v1232, 114
      %v2289 = vpop.permute.xlu0 %2288
      %vm2290 = vcmp.lt.s32.totalorder %v1317, 114
      %v2291 = vsel %vm2290, %v2283, %v2287
      %v2292 = vsel %vm2290, %v2285, %v2289
      %v2293 = vsel %vm2290, %v2287, %v2283
      %v2294 = vsel %vm2290, %v2289, %v2285
      %s2295 = scalar_lea.vmem %s6, 53
      %v2296 = vld [vmem:[%s2295] ss:$8 sm:$0x3]
      %v2298 = vlaneseq
      %v2299 = vshrl.u32 %v2298, 7
      %v2300 = vsub.s32 0, %v2299
      %v2301 = vrot.slane %v2296, %v2300
      %v2302 = vlaneseq
      %v2303 = vshrl.u32 %v2302, 7
      %v2304 = vsub.s32 1, %v2303
      %v2305 = vrot.slane %v2296, %v2304
      %v2308 = vmul.f32 %v2291, %v2301
      %v2309 = vmul.f32 %v2293, %v2305
      %v2310 = vmul.f32 %v2292, %v2301
      %v2311 = vmul.f32 %v2294, %v2305
      %v2312 = vpack.c.bf16 %v2310, %v2308
      %v2313 = vpack.c.bf16 %v2311, %v2309
      %2314 = vst [vmem:[#allocation2 + $0x1d0] sm:$0xff] %v2312
      %2315 = vst [vmem:[#allocation2 + $0x1d8] sm:$0xff] %v2313
      %2316 = vrot.lane.b32.xlu0 %v1229, 113
      %v2317 = vpop.permute.xlu0 %2316
      %2318 = vrot.lane.b32.xlu0 %v1231, 113
      %v2319 = vpop.permute.xlu0 %2318
      %2320 = vrot.lane.b32.xlu0 %v1230, 113
      %v2321 = vpop.permute.xlu0 %2320
      %2322 = vrot.lane.b32.xlu0 %v1232, 113
      %v2323 = vpop.permute.xlu0 %2322
      %vm2324 = vcmp.lt.s32.totalorder %v1317, 113
      %v2325 = vsel %vm2324, %v2317, %v2321
      %v2326 = vsel %vm2324, %v2319, %v2323
      %v2327 = vsel %vm2324, %v2321, %v2317
      %v2328 = vsel %vm2324, %v2323, %v2319
      %s2329 = scalar_lea.vmem %s6, 54
      %v2330 = vld [vmem:[%s2329] ss:$8 sm:$0x3]
      %v2332 = vlaneseq
      %v2333 = vshrl.u32 %v2332, 7
      %v2334 = vsub.s32 0, %v2333
      %v2335 = vrot.slane %v2330, %v2334
      %v2336 = vlaneseq
      %v2337 = vshrl.u32 %v2336, 7
      %v2338 = vsub.s32 1, %v2337
      %v2339 = vrot.slane %v2330, %v2338
      %v2342 = vmul.f32 %v2325, %v2335
      %v2343 = vmul.f32 %v2327, %v2339
      %v2344 = vmul.f32 %v2326, %v2335
      %v2345 = vmul.f32 %v2328, %v2339
      %v2346 = vpack.c.bf16 %v2344, %v2342
      %v2347 = vpack.c.bf16 %v2345, %v2343
      %2348 = vst [vmem:[#allocation2 + $0x1e0] sm:$0xff] %v2346
      %2349 = vst [vmem:[#allocation2 + $0x1e8] sm:$0xff] %v2347
      %2350 = vrot.lane.b32.xlu0 %v1229, 112
      %v2351 = vpop.permute.xlu0 %2350
      %2352 = vrot.lane.b32.xlu0 %v1231, 112
      %v2353 = vpop.permute.xlu0 %2352
      %2354 = vrot.lane.b32.xlu0 %v1230, 112
      %v2355 = vpop.permute.xlu0 %2354
      %2356 = vrot.lane.b32.xlu0 %v1232, 112
      %v2357 = vpop.permute.xlu0 %2356
      %vm2358 = vcmp.lt.s32.totalorder %v1317, 112
      %v2359 = vsel %vm2358, %v2351, %v2355
      %v2360 = vsel %vm2358, %v2353, %v2357
      %v2361 = vsel %vm2358, %v2355, %v2351
      %v2362 = vsel %vm2358, %v2357, %v2353
      %s2363 = scalar_lea.vmem %s6, 55
      %v2364 = vld [vmem:[%s2363] ss:$8 sm:$0x3]
      %v2366 = vlaneseq
      %v2367 = vshrl.u32 %v2366, 7
      %v2368 = vsub.s32 0, %v2367
      %v2369 = vrot.slane %v2364, %v2368
      %v2370 = vlaneseq
      %v2371 = vshrl.u32 %v2370, 7
      %v2372 = vsub.s32 1, %v2371
      %v2373 = vrot.slane %v2364, %v2372
      %v2376 = vmul.f32 %v2359, %v2369
      %v2377 = vmul.f32 %v2361, %v2373
      %v2378 = vmul.f32 %v2360, %v2369
      %v2379 = vmul.f32 %v2362, %v2373
      %v2380 = vpack.c.bf16 %v2378, %v2376
      %v2381 = vpack.c.bf16 %v2379, %v2377
      %2382 = vst [vmem:[#allocation2 + $0x1f0] sm:$0xff] %v2380
      %2383 = vst [vmem:[#allocation2 + $0x1f8] sm:$0xff] %v2381
      %2384 = vrot.lane.b32.xlu0 %v1229, 111
      %v2385 = vpop.permute.xlu0 %2384
      %2386 = vrot.lane.b32.xlu0 %v1231, 111
      %v2387 = vpop.permute.xlu0 %2386
      %2388 = vrot.lane.b32.xlu0 %v1230, 111
      %v2389 = vpop.permute.xlu0 %2388
      %2390 = vrot.lane.b32.xlu0 %v1232, 111
      %v2391 = vpop.permute.xlu0 %2390
      %vm2392 = vcmp.lt.s32.totalorder %v1317, 111
      %v2393 = vsel %vm2392, %v2385, %v2389
      %v2394 = vsel %vm2392, %v2387, %v2391
      %v2395 = vsel %vm2392, %v2389, %v2385
      %v2396 = vsel %vm2392, %v2391, %v2387
      %s2397 = scalar_lea.vmem %s6, 64
      %v2398 = vld [vmem:[%s2397] ss:$8 sm:$0x3]
      %v2400 = vlaneseq
      %v2401 = vshrl.u32 %v2400, 7
      %v2402 = vsub.s32 0, %v2401
      %v2403 = vrot.slane %v2398, %v2402
      %v2404 = vlaneseq
      %v2405 = vshrl.u32 %v2404, 7
      %v2406 = vsub.s32 1, %v2405
      %v2407 = vrot.slane %v2398, %v2406
      %v2410 = vmul.f32 %v2393, %v2403
      %v2411 = vmul.f32 %v2395, %v2407
      %v2412 = vmul.f32 %v2394, %v2403
      %v2413 = vmul.f32 %v2396, %v2407
      %v2414 = vpack.c.bf16 %v2412, %v2410
      %v2415 = vpack.c.bf16 %v2413, %v2411
      %2416 = vst [vmem:[#allocation2 + $0x200] sm:$0xff] %v2414
      %2417 = vst [vmem:[#allocation2 + $0x208] sm:$0xff] %v2415
      %2418 = vrot.lane.b32.xlu0 %v1229, 110
      %v2419 = vpop.permute.xlu0 %2418
      %2420 = vrot.lane.b32.xlu0 %v1231, 110
      %v2421 = vpop.permute.xlu0 %2420
      %2422 = vrot.lane.b32.xlu0 %v1230, 110
      %v2423 = vpop.permute.xlu0 %2422
      %2424 = vrot.lane.b32.xlu0 %v1232, 110
      %v2425 = vpop.permute.xlu0 %2424
      %vm2426 = vcmp.lt.s32.totalorder %v1317, 110
      %v2427 = vsel %vm2426, %v2419, %v2423
      %v2428 = vsel %vm2426, %v2421, %v2425
      %v2429 = vsel %vm2426, %v2423, %v2419
      %v2430 = vsel %vm2426, %v2425, %v2421
      %s2431 = scalar_lea.vmem %s6, 65
      %v2432 = vld [vmem:[%s2431] ss:$8 sm:$0x3]
      %v2434 = vlaneseq
      %v2435 = vshrl.u32 %v2434, 7
      %v2436 = vsub.s32 0, %v2435
      %v2437 = vrot.slane %v2432, %v2436
      %v2438 = vlaneseq
      %v2439 = vshrl.u32 %v2438, 7
      %v2440 = vsub.s32 1, %v2439
      %v2441 = vrot.slane %v2432, %v2440
      %v2444 = vmul.f32 %v2427, %v2437
      %v2445 = vmul.f32 %v2429, %v2441
      %v2446 = vmul.f32 %v2428, %v2437
      %v2447 = vmul.f32 %v2430, %v2441
      %v2448 = vpack.c.bf16 %v2446, %v2444
      %v2449 = vpack.c.bf16 %v2447, %v2445
      %2450 = vst [vmem:[#allocation2 + $0x210] sm:$0xff] %v2448
      %2451 = vst [vmem:[#allocation2 + $0x218] sm:$0xff] %v2449
      %2452 = vrot.lane.b32.xlu0 %v1229, 109
      %v2453 = vpop.permute.xlu0 %2452
      %2454 = vrot.lane.b32.xlu0 %v1231, 109
      %v2455 = vpop.permute.xlu0 %2454
      %2456 = vrot.lane.b32.xlu0 %v1230, 109
      %v2457 = vpop.permute.xlu0 %2456
      %2458 = vrot.lane.b32.xlu0 %v1232, 109
      %v2459 = vpop.permute.xlu0 %2458
      %vm2460 = vcmp.lt.s32.totalorder %v1317, 109
      %v2461 = vsel %vm2460, %v2453, %v2457
      %v2462 = vsel %vm2460, %v2455, %v2459
      %v2463 = vsel %vm2460, %v2457, %v2453
      %v2464 = vsel %vm2460, %v2459, %v2455
      %s2465 = scalar_lea.vmem %s6, 66
      %v2466 = vld [vmem:[%s2465] ss:$8 sm:$0x3]
      %v2468 = vlaneseq
      %v2469 = vshrl.u32 %v2468, 7
      %v2470 = vsub.s32 0, %v2469
      %v2471 = vrot.slane %v2466, %v2470
      %v2472 = vlaneseq
      %v2473 = vshrl.u32 %v2472, 7
      %v2474 = vsub.s32 1, %v2473
      %v2475 = vrot.slane %v2466, %v2474
      %v2478 = vmul.f32 %v2461, %v2471
      %v2479 = vmul.f32 %v2463, %v2475
      %v2480 = vmul.f32 %v2462, %v2471
      %v2481 = vmul.f32 %v2464, %v2475
      %v2482 = vpack.c.bf16 %v2480, %v2478
      %v2483 = vpack.c.bf16 %v2481, %v2479
      %2484 = vst [vmem:[#allocation2 + $0x220] sm:$0xff] %v2482
      %2485 = vst [vmem:[#allocation2 + $0x228] sm:$0xff] %v2483
      %2486 = vrot.lane.b32.xlu0 %v1229, 99
      %v2487 = vpop.permute.xlu0 %2486
      %2488 = vrot.lane.b32.xlu0 %v1231, 99
      %v2489 = vpop.permute.xlu0 %2488
      %2490 = vrot.lane.b32.xlu0 %v1230, 99
      %v2491 = vpop.permute.xlu0 %2490
      %2492 = vrot.lane.b32.xlu0 %v1232, 99
      %v2493 = vpop.permute.xlu0 %2492
      %vm2494 = vcmp.lt.s32.totalorder %v1317, 99
      %v2495 = vsel %vm2494, %v2487, %v2491
      %v2496 = vsel %vm2494, %v2489, %v2493
      %v2497 = vsel %vm2494, %v2491, %v2487
      %v2498 = vsel %vm2494, %v2493, %v2489
      %s2499 = scalar_lea.vmem %s6, 67
      %v2500 = vld [vmem:[%s2499] ss:$8 sm:$0x3]
      %v2502 = vlaneseq
      %v2503 = vshrl.u32 %v2502, 7
      %v2504 = vsub.s32 0, %v2503
      %v2505 = vrot.slane %v2500, %v2504
      %v2506 = vlaneseq
      %v2507 = vshrl.u32 %v2506, 7
      %v2508 = vsub.s32 1, %v2507
      %v2509 = vrot.slane %v2500, %v2508
      %v2512 = vmul.f32 %v2495, %v2505
      %v2513 = vmul.f32 %v2497, %v2509
      %v2514 = vmul.f32 %v2496, %v2505
      %v2515 = vmul.f32 %v2498, %v2509
      %v2516 = vpack.c.bf16 %v2514, %v2512
      %v2517 = vpack.c.bf16 %v2515, %v2513
      %2518 = vst [vmem:[#allocation2 + $0x230] sm:$0xff] %v2516
      %2519 = vst [vmem:[#allocation2 + $0x238] sm:$0xff] %v2517
      %2520 = vrot.lane.b32.xlu0 %v1229, 98
      %v2521 = vpop.permute.xlu0 %2520
      %2522 = vrot.lane.b32.xlu0 %v1231, 98
      %v2523 = vpop.permute.xlu0 %2522
      %2524 = vrot.lane.b32.xlu0 %v1230, 98
      %v2525 = vpop.permute.xlu0 %2524
      %2526 = vrot.lane.b32.xlu0 %v1232, 98
      %v2527 = vpop.permute.xlu0 %2526
      %vm2528 = vcmp.lt.s32.totalorder %v1317, 98
      %v2529 = vsel %vm2528, %v2521, %v2525
      %v2530 = vsel %vm2528, %v2523, %v2527
      %v2531 = vsel %vm2528, %v2525, %v2521
      %v2532 = vsel %vm2528, %v2527, %v2523
      %s2533 = scalar_lea.vmem %s6, 68
      %v2534 = vld [vmem:[%s2533] ss:$8 sm:$0x3]
      %v2536 = vlaneseq
      %v2537 = vshrl.u32 %v2536, 7
      %v2538 = vsub.s32 0, %v2537
      %v2539 = vrot.slane %v2534, %v2538
      %v2540 = vlaneseq
      %v2541 = vshrl.u32 %v2540, 7
      %v2542 = vsub.s32 1, %v2541
      %v2543 = vrot.slane %v2534, %v2542
      %v2546 = vmul.f32 %v2529, %v2539
      %v2547 = vmul.f32 %v2531, %v2543
      %v2548 = vmul.f32 %v2530, %v2539
      %v2549 = vmul.f32 %v2532, %v2543
      %v2550 = vpack.c.bf16 %v2548, %v2546
      %v2551 = vpack.c.bf16 %v2549, %v2547
      %2552 = vst [vmem:[#allocation2 + $0x240] sm:$0xff] %v2550
      %2553 = vst [vmem:[#allocation2 + $0x248] sm:$0xff] %v2551
      %2554 = vrot.lane.b32.xlu0 %v1229, 97
      %v2555 = vpop.permute.xlu0 %2554
      %2556 = vrot.lane.b32.xlu0 %v1231, 97
      %v2557 = vpop.permute.xlu0 %2556
      %2558 = vrot.lane.b32.xlu0 %v1230, 97
      %v2559 = vpop.permute.xlu0 %2558
      %2560 = vrot.lane.b32.xlu0 %v1232, 97
      %v2561 = vpop.permute.xlu0 %2560
      %vm2562 = vcmp.lt.s32.totalorder %v1317, 97
      %v2563 = vsel %vm2562, %v2555, %v2559
      %v2564 = vsel %vm2562, %v2557, %v2561
      %v2565 = vsel %vm2562, %v2559, %v2555
      %v2566 = vsel %vm2562, %v2561, %v2557
      %s2567 = scalar_lea.vmem %s6, 69
      %v2568 = vld [vmem:[%s2567] ss:$8 sm:$0x3]
      %v2570 = vlaneseq
      %v2571 = vshrl.u32 %v2570, 7
      %v2572 = vsub.s32 0, %v2571
      %v2573 = vrot.slane %v2568, %v2572
      %v2574 = vlaneseq
      %v2575 = vshrl.u32 %v2574, 7
      %v2576 = vsub.s32 1, %v2575
      %v2577 = vrot.slane %v2568, %v2576
      %v2580 = vmul.f32 %v2563, %v2573
      %v2581 = vmul.f32 %v2565, %v2577
      %v2582 = vmul.f32 %v2564, %v2573
      %v2583 = vmul.f32 %v2566, %v2577
      %v2584 = vpack.c.bf16 %v2582, %v2580
      %v2585 = vpack.c.bf16 %v2583, %v2581
      %2586 = vst [vmem:[#allocation2 + $0x250] sm:$0xff] %v2584
      %2587 = vst [vmem:[#allocation2 + $0x258] sm:$0xff] %v2585
      %2588 = vrot.lane.b32.xlu0 %v1229, 96
      %v2589 = vpop.permute.xlu0 %2588
      %2590 = vrot.lane.b32.xlu0 %v1231, 96
      %v2591 = vpop.permute.xlu0 %2590
      %2592 = vrot.lane.b32.xlu0 %v1230, 96
      %v2593 = vpop.permute.xlu0 %2592
      %2594 = vrot.lane.b32.xlu0 %v1232, 96
      %v2595 = vpop.permute.xlu0 %2594
      %vm2596 = vcmp.lt.s32.totalorder %v1317, 96
      %v2597 = vsel %vm2596, %v2589, %v2593
      %v2598 = vsel %vm2596, %v2591, %v2595
      %v2599 = vsel %vm2596, %v2593, %v2589
      %v2600 = vsel %vm2596, %v2595, %v2591
      %s2601 = scalar_lea.vmem %s6, 70
      %v2602 = vld [vmem:[%s2601] ss:$8 sm:$0x3]
      %v2604 = vlaneseq
      %v2605 = vshrl.u32 %v2604, 7
      %v2606 = vsub.s32 0, %v2605
      %v2607 = vrot.slane %v2602, %v2606
      %v2608 = vlaneseq
      %v2609 = vshrl.u32 %v2608, 7
      %v2610 = vsub.s32 1, %v2609
      %v2611 = vrot.slane %v2602, %v2610
      %v2614 = vmul.f32 %v2597, %v2607
      %v2615 = vmul.f32 %v2599, %v2611
      %v2616 = vmul.f32 %v2598, %v2607
      %v2617 = vmul.f32 %v2600, %v2611
      %v2618 = vpack.c.bf16 %v2616, %v2614
      %v2619 = vpack.c.bf16 %v2617, %v2615
      %2620 = vst [vmem:[#allocation2 + $0x260] sm:$0xff] %v2618
      %2621 = vst [vmem:[#allocation2 + $0x268] sm:$0xff] %v2619
      %2622 = vrot.lane.b32.xlu0 %v1229, 95
      %v2623 = vpop.permute.xlu0 %2622
      %2624 = vrot.lane.b32.xlu0 %v1231, 95
      %v2625 = vpop.permute.xlu0 %2624
      %2626 = vrot.lane.b32.xlu0 %v1230, 95
      %v2627 = vpop.permute.xlu0 %2626
      %2628 = vrot.lane.b32.xlu0 %v1232, 95
      %v2629 = vpop.permute.xlu0 %2628
      %vm2630 = vcmp.lt.s32.totalorder %v1317, 95
      %v2631 = vsel %vm2630, %v2623, %v2627
      %v2632 = vsel %vm2630, %v2625, %v2629
      %v2633 = vsel %vm2630, %v2627, %v2623
      %v2634 = vsel %vm2630, %v2629, %v2625
      %s2635 = scalar_lea.vmem %s6, 71
      %v2636 = vld [vmem:[%s2635] ss:$8 sm:$0x3]
      %v2638 = vlaneseq
      %v2639 = vshrl.u32 %v2638, 7
      %v2640 = vsub.s32 0, %v2639
      %v2641 = vrot.slane %v2636, %v2640
      %v2642 = vlaneseq
      %v2643 = vshrl.u32 %v2642, 7
      %v2644 = vsub.s32 1, %v2643
      %v2645 = vrot.slane %v2636, %v2644
      %v2648 = vmul.f32 %v2631, %v2641
      %v2649 = vmul.f32 %v2633, %v2645
      %v2650 = vmul.f32 %v2632, %v2641
      %v2651 = vmul.f32 %v2634, %v2645
      %v2652 = vpack.c.bf16 %v2650, %v2648
      %v2653 = vpack.c.bf16 %v2651, %v2649
      %2654 = vst [vmem:[#allocation2 + $0x270] sm:$0xff] %v2652
      %2655 = vst [vmem:[#allocation2 + $0x278] sm:$0xff] %v2653
      %2656 = vrot.lane.b32.xlu0 %v1229, 94
      %v2657 = vpop.permute.xlu0 %2656
      %2658 = vrot.lane.b32.xlu0 %v1231, 94
      %v2659 = vpop.permute.xlu0 %2658
      %2660 = vrot.lane.b32.xlu0 %v1230, 94
      %v2661 = vpop.permute.xlu0 %2660
      %2662 = vrot.lane.b32.xlu0 %v1232, 94
      %v2663 = vpop.permute.xlu0 %2662
      %vm2664 = vcmp.lt.s32.totalorder %v1317, 94
      %v2665 = vsel %vm2664, %v2657, %v2661
      %v2666 = vsel %vm2664, %v2659, %v2663
      %v2667 = vsel %vm2664, %v2661, %v2657
      %v2668 = vsel %vm2664, %v2663, %v2659
      %s2669 = scalar_lea.vmem %s6, 80
      %v2670 = vld [vmem:[%s2669] ss:$8 sm:$0x3]
      %v2672 = vlaneseq
      %v2673 = vshrl.u32 %v2672, 7
      %v2674 = vsub.s32 0, %v2673
      %v2675 = vrot.slane %v2670, %v2674
      %v2676 = vlaneseq
      %v2677 = vshrl.u32 %v2676, 7
      %v2678 = vsub.s32 1, %v2677
      %v2679 = vrot.slane %v2670, %v2678
      %v2682 = vmul.f32 %v2665, %v2675
      %v2683 = vmul.f32 %v2667, %v2679
      %v2684 = vmul.f32 %v2666, %v2675
      %v2685 = vmul.f32 %v2668, %v2679
      %v2686 = vpack.c.bf16 %v2684, %v2682
      %v2687 = vpack.c.bf16 %v2685, %v2683
      %2688 = vst [vmem:[#allocation2 + $0x280] sm:$0xff] %v2686
      %2689 = vst [vmem:[#allocation2 + $0x288] sm:$0xff] %v2687
      %2690 = vrot.lane.b32.xlu0 %v1229, 93
      %v2691 = vpop.permute.xlu0 %2690
      %2692 = vrot.lane.b32.xlu0 %v1231, 93
      %v2693 = vpop.permute.xlu0 %2692
      %2694 = vrot.lane.b32.xlu0 %v1230, 93
      %v2695 = vpop.permute.xlu0 %2694
      %2696 = vrot.lane.b32.xlu0 %v1232, 93
      %v2697 = vpop.permute.xlu0 %2696
      %vm2698 = vcmp.lt.s32.totalorder %v1317, 93
      %v2699 = vsel %vm2698, %v2691, %v2695
      %v2700 = vsel %vm2698, %v2693, %v2697
      %v2701 = vsel %vm2698, %v2695, %v2691
      %v2702 = vsel %vm2698, %v2697, %v2693
      %s2703 = scalar_lea.vmem %s6, 81
      %v2704 = vld [vmem:[%s2703] ss:$8 sm:$0x3]
      %v2706 = vlaneseq
      %v2707 = vshrl.u32 %v2706, 7
      %v2708 = vsub.s32 0, %v2707
      %v2709 = vrot.slane %v2704, %v2708
      %v2710 = vlaneseq
      %v2711 = vshrl.u32 %v2710, 7
      %v2712 = vsub.s32 1, %v2711
      %v2713 = vrot.slane %v2704, %v2712
      %v2716 = vmul.f32 %v2699, %v2709
      %v2717 = vmul.f32 %v2701, %v2713
      %v2718 = vmul.f32 %v2700, %v2709
      %v2719 = vmul.f32 %v2702, %v2713
      %v2720 = vpack.c.bf16 %v2718, %v2716
      %v2721 = vpack.c.bf16 %v2719, %v2717
      %2722 = vst [vmem:[#allocation2 + $0x290] sm:$0xff] %v2720
      %2723 = vst [vmem:[#allocation2 + $0x298] sm:$0xff] %v2721
      %2724 = vrot.lane.b32.xlu0 %v1229, 83
      %v2725 = vpop.permute.xlu0 %2724
      %2726 = vrot.lane.b32.xlu0 %v1231, 83
      %v2727 = vpop.permute.xlu0 %2726
      %2728 = vrot.lane.b32.xlu0 %v1230, 83
      %v2729 = vpop.permute.xlu0 %2728
      %2730 = vrot.lane.b32.xlu0 %v1232, 83
      %v2731 = vpop.permute.xlu0 %2730
      %vm2732 = vcmp.lt.s32.totalorder %v1317, 83
      %v2733 = vsel %vm2732, %v2725, %v2729
      %v2734 = vsel %vm2732, %v2727, %v2731
      %v2735 = vsel %vm2732, %v2729, %v2725
      %v2736 = vsel %vm2732, %v2731, %v2727
      %s2737 = scalar_lea.vmem %s6, 82
      %v2738 = vld [vmem:[%s2737] ss:$8 sm:$0x3]
      %v2740 = vlaneseq
      %v2741 = vshrl.u32 %v2740, 7
      %v2742 = vsub.s32 0, %v2741
      %v2743 = vrot.slane %v2738, %v2742
      %v2744 = vlaneseq
      %v2745 = vshrl.u32 %v2744, 7
      %v2746 = vsub.s32 1, %v2745
      %v2747 = vrot.slane %v2738, %v2746
      %v2750 = vmul.f32 %v2733, %v2743
      %v2751 = vmul.f32 %v2735, %v2747
      %v2752 = vmul.f32 %v2734, %v2743
      %v2753 = vmul.f32 %v2736, %v2747
      %v2754 = vpack.c.bf16 %v2752, %v2750
      %v2755 = vpack.c.bf16 %v2753, %v2751
      %2756 = vst [vmem:[#allocation2 + $0x2a0] sm:$0xff] %v2754
      %2757 = vst [vmem:[#allocation2 + $0x2a8] sm:$0xff] %v2755
      %2758 = vrot.lane.b32.xlu0 %v1229, 82
      %v2759 = vpop.permute.xlu0 %2758
      %2760 = vrot.lane.b32.xlu0 %v1231, 82
      %v2761 = vpop.permute.xlu0 %2760
      %2762 = vrot.lane.b32.xlu0 %v1230, 82
      %v2763 = vpop.permute.xlu0 %2762
      %2764 = vrot.lane.b32.xlu0 %v1232, 82
      %v2765 = vpop.permute.xlu0 %2764
      %vm2766 = vcmp.lt.s32.totalorder %v1317, 82
      %v2767 = vsel %vm2766, %v2759, %v2763
      %v2768 = vsel %vm2766, %v2761, %v2765
      %v2769 = vsel %vm2766, %v2763, %v2759
      %v2770 = vsel %vm2766, %v2765, %v2761
      %s2771 = scalar_lea.vmem %s6, 83
      %v2772 = vld [vmem:[%s2771] ss:$8 sm:$0x3]
      %v2774 = vlaneseq
      %v2775 = vshrl.u32 %v2774, 7
      %v2776 = vsub.s32 0, %v2775
      %v2777 = vrot.slane %v2772, %v2776
      %v2778 = vlaneseq
      %v2779 = vshrl.u32 %v2778, 7
      %v2780 = vsub.s32 1, %v2779
      %v2781 = vrot.slane %v2772, %v2780
      %v2784 = vmul.f32 %v2767, %v2777
      %v2785 = vmul.f32 %v2769, %v2781
      %v2786 = vmul.f32 %v2768, %v2777
      %v2787 = vmul.f32 %v2770, %v2781
      %v2788 = vpack.c.bf16 %v2786, %v2784
      %v2789 = vpack.c.bf16 %v2787, %v2785
      %2790 = vst [vmem:[#allocation2 + $0x2b0] sm:$0xff] %v2788
      %2791 = vst [vmem:[#allocation2 + $0x2b8] sm:$0xff] %v2789
      %2792 = vrot.lane.b32.xlu0 %v1229, 81
      %v2793 = vpop.permute.xlu0 %2792
      %2794 = vrot.lane.b32.xlu0 %v1231, 81
      %v2795 = vpop.permute.xlu0 %2794
      %2796 = vrot.lane.b32.xlu0 %v1230, 81
      %v2797 = vpop.permute.xlu0 %2796
      %2798 = vrot.lane.b32.xlu0 %v1232, 81
      %v2799 = vpop.permute.xlu0 %2798
      %vm2800 = vcmp.lt.s32.totalorder %v1317, 81
      %v2801 = vsel %vm2800, %v2793, %v2797
      %v2802 = vsel %vm2800, %v2795, %v2799
      %v2803 = vsel %vm2800, %v2797, %v2793
      %v2804 = vsel %vm2800, %v2799, %v2795
      %s2805 = scalar_lea.vmem %s6, 84
      %v2806 = vld [vmem:[%s2805] ss:$8 sm:$0x3]
      %v2808 = vlaneseq
      %v2809 = vshrl.u32 %v2808, 7
      %v2810 = vsub.s32 0, %v2809
      %v2811 = vrot.slane %v2806, %v2810
      %v2812 = vlaneseq
      %v2813 = vshrl.u32 %v2812, 7
      %v2814 = vsub.s32 1, %v2813
      %v2815 = vrot.slane %v2806, %v2814
      %v2818 = vmul.f32 %v2801, %v2811
      %v2819 = vmul.f32 %v2803, %v2815
      %v2820 = vmul.f32 %v2802, %v2811
      %v2821 = vmul.f32 %v2804, %v2815
      %v2822 = vpack.c.bf16 %v2820, %v2818
      %v2823 = vpack.c.bf16 %v2821, %v2819
      %2824 = vst [vmem:[#allocation2 + $0x2c0] sm:$0xff] %v2822
      %2825 = vst [vmem:[#allocation2 + $0x2c8] sm:$0xff] %v2823
      %2826 = vrot.lane.b32.xlu0 %v1229, 80
      %v2827 = vpop.permute.xlu0 %2826
      %2828 = vrot.lane.b32.xlu0 %v1231, 80
      %v2829 = vpop.permute.xlu0 %2828
      %2830 = vrot.lane.b32.xlu0 %v1230, 80
      %v2831 = vpop.permute.xlu0 %2830
      %2832 = vrot.lane.b32.xlu0 %v1232, 80
      %v2833 = vpop.permute.xlu0 %2832
      %vm2834 = vcmp.lt.s32.totalorder %v1317, 80
      %v2835 = vsel %vm2834, %v2827, %v2831
      %v2836 = vsel %vm2834, %v2829, %v2833
      %v2837 = vsel %vm2834, %v2831, %v2827
      %v2838 = vsel %vm2834, %v2833, %v2829
      %s2839 = scalar_lea.vmem %s6, 85
      %v2840 = vld [vmem:[%s2839] ss:$8 sm:$0x3]
      %v2842 = vlaneseq
      %v2843 = vshrl.u32 %v2842, 7
      %v2844 = vsub.s32 0, %v2843
      %v2845 = vrot.slane %v2840, %v2844
      %v2846 = vlaneseq
      %v2847 = vshrl.u32 %v2846, 7
      %v2848 = vsub.s32 1, %v2847
      %v2849 = vrot.slane %v2840, %v2848
      %v2852 = vmul.f32 %v2835, %v2845
      %v2853 = vmul.f32 %v2837, %v2849
      %v2854 = vmul.f32 %v2836, %v2845
      %v2855 = vmul.f32 %v2838, %v2849
      %v2856 = vpack.c.bf16 %v2854, %v2852
      %v2857 = vpack.c.bf16 %v2855, %v2853
      %2858 = vst [vmem:[#allocation2 + $0x2d0] sm:$0xff] %v2856
      %2859 = vst [vmem:[#allocation2 + $0x2d8] sm:$0xff] %v2857
      %2860 = vrot.lane.b32.xlu0 %v1229, 79
      %v2861 = vpop.permute.xlu0 %2860
      %2862 = vrot.lane.b32.xlu0 %v1231, 79
      %v2863 = vpop.permute.xlu0 %2862
      %2864 = vrot.lane.b32.xlu0 %v1230, 79
      %v2865 = vpop.permute.xlu0 %2864
      %2866 = vrot.lane.b32.xlu0 %v1232, 79
      %v2867 = vpop.permute.xlu0 %2866
      %vm2868 = vcmp.lt.s32.totalorder %v1317, 79
      %v2869 = vsel %vm2868, %v2861, %v2865
      %v2870 = vsel %vm2868, %v2863, %v2867
      %v2871 = vsel %vm2868, %v2865, %v2861
      %v2872 = vsel %vm2868, %v2867, %v2863
      %s2873 = scalar_lea.vmem %s6, 86
      %v2874 = vld [vmem:[%s2873] ss:$8 sm:$0x3]
      %v2876 = vlaneseq
      %v2877 = vshrl.u32 %v2876, 7
      %v2878 = vsub.s32 0, %v2877
      %v2879 = vrot.slane %v2874, %v2878
      %v2880 = vlaneseq
      %v2881 = vshrl.u32 %v2880, 7
      %v2882 = vsub.s32 1, %v2881
      %v2883 = vrot.slane %v2874, %v2882
      %v2886 = vmul.f32 %v2869, %v2879
      %v2887 = vmul.f32 %v2871, %v2883
      %v2888 = vmul.f32 %v2870, %v2879
      %v2889 = vmul.f32 %v2872, %v2883
      %v2890 = vpack.c.bf16 %v2888, %v2886
      %v2891 = vpack.c.bf16 %v2889, %v2887
      %2892 = vst [vmem:[#allocation2 + $0x2e0] sm:$0xff] %v2890
      %2893 = vst [vmem:[#allocation2 + $0x2e8] sm:$0xff] %v2891
      %2894 = vrot.lane.b32.xlu0 %v1229, 78
      %v2895 = vpop.permute.xlu0 %2894
      %2896 = vrot.lane.b32.xlu0 %v1231, 78
      %v2897 = vpop.permute.xlu0 %2896
      %2898 = vrot.lane.b32.xlu0 %v1230, 78
      %v2899 = vpop.permute.xlu0 %2898
      %2900 = vrot.lane.b32.xlu0 %v1232, 78
      %v2901 = vpop.permute.xlu0 %2900
      %vm2902 = vcmp.lt.s32.totalorder %v1317, 78
      %v2903 = vsel %vm2902, %v2895, %v2899
      %v2904 = vsel %vm2902, %v2897, %v2901
      %v2905 = vsel %vm2902, %v2899, %v2895
      %v2906 = vsel %vm2902, %v2901, %v2897
      %s2907 = scalar_lea.vmem %s6, 87
      %v2908 = vld [vmem:[%s2907] ss:$8 sm:$0x3]
      %v2910 = vlaneseq
      %v2911 = vshrl.u32 %v2910, 7
      %v2912 = vsub.s32 0, %v2911
      %v2913 = vrot.slane %v2908, %v2912
      %v2914 = vlaneseq
      %v2915 = vshrl.u32 %v2914, 7
      %v2916 = vsub.s32 1, %v2915
      %v2917 = vrot.slane %v2908, %v2916
      %v2920 = vmul.f32 %v2903, %v2913
      %v2921 = vmul.f32 %v2905, %v2917
      %v2922 = vmul.f32 %v2904, %v2913
      %v2923 = vmul.f32 %v2906, %v2917
      %v2924 = vpack.c.bf16 %v2922, %v2920
      %v2925 = vpack.c.bf16 %v2923, %v2921
      %2926 = vst [vmem:[#allocation2 + $0x2f0] sm:$0xff] %v2924
      %2927 = vst [vmem:[#allocation2 + $0x2f8] sm:$0xff] %v2925
      %2928 = vrot.lane.b32.xlu0 %v1229, 77
      %v2929 = vpop.permute.xlu0 %2928
      %2930 = vrot.lane.b32.xlu0 %v1231, 77
      %v2931 = vpop.permute.xlu0 %2930
      %2932 = vrot.lane.b32.xlu0 %v1230, 77
      %v2933 = vpop.permute.xlu0 %2932
      %2934 = vrot.lane.b32.xlu0 %v1232, 77
      %v2935 = vpop.permute.xlu0 %2934
      %vm2936 = vcmp.lt.s32.totalorder %v1317, 77
      %v2937 = vsel %vm2936, %v2929, %v2933
      %v2938 = vsel %vm2936, %v2931, %v2935
      %v2939 = vsel %vm2936, %v2933, %v2929
      %v2940 = vsel %vm2936, %v2935, %v2931
      %s2941 = scalar_lea.vmem %s6, 96
      %v2942 = vld [vmem:[%s2941] ss:$8 sm:$0x3]
      %v2944 = vlaneseq
      %v2945 = vshrl.u32 %v2944, 7
      %v2946 = vsub.s32 0, %v2945
      %v2947 = vrot.slane %v2942, %v2946
      %v2948 = vlaneseq
      %v2949 = vshrl.u32 %v2948, 7
      %v2950 = vsub.s32 1, %v2949
      %v2951 = vrot.slane %v2942, %v2950
      %v2954 = vmul.f32 %v2937, %v2947
      %v2955 = vmul.f32 %v2939, %v2951
      %v2956 = vmul.f32 %v2938, %v2947
      %v2957 = vmul.f32 %v2940, %v2951
      %v2958 = vpack.c.bf16 %v2956, %v2954
      %v2959 = vpack.c.bf16 %v2957, %v2955
      %2960 = vst [vmem:[#allocation2 + $0x300] sm:$0xff] %v2958
      %2961 = vst [vmem:[#allocation2 + $0x308] sm:$0xff] %v2959
      %v2962 = vld [vmem:[%s5] sm:$0xff]
      %v2963 = vld [vmem:[%s5 + $0x8] sm:$0xff]
      %v2964 = vld [vmem:[%s5 + $0x10] sm:$0xff]
      %v2965 = vld [vmem:[%s5 + $0x18] sm:$0xf]
      %v2966 = vld [vmem:[%s5 + $0x1c] sm:$0xff]
      %v2967 = vld [vmem:[%s5 + $0x24] sm:$0xff]
      %v2968 = vld [vmem:[%s5 + $0x2c] sm:$0xff]
      %v2969 = vld [vmem:[%s5 + $0x34] sm:$0xf]
      %v2970 = vld [vmem:[%s5 + $0x38] sm:$0xff]
      %v2971 = vld [vmem:[%s5 + $0x40] sm:$0xff]
      %v2972 = vld [vmem:[%s5 + $0x48] sm:$0xff]
      %v2973 = vld [vmem:[%s5 + $0x50] sm:$0xf]
      %v2974 = vld [vmem:[%s5 + $0x54] sm:$0xff]
      %v2975 = vld [vmem:[%s5 + $0x5c] sm:$0xff]
      %v2976 = vld [vmem:[%s5 + $0x64] sm:$0xff]
      %v2977 = vld [vmem:[%s5 + $0x6c] sm:$0xf]
      %v2978 = vld [vmem:[%s5 + $0x70] sm:$0xff]
      %v2979 = vld [vmem:[%s5 + $0x78] sm:$0xff]
      %v2980 = vld [vmem:[%s5 + $0x80] sm:$0xff]
      %v2981 = vld [vmem:[%s5 + $0x88] sm:$0xf]
      %v2982 = vld [vmem:[%s5 + $0x8c] sm:$0xff]
      %v2983 = vld [vmem:[%s5 + $0x94] sm:$0xff]
      %v2984 = vld [vmem:[%s5 + $0x9c] sm:$0xff]
      %v2985 = vld [vmem:[%s5 + $0xa4] sm:$0xf]
      %v2986 = vld [vmem:[%s5 + $0xa8] sm:$0xff]
      %v2987 = vld [vmem:[%s5 + $0xb0] sm:$0xff]
      %v2988 = vld [vmem:[%s5 + $0xb8] sm:$0xff]
      %v2989 = vld [vmem:[%s5 + $0xc0] sm:$0xf]
      %v2990 = vld [vmem:[%s5 + $0xc4] sm:$0xff]
      %v2991 = vld [vmem:[%s5 + $0xcc] sm:$0xff]
      %v2992 = vld [vmem:[%s5 + $0xd4] sm:$0xff]
      %v2993 = vld [vmem:[%s5 + $0xdc] sm:$0xf]
      %v2994 = vld [vmem:[%s5 + $0xe0] sm:$0xff]
      %v2995 = vld [vmem:[%s5 + $0xe8] sm:$0xff]
      %v2996 = vld [vmem:[%s5 + $0xf0] sm:$0xff]
      %v2997 = vld [vmem:[%s5 + $0xf8] sm:$0xf]
      %v2998 = vld [vmem:[%s5 + $0xfc] sm:$0xff]
      %v2999 = vld [vmem:[%s5 + $0x104] sm:$0xff]
      %v3000 = vld [vmem:[%s5 + $0x10c] sm:$0xff]
      %v3001 = vld [vmem:[%s5 + $0x114] sm:$0xf]
      %v3002 = vld [vmem:[%s5 + $0x118] sm:$0xff]
      %v3003 = vld [vmem:[%s5 + $0x120] sm:$0xff]
      %v3004 = vld [vmem:[%s5 + $0x128] sm:$0xff]
      %v3005 = vld [vmem:[%s5 + $0x130] sm:$0xf]
      %v3006 = vld [vmem:[%s5 + $0x134] sm:$0xff]
      %v3007 = vld [vmem:[%s5 + $0x13c] sm:$0xff]
      %v3008 = vld [vmem:[%s5 + $0x144] sm:$0xff]
      %v3009 = vld [vmem:[%s5 + $0x14c] sm:$0xf]
      %v3010 = vld [vmem:[%s5 + $0x150] sm:$0xff]
      %v3011 = vld [vmem:[%s5 + $0x158] sm:$0xff]
      %v3012 = vld [vmem:[%s5 + $0x160] sm:$0xff]
      %v3013 = vld [vmem:[%s5 + $0x168] sm:$0xf]
      %v3014 = vld [vmem:[%s5 + $0x16c] sm:$0xff]
      %v3015 = vld [vmem:[%s5 + $0x174] sm:$0xff]
      %v3016 = vld [vmem:[%s5 + $0x17c] sm:$0xff]
      %v3017 = vld [vmem:[%s5 + $0x184] sm:$0xf]
      %v3018 = vld [vmem:[%s5 + $0x188] sm:$0xff]
      %v3019 = vld [vmem:[%s5 + $0x190] sm:$0xff]
      %v3020 = vld [vmem:[%s5 + $0x198] sm:$0xff]
      %v3021 = vld [vmem:[%s5 + $0x1a0] sm:$0xf]
      %v3022 = vld [vmem:[%s5 + $0x1a4] sm:$0xff]
      %v3023 = vld [vmem:[%s5 + $0x1ac] sm:$0xff]
      %v3024 = vld [vmem:[%s5 + $0x1b4] sm:$0xff]
      %v3025 = vld [vmem:[%s5 + $0x1bc] sm:$0xf]
      %v3026 = vld [vmem:[%s5 + $0x1c0] sm:$0xff]
      %v3027 = vld [vmem:[%s5 + $0x1c8] sm:$0xff]
      %v3028 = vld [vmem:[%s5 + $0x1d0] sm:$0xff]
      %v3029 = vld [vmem:[%s5 + $0x1d8] sm:$0xf]
      %v3030 = vld [vmem:[%s5 + $0x1dc] sm:$0xff]
      %v3031 = vld [vmem:[%s5 + $0x1e4] sm:$0xff]
      %v3032 = vld [vmem:[%s5 + $0x1ec] sm:$0xff]
      %v3033 = vld [vmem:[%s5 + $0x1f4] sm:$0xf]
      %v3034 = vld [vmem:[%s5 + $0x1f8] sm:$0xff]
      %v3035 = vld [vmem:[%s5 + $0x200] sm:$0xff]
      %v3036 = vld [vmem:[%s5 + $0x208] sm:$0xff]
      %v3037 = vld [vmem:[%s5 + $0x210] sm:$0xf]
      %v3038 = vld [vmem:[%s5 + $0x214] sm:$0xff]
      %v3039 = vld [vmem:[%s5 + $0x21c] sm:$0xff]
      %v3040 = vld [vmem:[%s5 + $0x224] sm:$0xff]
      %v3041 = vld [vmem:[%s5 + $0x22c] sm:$0xf]
      %v3042 = vld [vmem:[%s5 + $0x230] sm:$0xff]
      %v3043 = vld [vmem:[%s5 + $0x238] sm:$0xff]
      %v3044 = vld [vmem:[%s5 + $0x240] sm:$0xff]
      %v3045 = vld [vmem:[%s5 + $0x248] sm:$0xf]
      %v3046 = vld [vmem:[%s5 + $0x24c] sm:$0xff]
      %v3047 = vld [vmem:[%s5 + $0x254] sm:$0xff]
      %v3048 = vld [vmem:[%s5 + $0x25c] sm:$0xff]
      %v3049 = vld [vmem:[%s5 + $0x264] sm:$0xf]
      %v3050 = vld [vmem:[%s5 + $0x268] sm:$0xff]
      %v3051 = vld [vmem:[%s5 + $0x270] sm:$0xff]
      %v3052 = vld [vmem:[%s5 + $0x278] sm:$0xff]
      %v3053 = vld [vmem:[%s5 + $0x280] sm:$0xf]
      %v3054 = vld [vmem:[%s5 + $0x284] sm:$0xff]
      %v3055 = vld [vmem:[%s5 + $0x28c] sm:$0xff]
      %v3056 = vld [vmem:[%s5 + $0x294] sm:$0xff]
      %v3057 = vld [vmem:[%s5 + $0x29c] sm:$0xf]
      %v3058 = vld [vmem:[%s5 + $0x2a0] sm:$0xff]
      %v3059 = vld [vmem:[%s5 + $0x2a8] sm:$0xff]
      %v3060 = vld [vmem:[%s5 + $0x2b0] sm:$0xff]
      %v3061 = vld [vmem:[%s5 + $0x2b8] sm:$0xf]
      %v3062 = vld [vmem:[%s5 + $0x2bc] sm:$0xff]
      %v3063 = vld [vmem:[%s5 + $0x2c4] sm:$0xff]
      %v3064 = vld [vmem:[%s5 + $0x2cc] sm:$0xff]
      %v3065 = vld [vmem:[%s5 + $0x2d4] sm:$0xf]
      %v3066 = vld [vmem:[%s5 + $0x2d8] sm:$0xff]
      %v3067 = vld [vmem:[%s5 + $0x2e0] sm:$0xff]
      %v3068 = vld [vmem:[%s5 + $0x2e8] sm:$0xff]
      %v3069 = vld [vmem:[%s5 + $0x2f0] sm:$0xf]
      %v3070 = vld [vmem:[%s5 + $0x2f4] sm:$0xff]
      %v3071 = vld [vmem:[%s5 + $0x2fc] sm:$0xff]
      %v3072 = vld [vmem:[%s5 + $0x304] sm:$0xff]
      %v3073 = vld [vmem:[%s5 + $0x30c] sm:$0xf]
      %v3074 = vld [vmem:[%s5 + $0x310] sm:$0xff]
      %v3075 = vld [vmem:[%s5 + $0x318] sm:$0xff]
      %v3076 = vld [vmem:[%s5 + $0x320] sm:$0xff]
      %v3077 = vld [vmem:[%s5 + $0x328] sm:$0xf]
      %v3078 = vld [vmem:[%s5 + $0x32c] sm:$0xff]
      %v3079 = vld [vmem:[%s5 + $0x334] sm:$0xff]
      %v3080 = vld [vmem:[%s5 + $0x33c] sm:$0xff]
      %v3081 = vld [vmem:[%s5 + $0x344] sm:$0xf]
      %v3082 = vld [vmem:[%s5 + $0x348] sm:$0xff]
      %v3083 = vld [vmem:[%s5 + $0x350] sm:$0xff]
      %v3084 = vld [vmem:[%s5 + $0x358] sm:$0xff]
      %v3085 = vld [vmem:[%s5 + $0x360] sm:$0xf]
      %v3086 = vld [vmem:[%s5 + $0x364] sm:$0xff]
      %v3087 = vld [vmem:[%s5 + $0x36c] sm:$0xff]
      %v3088 = vld [vmem:[%s5 + $0x374] sm:$0xff]
      %v3089 = vld [vmem:[%s5 + $0x37c] sm:$0xf]
      %v3090 = vld [vmem:[#allocation2] sm:$0xff]
      %v3091 = vld [vmem:[#allocation2 + $0x8] sm:$0xff]
      %v3092 = vld [vmem:[#allocation2 + $0x10] sm:$0xff]
      %v3093 = vld [vmem:[#allocation2 + $0x18] sm:$0xff]
      %v3094 = vld [vmem:[#allocation2 + $0x20] sm:$0xff]
      %v3095 = vld [vmem:[#allocation2 + $0x28] sm:$0xff]
      %v3096 = vld [vmem:[#allocation2 + $0x30] sm:$0xff]
      %v3097 = vld [vmem:[#allocation2 + $0x38] sm:$0xff]
      %v3098 = vld [vmem:[#allocation2 + $0x40] sm:$0xff]
      %v3099 = vld [vmem:[#allocation2 + $0x48] sm:$0xff]
      %v3100 = vld [vmem:[#allocation2 + $0x50] sm:$0xff]
      %v3101 = vld [vmem:[#allocation2 + $0x58] sm:$0xff]
      %v3102 = vld [vmem:[#allocation2 + $0x60] sm:$0xff]
      %v3103 = vld [vmem:[#allocation2 + $0x68] sm:$0xff]
      %v3104 = vld [vmem:[#allocation2 + $0x70] sm:$0xff]
      %v3105 = vld [vmem:[#allocation2 + $0x78] sm:$0xff]
      %v3106 = vld [vmem:[#allocation2 + $0x80] sm:$0xff]
      %v3107 = vld [vmem:[#allocation2 + $0x88] sm:$0xff]
      %v3108 = vld [vmem:[#allocation2 + $0x90] sm:$0xff]
      %v3109 = vld [vmem:[#allocation2 + $0x98] sm:$0xff]
      %v3110 = vld [vmem:[#allocation2 + $0xa0] sm:$0xff]
      %v3111 = vld [vmem:[#allocation2 + $0xa8] sm:$0xff]
      %v3112 = vld [vmem:[#allocation2 + $0xb0] sm:$0xff]
      %v3113 = vld [vmem:[#allocation2 + $0xb8] sm:$0xff]
      %v3114 = vld [vmem:[#allocation2 + $0xc0] sm:$0xff]
      %v3115 = vld [vmem:[#allocation2 + $0xc8] sm:$0xff]
      %v3116 = vld [vmem:[#allocation2 + $0xd0] sm:$0xff]
      %v3117 = vld [vmem:[#allocation2 + $0xd8] sm:$0xff]
      %v3118 = vld [vmem:[#allocation2 + $0xe0] sm:$0xff]
      %v3119 = vld [vmem:[#allocation2 + $0xe8] sm:$0xff]
      %v3120 = vld [vmem:[#allocation2 + $0xf0] sm:$0xff]
      %v3121 = vld [vmem:[#allocation2 + $0xf8] sm:$0xff]
      %v3122 = vld [vmem:[#allocation2 + $0x100] sm:$0xff]
      %v3123 = vld [vmem:[#allocation2 + $0x108] sm:$0xff]
      %v3124 = vld [vmem:[#allocation2 + $0x110] sm:$0xff]
      %v3125 = vld [vmem:[#allocation2 + $0x118] sm:$0xff]
      %v3126 = vld [vmem:[#allocation2 + $0x120] sm:$0xff]
      %v3127 = vld [vmem:[#allocation2 + $0x128] sm:$0xff]
      %v3128 = vld [vmem:[#allocation2 + $0x130] sm:$0xff]
      %v3129 = vld [vmem:[#allocation2 + $0x138] sm:$0xff]
      %v3130 = vld [vmem:[#allocation2 + $0x140] sm:$0xff]
      %v3131 = vld [vmem:[#allocation2 + $0x148] sm:$0xff]
      %v3132 = vld [vmem:[#allocation2 + $0x150] sm:$0xff]
      %v3133 = vld [vmem:[#allocation2 + $0x158] sm:$0xff]
      %v3134 = vld [vmem:[#allocation2 + $0x160] sm:$0xff]
      %v3135 = vld [vmem:[#allocation2 + $0x168] sm:$0xff]
      %v3136 = vld [vmem:[#allocation2 + $0x170] sm:$0xff]
      %v3137 = vld [vmem:[#allocation2 + $0x178] sm:$0xff]
      %v3138 = vld [vmem:[#allocation2 + $0x180] sm:$0xff]
      %v3139 = vld [vmem:[#allocation2 + $0x188] sm:$0xff]
      %v3140 = vld [vmem:[#allocation2 + $0x190] sm:$0xff]
      %v3141 = vld [vmem:[#allocation2 + $0x198] sm:$0xff]
      %v3142 = vld [vmem:[#allocation2 + $0x1a0] sm:$0xff]
      %v3143 = vld [vmem:[#allocation2 + $0x1a8] sm:$0xff]
      %v3144 = vld [vmem:[#allocation2 + $0x1b0] sm:$0xff]
      %v3145 = vld [vmem:[#allocation2 + $0x1b8] sm:$0xff]
      %v3146 = vld [vmem:[#allocation2 + $0x1c0] sm:$0xff]
      %v3147 = vld [vmem:[#allocation2 + $0x1c8] sm:$0xff]
      %v3148 = vld [vmem:[#allocation2 + $0x1d0] sm:$0xff]
      %v3149 = vld [vmem:[#allocation2 + $0x1d8] sm:$0xff]
      %v3150 = vld [vmem:[#allocation2 + $0x1e0] sm:$0xff]
      %v3151 = vld [vmem:[#allocation2 + $0x1e8] sm:$0xff]
      %v3152 = vld [vmem:[#allocation2 + $0x1f0] sm:$0xff]
      %v3153 = vld [vmem:[#allocation2 + $0x1f8] sm:$0xff]
      %v3154 = vld [vmem:[#allocation2 + $0x200] sm:$0xff]
      %v3155 = vld [vmem:[#allocation2 + $0x208] sm:$0xff]
      %v3156 = vld [vmem:[#allocation2 + $0x210] sm:$0xff]
      %v3157 = vld [vmem:[#allocation2 + $0x218] sm:$0xff]
      %v3158 = vld [vmem:[#allocation2 + $0x220] sm:$0xff]
      %v3159 = vld [vmem:[#allocation2 + $0x228] sm:$0xff]
      %v3160 = vld [vmem:[#allocation2 + $0x230] sm:$0xff]
      %v3161 = vld [vmem:[#allocation2 + $0x238] sm:$0xff]
      %v3162 = vld [vmem:[#allocation2 + $0x240] sm:$0xff]
      %v3163 = vld [vmem:[#allocation2 + $0x248] sm:$0xff]
      %v3164 = vld [vmem:[#allocation2 + $0x250] sm:$0xff]
      %v3165 = vld [vmem:[#allocation2 + $0x258] sm:$0xff]
      %v3166 = vld [vmem:[#allocation2 + $0x260] sm:$0xff]
      %v3167 = vld [vmem:[#allocation2 + $0x268] sm:$0xff]
      %v3168 = vld [vmem:[#allocation2 + $0x270] sm:$0xff]
      %v3169 = vld [vmem:[#allocation2 + $0x278] sm:$0xff]
      %v3170 = vld [vmem:[#allocation2 + $0x280] sm:$0xff]
      %v3171 = vld [vmem:[#allocation2 + $0x288] sm:$0xff]
      %v3172 = vld [vmem:[#allocation2 + $0x290] sm:$0xff]
      %v3173 = vld [vmem:[#allocation2 + $0x298] sm:$0xff]
      %v3174 = vld [vmem:[#allocation2 + $0x2a0] sm:$0xff]
      %v3175 = vld [vmem:[#allocation2 + $0x2a8] sm:$0xff]
      %v3176 = vld [vmem:[#allocation2 + $0x2b0] sm:$0xff]
      %v3177 = vld [vmem:[#allocation2 + $0x2b8] sm:$0xff]
      %v3178 = vld [vmem:[#allocation2 + $0x2c0] sm:$0xff]
      %v3179 = vld [vmem:[#allocation2 + $0x2c8] sm:$0xff]
      %v3180 = vld [vmem:[#allocation2 + $0x2d0] sm:$0xff]
      %v3181 = vld [vmem:[#allocation2 + $0x2d8] sm:$0xff]
      %v3182 = vld [vmem:[#allocation2 + $0x2e0] sm:$0xff]
      %v3183 = vld [vmem:[#allocation2 + $0x2e8] sm:$0xff]
      %v3184 = vld [vmem:[#allocation2 + $0x2f0] sm:$0xff]
      %v3185 = vld [vmem:[#allocation2 + $0x2f8] sm:$0xff]
      %v3186 = vld [vmem:[#allocation2 + $0x300] sm:$0xff]
      %v3187 = vld [vmem:[#allocation2 + $0x308] sm:$0xff]
      %v3316 = vunpack.c.l.b16 %v2962
      %v3317 = vunpack.c.h.b16 %v2962
      %v3318 = vunpack.c.l.b16 %v2963
      %v3319 = vunpack.c.h.b16 %v2963
      %v3320 = vunpack.c.l.b16 %v2964
      %v3321 = vunpack.c.h.b16 %v2964
      %v3322 = vunpack.c.l.b16 %v2965
      %v3323 = vunpack.c.l.b16 %v2966
      %v3324 = vunpack.c.h.b16 %v2966
      %v3325 = vunpack.c.l.b16 %v2967
      %v3326 = vunpack.c.h.b16 %v2967
      %v3327 = vunpack.c.l.b16 %v2968
      %v3328 = vunpack.c.h.b16 %v2968
      %v3329 = vunpack.c.l.b16 %v2969
      %v3330 = vunpack.c.l.b16 %v2970
      %v3331 = vunpack.c.h.b16 %v2970
      %v3332 = vunpack.c.l.b16 %v2971
      %v3333 = vunpack.c.h.b16 %v2971
      %v3334 = vunpack.c.l.b16 %v2972
      %v3335 = vunpack.c.h.b16 %v2972
      %v3336 = vunpack.c.l.b16 %v2973
      %v3337 = vunpack.c.l.b16 %v2974
      %v3338 = vunpack.c.h.b16 %v2974
      %v3339 = vunpack.c.l.b16 %v2975
      %v3340 = vunpack.c.h.b16 %v2975
      %v3341 = vunpack.c.l.b16 %v2976
      %v3342 = vunpack.c.h.b16 %v2976
      %v3343 = vunpack.c.l.b16 %v2977
      %v3344 = vunpack.c.l.b16 %v2978
      %v3345 = vunpack.c.h.b16 %v2978
      %v3346 = vunpack.c.l.b16 %v2979
      %v3347 = vunpack.c.h.b16 %v2979
      %v3348 = vunpack.c.l.b16 %v2980
      %v3349 = vunpack.c.h.b16 %v2980
      %v3350 = vunpack.c.l.b16 %v2981
      %v3351 = vunpack.c.l.b16 %v2982
      %v3352 = vunpack.c.h.b16 %v2982
      %v3353 = vunpack.c.l.b16 %v2983
      %v3354 = vunpack.c.h.b16 %v2983
      %v3355 = vunpack.c.l.b16 %v2984
      %v3356 = vunpack.c.h.b16 %v2984
      %v3357 = vunpack.c.l.b16 %v2985
      %v3358 = vunpack.c.l.b16 %v2986
      %v3359 = vunpack.c.h.b16 %v2986
      %v3360 = vunpack.c.l.b16 %v2987
      %v3361 = vunpack.c.h.b16 %v2987
      %v3362 = vunpack.c.l.b16 %v2988
      %v3363 = vunpack.c.h.b16 %v2988
      %v3364 = vunpack.c.l.b16 %v2989
      %v3365 = vunpack.c.l.b16 %v2990
      %v3366 = vunpack.c.h.b16 %v2990
      %v3367 = vunpack.c.l.b16 %v2991
      %v3368 = vunpack.c.h.b16 %v2991
      %v3369 = vunpack.c.l.b16 %v2992
      %v3370 = vunpack.c.h.b16 %v2992
      %v3371 = vunpack.c.l.b16 %v2993
      %v3372 = vunpack.c.l.b16 %v2994
      %v3373 = vunpack.c.h.b16 %v2994
      %v3374 = vunpack.c.l.b16 %v2995
      %v3375 = vunpack.c.h.b16 %v2995
      %v3376 = vunpack.c.l.b16 %v2996
      %v3377 = vunpack.c.h.b16 %v2996
      %v3378 = vunpack.c.l.b16 %v2997
      %v3379 = vunpack.c.l.b16 %v2998
      %v3380 = vunpack.c.h.b16 %v2998
      %v3381 = vunpack.c.l.b16 %v2999
      %v3382 = vunpack.c.h.b16 %v2999
      %v3383 = vunpack.c.l.b16 %v3000
      %v3384 = vunpack.c.h.b16 %v3000
      %v3385 = vunpack.c.l.b16 %v3001
      %v3386 = vunpack.c.l.b16 %v3002
      %v3387 = vunpack.c.h.b16 %v3002
      %v3388 = vunpack.c.l.b16 %v3003
      %v3389 = vunpack.c.h.b16 %v3003
      %v3390 = vunpack.c.l.b16 %v3004
      %v3391 = vunpack.c.h.b16 %v3004
      %v3392 = vunpack.c.l.b16 %v3005
      %v3393 = vunpack.c.l.b16 %v3006
      %v3394 = vunpack.c.h.b16 %v3006
      %v3395 = vunpack.c.l.b16 %v3007
      %v3396 = vunpack.c.h.b16 %v3007
      %v3397 = vunpack.c.l.b16 %v3008
      %v3398 = vunpack.c.h.b16 %v3008
      %v3399 = vunpack.c.l.b16 %v3009
      %v3400 = vunpack.c.l.b16 %v3010
      %v3401 = vunpack.c.h.b16 %v3010
      %v3402 = vunpack.c.l.b16 %v3011
      %v3403 = vunpack.c.h.b16 %v3011
      %v3404 = vunpack.c.l.b16 %v3012
      %v3405 = vunpack.c.h.b16 %v3012
      %v3406 = vunpack.c.l.b16 %v3013
      %v3407 = vunpack.c.l.b16 %v3014
      %v3408 = vunpack.c.h.b16 %v3014
      %v3409 = vunpack.c.l.b16 %v3015
      %v3410 = vunpack.c.h.b16 %v3015
      %v3411 = vunpack.c.l.b16 %v3016
      %v3412 = vunpack.c.h.b16 %v3016
      %v3413 = vunpack.c.l.b16 %v3017
      %v3414 = vunpack.c.l.b16 %v3018
      %v3415 = vunpack.c.h.b16 %v3018
      %v3416 = vunpack.c.l.b16 %v3019
      %v3417 = vunpack.c.h.b16 %v3019
      %v3418 = vunpack.c.l.b16 %v3020
      %v3419 = vunpack.c.h.b16 %v3020
      %v3420 = vunpack.c.l.b16 %v3021
      %v3421 = vunpack.c.l.b16 %v3022
      %v3422 = vunpack.c.h.b16 %v3022
      %v3423 = vunpack.c.l.b16 %v3023
      %v3424 = vunpack.c.h.b16 %v3023
      %v3425 = vunpack.c.l.b16 %v3024
      %v3426 = vunpack.c.h.b16 %v3024
      %v3427 = vunpack.c.l.b16 %v3025
      %v3428 = vunpack.c.l.b16 %v3026
      %v3429 = vunpack.c.h.b16 %v3026
      %v3430 = vunpack.c.l.b16 %v3027
      %v3431 = vunpack.c.h.b16 %v3027
      %v3432 = vunpack.c.l.b16 %v3028
      %v3433 = vunpack.c.h.b16 %v3028
      %v3434 = vunpack.c.l.b16 %v3029
      %v3435 = vunpack.c.l.b16 %v3030
      %v3436 = vunpack.c.h.b16 %v3030
      %v3437 = vunpack.c.l.b16 %v3031
      %v3438 = vunpack.c.h.b16 %v3031
      %v3439 = vunpack.c.l.b16 %v3032
      %v3440 = vunpack.c.h.b16 %v3032
      %v3441 = vunpack.c.l.b16 %v3033
      %v3442 = vunpack.c.l.b16 %v3034
      %v3443 = vunpack.c.h.b16 %v3034
      %v3444 = vunpack.c.l.b16 %v3035
      %v3445 = vunpack.c.h.b16 %v3035
      %v3446 = vunpack.c.l.b16 %v3036
      %v3447 = vunpack.c.h.b16 %v3036
      %v3448 = vunpack.c.l.b16 %v3037
      %v3449 = vunpack.c.l.b16 %v3038
      %v3450 = vunpack.c.h.b16 %v3038
      %v3451 = vunpack.c.l.b16 %v3039
      %v3452 = vunpack.c.h.b16 %v3039
      %v3453 = vunpack.c.l.b16 %v3040
      %v3454 = vunpack.c.h.b16 %v3040
      %v3455 = vunpack.c.l.b16 %v3041
      %v3456 = vunpack.c.l.b16 %v3042
      %v3457 = vunpack.c.h.b16 %v3042
      %v3458 = vunpack.c.l.b16 %v3043
      %v3459 = vunpack.c.h.b16 %v3043
      %v3460 = vunpack.c.l.b16 %v3044
      %v3461 = vunpack.c.h.b16 %v3044
      %v3462 = vunpack.c.l.b16 %v3045
      %v3463 = vunpack.c.l.b16 %v3046
      %v3464 = vunpack.c.h.b16 %v3046
      %v3465 = vunpack.c.l.b16 %v3047
      %v3466 = vunpack.c.h.b16 %v3047
      %v3467 = vunpack.c.l.b16 %v3048
      %v3468 = vunpack.c.h.b16 %v3048
      %v3469 = vunpack.c.l.b16 %v3049
      %v3470 = vunpack.c.l.b16 %v3050
      %v3471 = vunpack.c.h.b16 %v3050
      %v3472 = vunpack.c.l.b16 %v3051
      %v3473 = vunpack.c.h.b16 %v3051
      %v3474 = vunpack.c.l.b16 %v3052
      %v3475 = vunpack.c.h.b16 %v3052
      %v3476 = vunpack.c.l.b16 %v3053
      %v3477 = vunpack.c.l.b16 %v3054
      %v3478 = vunpack.c.h.b16 %v3054
      %v3479 = vunpack.c.l.b16 %v3055
      %v3480 = vunpack.c.h.b16 %v3055
      %v3481 = vunpack.c.l.b16 %v3056
      %v3482 = vunpack.c.h.b16 %v3056
      %v3483 = vunpack.c.l.b16 %v3057
      %v3484 = vunpack.c.l.b16 %v3058
      %v3485 = vunpack.c.h.b16 %v3058
      %v3486 = vunpack.c.l.b16 %v3059
      %v3487 = vunpack.c.h.b16 %v3059
      %v3488 = vunpack.c.l.b16 %v3060
      %v3489 = vunpack.c.h.b16 %v3060
      %v3490 = vunpack.c.l.b16 %v3061
      %v3491 = vunpack.c.l.b16 %v3062
      %v3492 = vunpack.c.h.b16 %v3062
      %v3493 = vunpack.c.l.b16 %v3063
      %v3494 = vunpack.c.h.b16 %v3063
      %v3495 = vunpack.c.l.b16 %v3064
      %v3496 = vunpack.c.h.b16 %v3064
      %v3497 = vunpack.c.l.b16 %v3065
      %v3498 = vunpack.c.l.b16 %v3066
      %v3499 = vunpack.c.h.b16 %v3066
      %v3500 = vunpack.c.l.b16 %v3067
      %v3501 = vunpack.c.h.b16 %v3067
      %v3502 = vunpack.c.l.b16 %v3068
      %v3503 = vunpack.c.h.b16 %v3068
      %v3504 = vunpack.c.l.b16 %v3069
      %v3505 = vunpack.c.l.b16 %v3070
      %v3506 = vunpack.c.h.b16 %v3070
      %v3507 = vunpack.c.l.b16 %v3071
      %v3508 = vunpack.c.h.b16 %v3071
      %v3509 = vunpack.c.l.b16 %v3072
      %v3510 = vunpack.c.h.b16 %v3072
      %v3511 = vunpack.c.l.b16 %v3073
      %v3512 = vunpack.c.l.b16 %v3074
      %v3513 = vunpack.c.h.b16 %v3074
      %v3514 = vunpack.c.l.b16 %v3075
      %v3515 = vunpack.c.h.b16 %v3075
      %v3516 = vunpack.c.l.b16 %v3076
      %v3517 = vunpack.c.h.b16 %v3076
      %v3518 = vunpack.c.l.b16 %v3077
      %v3519 = vunpack.c.l.b16 %v3078
      %v3520 = vunpack.c.h.b16 %v3078
      %v3521 = vunpack.c.l.b16 %v3079
      %v3522 = vunpack.c.h.b16 %v3079
      %v3523 = vunpack.c.l.b16 %v3080
      %v3524 = vunpack.c.h.b16 %v3080
      %v3525 = vunpack.c.l.b16 %v3081
      %v3526 = vunpack.c.l.b16 %v3082
      %v3527 = vunpack.c.h.b16 %v3082
      %v3528 = vunpack.c.l.b16 %v3083
      %v3529 = vunpack.c.h.b16 %v3083
      %v3530 = vunpack.c.l.b16 %v3084
      %v3531 = vunpack.c.h.b16 %v3084
      %v3532 = vunpack.c.l.b16 %v3085
      %v3533 = vunpack.c.l.b16 %v3086
      %v3534 = vunpack.c.h.b16 %v3086
      %v3535 = vunpack.c.l.b16 %v3087
      %v3536 = vunpack.c.h.b16 %v3087
      %v3537 = vunpack.c.l.b16 %v3088
      %v3538 = vunpack.c.h.b16 %v3088
      %v3539 = vunpack.c.l.b16 %v3089
      %v3540 = vpack.c.b16 %v3323, %v3316
      %v3541 = vpack.c.b16 %v3324, %v3317
      %v3542 = vpack.c.b16 %v3325, %v3318
      %v3543 = vpack.c.b16 %v3326, %v3319
      %v3544 = vpack.c.b16 %v3327, %v3320
      %v3545 = vpack.c.b16 %v3328, %v3321
      %v3546 = vpack.c.b16 %v3329, %v3322
      %v3547 = vpack.c.b16 %v3337, %v3330
      %v3548 = vpack.c.b16 %v3338, %v3331
      %v3549 = vpack.c.b16 %v3339, %v3332
      %v3550 = vpack.c.b16 %v3340, %v3333
      %v3551 = vpack.c.b16 %v3341, %v3334
      %v3552 = vpack.c.b16 %v3342, %v3335
      %v3553 = vpack.c.b16 %v3343, %v3336
      %v3554 = vpack.c.b16 %v3351, %v3344
      %v3555 = vpack.c.b16 %v3352, %v3345
      %v3556 = vpack.c.b16 %v3353, %v3346
      %v3557 = vpack.c.b16 %v3354, %v3347
      %v3558 = vpack.c.b16 %v3355, %v3348
      %v3559 = vpack.c.b16 %v3356, %v3349
      %v3560 = vpack.c.b16 %v3357, %v3350
      %v3561 = vpack.c.b16 %v3365, %v3358
      %v3562 = vpack.c.b16 %v3366, %v3359
      %v3563 = vpack.c.b16 %v3367, %v3360
      %v3564 = vpack.c.b16 %v3368, %v3361
      %v3565 = vpack.c.b16 %v3369, %v3362
      %v3566 = vpack.c.b16 %v3370, %v3363
      %v3567 = vpack.c.b16 %v3371, %v3364
      %v3568 = vpack.c.b16 %v3379, %v3372
      %v3569 = vpack.c.b16 %v3380, %v3373
      %v3570 = vpack.c.b16 %v3381, %v3374
      %v3571 = vpack.c.b16 %v3382, %v3375
      %v3572 = vpack.c.b16 %v3383, %v3376
      %v3573 = vpack.c.b16 %v3384, %v3377
      %v3574 = vpack.c.b16 %v3385, %v3378
      %v3575 = vpack.c.b16 %v3393, %v3386
      %v3576 = vpack.c.b16 %v3394, %v3387
      %v3577 = vpack.c.b16 %v3395, %v3388
      %v3578 = vpack.c.b16 %v3396, %v3389
      %v3579 = vpack.c.b16 %v3397, %v3390
      %v3580 = vpack.c.b16 %v3398, %v3391
      %v3581 = vpack.c.b16 %v3399, %v3392
      %v3582 = vpack.c.b16 %v3407, %v3400
      %v3583 = vpack.c.b16 %v3408, %v3401
      %v3584 = vpack.c.b16 %v3409, %v3402
      %v3585 = vpack.c.b16 %v3410, %v3403
      %v3586 = vpack.c.b16 %v3411, %v3404
      %v3587 = vpack.c.b16 %v3412, %v3405
      %v3588 = vpack.c.b16 %v3413, %v3406
      %v3589 = vpack.c.b16 %v3421, %v3414
      %v3590 = vpack.c.b16 %v3422, %v3415
      %v3591 = vpack.c.b16 %v3423, %v3416
      %v3592 = vpack.c.b16 %v3424, %v3417
      %v3593 = vpack.c.b16 %v3425, %v3418
      %v3594 = vpack.c.b16 %v3426, %v3419
      %v3595 = vpack.c.b16 %v3427, %v3420
      %v3596 = vpack.c.b16 %v3435, %v3428
      %v3597 = vpack.c.b16 %v3436, %v3429
      %v3598 = vpack.c.b16 %v3437, %v3430
      %v3599 = vpack.c.b16 %v3438, %v3431
      %v3600 = vpack.c.b16 %v3439, %v3432
      %v3601 = vpack.c.b16 %v3440, %v3433
      %v3602 = vpack.c.b16 %v3441, %v3434
      %v3603 = vpack.c.b16 %v3449, %v3442
      %v3604 = vpack.c.b16 %v3450, %v3443
      %v3605 = vpack.c.b16 %v3451, %v3444
      %v3606 = vpack.c.b16 %v3452, %v3445
      %v3607 = vpack.c.b16 %v3453, %v3446
      %v3608 = vpack.c.b16 %v3454, %v3447
      %v3609 = vpack.c.b16 %v3455, %v3448
      %v3610 = vpack.c.b16 %v3463, %v3456
      %v3611 = vpack.c.b16 %v3464, %v3457
      %v3612 = vpack.c.b16 %v3465, %v3458
      %v3613 = vpack.c.b16 %v3466, %v3459
      %v3614 = vpack.c.b16 %v3467, %v3460
      %v3615 = vpack.c.b16 %v3468, %v3461
      %v3616 = vpack.c.b16 %v3469, %v3462
      %v3617 = vpack.c.b16 %v3477, %v3470
      %v3618 = vpack.c.b16 %v3478, %v3471
      %v3619 = vpack.c.b16 %v3479, %v3472
      %v3620 = vpack.c.b16 %v3480, %v3473
      %v3621 = vpack.c.b16 %v3481, %v3474
      %v3622 = vpack.c.b16 %v3482, %v3475
      %v3623 = vpack.c.b16 %v3483, %v3476
      %v3624 = vpack.c.b16 %v3491, %v3484
      %v3625 = vpack.c.b16 %v3492, %v3485
      %v3626 = vpack.c.b16 %v3493, %v3486
      %v3627 = vpack.c.b16 %v3494, %v3487
      %v3628 = vpack.c.b16 %v3495, %v3488
      %v3629 = vpack.c.b16 %v3496, %v3489
      %v3630 = vpack.c.b16 %v3497, %v3490
      %v3631 = vpack.c.b16 %v3505, %v3498
      %v3632 = vpack.c.b16 %v3506, %v3499
      %v3633 = vpack.c.b16 %v3507, %v3500
      %v3634 = vpack.c.b16 %v3508, %v3501
      %v3635 = vpack.c.b16 %v3509, %v3502
      %v3636 = vpack.c.b16 %v3510, %v3503
      %v3637 = vpack.c.b16 %v3511, %v3504
      %v3638 = vpack.c.b16 %v3519, %v3512
      %v3639 = vpack.c.b16 %v3520, %v3513
      %v3640 = vpack.c.b16 %v3521, %v3514
      %v3641 = vpack.c.b16 %v3522, %v3515
      %v3642 = vpack.c.b16 %v3523, %v3516
      %v3643 = vpack.c.b16 %v3524, %v3517
      %v3644 = vpack.c.b16 %v3525, %v3518
      %v3645 = vpack.c.b16 %v3533, %v3526
      %v3646 = vpack.c.b16 %v3534, %v3527
      %v3647 = vpack.c.b16 %v3535, %v3528
      %v3648 = vpack.c.b16 %v3536, %v3529
      %v3649 = vpack.c.b16 %v3537, %v3530
      %v3650 = vpack.c.b16 %v3538, %v3531
      %v3651 = vpack.c.b16 %v3539, %v3532
      %vm3748 = vcmask 130048
      %v3750 = vsel %vm3748, %v3546, 0
      %v3753 = vsel %vm3748, %v3553, 0
      %v3756 = vsel %vm3748, %v3560, 0
      %v3759 = vsel %vm3748, %v3567, 0
      %v3762 = vsel %vm3748, %v3574, 0
      %v3765 = vsel %vm3748, %v3581, 0
      %v3768 = vsel %vm3748, %v3588, 0
      %v3771 = vsel %vm3748, %v3595, 0
      %v3774 = vsel %vm3748, %v3602, 0
      %v3777 = vsel %vm3748, %v3609, 0
      %v3780 = vsel %vm3748, %v3616, 0
      %v3783 = vsel %vm3748, %v3623, 0
      %v3786 = vsel %vm3748, %v3630, 0
      %v3789 = vsel %vm3748, %v3637, 0
      %v3792 = vsel %vm3748, %v3644, 0
      %v3795 = vsel %vm3748, %v3651, 0
      %3797 = vmatprep.subr.bf16.mxu0 %v3091
      %3798 = vmatpush1.bf16.msra.mxu0 %v3090
      %3799 = vmatprep.subr.bf16.mxu0 %v3093
      %3800 = vmatpush1.bf16.msra.mxu0 %v3092
      %3801 = vmatprep.subr.bf16.mxu0 %v3095
      %3802 = vmatpush1.bf16.msra.mxu0 %v3094
      %3803 = vmatprep.subr.bf16.mxu0 %v3097
      %3804 = vmatpush1.bf16.msra.mxu0 %v3096
      %3805 = vmatprep.subr.bf16.mxu0 %v3099
      %3806 = vmatpush1.bf16.msra.mxu0 %v3098
      %3807 = vmatprep.subr.bf16.mxu0 %v3101
      %3808 = vmatpush1.bf16.msra.mxu0 %v3100
      %3809 = vmatprep.subr.bf16.mxu0 %v3103
      %3810 = vmatpush1.bf16.msra.mxu0 %v3102
      %3811 = vmatprep.subr.bf16.mxu0 %v3105
      %3812 = vmatpush1.bf16.msra.mxu0 %v3104
      %3813 = vmatprep.subr.bf16.mxu0 %v3107
      %3814 = vmatpush1.bf16.msra.mxu0 %v3106
      %3815 = vmatprep.subr.bf16.mxu0 %v3109
      %3816 = vmatpush1.bf16.msra.mxu0 %v3108
      %3817 = vmatprep.subr.bf16.mxu0 %v3111
      %3818 = vmatpush1.bf16.msra.mxu0 %v3110
      %3819 = vmatprep.subr.bf16.mxu0 %v3113
      %3820 = vmatpush1.bf16.msra.mxu0 %v3112
      %3821 = vmatprep.subr.bf16.mxu0 %v3115
      %3822 = vmatpush1.bf16.msra.mxu0 %v3114
      %3823 = vmatprep.subr.bf16.mxu0 %v3117
      %3824 = vmatpush1.bf16.msra.mxu0 %v3116
      %3825 = vmatprep.subr.bf16.mxu0 %v3119
      %3826 = vmatpush1.bf16.msra.mxu0 %v3118
      %3827 = vmatprep.subr.bf16.mxu0 %v3121
      %3828 = vmatpush1.bf16.msra.mxu0 %v3120
      %3829 = vmatprep.mubr.bf16.mxu0 %v3541
      %3830 = vmatmul.mubr.bf16.gmra.mrb[0].mxu0 %v3540
      %v3831 = vpop.f32.mrb[0].mxu0
      %v3832 = vadd.f32 0.0, %v3831
      %v3833 = vpop.f32.mrb[0].mxu0
      %v3834 = vadd.f32 0.0, %v3833
      %v3835 = vpop.f32.mrb[0].mxu0
      %v3836 = vadd.f32 0.0, %v3835
      %v3837 = vpop.f32.mrb[0].mxu0
      %v3838 = vadd.f32 0.0, %v3837
      %3839 = vmatprep.mubr.bf16.mxu0 %v3548
      %3840 = vmatmul.mubr.bf16.gmra.mrb[0].mxu0 %v3547
      %v3841 = vpop.f32.mrb[0].mxu0
      %v3842 = vadd.f32 0.0, %v3841
      %v3843 = vpop.f32.mrb[0].mxu0
      %v3844 = vadd.f32 0.0, %v3843
      %v3845 = vpop.f32.mrb[0].mxu0
      %v3846 = vadd.f32 0.0, %v3845
      %v3847 = vpop.f32.mrb[0].mxu0
      %v3848 = vadd.f32 0.0, %v3847
      %3849 = vmatprep.mubr.bf16.mxu0 %v3555
      %3850 = vmatmul.mubr.bf16.gmra.mrb[0].mxu0 %v3554
      %v3851 = vpop.f32.mrb[0].mxu0
      %v3852 = vadd.f32 0.0, %v3851
      %v3853 = vpop.f32.mrb[0].mxu0
      %v3854 = vadd.f32 0.0, %v3853
      %v3855 = vpop.f32.mrb[0].mxu0
      %v3856 = vadd.f32 0.0, %v3855
      %v3857 = vpop.f32.mrb[0].mxu0
      %v3858 = vadd.f32 0.0, %v3857
      %3859 = vmatprep.mubr.bf16.mxu0 %v3562
      %3860 = vmatmul.mubr.bf16.gmra.mrb[0].mxu0 %v3561
      %v3861 = vpop.f32.mrb[0].mxu0
      %v3862 = vadd.f32 0.0, %v3861
      %v3863 = vpop.f32.mrb[0].mxu0
      %v3864 = vadd.f32 0.0, %v3863
      %v3865 = vpop.f32.mrb[0].mxu0
      %v3866 = vadd.f32 0.0, %v3865
      %v3867 = vpop.f32.mrb[0].mxu0
      %v3868 = vadd.f32 0.0, %v3867
      %3869 = vmatprep.mubr.bf16.mxu0 %v3569
      %3870 = vmatmul.mubr.bf16.gmra.mrb[0].mxu0 %v3568
      %v3871 = vpop.f32.mrb[0].mxu0
      %v3872 = vadd.f32 0.0, %v3871
      %v3873 = vpop.f32.mrb[0].mxu0
      %v3874 = vadd.f32 0.0, %v3873
      %v3875 = vpop.f32.mrb[0].mxu0
      %v3876 = vadd.f32 0.0, %v3875
      %v3877 = vpop.f32.mrb[0].mxu0
      %v3878 = vadd.f32 0.0, %v3877
      %3879 = vmatprep.mubr.bf16.mxu0 %v3576
      %3880 = vmatmul.mubr.bf16.gmra.mrb[0].mxu0 %v3575
      %v3881 = vpop.f32.mrb[0].mxu0
      %v3882 = vadd.f32 0.0, %v3881
      %v3883 = vpop.f32.mrb[0].mxu0
      %v3884 = vadd.f32 0.0, %v3883
      %v3885 = vpop.f32.mrb[0].mxu0
      %v3886 = vadd.f32 0.0, %v3885
      %v3887 = vpop.f32.mrb[0].mxu0
      %v3888 = vadd.f32 0.0, %v3887
      %3889 = vmatprep.mubr.bf16.mxu0 %v3583
      %3890 = vmatmul.mubr.bf16.gmra.mrb[0].mxu0 %v3582
      %v3891 = vpop.f32.mrb[0].mxu0
      %v3892 = vadd.f32 0.0, %v3891
      %v3893 = vpop.f32.mrb[0].mxu0
      %v3894 = vadd.f32 0.0, %v3893
      %v3895 = vpop.f32.mrb[0].mxu0
      %v3896 = vadd.f32 0.0, %v3895
      %v3897 = vpop.f32.mrb[0].mxu0
      %v3898 = vadd.f32 0.0, %v3897
      %3899 = vmatprep.mubr.bf16.mxu0 %v3590
      %3900 = vmatmul.mubr.bf16.gmra.mrb[0].mxu0 %v3589
      %v3901 = vpop.f32.mrb[0].mxu0
      %v3902 = vadd.f32 0.0, %v3901
      %v3903 = vpop.f32.mrb[0].mxu0
      %v3904 = vadd.f32 0.0, %v3903
      %v3905 = vpop.f32.mrb[0].mxu0
      %v3906 = vadd.f32 0.0, %v3905
      %v3907 = vpop.f32.mrb[0].mxu0
      %v3908 = vadd.f32 0.0, %v3907
      %3909 = vmatprep.mubr.bf16.mxu0 %v3597
      %3910 = vmatmul.mubr.bf16.gmra.mrb[0].mxu0 %v3596
      %v3911 = vpop.f32.mrb[0].mxu0
      %v3912 = vadd.f32 0.0, %v3911
      %v3913 = vpop.f32.mrb[0].mxu0
      %v3914 = vadd.f32 0.0, %v3913
      %v3915 = vpop.f32.mrb[0].mxu0
      %v3916 = vadd.f32 0.0, %v3915
      %v3917 = vpop.f32.mrb[0].mxu0
      %v3918 = vadd.f32 0.0, %v3917
      %3919 = vmatprep.mubr.bf16.mxu0 %v3604
      %3920 = vmatmul.mubr.bf16.gmra.mrb[0].mxu0 %v3603
      %v3921 = vpop.f32.mrb[0].mxu0
      %v3922 = vadd.f32 0.0, %v3921
      %v3923 = vpop.f32.mrb[0].mxu0
      %v3924 = vadd.f32 0.0, %v3923
      %v3925 = vpop.f32.mrb[0].mxu0
      %v3926 = vadd.f32 0.0, %v3925
      %v3927 = vpop.f32.mrb[0].mxu0
      %v3928 = vadd.f32 0.0, %v3927
      %3929 = vmatprep.mubr.bf16.mxu0 %v3611
      %3930 = vmatmul.mubr.bf16.gmra.mrb[0].mxu0 %v3610
      %v3931 = vpop.f32.mrb[0].mxu0
      %v3932 = vadd.f32 0.0, %v3931
      %v3933 = vpop.f32.mrb[0].mxu0
      %v3934 = vadd.f32 0.0, %v3933
      %v3935 = vpop.f32.mrb[0].mxu0
      %v3936 = vadd.f32 0.0, %v3935
      %v3937 = vpop.f32.mrb[0].mxu0
      %v3938 = vadd.f32 0.0, %v3937
      %3939 = vmatprep.mubr.bf16.mxu0 %v3618
      %3940 = vmatmul.mubr.bf16.gmra.mrb[0].mxu0 %v3617
      %v3941 = vpop.f32.mrb[0].mxu0
      %v3942 = vadd.f32 0.0, %v3941
      %v3943 = vpop.f32.mrb[0].mxu0
      %v3944 = vadd.f32 0.0, %v3943
      %v3945 = vpop.f32.mrb[0].mxu0
      %v3946 = vadd.f32 0.0, %v3945
      %v3947 = vpop.f32.mrb[0].mxu0
      %v3948 = vadd.f32 0.0, %v3947
      %3949 = vmatprep.mubr.bf16.mxu0 %v3625
      %3950 = vmatmul.mubr.bf16.gmra.mrb[0].mxu0 %v3624
      %v3951 = vpop.f32.mrb[0].mxu0
      %v3952 = vadd.f32 0.0, %v3951
      %v3953 = vpop.f32.mrb[0].mxu0
      %v3954 = vadd.f32 0.0, %v3953
      %v3955 = vpop.f32.mrb[0].mxu0
      %v3956 = vadd.f32 0.0, %v3955
      %v3957 = vpop.f32.mrb[0].mxu0
      %v3958 = vadd.f32 0.0, %v3957
      %3959 = vmatprep.mubr.bf16.mxu0 %v3632
      %3960 = vmatmul.mubr.bf16.gmra.mrb[0].mxu0 %v3631
      %v3961 = vpop.f32.mrb[0].mxu0
      %v3962 = vadd.f32 0.0, %v3961
      %v3963 = vpop.f32.mrb[0].mxu0
      %v3964 = vadd.f32 0.0, %v3963
      %v3965 = vpop.f32.mrb[0].mxu0
      %v3966 = vadd.f32 0.0, %v3965
      %v3967 = vpop.f32.mrb[0].mxu0
      %v3968 = vadd.f32 0.0, %v3967
      %3969 = vmatprep.mubr.bf16.mxu0 %v3639
      %3970 = vmatmul.mubr.bf16.gmra.mrb[0].mxu0 %v3638
      %v3971 = vpop.f32.mrb[0].mxu0
      %v3972 = vadd.f32 0.0, %v3971
      %v3973 = vpop.f32.mrb[0].mxu0
      %v3974 = vadd.f32 0.0, %v3973
      %v3975 = vpop.f32.mrb[0].mxu0
      %v3976 = vadd.f32 0.0, %v3975
      %v3977 = vpop.f32.mrb[0].mxu0
      %v3978 = vadd.f32 0.0, %v3977
      %3979 = vmatprep.mubr.bf16.mxu0 %v3646
      %3980 = vmatmul.mubr.bf16.gmra.mrb[0].mxu0 %v3645
      %v3981 = vpop.f32.mrb[0].mxu0
      %v3982 = vadd.f32 0.0, %v3981
      %v3983 = vpop.f32.mrb[0].mxu0
      %v3984 = vadd.f32 0.0, %v3983
      %v3985 = vpop.f32.mrb[0].mxu0
      %v3986 = vadd.f32 0.0, %v3985
      %v3987 = vpop.f32.mrb[0].mxu0
      %v3988 = vadd.f32 0.0, %v3987
      %3989 = vdwg.mxu0
      %3990 = vmatprep.subr.bf16.mxu0 %v3123
      %3991 = vmatpush1.bf16.msra.mxu0 %v3122
      %3992 = vmatprep.subr.bf16.mxu0 %v3125
      %3993 = vmatpush1.bf16.msra.mxu0 %v3124
      %3994 = vmatprep.subr.bf16.mxu0 %v3127
      %3995 = vmatpush1.bf16.msra.mxu0 %v3126
      %3996 = vmatprep.subr.bf16.mxu0 %v3129
      %3997 = vmatpush1.bf16.msra.mxu0 %v3128
      %3998 = vmatprep.subr.bf16.mxu0 %v3131
      %3999 = vmatpush1.bf16.msra.mxu0 %v3130
      %4000 = vmatprep.subr.bf16.mxu0 %v3133
      %4001 = vmatpush1.bf16.msra.mxu0 %v3132
      %4002 = vmatprep.subr.bf16.mxu0 %v3135
      %4003 = vmatpush1.bf16.msra.mxu0 %v3134
      %4004 = vmatprep.subr.bf16.mxu0 %v3137
      %4005 = vmatpush1.bf16.msra.mxu0 %v3136
      %4006 = vmatprep.subr.bf16.mxu0 %v3139
      %4007 = vmatpush1.bf16.msra.mxu0 %v3138
      %4008 = vmatprep.subr.bf16.mxu0 %v3141
      %4009 = vmatpush1.bf16.msra.mxu0 %v3140
      %4010 = vmatprep.subr.bf16.mxu0 %v3143
      %4011 = vmatpush1.bf16.msra.mxu0 %v3142
      %4012 = vmatprep.subr.bf16.mxu0 %v3145
      %4013 = vmatpush1.bf16.msra.mxu0 %v3144
      %4014 = vmatprep.subr.bf16.mxu0 %v3147
      %4015 = vmatpush1.bf16.msra.mxu0 %v3146
      %4016 = vmatprep.subr.bf16.mxu0 %v3149
      %4017 = vmatpush1.bf16.msra.mxu0 %v3148
      %4018 = vmatprep.subr.bf16.mxu0 %v3151
      %4019 = vmatpush1.bf16.msra.mxu0 %v3150
      %4020 = vmatprep.subr.bf16.mxu0 %v3153
      %4021 = vmatpush1.bf16.msra.mxu0 %v3152
      %4022 = vmatprep.mubr.bf16.mxu0 %v3543
      %4023 = vmatmul.mubr.bf16.gmra.mrb[0].mxu0 %v3542
      %v4024 = vpop.f32.mrb[0].mxu0
      %v4025 = vadd.f32 %v3832, %v4024
      %v4026 = vpop.f32.mrb[0].mxu0
      %v4027 = vadd.f32 %v3834, %v4026
      %v4028 = vpop.f32.mrb[0].mxu0
      %v4029 = vadd.f32 %v3836, %v4028
      %v4030 = vpop.f32.mrb[0].mxu0
      %v4031 = vadd.f32 %v3838, %v4030
      %4032 = vmatprep.mubr.bf16.mxu0 %v3550
      %4033 = vmatmul.mubr.bf16.gmra.mrb[0].mxu0 %v3549
      %v4034 = vpop.f32.mrb[0].mxu0
      %v4035 = vadd.f32 %v3842, %v4034
      %v4036 = vpop.f32.mrb[0].mxu0
      %v4037 = vadd.f32 %v3844, %v4036
      %v4038 = vpop.f32.mrb[0].mxu0
      %v4039 = vadd.f32 %v3846, %v4038
      %v4040 = vpop.f32.mrb[0].mxu0
      %v4041 = vadd.f32 %v3848, %v4040
      %4042 = vmatprep.mubr.bf16.mxu0 %v3557
      %4043 = vmatmul.mubr.bf16.gmra.mrb[0].mxu0 %v3556
      %v4044 = vpop.f32.mrb[0].mxu0
      %v4045 = vadd.f32 %v3852, %v4044
      %v4046 = vpop.f32.mrb[0].mxu0
      %v4047 = vadd.f32 %v3854, %v4046
      %v4048 = vpop.f32.mrb[0].mxu0
      %v4049 = vadd.f32 %v3856, %v4048
      %v4050 = vpop.f32.mrb[0].mxu0
      %v4051 = vadd.f32 %v3858, %v4050
      %4052 = vmatprep.mubr.bf16.mxu0 %v3564
      %4053 = vmatmul.mubr.bf16.gmra.mrb[0].mxu0 %v3563
      %v4054 = vpop.f32.mrb[0].mxu0
      %v4055 = vadd.f32 %v3862, %v4054
      %v4056 = vpop.f32.mrb[0].mxu0
      %v4057 = vadd.f32 %v3864, %v4056
      %v4058 = vpop.f32.mrb[0].mxu0
      %v4059 = vadd.f32 %v3866, %v4058
      %v4060 = vpop.f32.mrb[0].mxu0
      %v4061 = vadd.f32 %v3868, %v4060
      %4062 = vmatprep.mubr.bf16.mxu0 %v3571
      %4063 = vmatmul.mubr.bf16.gmra.mrb[0].mxu0 %v3570
      %v4064 = vpop.f32.mrb[0].mxu0
      %v4065 = vadd.f32 %v3872, %v4064
      %v4066 = vpop.f32.mrb[0].mxu0
      %v4067 = vadd.f32 %v3874, %v4066
      %v4068 = vpop.f32.mrb[0].mxu0
      %v4069 = vadd.f32 %v3876, %v4068
      %v4070 = vpop.f32.mrb[0].mxu0
      %v4071 = vadd.f32 %v3878, %v4070
      %4072 = vmatprep.mubr.bf16.mxu0 %v3578
      %4073 = vmatmul.mubr.bf16.gmra.mrb[0].mxu0 %v3577
      %v4074 = vpop.f32.mrb[0].mxu0
      %v4075 = vadd.f32 %v3882, %v4074
      %v4076 = vpop.f32.mrb[0].mxu0
      %v4077 = vadd.f32 %v3884, %v4076
      %v4078 = vpop.f32.mrb[0].mxu0
      %v4079 = vadd.f32 %v3886, %v4078
      %v4080 = vpop.f32.mrb[0].mxu0
      %v4081 = vadd.f32 %v3888, %v4080
      %4082 = vmatprep.mubr.bf16.mxu0 %v3585
      %4083 = vmatmul.mubr.bf16.gmra.mrb[0].mxu0 %v3584
      %v4084 = vpop.f32.mrb[0].mxu0
      %v4085 = vadd.f32 %v3892, %v4084
      %v4086 = vpop.f32.mrb[0].mxu0
      %v4087 = vadd.f32 %v3894, %v4086
      %v4088 = vpop.f32.mrb[0].mxu0
      %v4089 = vadd.f32 %v3896, %v4088
      %v4090 = vpop.f32.mrb[0].mxu0
      %v4091 = vadd.f32 %v3898, %v4090
      %4092 = vmatprep.mubr.bf16.mxu0 %v3592
      %4093 = vmatmul.mubr.bf16.gmra.mrb[0].mxu0 %v3591
      %v4094 = vpop.f32.mrb[0].mxu0
      %v4095 = vadd.f32 %v3902, %v4094
      %v4096 = vpop.f32.mrb[0].mxu0
      %v4097 = vadd.f32 %v3904, %v4096
      %v4098 = vpop.f32.mrb[0].mxu0
      %v4099 = vadd.f32 %v3906, %v4098
      %v4100 = vpop.f32.mrb[0].mxu0
      %v4101 = vadd.f32 %v3908, %v4100
      %4102 = vmatprep.mubr.bf16.mxu0 %v3599
      %4103 = vmatmul.mubr.bf16.gmra.mrb[0].mxu0 %v3598
      %v4104 = vpop.f32.mrb[0].mxu0
      %v4105 = vadd.f32 %v3912, %v4104
      %v4106 = vpop.f32.mrb[0].mxu0
      %v4107 = vadd.f32 %v3914, %v4106
      %v4108 = vpop.f32.mrb[0].mxu0
      %v4109 = vadd.f32 %v3916, %v4108
      %v4110 = vpop.f32.mrb[0].mxu0
      %v4111 = vadd.f32 %v3918, %v4110
      %4112 = vmatprep.mubr.bf16.mxu0 %v3606
      %4113 = vmatmul.mubr.bf16.gmra.mrb[0].mxu0 %v3605
      %v4114 = vpop.f32.mrb[0].mxu0
      %v4115 = vadd.f32 %v3922, %v4114
      %v4116 = vpop.f32.mrb[0].mxu0
      %v4117 = vadd.f32 %v3924, %v4116
      %v4118 = vpop.f32.mrb[0].mxu0
      %v4119 = vadd.f32 %v3926, %v4118
      %v4120 = vpop.f32.mrb[0].mxu0
      %v4121 = vadd.f32 %v3928, %v4120
      %4122 = vmatprep.mubr.bf16.mxu0 %v3613
      %4123 = vmatmul.mubr.bf16.gmra.mrb[0].mxu0 %v3612
      %v4124 = vpop.f32.mrb[0].mxu0
      %v4125 = vadd.f32 %v3932, %v4124
      %v4126 = vpop.f32.mrb[0].mxu0
      %v4127 = vadd.f32 %v3934, %v4126
      %v4128 = vpop.f32.mrb[0].mxu0
      %v4129 = vadd.f32 %v3936, %v4128
      %v4130 = vpop.f32.mrb[0].mxu0
      %v4131 = vadd.f32 %v3938, %v4130
      %4132 = vmatprep.mubr.bf16.mxu0 %v3620
      %4133 = vmatmul.mubr.bf16.gmra.mrb[0].mxu0 %v3619
      %v4134 = vpop.f32.mrb[0].mxu0
      %v4135 = vadd.f32 %v3942, %v4134
      %v4136 = vpop.f32.mrb[0].mxu0
      %v4137 = vadd.f32 %v3944, %v4136
      %v4138 = vpop.f32.mrb[0].mxu0
      %v4139 = vadd.f32 %v3946, %v4138
      %v4140 = vpop.f32.mrb[0].mxu0
      %v4141 = vadd.f32 %v3948, %v4140
      %4142 = vmatprep.mubr.bf16.mxu0 %v3627
      %4143 = vmatmul.mubr.bf16.gmra.mrb[0].mxu0 %v3626
      %v4144 = vpop.f32.mrb[0].mxu0
      %v4145 = vadd.f32 %v3952, %v4144
      %v4146 = vpop.f32.mrb[0].mxu0
      %v4147 = vadd.f32 %v3954, %v4146
      %v4148 = vpop.f32.mrb[0].mxu0
      %v4149 = vadd.f32 %v3956, %v4148
      %v4150 = vpop.f32.mrb[0].mxu0
      %v4151 = vadd.f32 %v3958, %v4150
      %4152 = vmatprep.mubr.bf16.mxu0 %v3634
      %4153 = vmatmul.mubr.bf16.gmra.mrb[0].mxu0 %v3633
      %v4154 = vpop.f32.mrb[0].mxu0
      %v4155 = vadd.f32 %v3962, %v4154
      %v4156 = vpop.f32.mrb[0].mxu0
      %v4157 = vadd.f32 %v3964, %v4156
      %v4158 = vpop.f32.mrb[0].mxu0
      %v4159 = vadd.f32 %v3966, %v4158
      %v4160 = vpop.f32.mrb[0].mxu0
      %v4161 = vadd.f32 %v3968, %v4160
      %4162 = vmatprep.mubr.bf16.mxu0 %v3641
      %4163 = vmatmul.mubr.bf16.gmra.mrb[0].mxu0 %v3640
      %v4164 = vpop.f32.mrb[0].mxu0
      %v4165 = vadd.f32 %v3972, %v4164
      %v4166 = vpop.f32.mrb[0].mxu0
      %v4167 = vadd.f32 %v3974, %v4166
      %v4168 = vpop.f32.mrb[0].mxu0
      %v4169 = vadd.f32 %v3976, %v4168
      %v4170 = vpop.f32.mrb[0].mxu0
      %v4171 = vadd.f32 %v3978, %v4170
      %4172 = vmatprep.mubr.bf16.mxu0 %v3648
      %4173 = vmatmul.mubr.bf16.gmra.mrb[0].mxu0 %v3647
      %v4174 = vpop.f32.mrb[0].mxu0
      %v4175 = vadd.f32 %v3982, %v4174
      %v4176 = vpop.f32.mrb[0].mxu0
      %v4177 = vadd.f32 %v3984, %v4176
      %v4178 = vpop.f32.mrb[0].mxu0
      %v4179 = vadd.f32 %v3986, %v4178
      %v4180 = vpop.f32.mrb[0].mxu0
      %v4181 = vadd.f32 %v3988, %v4180
      %4182 = vdwg.mxu0
      %4183 = vmatprep.subr.bf16.mxu0 %v3155
      %4184 = vmatpush1.bf16.msra.mxu0 %v3154
      %4185 = vmatprep.subr.bf16.mxu0 %v3157
      %4186 = vmatpush1.bf16.msra.mxu0 %v3156
      %4187 = vmatprep.subr.bf16.mxu0 %v3159
      %4188 = vmatpush1.bf16.msra.mxu0 %v3158
      %4189 = vmatprep.subr.bf16.mxu0 %v3161
      %4190 = vmatpush1.bf16.msra.mxu0 %v3160
      %4191 = vmatprep.subr.bf16.mxu0 %v3163
      %4192 = vmatpush1.bf16.msra.mxu0 %v3162
      %4193 = vmatprep.subr.bf16.mxu0 %v3165
      %4194 = vmatpush1.bf16.msra.mxu0 %v3164
      %4195 = vmatprep.subr.bf16.mxu0 %v3167
      %4196 = vmatpush1.bf16.msra.mxu0 %v3166
      %4197 = vmatprep.subr.bf16.mxu0 %v3169
      %4198 = vmatpush1.bf16.msra.mxu0 %v3168
      %4199 = vmatprep.subr.bf16.mxu0 %v3171
      %4200 = vmatpush1.bf16.msra.mxu0 %v3170
      %4201 = vmatprep.subr.bf16.mxu0 %v3173
      %4202 = vmatpush1.bf16.msra.mxu0 %v3172
      %4203 = vmatprep.subr.bf16.mxu0 %v3175
      %4204 = vmatpush1.bf16.msra.mxu0 %v3174
      %4205 = vmatprep.subr.bf16.mxu0 %v3177
      %4206 = vmatpush1.bf16.msra.mxu0 %v3176
      %4207 = vmatprep.subr.bf16.mxu0 %v3179
      %4208 = vmatpush1.bf16.msra.mxu0 %v3178
      %4209 = vmatprep.subr.bf16.mxu0 %v3181
      %4210 = vmatpush1.bf16.msra.mxu0 %v3180
      %4211 = vmatprep.subr.bf16.mxu0 %v3183
      %4212 = vmatpush1.bf16.msra.mxu0 %v3182
      %4213 = vmatprep.subr.bf16.mxu0 %v3185
      %4214 = vmatpush1.bf16.msra.mxu0 %v3184
      %4215 = vmatprep.mubr.bf16.mxu0 %v3545
      %4216 = vmatmul.mubr.bf16.gmra.mrb[0].mxu0 %v3544
      %v4217 = vpop.f32.mrb[0].mxu0
      %v4218 = vadd.f32 %v4025, %v4217
      %v4219 = vpop.f32.mrb[0].mxu0
      %v4220 = vadd.f32 %v4027, %v4219
      %v4221 = vpop.f32.mrb[0].mxu0
      %v4222 = vadd.f32 %v4029, %v4221
      %v4223 = vpop.f32.mrb[0].mxu0
      %v4224 = vadd.f32 %v4031, %v4223
      %4225 = vmatprep.mubr.bf16.mxu0 %v3552
      %4226 = vmatmul.mubr.bf16.gmra.mrb[0].mxu0 %v3551
      %v4227 = vpop.f32.mrb[0].mxu0
      %v4228 = vadd.f32 %v4035, %v4227
      %v4229 = vpop.f32.mrb[0].mxu0
      %v4230 = vadd.f32 %v4037, %v4229
      %v4231 = vpop.f32.mrb[0].mxu0
      %v4232 = vadd.f32 %v4039, %v4231
      %v4233 = vpop.f32.mrb[0].mxu0
      %v4234 = vadd.f32 %v4041, %v4233
      %4235 = vmatprep.mubr.bf16.mxu0 %v3559
      %4236 = vmatmul.mubr.bf16.gmra.mrb[0].mxu0 %v3558
      %v4237 = vpop.f32.mrb[0].mxu0
      %v4238 = vadd.f32 %v4045, %v4237
      %v4239 = vpop.f32.mrb[0].mxu0
      %v4240 = vadd.f32 %v4047, %v4239
      %v4241 = vpop.f32.mrb[0].mxu0
      %v4242 = vadd.f32 %v4049, %v4241
      %v4243 = vpop.f32.mrb[0].mxu0
      %v4244 = vadd.f32 %v4051, %v4243
      %4245 = vmatprep.mubr.bf16.mxu0 %v3566
      %4246 = vmatmul.mubr.bf16.gmra.mrb[0].mxu0 %v3565
      %v4247 = vpop.f32.mrb[0].mxu0
      %v4248 = vadd.f32 %v4055, %v4247
      %v4249 = vpop.f32.mrb[0].mxu0
      %v4250 = vadd.f32 %v4057, %v4249
      %v4251 = vpop.f32.mrb[0].mxu0
      %v4252 = vadd.f32 %v4059, %v4251
      %v4253 = vpop.f32.mrb[0].mxu0
      %v4254 = vadd.f32 %v4061, %v4253
      %4255 = vmatprep.mubr.bf16.mxu0 %v3573
      %4256 = vmatmul.mubr.bf16.gmra.mrb[0].mxu0 %v3572
      %v4257 = vpop.f32.mrb[0].mxu0
      %v4258 = vadd.f32 %v4065, %v4257
      %v4259 = vpop.f32.mrb[0].mxu0
      %v4260 = vadd.f32 %v4067, %v4259
      %v4261 = vpop.f32.mrb[0].mxu0
      %v4262 = vadd.f32 %v4069, %v4261
      %v4263 = vpop.f32.mrb[0].mxu0
      %v4264 = vadd.f32 %v4071, %v4263
      %4265 = vmatprep.mubr.bf16.mxu0 %v3580
      %4266 = vmatmul.mubr.bf16.gmra.mrb[0].mxu0 %v3579
      %v4267 = vpop.f32.mrb[0].mxu0
      %v4268 = vadd.f32 %v4075, %v4267
      %v4269 = vpop.f32.mrb[0].mxu0
      %v4270 = vadd.f32 %v4077, %v4269
      %v4271 = vpop.f32.mrb[0].mxu0
      %v4272 = vadd.f32 %v4079, %v4271
      %v4273 = vpop.f32.mrb[0].mxu0
      %v4274 = vadd.f32 %v4081, %v4273
      %4275 = vmatprep.mubr.bf16.mxu0 %v3587
      %4276 = vmatmul.mubr.bf16.gmra.mrb[0].mxu0 %v3586
      %v4277 = vpop.f32.mrb[0].mxu0
      %v4278 = vadd.f32 %v4085, %v4277
      %v4279 = vpop.f32.mrb[0].mxu0
      %v4280 = vadd.f32 %v4087, %v4279
      %v4281 = vpop.f32.mrb[0].mxu0
      %v4282 = vadd.f32 %v4089, %v4281
      %v4283 = vpop.f32.mrb[0].mxu0
      %v4284 = vadd.f32 %v4091, %v4283
      %4285 = vmatprep.mubr.bf16.mxu0 %v3594
      %4286 = vmatmul.mubr.bf16.gmra.mrb[0].mxu0 %v3593
      %v4287 = vpop.f32.mrb[0].mxu0
      %v4288 = vadd.f32 %v4095, %v4287
      %v4289 = vpop.f32.mrb[0].mxu0
      %v4290 = vadd.f32 %v4097, %v4289
      %v4291 = vpop.f32.mrb[0].mxu0
      %v4292 = vadd.f32 %v4099, %v4291
      %v4293 = vpop.f32.mrb[0].mxu0
      %v4294 = vadd.f32 %v4101, %v4293
      %4295 = vmatprep.mubr.bf16.mxu0 %v3601
      %4296 = vmatmul.mubr.bf16.gmra.mrb[0].mxu0 %v3600
      %v4297 = vpop.f32.mrb[0].mxu0
      %v4298 = vadd.f32 %v4105, %v4297
      %v4299 = vpop.f32.mrb[0].mxu0
      %v4300 = vadd.f32 %v4107, %v4299
      %v4301 = vpop.f32.mrb[0].mxu0
      %v4302 = vadd.f32 %v4109, %v4301
      %v4303 = vpop.f32.mrb[0].mxu0
      %v4304 = vadd.f32 %v4111, %v4303
      %4305 = vmatprep.mubr.bf16.mxu0 %v3608
      %4306 = vmatmul.mubr.bf16.gmra.mrb[0].mxu0 %v3607
      %v4307 = vpop.f32.mrb[0].mxu0
      %v4308 = vadd.f32 %v4115, %v4307
      %v4309 = vpop.f32.mrb[0].mxu0
      %v4310 = vadd.f32 %v4117, %v4309
      %v4311 = vpop.f32.mrb[0].mxu0
      %v4312 = vadd.f32 %v4119, %v4311
      %v4313 = vpop.f32.mrb[0].mxu0
      %v4314 = vadd.f32 %v4121, %v4313
      %4315 = vmatprep.mubr.bf16.mxu0 %v3615
      %4316 = vmatmul.mubr.bf16.gmra.mrb[0].mxu0 %v3614
      %v4317 = vpop.f32.mrb[0].mxu0
      %v4318 = vadd.f32 %v4125, %v4317
      %v4319 = vpop.f32.mrb[0].mxu0
      %v4320 = vadd.f32 %v4127, %v4319
      %v4321 = vpop.f32.mrb[0].mxu0
      %v4322 = vadd.f32 %v4129, %v4321
      %v4323 = vpop.f32.mrb[0].mxu0
      %v4324 = vadd.f32 %v4131, %v4323
      %4325 = vmatprep.mubr.bf16.mxu0 %v3622
      %4326 = vmatmul.mubr.bf16.gmra.mrb[0].mxu0 %v3621
      %v4327 = vpop.f32.mrb[0].mxu0
      %v4328 = vadd.f32 %v4135, %v4327
      %v4329 = vpop.f32.mrb[0].mxu0
      %v4330 = vadd.f32 %v4137, %v4329
      %v4331 = vpop.f32.mrb[0].mxu0
      %v4332 = vadd.f32 %v4139, %v4331
      %v4333 = vpop.f32.mrb[0].mxu0
      %v4334 = vadd.f32 %v4141, %v4333
      %4335 = vmatprep.mubr.bf16.mxu0 %v3629
      %4336 = vmatmul.mubr.bf16.gmra.mrb[0].mxu0 %v3628
      %v4337 = vpop.f32.mrb[0].mxu0
      %v4338 = vadd.f32 %v4145, %v4337
      %v4339 = vpop.f32.mrb[0].mxu0
      %v4340 = vadd.f32 %v4147, %v4339
      %v4341 = vpop.f32.mrb[0].mxu0
      %v4342 = vadd.f32 %v4149, %v4341
      %v4343 = vpop.f32.mrb[0].mxu0
      %v4344 = vadd.f32 %v4151, %v4343
      %4345 = vmatprep.mubr.bf16.mxu0 %v3636
      %4346 = vmatmul.mubr.bf16.gmra.mrb[0].mxu0 %v3635
      %v4347 = vpop.f32.mrb[0].mxu0
      %v4348 = vadd.f32 %v4155, %v4347
      %v4349 = vpop.f32.mrb[0].mxu0
      %v4350 = vadd.f32 %v4157, %v4349
      %v4351 = vpop.f32.mrb[0].mxu0
      %v4352 = vadd.f32 %v4159, %v4351
      %v4353 = vpop.f32.mrb[0].mxu0
      %v4354 = vadd.f32 %v4161, %v4353
      %4355 = vmatprep.mubr.bf16.mxu0 %v3643
      %4356 = vmatmul.mubr.bf16.gmra.mrb[0].mxu0 %v3642
      %v4357 = vpop.f32.mrb[0].mxu0
      %v4358 = vadd.f32 %v4165, %v4357
      %v4359 = vpop.f32.mrb[0].mxu0
      %v4360 = vadd.f32 %v4167, %v4359
      %v4361 = vpop.f32.mrb[0].mxu0
      %v4362 = vadd.f32 %v4169, %v4361
      %v4363 = vpop.f32.mrb[0].mxu0
      %v4364 = vadd.f32 %v4171, %v4363
      %4365 = vmatprep.mubr.bf16.mxu0 %v3650
      %4366 = vmatmul.mubr.bf16.gmra.mrb[0].mxu0 %v3649
      %v4367 = vpop.f32.mrb[0].mxu0
      %v4368 = vadd.f32 %v4175, %v4367
      %v4369 = vpop.f32.mrb[0].mxu0
      %v4370 = vadd.f32 %v4177, %v4369
      %v4371 = vpop.f32.mrb[0].mxu0
      %v4372 = vadd.f32 %v4179, %v4371
      %v4373 = vpop.f32.mrb[0].mxu0
      %v4374 = vadd.f32 %v4181, %v4373
      %4375 = vdwg.mxu0
      %4376 = vmatprep.subr.bf16.mxu0 %v3187
      %4377 = vmatpush1.bf16.msra.mxu0 %v3186
      %4378 = vmatprep.subr.bf16.mxu0 0
      %4379 = vmatpush1.bf16.msra.mxu0 0
      %4380 = vmatprep.subr.bf16.mxu0 0
      %4381 = vmatpush1.bf16.msra.mxu0 0
      %4382 = vmatprep.subr.bf16.mxu0 0
      %4383 = vmatpush1.bf16.msra.mxu0 0
      %4384 = vmatprep.subr.bf16.mxu0 0
      %4385 = vmatpush1.bf16.msra.mxu0 0
      %4386 = vmatprep.subr.bf16.mxu0 0
      %4387 = vmatpush1.bf16.msra.mxu0 0
      %4388 = vmatprep.subr.bf16.mxu0 0
      %4389 = vmatpush1.bf16.msra.mxu0 0
      %4390 = vmatprep.subr.bf16.mxu0 0
      %4391 = vmatpush1.bf16.msra.mxu0 0
      %4392 = vmatprep.subr.bf16.mxu0 0
      %4393 = vmatpush1.bf16.msra.mxu0 0
      %4394 = vmatprep.subr.bf16.mxu0 0
      %4395 = vmatpush1.bf16.msra.mxu0 0
      %4396 = vmatprep.subr.bf16.mxu0 0
      %4397 = vmatpush1.bf16.msra.mxu0 0
      %4398 = vmatprep.subr.bf16.mxu0 0
      %4399 = vmatpush1.bf16.msra.mxu0 0
      %4400 = vmatprep.subr.bf16.mxu0 0
      %4401 = vmatpush1.bf16.msra.mxu0 0
      %4402 = vmatprep.subr.bf16.mxu0 0
      %4403 = vmatpush1.bf16.msra.mxu0 0
      %4404 = vmatprep.subr.bf16.mxu0 0
      %4405 = vmatpush1.bf16.msra.mxu0 0
      %4406 = vmatprep.subr.bf16.mxu0 0
      %4407 = vmatpush1.bf16.msra.mxu0 0
      %4408 = vmatprep.mubr.bf16.mxu0 0
      %4409 = vmatmul.mubr.bf16.gmra.mrb[0].mxu0 %v3750
      %v4410 = vpop.f32.mrb[0].mxu0
      %v4411 = vadd.f32 %v4218, %v4410
      %v4412 = vpop.f32.mrb[0].mxu0
      %v4413 = vadd.f32 %v4220, %v4412
      %v4414 = vpop.f32.mrb[0].mxu0
      %v4415 = vadd.f32 %v4222, %v4414
      %v4416 = vpop.f32.mrb[0].mxu0
      %v4417 = vadd.f32 %v4224, %v4416
      %4418 = vmatprep.mubr.bf16.mxu0 0
      %4419 = vmatmul.mubr.bf16.gmra.mrb[0].mxu0 %v3753
      %v4420 = vpop.f32.mrb[0].mxu0
      %v4421 = vadd.f32 %v4228, %v4420
      %v4422 = vpop.f32.mrb[0].mxu0
      %v4423 = vadd.f32 %v4230, %v4422
      %v4424 = vpop.f32.mrb[0].mxu0
      %v4425 = vadd.f32 %v4232, %v4424
      %v4426 = vpop.f32.mrb[0].mxu0
      %v4427 = vadd.f32 %v4234, %v4426
      %4428 = vmatprep.mubr.bf16.mxu0 0
      %4429 = vmatmul.mubr.bf16.gmra.mrb[0].mxu0 %v3756
      %v4430 = vpop.f32.mrb[0].mxu0
      %v4431 = vadd.f32 %v4238, %v4430
      %v4432 = vpop.f32.mrb[0].mxu0
      %v4433 = vadd.f32 %v4240, %v4432
      %v4434 = vpop.f32.mrb[0].mxu0
      %v4435 = vadd.f32 %v4242, %v4434
      %v4436 = vpop.f32.mrb[0].mxu0
      %v4437 = vadd.f32 %v4244, %v4436
      %4438 = vmatprep.mubr.bf16.mxu0 0
      %4439 = vmatmul.mubr.bf16.gmra.mrb[0].mxu0 %v3759
      %v4440 = vpop.f32.mrb[0].mxu0
      %v4441 = vadd.f32 %v4248, %v4440
      %v4442 = vpop.f32.mrb[0].mxu0
      %v4443 = vadd.f32 %v4250, %v4442
      %v4444 = vpop.f32.mrb[0].mxu0
      %v4445 = vadd.f32 %v4252, %v4444
      %v4446 = vpop.f32.mrb[0].mxu0
      %v4447 = vadd.f32 %v4254, %v4446
      %4448 = vmatprep.mubr.bf16.mxu0 0
      %4449 = vmatmul.mubr.bf16.gmra.mrb[0].mxu0 %v3762
      %v4450 = vpop.f32.mrb[0].mxu0
      %v4451 = vadd.f32 %v4258, %v4450
      %v4452 = vpop.f32.mrb[0].mxu0
      %v4453 = vadd.f32 %v4260, %v4452
      %v4454 = vpop.f32.mrb[0].mxu0
      %v4455 = vadd.f32 %v4262, %v4454
      %v4456 = vpop.f32.mrb[0].mxu0
      %v4457 = vadd.f32 %v4264, %v4456
      %4458 = vmatprep.mubr.bf16.mxu0 0
      %4459 = vmatmul.mubr.bf16.gmra.mrb[0].mxu0 %v3765
      %v4460 = vpop.f32.mrb[0].mxu0
      %v4461 = vadd.f32 %v4268, %v4460
      %v4462 = vpop.f32.mrb[0].mxu0
      %v4463 = vadd.f32 %v4270, %v4462
      %v4464 = vpop.f32.mrb[0].mxu0
      %v4465 = vadd.f32 %v4272, %v4464
      %v4466 = vpop.f32.mrb[0].mxu0
      %v4467 = vadd.f32 %v4274, %v4466
      %4468 = vmatprep.mubr.bf16.mxu0 0
      %4469 = vmatmul.mubr.bf16.gmra.mrb[0].mxu0 %v3768
      %v4470 = vpop.f32.mrb[0].mxu0
      %v4471 = vadd.f32 %v4278, %v4470
      %v4472 = vpop.f32.mrb[0].mxu0
      %v4473 = vadd.f32 %v4280, %v4472
      %v4474 = vpop.f32.mrb[0].mxu0
      %v4475 = vadd.f32 %v4282, %v4474
      %v4476 = vpop.f32.mrb[0].mxu0
      %v4477 = vadd.f32 %v4284, %v4476
      %4478 = vmatprep.mubr.bf16.mxu0 0
      %4479 = vmatmul.mubr.bf16.gmra.mrb[0].mxu0 %v3771
      %v4480 = vpop.f32.mrb[0].mxu0
      %v4481 = vadd.f32 %v4288, %v4480
      %v4482 = vpop.f32.mrb[0].mxu0
      %v4483 = vadd.f32 %v4290, %v4482
      %v4484 = vpop.f32.mrb[0].mxu0
      %v4485 = vadd.f32 %v4292, %v4484
      %v4486 = vpop.f32.mrb[0].mxu0
      %v4487 = vadd.f32 %v4294, %v4486
      %4488 = vmatprep.mubr.bf16.mxu0 0
      %4489 = vmatmul.mubr.bf16.gmra.mrb[0].mxu0 %v3774
      %v4490 = vpop.f32.mrb[0].mxu0
      %v4491 = vadd.f32 %v4298, %v4490
      %v4492 = vpop.f32.mrb[0].mxu0
      %v4493 = vadd.f32 %v4300, %v4492
      %v4494 = vpop.f32.mrb[0].mxu0
      %v4495 = vadd.f32 %v4302, %v4494
      %v4496 = vpop.f32.mrb[0].mxu0
      %v4497 = vadd.f32 %v4304, %v4496
      %4498 = vmatprep.mubr.bf16.mxu0 0
      %4499 = vmatmul.mubr.bf16.gmra.mrb[0].mxu0 %v3777
      %v4500 = vpop.f32.mrb[0].mxu0
      %v4501 = vadd.f32 %v4308, %v4500
      %v4502 = vpop.f32.mrb[0].mxu0
      %v4503 = vadd.f32 %v4310, %v4502
      %v4504 = vpop.f32.mrb[0].mxu0
      %v4505 = vadd.f32 %v4312, %v4504
      %v4506 = vpop.f32.mrb[0].mxu0
      %v4507 = vadd.f32 %v4314, %v4506
      %4508 = vmatprep.mubr.bf16.mxu0 0
      %4509 = vmatmul.mubr.bf16.gmra.mrb[0].mxu0 %v3780
      %v4510 = vpop.f32.mrb[0].mxu0
      %v4511 = vadd.f32 %v4318, %v4510
      %v4512 = vpop.f32.mrb[0].mxu0
      %v4513 = vadd.f32 %v4320, %v4512
      %v4514 = vpop.f32.mrb[0].mxu0
      %v4515 = vadd.f32 %v4322, %v4514
      %v4516 = vpop.f32.mrb[0].mxu0
      %v4517 = vadd.f32 %v4324, %v4516
      %4518 = vmatprep.mubr.bf16.mxu0 0
      %4519 = vmatmul.mubr.bf16.gmra.mrb[0].mxu0 %v3783
      %v4520 = vpop.f32.mrb[0].mxu0
      %v4521 = vadd.f32 %v4328, %v4520
      %v4522 = vpop.f32.mrb[0].mxu0
      %v4523 = vadd.f32 %v4330, %v4522
      %v4524 = vpop.f32.mrb[0].mxu0
      %v4525 = vadd.f32 %v4332, %v4524
      %v4526 = vpop.f32.mrb[0].mxu0
      %v4527 = vadd.f32 %v4334, %v4526
      %4528 = vmatprep.mubr.bf16.mxu0 0
      %4529 = vmatmul.mubr.bf16.gmra.mrb[0].mxu0 %v3786
      %v4530 = vpop.f32.mrb[0].mxu0
      %v4531 = vadd.f32 %v4338, %v4530
      %v4532 = vpop.f32.mrb[0].mxu0
      %v4533 = vadd.f32 %v4340, %v4532
      %v4534 = vpop.f32.mrb[0].mxu0
      %v4535 = vadd.f32 %v4342, %v4534
      %v4536 = vpop.f32.mrb[0].mxu0
      %v4537 = vadd.f32 %v4344, %v4536
      %4538 = vmatprep.mubr.bf16.mxu0 0
      %4539 = vmatmul.mubr.bf16.gmra.mrb[0].mxu0 %v3789
      %v4540 = vpop.f32.mrb[0].mxu0
      %v4541 = vadd.f32 %v4348, %v4540
      %v4542 = vpop.f32.mrb[0].mxu0
      %v4543 = vadd.f32 %v4350, %v4542
      %v4544 = vpop.f32.mrb[0].mxu0
      %v4545 = vadd.f32 %v4352, %v4544
      %v4546 = vpop.f32.mrb[0].mxu0
      %v4547 = vadd.f32 %v4354, %v4546
      %4548 = vmatprep.mubr.bf16.mxu0 0
      %4549 = vmatmul.mubr.bf16.gmra.mrb[0].mxu0 %v3792
      %v4550 = vpop.f32.mrb[0].mxu0
      %v4551 = vadd.f32 %v4358, %v4550
      %v4552 = vpop.f32.mrb[0].mxu0
      %v4553 = vadd.f32 %v4360, %v4552
      %v4554 = vpop.f32.mrb[0].mxu0
      %v4555 = vadd.f32 %v4362, %v4554
      %v4556 = vpop.f32.mrb[0].mxu0
      %v4557 = vadd.f32 %v4364, %v4556
      %4558 = vmatprep.mubr.bf16.mxu0 0
      %4559 = vmatmul.mubr.bf16.gmra.mrb[0].mxu0 %v3795
      %v4560 = vpop.f32.mrb[0].mxu0
      %v4561 = vadd.f32 %v4368, %v4560
      %v4562 = vpop.f32.mrb[0].mxu0
      %v4563 = vadd.f32 %v4370, %v4562
      %v4564 = vpop.f32.mrb[0].mxu0
      %v4565 = vadd.f32 %v4372, %v4564
      %v4566 = vpop.f32.mrb[0].mxu0
      %v4567 = vadd.f32 %v4374, %v4566
      %4568 = vdwg.mxu0
      %4570 = vset.pattern.permute.xlu0 0
      %4571 = vperm.xlu0 %4570, %v1302
      %v4572 = vpop.permute.xlu0 %4571
      %4575 = vset.pattern.permute.xlu0 0
      %4576 = vperm.xlu0 %4575, %v1305
      %v4577 = vpop.permute.xlu0 %4576
      %v4579 = vadd.f32 %v4411, %v4572
      %v4580 = vadd.f32 %v4413, %v4572
      %v4581 = vadd.f32 %v4415, %v4577
      %v4582 = vadd.f32 %v4417, %v4577
      %v4583 = vlaneseq
      %v4584 = vshrl.u32 %v4583, 7
      %v4585 = vsub.s32 0, %v4584
      %v4586 = vrot.slane %v1209, %v4585
      %v4587 = vlaneseq
      %v4588 = vshrl.u32 %v4587, 7
      %v4589 = vsub.s32 0, %v4588
      %v4590 = vrot.slane %v1210, %v4589
      %v4591 = vlaneseq
      %v4592 = vshrl.u32 %v4591, 7
      %v4593 = vsub.s32 0, %v4592
      %v4594 = vrot.slane %v1213, %v4593
      %v4595 = vlaneseq
      %v4596 = vshrl.u32 %v4595, 7
      %v4597 = vsub.s32 0, %v4596
      %v4598 = vrot.slane %v1214, %v4597
      %v4599 = vlaneseq
      %v4600 = vshrl.u32 %v4599, 7
      %v4601 = vsub.s32 0, %v4600
      %v4602 = vrot.slane %v1217, %v4601
      %v4603 = vlaneseq
      %v4604 = vshrl.u32 %v4603, 7
      %v4605 = vsub.s32 0, %v4604
      %v4606 = vrot.slane %v1218, %v4605
      %v4607 = vlaneseq
      %v4608 = vshrl.u32 %v4607, 7
      %v4609 = vsub.s32 0, %v4608
      %v4610 = vrot.slane %v1221, %v4609
      %v4611 = vlaneseq
      %v4612 = vshrl.u32 %v4611, 7
      %v4613 = vsub.s32 0, %v4612
      %v4614 = vrot.slane %v1222, %v4613
      %v4615 = vmul.f32 %v4586, %v4579
      %v4616 = vmul.f32 %v4590, %v4580
      %v4617 = vmul.f32 %v4586, %v4581
      %v4618 = vmul.f32 %v4590, %v4582
      %v4619 = vmul.f32 %v4594, %v4579
      %v4620 = vmul.f32 %v4598, %v4580
      %v4621 = vmul.f32 %v4594, %v4581
      %v4622 = vmul.f32 %v4598, %v4582
      %v4623 = vmul.f32 %v4602, %v4579
      %v4624 = vmul.f32 %v4606, %v4580
      %v4625 = vmul.f32 %v4602, %v4581
      %v4626 = vmul.f32 %v4606, %v4582
      %v4627 = vmul.f32 %v4610, %v4579
      %v4628 = vmul.f32 %v4614, %v4580
      %v4629 = vmul.f32 %v4610, %v4581
      %v4630 = vmul.f32 %v4614, %v4582
      %v4631 = vadd.f32 %v4615, 0.0
      %v4632 = vadd.f32 %v4616, 0.0
      %v4633 = vadd.f32 %v4617, 0.0
      %v4634 = vadd.f32 %v4618, 0.0
      %v4635 = vadd.f32 %v4619, 0.0
      %v4636 = vadd.f32 %v4620, 0.0
      %v4637 = vadd.f32 %v4621, 0.0
      %v4638 = vadd.f32 %v4622, 0.0
      %v4639 = vadd.f32 %v4623, 0.0
      %v4640 = vadd.f32 %v4624, 0.0
      %v4641 = vadd.f32 %v4625, 0.0
      %v4642 = vadd.f32 %v4626, 0.0
      %v4643 = vadd.f32 %v4627, 0.0
      %v4644 = vadd.f32 %v4628, 0.0
      %v4645 = vadd.f32 %v4629, 0.0
      %v4646 = vadd.f32 %v4630, 0.0
      %4647 = vset.pattern.permute.xlu0 1
      %4648 = vperm.xlu0 %4647, %v1302
      %v4649 = vpop.permute.xlu0 %4648
      %4651 = vset.pattern.permute.xlu0 1
      %4652 = vperm.xlu0 %4651, %v1305
      %v4653 = vpop.permute.xlu0 %4652
      %v4655 = vadd.f32 %v4421, %v4649
      %v4656 = vadd.f32 %v4423, %v4649
      %v4657 = vadd.f32 %v4425, %v4653
      %v4658 = vadd.f32 %v4427, %v4653
      %v4659 = vlaneseq
      %v4660 = vshrl.u32 %v4659, 7
      %v4661 = vsub.s32 1, %v4660
      %v4662 = vrot.slane %v1209, %v4661
      %v4663 = vlaneseq
      %v4664 = vshrl.u32 %v4663, 7
      %v4665 = vsub.s32 1, %v4664
      %v4666 = vrot.slane %v1210, %v4665
      %v4667 = vlaneseq
      %v4668 = vshrl.u32 %v4667, 7
      %v4669 = vsub.s32 1, %v4668
      %v4670 = vrot.slane %v1213, %v4669
      %v4671 = vlaneseq
      %v4672 = vshrl.u32 %v4671, 7
      %v4673 = vsub.s32 1, %v4672
      %v4674 = vrot.slane %v1214, %v4673
      %v4675 = vlaneseq
      %v4676 = vshrl.u32 %v4675, 7
      %v4677 = vsub.s32 1, %v4676
      %v4678 = vrot.slane %v1217, %v4677
      %v4679 = vlaneseq
      %v4680 = vshrl.u32 %v4679, 7
      %v4681 = vsub.s32 1, %v4680
      %v4682 = vrot.slane %v1218, %v4681
      %v4683 = vlaneseq
      %v4684 = vshrl.u32 %v4683, 7
      %v4685 = vsub.s32 1, %v4684
      %v4686 = vrot.slane %v1221, %v4685
      %v4687 = vlaneseq
      %v4688 = vshrl.u32 %v4687, 7
      %v4689 = vsub.s32 1, %v4688
      %v4690 = vrot.slane %v1222, %v4689
      %v4691 = vmul.f32 %v4662, %v4655
      %v4692 = vmul.f32 %v4666, %v4656
      %v4693 = vmul.f32 %v4662, %v4657
      %v4694 = vmul.f32 %v4666, %v4658
      %v4695 = vmul.f32 %v4670, %v4655
      %v4696 = vmul.f32 %v4674, %v4656
      %v4697 = vmul.f32 %v4670, %v4657
      %v4698 = vmul.f32 %v4674, %v4658
      %v4699 = vmul.f32 %v4678, %v4655
      %v4700 = vmul.f32 %v4682, %v4656
      %v4701 = vmul.f32 %v4678, %v4657
      %v4702 = vmul.f32 %v4682, %v4658
      %v4703 = vmul.f32 %v4686, %v4655
      %v4704 = vmul.f32 %v4690, %v4656
      %v4705 = vmul.f32 %v4686, %v4657
      %v4706 = vmul.f32 %v4690, %v4658
      %v4707 = vadd.f32 %v4631, %v4691
      %v4708 = vadd.f32 %v4632, %v4692
      %v4709 = vadd.f32 %v4633, %v4693
      %v4710 = vadd.f32 %v4634, %v4694
      %v4711 = vadd.f32 %v4635, %v4695
      %v4712 = vadd.f32 %v4636, %v4696
      %v4713 = vadd.f32 %v4637, %v4697
      %v4714 = vadd.f32 %v4638, %v4698
      %v4715 = vadd.f32 %v4639, %v4699
      %v4716 = vadd.f32 %v4640, %v4700
      %v4717 = vadd.f32 %v4641, %v4701
      %v4718 = vadd.f32 %v4642, %v4702
      %v4719 = vadd.f32 %v4643, %v4703
      %v4720 = vadd.f32 %v4644, %v4704
      %v4721 = vadd.f32 %v4645, %v4705
      %v4722 = vadd.f32 %v4646, %v4706
      %4723 = vset.pattern.permute.xlu0 2
      %4724 = vperm.xlu0 %4723, %v1302
      %v4725 = vpop.permute.xlu0 %4724
      %4727 = vset.pattern.permute.xlu0 2
      %4728 = vperm.xlu0 %4727, %v1305
      %v4729 = vpop.permute.xlu0 %4728
      %v4731 = vadd.f32 %v4431, %v4725
      %v4732 = vadd.f32 %v4433, %v4725
      %v4733 = vadd.f32 %v4435, %v4729
      %v4734 = vadd.f32 %v4437, %v4729
      %v4735 = vlaneseq
      %v4736 = vshrl.u32 %v4735, 7
      %v4737 = vsub.s32 2, %v4736
      %v4738 = vrot.slane %v1209, %v4737
      %v4739 = vlaneseq
      %v4740 = vshrl.u32 %v4739, 7
      %v4741 = vsub.s32 2, %v4740
      %v4742 = vrot.slane %v1210, %v4741
      %v4743 = vlaneseq
      %v4744 = vshrl.u32 %v4743, 7
      %v4745 = vsub.s32 2, %v4744
      %v4746 = vrot.slane %v1213, %v4745
      %v4747 = vlaneseq
      %v4748 = vshrl.u32 %v4747, 7
      %v4749 = vsub.s32 2, %v4748
      %v4750 = vrot.slane %v1214, %v4749
      %v4751 = vlaneseq
      %v4752 = vshrl.u32 %v4751, 7
      %v4753 = vsub.s32 2, %v4752
      %v4754 = vrot.slane %v1217, %v4753
      %v4755 = vlaneseq
      %v4756 = vshrl.u32 %v4755, 7
      %v4757 = vsub.s32 2, %v4756
      %v4758 = vrot.slane %v1218, %v4757
      %v4759 = vlaneseq
      %v4760 = vshrl.u32 %v4759, 7
      %v4761 = vsub.s32 2, %v4760
      %v4762 = vrot.slane %v1221, %v4761
      %v4763 = vlaneseq
      %v4764 = vshrl.u32 %v4763, 7
      %v4765 = vsub.s32 2, %v4764
      %v4766 = vrot.slane %v1222, %v4765
      %v4767 = vmul.f32 %v4738, %v4731
      %v4768 = vmul.f32 %v4742, %v4732
      %v4769 = vmul.f32 %v4738, %v4733
      %v4770 = vmul.f32 %v4742, %v4734
      %v4771 = vmul.f32 %v4746, %v4731
      %v4772 = vmul.f32 %v4750, %v4732
      %v4773 = vmul.f32 %v4746, %v4733
      %v4774 = vmul.f32 %v4750, %v4734
      %v4775 = vmul.f32 %v4754, %v4731
      %v4776 = vmul.f32 %v4758, %v4732
      %v4777 = vmul.f32 %v4754, %v4733
      %v4778 = vmul.f32 %v4758, %v4734
      %v4779 = vmul.f32 %v4762, %v4731
      %v4780 = vmul.f32 %v4766, %v4732
      %v4781 = vmul.f32 %v4762, %v4733
      %v4782 = vmul.f32 %v4766, %v4734
      %v4783 = vadd.f32 %v4707, %v4767
      %v4784 = vadd.f32 %v4708, %v4768
      %v4785 = vadd.f32 %v4709, %v4769
      %v4786 = vadd.f32 %v4710, %v4770
      %v4787 = vadd.f32 %v4711, %v4771
      %v4788 = vadd.f32 %v4712, %v4772
      %v4789 = vadd.f32 %v4713, %v4773
      %v4790 = vadd.f32 %v4714, %v4774
      %v4791 = vadd.f32 %v4715, %v4775
      %v4792 = vadd.f32 %v4716, %v4776
      %v4793 = vadd.f32 %v4717, %v4777
      %v4794 = vadd.f32 %v4718, %v4778
      %v4795 = vadd.f32 %v4719, %v4779
      %v4796 = vadd.f32 %v4720, %v4780
      %v4797 = vadd.f32 %v4721, %v4781
      %v4798 = vadd.f32 %v4722, %v4782
      %4799 = vset.pattern.permute.xlu0 3
      %4800 = vperm.xlu0 %4799, %v1302
      %v4801 = vpop.permute.xlu0 %4800
      %4803 = vset.pattern.permute.xlu0 3
      %4804 = vperm.xlu0 %4803, %v1305
      %v4805 = vpop.permute.xlu0 %4804
      %v4807 = vadd.f32 %v4441, %v4801
      %v4808 = vadd.f32 %v4443, %v4801
      %v4809 = vadd.f32 %v4445, %v4805
      %v4810 = vadd.f32 %v4447, %v4805
      %v4811 = vlaneseq
      %v4812 = vshrl.u32 %v4811, 7
      %v4813 = vsub.s32 3, %v4812
      %v4814 = vrot.slane %v1209, %v4813
      %v4815 = vlaneseq
      %v4816 = vshrl.u32 %v4815, 7
      %v4817 = vsub.s32 3, %v4816
      %v4818 = vrot.slane %v1210, %v4817
      %v4819 = vlaneseq
      %v4820 = vshrl.u32 %v4819, 7
      %v4821 = vsub.s32 3, %v4820
      %v4822 = vrot.slane %v1213, %v4821
      %v4823 = vlaneseq
      %v4824 = vshrl.u32 %v4823, 7
      %v4825 = vsub.s32 3, %v4824
      %v4826 = vrot.slane %v1214, %v4825
      %v4827 = vlaneseq
      %v4828 = vshrl.u32 %v4827, 7
      %v4829 = vsub.s32 3, %v4828
      %v4830 = vrot.slane %v1217, %v4829
      %v4831 = vlaneseq
      %v4832 = vshrl.u32 %v4831, 7
      %v4833 = vsub.s32 3, %v4832
      %v4834 = vrot.slane %v1218, %v4833
      %v4835 = vlaneseq
      %v4836 = vshrl.u32 %v4835, 7
      %v4837 = vsub.s32 3, %v4836
      %v4838 = vrot.slane %v1221, %v4837
      %v4839 = vlaneseq
      %v4840 = vshrl.u32 %v4839, 7
      %v4841 = vsub.s32 3, %v4840
      %v4842 = vrot.slane %v1222, %v4841
      %v4843 = vmul.f32 %v4814, %v4807
      %v4844 = vmul.f32 %v4818, %v4808
      %v4845 = vmul.f32 %v4814, %v4809
      %v4846 = vmul.f32 %v4818, %v4810
      %v4847 = vmul.f32 %v4822, %v4807
      %v4848 = vmul.f32 %v4826, %v4808
      %v4849 = vmul.f32 %v4822, %v4809
      %v4850 = vmul.f32 %v4826, %v4810
      %v4851 = vmul.f32 %v4830, %v4807
      %v4852 = vmul.f32 %v4834, %v4808
      %v4853 = vmul.f32 %v4830, %v4809
      %v4854 = vmul.f32 %v4834, %v4810
      %v4855 = vmul.f32 %v4838, %v4807
      %v4856 = vmul.f32 %v4842, %v4808
      %v4857 = vmul.f32 %v4838, %v4809
      %v4858 = vmul.f32 %v4842, %v4810
      %v4859 = vadd.f32 %v4783, %v4843
      %v4860 = vadd.f32 %v4784, %v4844
      %v4861 = vadd.f32 %v4785, %v4845
      %v4862 = vadd.f32 %v4786, %v4846
      %v4863 = vadd.f32 %v4787, %v4847
      %v4864 = vadd.f32 %v4788, %v4848
      %v4865 = vadd.f32 %v4789, %v4849
      %v4866 = vadd.f32 %v4790, %v4850
      %v4867 = vadd.f32 %v4791, %v4851
      %v4868 = vadd.f32 %v4792, %v4852
      %v4869 = vadd.f32 %v4793, %v4853
      %v4870 = vadd.f32 %v4794, %v4854
      %v4871 = vadd.f32 %v4795, %v4855
      %v4872 = vadd.f32 %v4796, %v4856
      %v4873 = vadd.f32 %v4797, %v4857
      %v4874 = vadd.f32 %v4798, %v4858
      %4875 = vset.pattern.permute.xlu0 4
      %4876 = vperm.xlu0 %4875, %v1302
      %v4877 = vpop.permute.xlu0 %4876
      %4879 = vset.pattern.permute.xlu0 4
      %4880 = vperm.xlu0 %4879, %v1305
      %v4881 = vpop.permute.xlu0 %4880
      %v4883 = vadd.f32 %v4451, %v4877
      %v4884 = vadd.f32 %v4453, %v4877
      %v4885 = vadd.f32 %v4455, %v4881
      %v4886 = vadd.f32 %v4457, %v4881
      %v4887 = vlaneseq
      %v4888 = vshrl.u32 %v4887, 7
      %v4889 = vsub.s32 4, %v4888
      %v4890 = vrot.slane %v1209, %v4889
      %v4891 = vlaneseq
      %v4892 = vshrl.u32 %v4891, 7
      %v4893 = vsub.s32 4, %v4892
      %v4894 = vrot.slane %v1210, %v4893
      %v4895 = vlaneseq
      %v4896 = vshrl.u32 %v4895, 7
      %v4897 = vsub.s32 4, %v4896
      %v4898 = vrot.slane %v1213, %v4897
      %v4899 = vlaneseq
      %v4900 = vshrl.u32 %v4899, 7
      %v4901 = vsub.s32 4, %v4900
      %v4902 = vrot.slane %v1214, %v4901
      %v4903 = vlaneseq
      %v4904 = vshrl.u32 %v4903, 7
      %v4905 = vsub.s32 4, %v4904
      %v4906 = vrot.slane %v1217, %v4905
      %v4907 = vlaneseq
      %v4908 = vshrl.u32 %v4907, 7
      %v4909 = vsub.s32 4, %v4908
      %v4910 = vrot.slane %v1218, %v4909
      %v4911 = vlaneseq
      %v4912 = vshrl.u32 %v4911, 7
      %v4913 = vsub.s32 4, %v4912
      %v4914 = vrot.slane %v1221, %v4913
      %v4915 = vlaneseq
      %v4916 = vshrl.u32 %v4915, 7
      %v4917 = vsub.s32 4, %v4916
      %v4918 = vrot.slane %v1222, %v4917
      %v4919 = vmul.f32 %v4890, %v4883
      %v4920 = vmul.f32 %v4894, %v4884
      %v4921 = vmul.f32 %v4890, %v4885
      %v4922 = vmul.f32 %v4894, %v4886
      %v4923 = vmul.f32 %v4898, %v4883
      %v4924 = vmul.f32 %v4902, %v4884
      %v4925 = vmul.f32 %v4898, %v4885
      %v4926 = vmul.f32 %v4902, %v4886
      %v4927 = vmul.f32 %v4906, %v4883
      %v4928 = vmul.f32 %v4910, %v4884
      %v4929 = vmul.f32 %v4906, %v4885
      %v4930 = vmul.f32 %v4910, %v4886
      %v4931 = vmul.f32 %v4914, %v4883
      %v4932 = vmul.f32 %v4918, %v4884
      %v4933 = vmul.f32 %v4914, %v4885
      %v4934 = vmul.f32 %v4918, %v4886
      %v4935 = vadd.f32 %v4859, %v4919
      %v4936 = vadd.f32 %v4860, %v4920
      %v4937 = vadd.f32 %v4861, %v4921
      %v4938 = vadd.f32 %v4862, %v4922
      %v4939 = vadd.f32 %v4863, %v4923
      %v4940 = vadd.f32 %v4864, %v4924
      %v4941 = vadd.f32 %v4865, %v4925
      %v4942 = vadd.f32 %v4866, %v4926
      %v4943 = vadd.f32 %v4867, %v4927
      %v4944 = vadd.f32 %v4868, %v4928
      %v4945 = vadd.f32 %v4869, %v4929
      %v4946 = vadd.f32 %v4870, %v4930
      %v4947 = vadd.f32 %v4871, %v4931
      %v4948 = vadd.f32 %v4872, %v4932
      %v4949 = vadd.f32 %v4873, %v4933
      %v4950 = vadd.f32 %v4874, %v4934
      %4951 = vset.pattern.permute.xlu0 5
      %4952 = vperm.xlu0 %4951, %v1302
      %v4953 = vpop.permute.xlu0 %4952
      %4955 = vset.pattern.permute.xlu0 5
      %4956 = vperm.xlu0 %4955, %v1305
      %v4957 = vpop.permute.xlu0 %4956
      %v4959 = vadd.f32 %v4461, %v4953
      %v4960 = vadd.f32 %v4463, %v4953
      %v4961 = vadd.f32 %v4465, %v4957
      %v4962 = vadd.f32 %v4467, %v4957
      %v4963 = vlaneseq
      %v4964 = vshrl.u32 %v4963, 7
      %v4965 = vsub.s32 5, %v4964
      %v4966 = vrot.slane %v1209, %v4965
      %v4967 = vlaneseq
      %v4968 = vshrl.u32 %v4967, 7
      %v4969 = vsub.s32 5, %v4968
      %v4970 = vrot.slane %v1210, %v4969
      %v4971 = vlaneseq
      %v4972 = vshrl.u32 %v4971, 7
      %v4973 = vsub.s32 5, %v4972
      %v4974 = vrot.slane %v1213, %v4973
      %v4975 = vlaneseq
      %v4976 = vshrl.u32 %v4975, 7
      %v4977 = vsub.s32 5, %v4976
      %v4978 = vrot.slane %v1214, %v4977
      %v4979 = vlaneseq
      %v4980 = vshrl.u32 %v4979, 7
      %v4981 = vsub.s32 5, %v4980
      %v4982 = vrot.slane %v1217, %v4981
      %v4983 = vlaneseq
      %v4984 = vshrl.u32 %v4983, 7
      %v4985 = vsub.s32 5, %v4984
      %v4986 = vrot.slane %v1218, %v4985
      %v4987 = vlaneseq
      %v4988 = vshrl.u32 %v4987, 7
      %v4989 = vsub.s32 5, %v4988
      %v4990 = vrot.slane %v1221, %v4989
      %v4991 = vlaneseq
      %v4992 = vshrl.u32 %v4991, 7
      %v4993 = vsub.s32 5, %v4992
      %v4994 = vrot.slane %v1222, %v4993
      %v4995 = vmul.f32 %v4966, %v4959
      %v4996 = vmul.f32 %v4970, %v4960
      %v4997 = vmul.f32 %v4966, %v4961
      %v4998 = vmul.f32 %v4970, %v4962
      %v4999 = vmul.f32 %v4974, %v4959
      %v5000 = vmul.f32 %v4978, %v4960
      %v5001 = vmul.f32 %v4974, %v4961
      %v5002 = vmul.f32 %v4978, %v4962
      %v5003 = vmul.f32 %v4982, %v4959
      %v5004 = vmul.f32 %v4986, %v4960
      %v5005 = vmul.f32 %v4982, %v4961
      %v5006 = vmul.f32 %v4986, %v4962
      %v5007 = vmul.f32 %v4990, %v4959
      %v5008 = vmul.f32 %v4994, %v4960
      %v5009 = vmul.f32 %v4990, %v4961
      %v5010 = vmul.f32 %v4994, %v4962
      %v5011 = vadd.f32 %v4935, %v4995
      %v5012 = vadd.f32 %v4936, %v4996
      %v5013 = vadd.f32 %v4937, %v4997
      %v5014 = vadd.f32 %v4938, %v4998
      %v5015 = vadd.f32 %v4939, %v4999
      %v5016 = vadd.f32 %v4940, %v5000
      %v5017 = vadd.f32 %v4941, %v5001
      %v5018 = vadd.f32 %v4942, %v5002
      %v5019 = vadd.f32 %v4943, %v5003
      %v5020 = vadd.f32 %v4944, %v5004
      %v5021 = vadd.f32 %v4945, %v5005
      %v5022 = vadd.f32 %v4946, %v5006
      %v5023 = vadd.f32 %v4947, %v5007
      %v5024 = vadd.f32 %v4948, %v5008
      %v5025 = vadd.f32 %v4949, %v5009
      %v5026 = vadd.f32 %v4950, %v5010
      %5027 = vset.pattern.permute.xlu0 6
      %5028 = vperm.xlu0 %5027, %v1302
      %v5029 = vpop.permute.xlu0 %5028
      %5031 = vset.pattern.permute.xlu0 6
      %5032 = vperm.xlu0 %5031, %v1305
      %v5033 = vpop.permute.xlu0 %5032
      %v5035 = vadd.f32 %v4471, %v5029
      %v5036 = vadd.f32 %v4473, %v5029
      %v5037 = vadd.f32 %v4475, %v5033
      %v5038 = vadd.f32 %v4477, %v5033
      %v5039 = vlaneseq
      %v5040 = vshrl.u32 %v5039, 7
      %v5041 = vsub.s32 6, %v5040
      %v5042 = vrot.slane %v1209, %v5041
      %v5043 = vlaneseq
      %v5044 = vshrl.u32 %v5043, 7
      %v5045 = vsub.s32 6, %v5044
      %v5046 = vrot.slane %v1210, %v5045
      %v5047 = vlaneseq
      %v5048 = vshrl.u32 %v5047, 7
      %v5049 = vsub.s32 6, %v5048
      %v5050 = vrot.slane %v1213, %v5049
      %v5051 = vlaneseq
      %v5052 = vshrl.u32 %v5051, 7
      %v5053 = vsub.s32 6, %v5052
      %v5054 = vrot.slane %v1214, %v5053
      %v5055 = vlaneseq
      %v5056 = vshrl.u32 %v5055, 7
      %v5057 = vsub.s32 6, %v5056
      %v5058 = vrot.slane %v1217, %v5057
      %v5059 = vlaneseq
      %v5060 = vshrl.u32 %v5059, 7
      %v5061 = vsub.s32 6, %v5060
      %v5062 = vrot.slane %v1218, %v5061
      %v5063 = vlaneseq
      %v5064 = vshrl.u32 %v5063, 7
      %v5065 = vsub.s32 6, %v5064
      %v5066 = vrot.slane %v1221, %v5065
      %v5067 = vlaneseq
      %v5068 = vshrl.u32 %v5067, 7
      %v5069 = vsub.s32 6, %v5068
      %v5070 = vrot.slane %v1222, %v5069
      %v5071 = vmul.f32 %v5042, %v5035
      %v5072 = vmul.f32 %v5046, %v5036
      %v5073 = vmul.f32 %v5042, %v5037
      %v5074 = vmul.f32 %v5046, %v5038
      %v5075 = vmul.f32 %v5050, %v5035
      %v5076 = vmul.f32 %v5054, %v5036
      %v5077 = vmul.f32 %v5050, %v5037
      %v5078 = vmul.f32 %v5054, %v5038
      %v5079 = vmul.f32 %v5058, %v5035
      %v5080 = vmul.f32 %v5062, %v5036
      %v5081 = vmul.f32 %v5058, %v5037
      %v5082 = vmul.f32 %v5062, %v5038
      %v5083 = vmul.f32 %v5066, %v5035
      %v5084 = vmul.f32 %v5070, %v5036
      %v5085 = vmul.f32 %v5066, %v5037
      %v5086 = vmul.f32 %v5070, %v5038
      %v5087 = vadd.f32 %v5011, %v5071
      %v5088 = vadd.f32 %v5012, %v5072
      %v5089 = vadd.f32 %v5013, %v5073
      %v5090 = vadd.f32 %v5014, %v5074
      %v5091 = vadd.f32 %v5015, %v5075
      %v5092 = vadd.f32 %v5016, %v5076
      %v5093 = vadd.f32 %v5017, %v5077
      %v5094 = vadd.f32 %v5018, %v5078
      %v5095 = vadd.f32 %v5019, %v5079
      %v5096 = vadd.f32 %v5020, %v5080
      %v5097 = vadd.f32 %v5021, %v5081
      %v5098 = vadd.f32 %v5022, %v5082
      %v5099 = vadd.f32 %v5023, %v5083
      %v5100 = vadd.f32 %v5024, %v5084
      %v5101 = vadd.f32 %v5025, %v5085
      %v5102 = vadd.f32 %v5026, %v5086
      %5103 = vset.pattern.permute.xlu0 7
      %5104 = vperm.xlu0 %5103, %v1302
      %v5105 = vpop.permute.xlu0 %5104
      %5107 = vset.pattern.permute.xlu0 7
      %5108 = vperm.xlu0 %5107, %v1305
      %v5109 = vpop.permute.xlu0 %5108
      %v5111 = vadd.f32 %v4481, %v5105
      %v5112 = vadd.f32 %v4483, %v5105
      %v5113 = vadd.f32 %v4485, %v5109
      %v5114 = vadd.f32 %v4487, %v5109
      %v5115 = vlaneseq
      %v5116 = vshrl.u32 %v5115, 7
      %v5117 = vsub.s32 7, %v5116
      %v5118 = vrot.slane %v1209, %v5117
      %v5119 = vlaneseq
      %v5120 = vshrl.u32 %v5119, 7
      %v5121 = vsub.s32 7, %v5120
      %v5122 = vrot.slane %v1210, %v5121
      %v5123 = vlaneseq
      %v5124 = vshrl.u32 %v5123, 7
      %v5125 = vsub.s32 7, %v5124
      %v5126 = vrot.slane %v1213, %v5125
      %v5127 = vlaneseq
      %v5128 = vshrl.u32 %v5127, 7
      %v5129 = vsub.s32 7, %v5128
      %v5130 = vrot.slane %v1214, %v5129
      %v5131 = vlaneseq
      %v5132 = vshrl.u32 %v5131, 7
      %v5133 = vsub.s32 7, %v5132
      %v5134 = vrot.slane %v1217, %v5133
      %v5135 = vlaneseq
      %v5136 = vshrl.u32 %v5135, 7
      %v5137 = vsub.s32 7, %v5136
      %v5138 = vrot.slane %v1218, %v5137
      %v5139 = vlaneseq
      %v5140 = vshrl.u32 %v5139, 7
      %v5141 = vsub.s32 7, %v5140
      %v5142 = vrot.slane %v1221, %v5141
      %v5143 = vlaneseq
      %v5144 = vshrl.u32 %v5143, 7
      %v5145 = vsub.s32 7, %v5144
      %v5146 = vrot.slane %v1222, %v5145
      %v5147 = vmul.f32 %v5118, %v5111
      %v5148 = vmul.f32 %v5122, %v5112
      %v5149 = vmul.f32 %v5118, %v5113
      %v5150 = vmul.f32 %v5122, %v5114
      %v5151 = vmul.f32 %v5126, %v5111
      %v5152 = vmul.f32 %v5130, %v5112
      %v5153 = vmul.f32 %v5126, %v5113
      %v5154 = vmul.f32 %v5130, %v5114
      %v5155 = vmul.f32 %v5134, %v5111
      %v5156 = vmul.f32 %v5138, %v5112
      %v5157 = vmul.f32 %v5134, %v5113
      %v5158 = vmul.f32 %v5138, %v5114
      %v5159 = vmul.f32 %v5142, %v5111
      %v5160 = vmul.f32 %v5146, %v5112
      %v5161 = vmul.f32 %v5142, %v5113
      %v5162 = vmul.f32 %v5146, %v5114
      %v5163 = vadd.f32 %v5087, %v5147
      %v5164 = vadd.f32 %v5088, %v5148
      %v5165 = vadd.f32 %v5089, %v5149
      %v5166 = vadd.f32 %v5090, %v5150
      %v5167 = vadd.f32 %v5091, %v5151
      %v5168 = vadd.f32 %v5092, %v5152
      %v5169 = vadd.f32 %v5093, %v5153
      %v5170 = vadd.f32 %v5094, %v5154
      %v5171 = vadd.f32 %v5095, %v5155
      %v5172 = vadd.f32 %v5096, %v5156
      %v5173 = vadd.f32 %v5097, %v5157
      %v5174 = vadd.f32 %v5098, %v5158
      %v5175 = vadd.f32 %v5099, %v5159
      %v5176 = vadd.f32 %v5100, %v5160
      %v5177 = vadd.f32 %v5101, %v5161
      %v5178 = vadd.f32 %v5102, %v5162
      %5179 = vset.pattern.permute.xlu0 8
      %5180 = vperm.xlu0 %5179, %v1302
      %v5181 = vpop.permute.xlu0 %5180
      %5183 = vset.pattern.permute.xlu0 8
      %5184 = vperm.xlu0 %5183, %v1305
      %v5185 = vpop.permute.xlu0 %5184
      %v5187 = vadd.f32 %v4491, %v5181
      %v5188 = vadd.f32 %v4493, %v5181
      %v5189 = vadd.f32 %v4495, %v5185
      %v5190 = vadd.f32 %v4497, %v5185
      %v5191 = vlaneseq
      %v5192 = vshrl.u32 %v5191, 7
      %v5193 = vsub.s32 0, %v5192
      %v5194 = vrot.slane %v1211, %v5193
      %v5195 = vlaneseq
      %v5196 = vshrl.u32 %v5195, 7
      %v5197 = vsub.s32 0, %v5196
      %v5198 = vrot.slane %v1212, %v5197
      %v5199 = vlaneseq
      %v5200 = vshrl.u32 %v5199, 7
      %v5201 = vsub.s32 0, %v5200
      %v5202 = vrot.slane %v1215, %v5201
      %v5203 = vlaneseq
      %v5204 = vshrl.u32 %v5203, 7
      %v5205 = vsub.s32 0, %v5204
      %v5206 = vrot.slane %v1216, %v5205
      %v5207 = vlaneseq
      %v5208 = vshrl.u32 %v5207, 7
      %v5209 = vsub.s32 0, %v5208
      %v5210 = vrot.slane %v1219, %v5209
      %v5211 = vlaneseq
      %v5212 = vshrl.u32 %v5211, 7
      %v5213 = vsub.s32 0, %v5212
      %v5214 = vrot.slane %v1220, %v5213
      %v5215 = vlaneseq
      %v5216 = vshrl.u32 %v5215, 7
      %v5217 = vsub.s32 0, %v5216
      %v5218 = vrot.slane %v1223, %v5217
      %v5219 = vlaneseq
      %v5220 = vshrl.u32 %v5219, 7
      %v5221 = vsub.s32 0, %v5220
      %v5222 = vrot.slane %v1224, %v5221
      %v5223 = vmul.f32 %v5194, %v5187
      %v5224 = vmul.f32 %v5198, %v5188
      %v5225 = vmul.f32 %v5194, %v5189
      %v5226 = vmul.f32 %v5198, %v5190
      %v5227 = vmul.f32 %v5202, %v5187
      %v5228 = vmul.f32 %v5206, %v5188
      %v5229 = vmul.f32 %v5202, %v5189
      %v5230 = vmul.f32 %v5206, %v5190
      %v5231 = vmul.f32 %v5210, %v5187
      %v5232 = vmul.f32 %v5214, %v5188
      %v5233 = vmul.f32 %v5210, %v5189
      %v5234 = vmul.f32 %v5214, %v5190
      %v5235 = vmul.f32 %v5218, %v5187
      %v5236 = vmul.f32 %v5222, %v5188
      %v5237 = vmul.f32 %v5218, %v5189
      %v5238 = vmul.f32 %v5222, %v5190
      %v5239 = vadd.f32 %v5163, %v5223
      %v5240 = vadd.f32 %v5164, %v5224
      %v5241 = vadd.f32 %v5165, %v5225
      %v5242 = vadd.f32 %v5166, %v5226
      %v5243 = vadd.f32 %v5167, %v5227
      %v5244 = vadd.f32 %v5168, %v5228
      %v5245 = vadd.f32 %v5169, %v5229
      %v5246 = vadd.f32 %v5170, %v5230
      %v5247 = vadd.f32 %v5171, %v5231
      %v5248 = vadd.f32 %v5172, %v5232
      %v5249 = vadd.f32 %v5173, %v5233
      %v5250 = vadd.f32 %v5174, %v5234
      %v5251 = vadd.f32 %v5175, %v5235
      %v5252 = vadd.f32 %v5176, %v5236
      %v5253 = vadd.f32 %v5177, %v5237
      %v5254 = vadd.f32 %v5178, %v5238
      %5255 = vset.pattern.permute.xlu0 9
      %5256 = vperm.xlu0 %5255, %v1302
      %v5257 = vpop.permute.xlu0 %5256
      %5259 = vset.pattern.permute.xlu0 9
      %5260 = vperm.xlu0 %5259, %v1305
      %v5261 = vpop.permute.xlu0 %5260
      %v5263 = vadd.f32 %v4501, %v5257
      %v5264 = vadd.f32 %v4503, %v5257
      %v5265 = vadd.f32 %v4505, %v5261
      %v5266 = vadd.f32 %v4507, %v5261
      %v5267 = vlaneseq
      %v5268 = vshrl.u32 %v5267, 7
      %v5269 = vsub.s32 1, %v5268
      %v5270 = vrot.slane %v1211, %v5269
      %v5271 = vlaneseq
      %v5272 = vshrl.u32 %v5271, 7
      %v5273 = vsub.s32 1, %v5272
      %v5274 = vrot.slane %v1212, %v5273
      %v5275 = vlaneseq
      %v5276 = vshrl.u32 %v5275, 7
      %v5277 = vsub.s32 1, %v5276
      %v5278 = vrot.slane %v1215, %v5277
      %v5279 = vlaneseq
      %v5280 = vshrl.u32 %v5279, 7
      %v5281 = vsub.s32 1, %v5280
      %v5282 = vrot.slane %v1216, %v5281
      %v5283 = vlaneseq
      %v5284 = vshrl.u32 %v5283, 7
      %v5285 = vsub.s32 1, %v5284
      %v5286 = vrot.slane %v1219, %v5285
      %v5287 = vlaneseq
      %v5288 = vshrl.u32 %v5287, 7
      %v5289 = vsub.s32 1, %v5288
      %v5290 = vrot.slane %v1220, %v5289
      %v5291 = vlaneseq
      %v5292 = vshrl.u32 %v5291, 7
      %v5293 = vsub.s32 1, %v5292
      %v5294 = vrot.slane %v1223, %v5293
      %v5295 = vlaneseq
      %v5296 = vshrl.u32 %v5295, 7
      %v5297 = vsub.s32 1, %v5296
      %v5298 = vrot.slane %v1224, %v5297
      %v5299 = vmul.f32 %v5270, %v5263
      %v5300 = vmul.f32 %v5274, %v5264
      %v5301 = vmul.f32 %v5270, %v5265
      %v5302 = vmul.f32 %v5274, %v5266
      %v5303 = vmul.f32 %v5278, %v5263
      %v5304 = vmul.f32 %v5282, %v5264
      %v5305 = vmul.f32 %v5278, %v5265
      %v5306 = vmul.f32 %v5282, %v5266
      %v5307 = vmul.f32 %v5286, %v5263
      %v5308 = vmul.f32 %v5290, %v5264
      %v5309 = vmul.f32 %v5286, %v5265
      %v5310 = vmul.f32 %v5290, %v5266
      %v5311 = vmul.f32 %v5294, %v5263
      %v5312 = vmul.f32 %v5298, %v5264
      %v5313 = vmul.f32 %v5294, %v5265
      %v5314 = vmul.f32 %v5298, %v5266
      %v5315 = vadd.f32 %v5239, %v5299
      %v5316 = vadd.f32 %v5240, %v5300
      %v5317 = vadd.f32 %v5241, %v5301
      %v5318 = vadd.f32 %v5242, %v5302
      %v5319 = vadd.f32 %v5243, %v5303
      %v5320 = vadd.f32 %v5244, %v5304
      %v5321 = vadd.f32 %v5245, %v5305
      %v5322 = vadd.f32 %v5246, %v5306
      %v5323 = vadd.f32 %v5247, %v5307
      %v5324 = vadd.f32 %v5248, %v5308
      %v5325 = vadd.f32 %v5249, %v5309
      %v5326 = vadd.f32 %v5250, %v5310
      %v5327 = vadd.f32 %v5251, %v5311
      %v5328 = vadd.f32 %v5252, %v5312
      %v5329 = vadd.f32 %v5253, %v5313
      %v5330 = vadd.f32 %v5254, %v5314
      %5331 = vset.pattern.permute.xlu0 10
      %5332 = vperm.xlu0 %5331, %v1302
      %v5333 = vpop.permute.xlu0 %5332
      %5335 = vset.pattern.permute.xlu0 10
      %5336 = vperm.xlu0 %5335, %v1305
      %v5337 = vpop.permute.xlu0 %5336
      %v5339 = vadd.f32 %v4511, %v5333
      %v5340 = vadd.f32 %v4513, %v5333
      %v5341 = vadd.f32 %v4515, %v5337
      %v5342 = vadd.f32 %v4517, %v5337
      %v5343 = vlaneseq
      %v5344 = vshrl.u32 %v5343, 7
      %v5345 = vsub.s32 2, %v5344
      %v5346 = vrot.slane %v1211, %v5345
      %v5347 = vlaneseq
      %v5348 = vshrl.u32 %v5347, 7
      %v5349 = vsub.s32 2, %v5348
      %v5350 = vrot.slane %v1212, %v5349
      %v5351 = vlaneseq
      %v5352 = vshrl.u32 %v5351, 7
      %v5353 = vsub.s32 2, %v5352
      %v5354 = vrot.slane %v1215, %v5353
      %v5355 = vlaneseq
      %v5356 = vshrl.u32 %v5355, 7
      %v5357 = vsub.s32 2, %v5356
      %v5358 = vrot.slane %v1216, %v5357
      %v5359 = vlaneseq
      %v5360 = vshrl.u32 %v5359, 7
      %v5361 = vsub.s32 2, %v5360
      %v5362 = vrot.slane %v1219, %v5361
      %v5363 = vlaneseq
      %v5364 = vshrl.u32 %v5363, 7
      %v5365 = vsub.s32 2, %v5364
      %v5366 = vrot.slane %v1220, %v5365
      %v5367 = vlaneseq
      %v5368 = vshrl.u32 %v5367, 7
      %v5369 = vsub.s32 2, %v5368
      %v5370 = vrot.slane %v1223, %v5369
      %v5371 = vlaneseq
      %v5372 = vshrl.u32 %v5371, 7
      %v5373 = vsub.s32 2, %v5372
      %v5374 = vrot.slane %v1224, %v5373
      %v5375 = vmul.f32 %v5346, %v5339
      %v5376 = vmul.f32 %v5350, %v5340
      %v5377 = vmul.f32 %v5346, %v5341
      %v5378 = vmul.f32 %v5350, %v5342
      %v5379 = vmul.f32 %v5354, %v5339
      %v5380 = vmul.f32 %v5358, %v5340
      %v5381 = vmul.f32 %v5354, %v5341
      %v5382 = vmul.f32 %v5358, %v5342
      %v5383 = vmul.f32 %v5362, %v5339
      %v5384 = vmul.f32 %v5366, %v5340
      %v5385 = vmul.f32 %v5362, %v5341
      %v5386 = vmul.f32 %v5366, %v5342
      %v5387 = vmul.f32 %v5370, %v5339
      %v5388 = vmul.f32 %v5374, %v5340
      %v5389 = vmul.f32 %v5370, %v5341
      %v5390 = vmul.f32 %v5374, %v5342
      %v5391 = vadd.f32 %v5315, %v5375
      %v5392 = vadd.f32 %v5316, %v5376
      %v5393 = vadd.f32 %v5317, %v5377
      %v5394 = vadd.f32 %v5318, %v5378
      %v5395 = vadd.f32 %v5319, %v5379
      %v5396 = vadd.f32 %v5320, %v5380
      %v5397 = vadd.f32 %v5321, %v5381
      %v5398 = vadd.f32 %v5322, %v5382
      %v5399 = vadd.f32 %v5323, %v5383
      %v5400 = vadd.f32 %v5324, %v5384
      %v5401 = vadd.f32 %v5325, %v5385
      %v5402 = vadd.f32 %v5326, %v5386
      %v5403 = vadd.f32 %v5327, %v5387
      %v5404 = vadd.f32 %v5328, %v5388
      %v5405 = vadd.f32 %v5329, %v5389
      %v5406 = vadd.f32 %v5330, %v5390
      %5407 = vset.pattern.permute.xlu0 11
      %5408 = vperm.xlu0 %5407, %v1302
      %v5409 = vpop.permute.xlu0 %5408
      %5411 = vset.pattern.permute.xlu0 11
      %5412 = vperm.xlu0 %5411, %v1305
      %v5413 = vpop.permute.xlu0 %5412
      %v5415 = vadd.f32 %v4521, %v5409
      %v5416 = vadd.f32 %v4523, %v5409
      %v5417 = vadd.f32 %v4525, %v5413
      %v5418 = vadd.f32 %v4527, %v5413
      %v5419 = vlaneseq
      %v5420 = vshrl.u32 %v5419, 7
      %v5421 = vsub.s32 3, %v5420
      %v5422 = vrot.slane %v1211, %v5421
      %v5423 = vlaneseq
      %v5424 = vshrl.u32 %v5423, 7
      %v5425 = vsub.s32 3, %v5424
      %v5426 = vrot.slane %v1212, %v5425
      %v5427 = vlaneseq
      %v5428 = vshrl.u32 %v5427, 7
      %v5429 = vsub.s32 3, %v5428
      %v5430 = vrot.slane %v1215, %v5429
      %v5431 = vlaneseq
      %v5432 = vshrl.u32 %v5431, 7
      %v5433 = vsub.s32 3, %v5432
      %v5434 = vrot.slane %v1216, %v5433
      %v5435 = vlaneseq
      %v5436 = vshrl.u32 %v5435, 7
      %v5437 = vsub.s32 3, %v5436
      %v5438 = vrot.slane %v1219, %v5437
      %v5439 = vlaneseq
      %v5440 = vshrl.u32 %v5439, 7
      %v5441 = vsub.s32 3, %v5440
      %v5442 = vrot.slane %v1220, %v5441
      %v5443 = vlaneseq
      %v5444 = vshrl.u32 %v5443, 7
      %v5445 = vsub.s32 3, %v5444
      %v5446 = vrot.slane %v1223, %v5445
      %v5447 = vlaneseq
      %v5448 = vshrl.u32 %v5447, 7
      %v5449 = vsub.s32 3, %v5448
      %v5450 = vrot.slane %v1224, %v5449
      %v5451 = vmul.f32 %v5422, %v5415
      %v5452 = vmul.f32 %v5426, %v5416
      %v5453 = vmul.f32 %v5422, %v5417
      %v5454 = vmul.f32 %v5426, %v5418
      %v5455 = vmul.f32 %v5430, %v5415
      %v5456 = vmul.f32 %v5434, %v5416
      %v5457 = vmul.f32 %v5430, %v5417
      %v5458 = vmul.f32 %v5434, %v5418
      %v5459 = vmul.f32 %v5438, %v5415
      %v5460 = vmul.f32 %v5442, %v5416
      %v5461 = vmul.f32 %v5438, %v5417
      %v5462 = vmul.f32 %v5442, %v5418
      %v5463 = vmul.f32 %v5446, %v5415
      %v5464 = vmul.f32 %v5450, %v5416
      %v5465 = vmul.f32 %v5446, %v5417
      %v5466 = vmul.f32 %v5450, %v5418
      %v5467 = vadd.f32 %v5391, %v5451
      %v5468 = vadd.f32 %v5392, %v5452
      %v5469 = vadd.f32 %v5393, %v5453
      %v5470 = vadd.f32 %v5394, %v5454
      %v5471 = vadd.f32 %v5395, %v5455
      %v5472 = vadd.f32 %v5396, %v5456
      %v5473 = vadd.f32 %v5397, %v5457
      %v5474 = vadd.f32 %v5398, %v5458
      %v5475 = vadd.f32 %v5399, %v5459
      %v5476 = vadd.f32 %v5400, %v5460
      %v5477 = vadd.f32 %v5401, %v5461
      %v5478 = vadd.f32 %v5402, %v5462
      %v5479 = vadd.f32 %v5403, %v5463
      %v5480 = vadd.f32 %v5404, %v5464
      %v5481 = vadd.f32 %v5405, %v5465
      %v5482 = vadd.f32 %v5406, %v5466
      %5483 = vset.pattern.permute.xlu0 12
      %5484 = vperm.xlu0 %5483, %v1302
      %v5485 = vpop.permute.xlu0 %5484
      %5487 = vset.pattern.permute.xlu0 12
      %5488 = vperm.xlu0 %5487, %v1305
      %v5489 = vpop.permute.xlu0 %5488
      %v5491 = vadd.f32 %v4531, %v5485
      %v5492 = vadd.f32 %v4533, %v5485
      %v5493 = vadd.f32 %v4535, %v5489
      %v5494 = vadd.f32 %v4537, %v5489
      %v5495 = vlaneseq
      %v5496 = vshrl.u32 %v5495, 7
      %v5497 = vsub.s32 4, %v5496
      %v5498 = vrot.slane %v1211, %v5497
      %v5499 = vlaneseq
      %v5500 = vshrl.u32 %v5499, 7
      %v5501 = vsub.s32 4, %v5500
      %v5502 = vrot.slane %v1212, %v5501
      %v5503 = vlaneseq
      %v5504 = vshrl.u32 %v5503, 7
      %v5505 = vsub.s32 4, %v5504
      %v5506 = vrot.slane %v1215, %v5505
      %v5507 = vlaneseq
      %v5508 = vshrl.u32 %v5507, 7
      %v5509 = vsub.s32 4, %v5508
      %v5510 = vrot.slane %v1216, %v5509
      %v5511 = vlaneseq
      %v5512 = vshrl.u32 %v5511, 7
      %v5513 = vsub.s32 4, %v5512
      %v5514 = vrot.slane %v1219, %v5513
      %v5515 = vlaneseq
      %v5516 = vshrl.u32 %v5515, 7
      %v5517 = vsub.s32 4, %v5516
      %v5518 = vrot.slane %v1220, %v5517
      %v5519 = vlaneseq
      %v5520 = vshrl.u32 %v5519, 7
      %v5521 = vsub.s32 4, %v5520
      %v5522 = vrot.slane %v1223, %v5521
      %v5523 = vlaneseq
      %v5524 = vshrl.u32 %v5523, 7
      %v5525 = vsub.s32 4, %v5524
      %v5526 = vrot.slane %v1224, %v5525
      %v5527 = vmul.f32 %v5498, %v5491
      %v5528 = vmul.f32 %v5502, %v5492
      %v5529 = vmul.f32 %v5498, %v5493
      %v5530 = vmul.f32 %v5502, %v5494
      %v5531 = vmul.f32 %v5506, %v5491
      %v5532 = vmul.f32 %v5510, %v5492
      %v5533 = vmul.f32 %v5506, %v5493
      %v5534 = vmul.f32 %v5510, %v5494
      %v5535 = vmul.f32 %v5514, %v5491
      %v5536 = vmul.f32 %v5518, %v5492
      %v5537 = vmul.f32 %v5514, %v5493
      %v5538 = vmul.f32 %v5518, %v5494
      %v5539 = vmul.f32 %v5522, %v5491
      %v5540 = vmul.f32 %v5526, %v5492
      %v5541 = vmul.f32 %v5522, %v5493
      %v5542 = vmul.f32 %v5526, %v5494
      %v5543 = vadd.f32 %v5467, %v5527
      %v5544 = vadd.f32 %v5468, %v5528
      %v5545 = vadd.f32 %v5469, %v5529
      %v5546 = vadd.f32 %v5470, %v5530
      %v5547 = vadd.f32 %v5471, %v5531
      %v5548 = vadd.f32 %v5472, %v5532
      %v5549 = vadd.f32 %v5473, %v5533
      %v5550 = vadd.f32 %v5474, %v5534
      %v5551 = vadd.f32 %v5475, %v5535
      %v5552 = vadd.f32 %v5476, %v5536
      %v5553 = vadd.f32 %v5477, %v5537
      %v5554 = vadd.f32 %v5478, %v5538
      %v5555 = vadd.f32 %v5479, %v5539
      %v5556 = vadd.f32 %v5480, %v5540
      %v5557 = vadd.f32 %v5481, %v5541
      %v5558 = vadd.f32 %v5482, %v5542
      %5559 = vset.pattern.permute.xlu0 13
      %5560 = vperm.xlu0 %5559, %v1302
      %v5561 = vpop.permute.xlu0 %5560
      %5563 = vset.pattern.permute.xlu0 13
      %5564 = vperm.xlu0 %5563, %v1305
      %v5565 = vpop.permute.xlu0 %5564
      %v5567 = vadd.f32 %v4541, %v5561
      %v5568 = vadd.f32 %v4543, %v5561
      %v5569 = vadd.f32 %v4545, %v5565
      %v5570 = vadd.f32 %v4547, %v5565
      %v5571 = vlaneseq
      %v5572 = vshrl.u32 %v5571, 7
      %v5573 = vsub.s32 5, %v5572
      %v5574 = vrot.slane %v1211, %v5573
      %v5575 = vlaneseq
      %v5576 = vshrl.u32 %v5575, 7
      %v5577 = vsub.s32 5, %v5576
      %v5578 = vrot.slane %v1212, %v5577
      %v5579 = vlaneseq
      %v5580 = vshrl.u32 %v5579, 7
      %v5581 = vsub.s32 5, %v5580
      %v5582 = vrot.slane %v1215, %v5581
      %v5583 = vlaneseq
      %v5584 = vshrl.u32 %v5583, 7
      %v5585 = vsub.s32 5, %v5584
      %v5586 = vrot.slane %v1216, %v5585
      %v5587 = vlaneseq
      %v5588 = vshrl.u32 %v5587, 7
      %v5589 = vsub.s32 5, %v5588
      %v5590 = vrot.slane %v1219, %v5589
      %v5591 = vlaneseq
      %v5592 = vshrl.u32 %v5591, 7
      %v5593 = vsub.s32 5, %v5592
      %v5594 = vrot.slane %v1220, %v5593
      %v5595 = vlaneseq
      %v5596 = vshrl.u32 %v5595, 7
      %v5597 = vsub.s32 5, %v5596
      %v5598 = vrot.slane %v1223, %v5597
      %v5599 = vlaneseq
      %v5600 = vshrl.u32 %v5599, 7
      %v5601 = vsub.s32 5, %v5600
      %v5602 = vrot.slane %v1224, %v5601
      %v5603 = vmul.f32 %v5574, %v5567
      %v5604 = vmul.f32 %v5578, %v5568
      %v5605 = vmul.f32 %v5574, %v5569
      %v5606 = vmul.f32 %v5578, %v5570
      %v5607 = vmul.f32 %v5582, %v5567
      %v5608 = vmul.f32 %v5586, %v5568
      %v5609 = vmul.f32 %v5582, %v5569
      %v5610 = vmul.f32 %v5586, %v5570
      %v5611 = vmul.f32 %v5590, %v5567
      %v5612 = vmul.f32 %v5594, %v5568
      %v5613 = vmul.f32 %v5590, %v5569
      %v5614 = vmul.f32 %v5594, %v5570
      %v5615 = vmul.f32 %v5598, %v5567
      %v5616 = vmul.f32 %v5602, %v5568
      %v5617 = vmul.f32 %v5598, %v5569
      %v5618 = vmul.f32 %v5602, %v5570
      %v5619 = vadd.f32 %v5543, %v5603
      %v5620 = vadd.f32 %v5544, %v5604
      %v5621 = vadd.f32 %v5545, %v5605
      %v5622 = vadd.f32 %v5546, %v5606
      %v5623 = vadd.f32 %v5547, %v5607
      %v5624 = vadd.f32 %v5548, %v5608
      %v5625 = vadd.f32 %v5549, %v5609
      %v5626 = vadd.f32 %v5550, %v5610
      %v5627 = vadd.f32 %v5551, %v5611
      %v5628 = vadd.f32 %v5552, %v5612
      %v5629 = vadd.f32 %v5553, %v5613
      %v5630 = vadd.f32 %v5554, %v5614
      %v5631 = vadd.f32 %v5555, %v5615
      %v5632 = vadd.f32 %v5556, %v5616
      %v5633 = vadd.f32 %v5557, %v5617
      %v5634 = vadd.f32 %v5558, %v5618
      %5635 = vset.pattern.permute.xlu0 14
      %5636 = vperm.xlu0 %5635, %v1302
      %v5637 = vpop.permute.xlu0 %5636
      %5639 = vset.pattern.permute.xlu0 14
      %5640 = vperm.xlu0 %5639, %v1305
      %v5641 = vpop.permute.xlu0 %5640
      %v5643 = vadd.f32 %v4551, %v5637
      %v5644 = vadd.f32 %v4553, %v5637
      %v5645 = vadd.f32 %v4555, %v5641
      %v5646 = vadd.f32 %v4557, %v5641
      %v5647 = vlaneseq
      %v5648 = vshrl.u32 %v5647, 7
      %v5649 = vsub.s32 6, %v5648
      %v5650 = vrot.slane %v1211, %v5649
      %v5651 = vlaneseq
      %v5652 = vshrl.u32 %v5651, 7
      %v5653 = vsub.s32 6, %v5652
      %v5654 = vrot.slane %v1212, %v5653
      %v5655 = vlaneseq
      %v5656 = vshrl.u32 %v5655, 7
      %v5657 = vsub.s32 6, %v5656
      %v5658 = vrot.slane %v1215, %v5657
      %v5659 = vlaneseq
      %v5660 = vshrl.u32 %v5659, 7
      %v5661 = vsub.s32 6, %v5660
      %v5662 = vrot.slane %v1216, %v5661
      %v5663 = vlaneseq
      %v5664 = vshrl.u32 %v5663, 7
      %v5665 = vsub.s32 6, %v5664
      %v5666 = vrot.slane %v1219, %v5665
      %v5667 = vlaneseq
      %v5668 = vshrl.u32 %v5667, 7
      %v5669 = vsub.s32 6, %v5668
      %v5670 = vrot.slane %v1220, %v5669
      %v5671 = vlaneseq
      %v5672 = vshrl.u32 %v5671, 7
      %v5673 = vsub.s32 6, %v5672
      %v5674 = vrot.slane %v1223, %v5673
      %v5675 = vlaneseq
      %v5676 = vshrl.u32 %v5675, 7
      %v5677 = vsub.s32 6, %v5676
      %v5678 = vrot.slane %v1224, %v5677
      %v5679 = vmul.f32 %v5650, %v5643
      %v5680 = vmul.f32 %v5654, %v5644
      %v5681 = vmul.f32 %v5650, %v5645
      %v5682 = vmul.f32 %v5654, %v5646
      %v5683 = vmul.f32 %v5658, %v5643
      %v5684 = vmul.f32 %v5662, %v5644
      %v5685 = vmul.f32 %v5658, %v5645
      %v5686 = vmul.f32 %v5662, %v5646
      %v5687 = vmul.f32 %v5666, %v5643
      %v5688 = vmul.f32 %v5670, %v5644
      %v5689 = vmul.f32 %v5666, %v5645
      %v5690 = vmul.f32 %v5670, %v5646
      %v5691 = vmul.f32 %v5674, %v5643
      %v5692 = vmul.f32 %v5678, %v5644
      %v5693 = vmul.f32 %v5674, %v5645
      %v5694 = vmul.f32 %v5678, %v5646
      %v5695 = vadd.f32 %v5619, %v5679
      %v5696 = vadd.f32 %v5620, %v5680
      %v5697 = vadd.f32 %v5621, %v5681
      %v5698 = vadd.f32 %v5622, %v5682
      %v5699 = vadd.f32 %v5623, %v5683
      %v5700 = vadd.f32 %v5624, %v5684
      %v5701 = vadd.f32 %v5625, %v5685
      %v5702 = vadd.f32 %v5626, %v5686
      %v5703 = vadd.f32 %v5627, %v5687
      %v5704 = vadd.f32 %v5628, %v5688
      %v5705 = vadd.f32 %v5629, %v5689
      %v5706 = vadd.f32 %v5630, %v5690
      %v5707 = vadd.f32 %v5631, %v5691
      %v5708 = vadd.f32 %v5632, %v5692
      %v5709 = vadd.f32 %v5633, %v5693
      %v5710 = vadd.f32 %v5634, %v5694
      %5711 = vset.pattern.permute.xlu0 15
      %5712 = vperm.xlu0 %5711, %v1302
      %v5713 = vpop.permute.xlu0 %5712
      %5715 = vset.pattern.permute.xlu0 15
      %5716 = vperm.xlu0 %5715, %v1305
      %v5717 = vpop.permute.xlu0 %5716
      %v5719 = vadd.f32 %v4561, %v5713
      %v5720 = vadd.f32 %v4563, %v5713
      %v5721 = vadd.f32 %v4565, %v5717
      %v5722 = vadd.f32 %v4567, %v5717
      %v5723 = vlaneseq
      %v5724 = vshrl.u32 %v5723, 7
      %v5725 = vsub.s32 7, %v5724
      %v5726 = vrot.slane %v1211, %v5725
      %v5727 = vlaneseq
      %v5728 = vshrl.u32 %v5727, 7
      %v5729 = vsub.s32 7, %v5728
      %v5730 = vrot.slane %v1212, %v5729
      %v5731 = vlaneseq
      %v5732 = vshrl.u32 %v5731, 7
      %v5733 = vsub.s32 7, %v5732
      %v5734 = vrot.slane %v1215, %v5733
      %v5735 = vlaneseq
      %v5736 = vshrl.u32 %v5735, 7
      %v5737 = vsub.s32 7, %v5736
      %v5738 = vrot.slane %v1216, %v5737
      %v5739 = vlaneseq
      %v5740 = vshrl.u32 %v5739, 7
      %v5741 = vsub.s32 7, %v5740
      %v5742 = vrot.slane %v1219, %v5741
      %v5743 = vlaneseq
      %v5744 = vshrl.u32 %v5743, 7
      %v5745 = vsub.s32 7, %v5744
      %v5746 = vrot.slane %v1220, %v5745
      %v5747 = vlaneseq
      %v5748 = vshrl.u32 %v5747, 7
      %v5749 = vsub.s32 7, %v5748
      %v5750 = vrot.slane %v1223, %v5749
      %v5751 = vlaneseq
      %v5752 = vshrl.u32 %v5751, 7
      %v5753 = vsub.s32 7, %v5752
      %v5754 = vrot.slane %v1224, %v5753
      %v5755 = vmul.f32 %v5726, %v5719
      %v5756 = vmul.f32 %v5730, %v5720
      %v5757 = vmul.f32 %v5726, %v5721
      %v5758 = vmul.f32 %v5730, %v5722
      %v5759 = vmul.f32 %v5734, %v5719
      %v5760 = vmul.f32 %v5738, %v5720
      %v5761 = vmul.f32 %v5734, %v5721
      %v5762 = vmul.f32 %v5738, %v5722
      %v5763 = vmul.f32 %v5742, %v5719
      %v5764 = vmul.f32 %v5746, %v5720
      %v5765 = vmul.f32 %v5742, %v5721
      %v5766 = vmul.f32 %v5746, %v5722
      %v5767 = vmul.f32 %v5750, %v5719
      %v5768 = vmul.f32 %v5754, %v5720
      %v5769 = vmul.f32 %v5750, %v5721
      %v5770 = vmul.f32 %v5754, %v5722
      %v5771 = vadd.f32 %v5695, %v5755
      %v5772 = vadd.f32 %v5696, %v5756
      %v5773 = vadd.f32 %v5697, %v5757
      %v5774 = vadd.f32 %v5698, %v5758
      %v5775 = vadd.f32 %v5699, %v5759
      %v5776 = vadd.f32 %v5700, %v5760
      %v5777 = vadd.f32 %v5701, %v5761
      %v5778 = vadd.f32 %v5702, %v5762
      %v5779 = vadd.f32 %v5703, %v5763
      %v5780 = vadd.f32 %v5704, %v5764
      %v5781 = vadd.f32 %v5705, %v5765
      %v5782 = vadd.f32 %v5706, %v5766
      %v5783 = vadd.f32 %v5707, %v5767
      %v5784 = vadd.f32 %v5708, %v5768
      %v5785 = vadd.f32 %v5709, %v5769
      %v5786 = vadd.f32 %v5710, %v5770
      %5787 = vst [vmem:[%s278] sm:$0xff] %v5771
      %5788 = vst [vmem:[%s278 + $0x8] sm:$0xff] %v5772
      %5789 = vst [vmem:[%s278 + $0x10] sm:$0xff] %v5773
      %5790 = vst [vmem:[%s278 + $0x18] sm:$0xff] %v5774
      %5791 = vst [vmem:[%s278 + $0x20] sm:$0xff] %v5775
      %5792 = vst [vmem:[%s278 + $0x28] sm:$0xff] %v5776
      %5793 = vst [vmem:[%s278 + $0x30] sm:$0xff] %v5777
      %5794 = vst [vmem:[%s278 + $0x38] sm:$0xff] %v5778
      %5795 = vst [vmem:[%s278 + $0x40] sm:$0xff] %v5779
      %5796 = vst [vmem:[%s278 + $0x48] sm:$0xff] %v5780
      %5797 = vst [vmem:[%s278 + $0x50] sm:$0xff] %v5781
      %5798 = vst [vmem:[%s278 + $0x58] sm:$0xff] %v5782
      %5799 = vst [vmem:[%s278 + $0x60] sm:$0xff] %v5783
      %5800 = vst [vmem:[%s278 + $0x68] sm:$0xff] %v5784
      %5801 = vst [vmem:[%s278 + $0x70] sm:$0xff] %v5785
      %5802 = vst [vmem:[%s278 + $0x78] sm:$0xff] %v5786
      %p5803 = scmp.lt.s32.totalorder %s18, 1
      %s5804 = scalar_select %p5803, %s18, 1
      %s5805 = smul.addr %s5804, 16
      %s5806 = smul.addr %s5805, 8
      %s5807 = scalar_lea.vmem %s7, %s5806
      // Predicated region
      $region49: #{local_sa_block.1} parent=47 // pred_check
        %p5808 = pneg %p188
      $region50: #{local_sa_block.1} parent=47 // pred_check_branch
        %5810 = sbr.rel (%p5808) target = $region52
      $region51: #{local_sa_block.1} parent=47 // pred_region
        _
      $region52: #{local_sa_block.1} parent=47 // pred_fallthru
        _
    $region48: #{local_sa_block.1} parent=5 // pred_fallthru
      _
    %p5811 = scmp.le.s32.totalorder 2, %s13
    // Predicated region
    $region53: #{local_sa_block.1} parent=5 // pred_check
      %p5812 = pneg %p5811
    $region54: #{local_sa_block.1} parent=5 // pred_check_branch
      %5814 = sbr.rel (%p5812) target = $region56
    $region55: #{local_sa_block.1} parent=5 // pred_region
      %s5815 = ssub.s32 %s13, 2
      // Predicated region
      $region57: #{local_sa_block.1} parent=55 // pred_check
        %p5816 = pneg %p194
      $region58: #{local_sa_block.1} parent=55 // pred_check_branch
        %5818 = sbr.rel (%p5816) target = $region60
      $region59: #{local_sa_block.1} parent=55 // pred_region
        %p5819 = scmp.lt.s32.totalorder %s19, 1
        %s5820 = scalar_select %p5819, %s19, 1
        %s5821 = smul.addr %s5820, 16
        %s5822 = smul.addr %s5821, 8
        %s5823 = scalar_lea.vmem %s7, %s5822
      $region60: #{local_sa_block.1} parent=55 // pred_fallthru
        _
    $region56: #{local_sa_block.1} parent=5 // pred_fallthru
      _
  $region6: #{local_sa_block.1} parent=0 // loop_footer
    %s17 = sadd.s32 1, %s13
  $region7: #{local_sa_block.1} parent=0 // loop_footer_branch
    %12 = sbr.rel target = $region3
  $region8: #{local_sa_block.1} parent=0 // loop_exit
    _

</llo_original>
